<compile_context>
chip_gen: v7x
topology: tpu7x:2x2x1
jax: 0.10.0
libtpu: 0.0.40
codegen_flags: <defaults>
</compile_context>

<pallas_src>
import functools

import jax
import jax.numpy as jnp
from jax.experimental import pallas as pl
from jax.experimental.pallas import tpu as pltpu

LANE = 128  # TPU lane width; channel dims are padded to a multiple of this


def _round_up(x, m):
    return (x + m - 1) // m * m


# --------------------------------------------------------------------------- conv kernel
def _conv_bn_stats_kernel(x_ref, pscale_ref, pshift_ref, w_ref, b_ref,
                          y_ref, s_ref, ss_ref,
                          xp_ref, patches_ref, *, apply_prologue):
    # x_ref      : (1, H, W, Cin)      input tile (one batch element), channels padded
    # pscale_ref : (1, Cin)            fused BN scale of the *previous* layer (or 1s)
    # pshift_ref : (1, Cin)            fused BN shift of the *previous* layer (or 0s)
    # w_ref      : (9*Cin, Cout)       conv weight, im2col-reshaped (tap-major: ky,kx,cin)
    # b_ref      : (1, Cout)           conv bias
    # y_ref      : (1, H, W, Cout)     conv+bias output
    # s_ref,ss_ref: (1, 1, Cout)       per-grid-step partial sum / sum-of-squares
    # xp_ref     : VMEM (H+2, W+2, Cin) zero-halo staging scratch
    # patches_ref: VMEM (H*W, 9*Cin)   im2col scratch
    H, W, Cout = y_ref.shape[1], y_ref.shape[2], y_ref.shape[3]
    Cin = x_ref.shape[3]

    x = x_ref[0]                                           # (H, W, Cin), f32
    if apply_prologue:
        # previous layer's BatchNorm + ReLU, fused into this conv's input path
        x = jnp.maximum(x * pscale_ref[...] + pshift_ref[...], 0.0)

    # 1-pixel zero halo built in VMEM (no HBM-side padded copy). Border re-zeroed
    # every step so it stays correct if the grid is split across cores.
    xp_ref[0:1, :, :] = jnp.zeros((1, W + 2, Cin), jnp.float32)
    xp_ref[H + 1:H + 2, :, :] = jnp.zeros((1, W + 2, Cin), jnp.float32)
    xp_ref[:, 0:1, :] = jnp.zeros((H + 2, 1, Cin), jnp.float32)
    xp_ref[:, W + 1:W + 2, :] = jnp.zeros((H + 2, 1, Cin), jnp.float32)
    xp_ref[1:H + 1, 1:W + 1, :] = x

    # im2col: 9 lane-aligned (Cin is a multiple of 128) column blocks -> single matmul.
    for t in range(9):                                     # fully unrolled, static offsets
        dy, dx = t // 3, t % 3
        patches_ref[:, t * Cin:(t + 1) * Cin] = (
            xp_ref[dy:dy + H, dx:dx + W, :].reshape(H * W, Cin))

    y = jnp.dot(patches_ref[...], w_ref[...],
                preferred_element_type=jnp.float32)        # (H*W, Cout), one MXU call
    y = y + b_ref[...]

    y_ref[0] = y.reshape(H, W, Cout)
    # Per-step partial batch statistics; reduced outside the kernel (keeps the grid
    # axis fully parallel instead of a serialized resident accumulator).
    s_ref[0] = jnp.sum(y, axis=0, keepdims=True)
    ss_ref[0] = jnp.sum(y * y, axis=0, keepdims=True)


def conv3x3_bn_stats(x, w_mat, b, pre_scale, pre_shift, *, apply_prologue):
    # x: (N, H, W, Cin_pad) f32; w_mat: (9*Cin_pad, Cout_pad); b/pre_*: (1, C_pad)
    N, H, W, Cin = x.shape
    Cout = w_mat.shape[1]
    kernel = functools.partial(_conv_bn_stats_kernel, apply_prologue=apply_prologue)
    flops = 2 * N * H * W * w_mat.shape[0] * Cout
    bytes_accessed = 4 * (x.size + w_mat.size + N * H * W * Cout)
    return pl.pallas_call(
        kernel,
        out_shape=(jax.ShapeDtypeStruct((N, H, W, Cout), jnp.float32),
                   jax.ShapeDtypeStruct((N, 1, Cout), jnp.float32),
                   jax.ShapeDtypeStruct((N, 1, Cout), jnp.float32)),
        grid=(N,),
        in_specs=[
            pl.BlockSpec((1, H, W, Cin), lambda n: (n, 0, 0, 0)),
            pl.BlockSpec((1, Cin), lambda n: (0, 0)),
            pl.BlockSpec((1, Cin), lambda n: (0, 0)),
            pl.BlockSpec((9 * Cin, Cout), lambda n: (0, 0)),
            pl.BlockSpec((1, Cout), lambda n: (0, 0)),
        ],
        out_specs=(
            pl.BlockSpec((1, H, W, Cout), lambda n: (n, 0, 0, 0)),
            pl.BlockSpec((1, 1, Cout), lambda n: (n, 0, 0)),
            pl.BlockSpec((1, 1, Cout), lambda n: (n, 0, 0)),
        ),
        scratch_shapes=[
            pltpu.VMEM((H + 2, W + 2, Cin), jnp.float32),   # halo staging
            pltpu.VMEM((H * W, 9 * Cin), jnp.float32),      # im2col patches
        ],
        compiler_params=pltpu.CompilerParams(
            dimension_semantics=("parallel",)),
        cost_estimate=pl.CostEstimate(flops=flops, transcendentals=0,
                                      bytes_accessed=bytes_accessed),
    )(x, pre_scale, pre_shift, w_mat, b)


# --------------------------------------------------------------- final BatchNorm + ReLU
def _bn_relu_kernel(y_ref, scale_ref, shift_ref, o_ref):
    o_ref[0] = jnp.maximum(y_ref[0] * scale_ref[...] + shift_ref[...], 0.0)


def bn_relu(y, scale, shift):
    N, H, W, C = y.shape
    return pl.pallas_call(
        _bn_relu_kernel,
        out_shape=jax.ShapeDtypeStruct((N, H, W, C), jnp.float32),
        grid=(N,),
        in_specs=[pl.BlockSpec((1, H, W, C), lambda n: (n, 0, 0, 0)),
                  pl.BlockSpec((1, C), lambda n: (0, 0)),
                  pl.BlockSpec((1, C), lambda n: (0, 0))],
        out_specs=pl.BlockSpec((1, H, W, C), lambda n: (n, 0, 0, 0)),
        compiler_params=pltpu.CompilerParams(dimension_semantics=("parallel",)),
    )(y, scale, shift)


# ------------------------------------------------------------------------- host-side glue
def _bn_scale_shift(s_partial, ss_partial, count, gamma, beta, eps):
    # nn.BatchNorm2d train mode: batch mean, biased batch variance.
    s = jnp.sum(s_partial, axis=(0, 1))
    ss = jnp.sum(ss_partial, axis=(0, 1))
    mean = s / count
    var = jnp.maximum(ss / count - mean * mean, 0.0)   # cancellation guard
    scale = gamma * jax.lax.rsqrt(var + eps)
    shift = beta - mean * scale
    return scale.reshape(1, -1), shift.reshape(1, -1)


def _pad_params(params, cin, cout, cp_in, cp_out):
    def pad_w(w, ci, co, cpi, cpo):
        wp = jnp.zeros((3, 3, cpi, cpo), jnp.float32)
        wp = wp.at[:, :, :ci, :co].set(w.astype(jnp.float32))
        return wp.reshape(9 * cpi, cpo)          # tap order (ky, kx, cin) matches kernel
    def pad_v(v, cp):
        return jnp.pad(v.astype(jnp.float32), (0, cp - v.shape[0]))
    return {
        "w1": pad_w(params["w1"], cin, cout, cp_in, cp_out),
        "b1": pad_v(params["b1"], cp_out).reshape(1, cp_out),
        "g1": pad_v(params["g1"], cp_out),
        "be1": pad_v(params["be1"], cp_out),
        "w2": pad_w(params["w2"], cout, cout, cp_out, cp_out),
        "b2": pad_v(params["b2"], cp_out).reshape(1, cp_out),
        "g2": pad_v(params["g2"], cp_out),
        "be2": pad_v(params["be2"], cp_out),
    }


def double_conv_forward(x_nchw, params, eps=1e-5):
    # (N, Cin, H, W) -> (N, Cout, H, W), same math as torch DoubleConv.forward (train mode)
    N, Cin, H, W = x_nchw.shape
    Cout = params["w1"].shape[-1]
    cp_in, cp_out = _round_up(Cin, LANE), _round_up(Cout, LANE)
    p = _pad_params(params, Cin, Cout, cp_in, cp_out)

    # NCHW -> NHWC; pad channels to lane width. Padded channels carry exact zeros
    # end-to-end (zero weights/bias/gamma/beta keep them zero through BN+ReLU).
    x = jnp.transpose(x_nchw, (0, 2, 3, 1)).astype(jnp.float32)
    x = jnp.pad(x, ((0, 0), (0, 0), (0, 0), (0, cp_in - Cin)))

    count = float(N * H * W)
    ident_scale = jnp.ones((1, cp_in), jnp.float32)
    ident_shift = jnp.zeros((1, cp_in), jnp.float32)

    # conv1 (+ partial batch stats)
    y1, s1, ss1 = conv3x3_bn_stats(x, p["w1"], p["b1"], ident_scale, ident_shift,
                                   apply_prologue=False)
    sc1, sh1 = _bn_scale_shift(s1, ss1, count, p["g1"], p["be1"], eps)

    # conv2 with BN1 + ReLU fused into its input path
    y2, s2, ss2 = conv3x3_bn_stats(y1, p["w2"], p["b2"], sc1, sh1,
                                   apply_prologue=True)
    sc2, sh2 = _bn_scale_shift(s2, ss2, count, p["g2"], p["be2"], eps)

    out = bn_relu(y2, sc2, sh2)                    # final BN2 + ReLU
    return jnp.transpose(out[..., :Cout], (0, 3, 1, 2))


double_conv_forward = jax.jit(double_conv_forward)


# --------------------------------------------------------------------- pure-JAX reference
def _reference_double_conv(x_nchw, params, eps=1e-5):
    def conv_bn_relu(x, w, b, g, be):
        y = jax.lax.conv_general_dilated(
            x, w, window_strides=(1, 1), padding="SAME",
            dimension_numbers=("NCHW", "HWIO", "NCHW"),
            precision=jax.lax.Precision.HIGHEST)
        y = y + b.reshape(1, -1, 1, 1)
        mean = jnp.mean(y, axis=(0, 2, 3), keepdims=True)
        var = jnp.mean(jnp.square(y - mean), axis=(0, 2, 3), keepdims=True)
        yn = (y - mean) * jax.lax.rsqrt(var + eps)
        return jnp.maximum(yn * g.reshape(1, -1, 1, 1) + be.reshape(1, -1, 1, 1), 0.0)
    x = conv_bn_relu(x_nchw, params["w1"], params["b1"], params["g1"], params["be1"])
    x = conv_bn_relu(x, params["w2"], params["b2"], params["g2"], params["be2"])
    return x


if __name__ == "__main__":
    key = jax.random.PRNGKey(0)
    N, Cin, Cout, H, W = 2, 4, 8, 16, 16
    ks = jax.random.split(key, 5)
    x = jax.random.normal(ks[0], (N, Cin, H, W), dtype=jnp.float32)

    # Deterministic synthetic parameters (shapes from DoubleConv(4, 8)); weights in HWIO.
    params = {
        "w1": 0.1 * jax.random.normal(ks[1], (3, 3, Cin, Cout), jnp.float32),
        "b1": 0.05 * jax.random.normal(ks[2], (Cout,), jnp.float32),
        "g1": jnp.ones((Cout,), jnp.float32),     # BatchNorm2d weight init = 1
        "be1": jnp.zeros((Cout,), jnp.float32),   # BatchNorm2d bias   init = 0
        "w2": 0.1 * jax.random.normal(ks[3], (3, 3, Cout, Cout), jnp.float32),
        "b2": 0.05 * jax.random.normal(ks[4], (Cout,), jnp.float32),
        "g2": jnp.ones((Cout,), jnp.float32),
        "be2": jnp.zeros((Cout,), jnp.float32),
    }

    out = double_conv_forward(x, params)
    jax.block_until_ready(out)

    assert out.shape == (N, Cout, H, W), out.shape
    assert bool(jnp.all(out >= 0.0))               # ReLU output
    ref = _reference_double_conv(x, params)
    max_err = float(jnp.max(jnp.abs(out - ref)))
    assert max_err < 5e-2, f"max abs err vs reference: {max_err}"
    print("KERNEL_OK")
</pallas_src>

<mosaic_0001>
module attributes {stable_mosaic.version = 11 : i64} {
  func.func @_conv_bn_stats_kernel(%arg0: i32, %arg1: memref<1x16x16x128xf32, #tpu.memory_space<vmem>>, %arg2: memref<1x128xf32, #tpu.memory_space<vmem>>, %arg3: memref<1x128xf32, #tpu.memory_space<vmem>>, %arg4: memref<1152x128xf32, #tpu.memory_space<vmem>>, %arg5: memref<1x128xf32, #tpu.memory_space<vmem>>, %arg6: memref<1x16x16x128xf32, #tpu.memory_space<vmem>>, %arg7: memref<1x1x128xf32, #tpu.memory_space<vmem>>, %arg8: memref<1x1x128xf32, #tpu.memory_space<vmem>>, %arg9: memref<18x18x128xf32, #tpu.memory_space<vmem>>, %arg10: memref<256x1152xf32, #tpu.memory_space<vmem>>) attributes {dimension_semantics = [#tpu.dimension_semantics<parallel>], iteration_bounds = array<i64: 2>, scalar_prefetch = 0 : i64, scratch_operands = 2 : i64, tpu.core_type = #tpu.core_type<tc>, window_params = [{transform_indices = @transform_0, window_bounds = array<i64: 1, 16, 16, 128>}, {pipeline_mode = #tpu.pipeline_mode<synchronous>, transform_indices = @transform_1, window_bounds = array<i64: 1, 128>}, {pipeline_mode = #tpu.pipeline_mode<synchronous>, transform_indices = @transform_2, window_bounds = array<i64: 1, 128>}, {pipeline_mode = #tpu.pipeline_mode<synchronous>, transform_indices = @transform_3, window_bounds = array<i64: 1152, 128>}, {pipeline_mode = #tpu.pipeline_mode<synchronous>, transform_indices = @transform_4, window_bounds = array<i64: 1, 128>}, {transform_indices = @transform_5, window_bounds = array<i64: 1, 16, 16, 128>}, {transform_indices = @transform_6, window_bounds = array<i64: 1, 1, 128>}, {transform_indices = @transform_7, window_bounds = array<i64: 1, 1, 128>}]} {
    %c0 = arith.constant 0 : index
    %c0_0 = arith.constant 0 : index
    %c0_1 = arith.constant 0 : index
    %c0_2 = arith.constant 0 : index
    %0 = vector.load %arg1[%c0, %c0_0, %c0_1, %c0_2] : memref<1x16x16x128xf32, #tpu.memory_space<vmem>>, vector<1x16x16x128xf32>
    %1 = vector.shape_cast %0 : vector<1x16x16x128xf32> to vector<16x16x128xf32>
    %cst = arith.constant 0.000000e+00 : f32
    %2 = vector.broadcast %cst : f32 to vector<1x18x128xf32>
    %c0_3 = arith.constant 0 : index
    %c0_4 = arith.constant 0 : index
    %c0_5 = arith.constant 0 : index
    %3 = vector.load %arg9[%c0_3, %c0_4, %c0_5] : memref<18x18x128xf32, #tpu.memory_space<vmem>>, vector<1x18x128xf32>
    tpu.vector_store %arg9[%c0_3, %c0_4, %c0_5], %2 {strides = array<i32>} : memref<18x18x128xf32, #tpu.memory_space<vmem>>, vector<1x18x128xf32>,
    %cst_6 = arith.constant 0.000000e+00 : f32
    %4 = vector.broadcast %cst_6 : f32 to vector<1x18x128xf32>
    %c17 = arith.constant 17 : index
    %c0_7 = arith.constant 0 : index
    %c0_8 = arith.constant 0 : index
    %5 = vector.load %arg9[%c17, %c0_7, %c0_8] : memref<18x18x128xf32, #tpu.memory_space<vmem>>, vector<1x18x128xf32>
    tpu.vector_store %arg9[%c17, %c0_7, %c0_8], %4 {strides = array<i32>} : memref<18x18x128xf32, #tpu.memory_space<vmem>>, vector<1x18x128xf32>,
    %cst_9 = arith.constant 0.000000e+00 : f32
    %6 = vector.broadcast %cst_9 : f32 to vector<18x1x128xf32>
    %c0_10 = arith.constant 0 : index
    %c0_11 = arith.constant 0 : index
    %c0_12 = arith.constant 0 : index
    %7 = vector.load %arg9[%c0_10, %c0_11, %c0_12] : memref<18x18x128xf32, #tpu.memory_space<vmem>>, vector<18x1x128xf32>
    tpu.vector_store %arg9[%c0_10, %c0_11, %c0_12], %6 {strides = array<i32>} : memref<18x18x128xf32, #tpu.memory_space<vmem>>, vector<18x1x128xf32>,
    %cst_13 = arith.constant 0.000000e+00 : f32
    %8 = vector.broadcast %cst_13 : f32 to vector<18x1x128xf32>
    %c0_14 = arith.constant 0 : index
    %c17_15 = arith.constant 17 : index
    %c0_16 = arith.constant 0 : index
    %9 = vector.load %arg9[%c0_14, %c17_15, %c0_16] : memref<18x18x128xf32, #tpu.memory_space<vmem>>, vector<18x1x128xf32>
    tpu.vector_store %arg9[%c0_14, %c17_15, %c0_16], %8 {strides = array<i32>} : memref<18x18x128xf32, #tpu.memory_space<vmem>>, vector<18x1x128xf32>,
    %c1 = arith.constant 1 : index
    %c1_17 = arith.constant 1 : index
    %c0_18 = arith.constant 0 : index
    %10 = vector.load %arg9[%c1, %c1_17, %c0_18] : memref<18x18x128xf32, #tpu.memory_space<vmem>>, vector<16x16x128xf32>
    tpu.vector_store %arg9[%c1, %c1_17, %c0_18], %1 {strides = array<i32>} : memref<18x18x128xf32, #tpu.memory_space<vmem>>, vector<16x16x128xf32>,
    %c0_19 = arith.constant 0 : index
    %c0_20 = arith.constant 0 : index
    %c0_21 = arith.constant 0 : index
    %11 = vector.load %arg9[%c0_19, %c0_20, %c0_21] : memref<18x18x128xf32, #tpu.memory_space<vmem>>, vector<16x16x128xf32>
    %12 = vector.shape_cast %11 : vector<16x16x128xf32> to vector<256x128xf32>
    %c0_22 = arith.constant 0 : index
    %c0_23 = arith.constant 0 : index
    %13 = vector.load %arg10[%c0_22, %c0_23] : memref<256x1152xf32, #tpu.memory_space<vmem>>, vector<256x128xf32>
    tpu.vector_store %arg10[%c0_22, %c0_23], %12 {strides = array<i32>} : memref<256x1152xf32, #tpu.memory_space<vmem>>, vector<256x128xf32>,
    %c0_24 = arith.constant 0 : index
    %c1_25 = arith.constant 1 : index
    %c0_26 = arith.constant 0 : index
    %14 = vector.load %arg9[%c0_24, %c1_25, %c0_26] : memref<18x18x128xf32, #tpu.memory_space<vmem>>, vector<16x16x128xf32>
    %15 = vector.shape_cast %14 : vector<16x16x128xf32> to vector<256x128xf32>
    %c0_27 = arith.constant 0 : index
    %c128 = arith.constant 128 : index
    %16 = vector.load %arg10[%c0_27, %c128] : memref<256x1152xf32, #tpu.memory_space<vmem>>, vector<256x128xf32>
    tpu.vector_store %arg10[%c0_27, %c128], %15 {strides = array<i32>} : memref<256x1152xf32, #tpu.memory_space<vmem>>, vector<256x128xf32>,
    %c0_28 = arith.constant 0 : index
    %c2 = arith.constant 2 : index
    %c0_29 = arith.constant 0 : index
    %17 = vector.load %arg9[%c0_28, %c2, %c0_29] : memref<18x18x128xf32, #tpu.memory_space<vmem>>, vector<16x16x128xf32>
    %18 = vector.shape_cast %17 : vector<16x16x128xf32> to vector<256x128xf32>
    %c0_30 = arith.constant 0 : index
    %c256 = arith.constant 256 : index
    %19 = vector.load %arg10[%c0_30, %c256] : memref<256x1152xf32, #tpu.memory_space<vmem>>, vector<256x128xf32>
    tpu.vector_store %arg10[%c0_30, %c256], %18 {strides = array<i32>} : memref<256x1152xf32, #tpu.memory_space<vmem>>, vector<256x128xf32>,
    %c1_31 = arith.constant 1 : index
    %c0_32 = arith.constant 0 : index
    %c0_33 = arith.constant 0 : index
    %20 = vector.load %arg9[%c1_31, %c0_32, %c0_33] : memref<18x18x128xf32, #tpu.memory_space<vmem>>, vector<16x16x128xf32>
    %21 = vector.shape_cast %20 : vector<16x16x128xf32> to vector<256x128xf32>
    %c0_34 = arith.constant 0 : index
    %c384 = arith.constant 384 : index
    %22 = vector.load %arg10[%c0_34, %c384] : memref<256x1152xf32, #tpu.memory_space<vmem>>, vector<256x128xf32>
    tpu.vector_store %arg10[%c0_34, %c384], %21 {strides = array<i32>} : memref<256x1152xf32, #tpu.memory_space<vmem>>, vector<256x128xf32>,
    %c1_35 = arith.constant 1 : index
    %c1_36 = arith.constant 1 : index
    %c0_37 = arith.constant 0 : index
    %23 = vector.load %arg9[%c1_35, %c1_36, %c0_37] : memref<18x18x128xf32, #tpu.memory_space<vmem>>, vector<16x16x128xf32>
    %24 = vector.shape_cast %23 : vector<16x16x128xf32> to vector<256x128xf32>
    %c0_38 = arith.constant 0 : index
    %c512 = arith.constant 512 : index
    %25 = vector.load %arg10[%c0_38, %c512] : memref<256x1152xf32, #tpu.memory_space<vmem>>, vector<256x128xf32>
    tpu.vector_store %arg10[%c0_38, %c512], %24 {strides = array<i32>} : memref<256x1152xf32, #tpu.memory_space<vmem>>, vector<256x128xf32>,
    %c1_39 = arith.constant 1 : index
    %c2_40 = arith.constant 2 : index
    %c0_41 = arith.constant 0 : index
    %26 = vector.load %arg9[%c1_39, %c2_40, %c0_41] : memref<18x18x128xf32, #tpu.memory_space<vmem>>, vector<16x16x128xf32>
    %27 = vector.shape_cast %26 : vector<16x16x128xf32> to vector<256x128xf32>
    %c0_42 = arith.constant 0 : index
    %c640 = arith.constant 640 : index
    %28 = vector.load %arg10[%c0_42, %c640] : memref<256x1152xf32, #tpu.memory_space<vmem>>, vector<256x128xf32>
    tpu.vector_store %arg10[%c0_42, %c640], %27 {strides = array<i32>} : memref<256x1152xf32, #tpu.memory_space<vmem>>, vector<256x128xf32>,
    %c2_43 = arith.constant 2 : index
    %c0_44 = arith.constant 0 : index
    %c0_45 = arith.constant 0 : index
    %29 = vector.load %arg9[%c2_43, %c0_44, %c0_45] : memref<18x18x128xf32, #tpu.memory_space<vmem>>, vector<16x16x128xf32>
    %30 = vector.shape_cast %29 : vector<16x16x128xf32> to vector<256x128xf32>
    %c0_46 = arith.constant 0 : index
    %c768 = arith.constant 768 : index
    %31 = vector.load %arg10[%c0_46, %c768] : memref<256x1152xf32, #tpu.memory_space<vmem>>, vector<256x128xf32>
    tpu.vector_store %arg10[%c0_46, %c768], %30 {strides = array<i32>} : memref<256x1152xf32, #tpu.memory_space<vmem>>, vector<256x128xf32>,
    %c2_47 = arith.constant 2 : index
    %c1_48 = arith.constant 1 : index
    %c0_49 = arith.constant 0 : index
    %32 = vector.load %arg9[%c2_47, %c1_48, %c0_49] : memref<18x18x128xf32, #tpu.memory_space<vmem>>, vector<16x16x128xf32>
    %33 = vector.shape_cast %32 : vector<16x16x128xf32> to vector<256x128xf32>
    %c0_50 = arith.constant 0 : index
    %c896 = arith.constant 896 : index
    %34 = vector.load %arg10[%c0_50, %c896] : memref<256x1152xf32, #tpu.memory_space<vmem>>, vector<256x128xf32>
    tpu.vector_store %arg10[%c0_50, %c896], %33 {strides = array<i32>} : memref<256x1152xf32, #tpu.memory_space<vmem>>, vector<256x128xf32>,
    %c2_51 = arith.constant 2 : index
    %c2_52 = arith.constant 2 : index
    %c0_53 = arith.constant 0 : index
    %35 = vector.load %arg9[%c2_51, %c2_52, %c0_53] : memref<18x18x128xf32, #tpu.memory_space<vmem>>, vector<16x16x128xf32>
    %36 = vector.shape_cast %35 : vector<16x16x128xf32> to vector<256x128xf32>
    %c0_54 = arith.constant 0 : index
    %c1024 = arith.constant 1024 : index
    %37 = vector.load %arg10[%c0_54, %c1024] : memref<256x1152xf32, #tpu.memory_space<vmem>>, vector<256x128xf32>
    tpu.vector_store %arg10[%c0_54, %c1024], %36 {strides = array<i32>} : memref<256x1152xf32, #tpu.memory_space<vmem>>, vector<256x128xf32>,
    %c0_55 = arith.constant 0 : index
    %c0_56 = arith.constant 0 : index
    %38 = vector.load %arg10[%c0_55, %c0_56] : memref<256x1152xf32, #tpu.memory_space<vmem>>, vector<256x1152xf32>
    %c0_57 = arith.constant 0 : index
    %c0_58 = arith.constant 0 : index
    %39 = vector.load %arg4[%c0_57, %c0_58] : memref<1152x128xf32, #tpu.memory_space<vmem>>, vector<1152x128xf32>
    %cst_59 = arith.constant dense<0.000000e+00> : vector<256x128xf32>
    %40 = tpu.matmul %38, %39, %cst_59 {dimension_numbers = #tpu.dot_dimension_numbers<[1], [0], [0], [1], [0, 0, 1, 1], [], []>} : vector<256x1152xf32>, vector<1152x128xf32>, vector<256x128xf32> -> vector<256x128xf32>
    %c0_60 = arith.constant 0 : index
    %c0_61 = arith.constant 0 : index
    %41 = vector.load %arg5[%c0_60, %c0_61] : memref<1x128xf32, #tpu.memory_space<vmem>>, vector<1x128xf32>
    %42 = vector.broadcast %41 : vector<1x128xf32> to vector<256x128xf32>
    %43 = arith.addf %40, %42 : vector<256x128xf32>
    %44 = vector.shape_cast %43 : vector<256x128xf32> to vector<16x16x128xf32>
    %c0_62 = arith.constant 0 : index
    %c0_63 = arith.constant 0 : index
    %c0_64 = arith.constant 0 : index
    %c0_65 = arith.constant 0 : index
    %45 = vector.load %arg6[%c0_62, %c0_63, %c0_64, %c0_65] : memref<1x16x16x128xf32, #tpu.memory_space<vmem>>, vector<1x16x16x128xf32>
    %46 = vector.shape_cast %45 : vector<1x16x16x128xf32> to vector<16x16x128xf32>
    %47 = vector.shape_cast %44 : vector<16x16x128xf32> to vector<1x16x16x128xf32>
    tpu.vector_store %arg6[%c0_62, %c0_63, %c0_64, %c0_65], %47 {strides = array<i32>} : memref<1x16x16x128xf32, #tpu.memory_space<vmem>>, vector<1x16x16x128xf32>,
    %cst_66 = arith.constant dense<0.000000e+00> : vector<128xf32>
    %48 = vector.multi_reduction <add>, %43, %cst_66 [0] : vector<256x128xf32> to vector<128xf32>
    %49 = vector.shape_cast %48 : vector<128xf32> to vector<1x128xf32>
    %c0_67 = arith.constant 0 : index
    %c0_68 = arith.constant 0 : index
    %c0_69 = arith.constant 0 : index
    %50 = vector.load %arg7[%c0_67, %c0_68, %c0_69] : memref<1x1x128xf32, #tpu.memory_space<vmem>>, vector<1x1x128xf32>
    %51 = vector.shape_cast %50 : vector<1x1x128xf32> to vector<1x128xf32>
    %52 = vector.shape_cast %49 : vector<1x128xf32> to vector<1x1x128xf32>
    tpu.vector_store %arg7[%c0_67, %c0_68, %c0_69], %52 {strides = array<i32>} : memref<1x1x128xf32, #tpu.memory_space<vmem>>, vector<1x1x128xf32>,
    %53 = arith.mulf %43, %43 : vector<256x128xf32>
    %cst_70 = arith.constant dense<0.000000e+00> : vector<128xf32>
    %54 = vector.multi_reduction <add>, %53, %cst_70 [0] : vector<256x128xf32> to vector<128xf32>
    %55 = vector.shape_cast %54 : vector<128xf32> to vector<1x128xf32>
    %c0_71 = arith.constant 0 : index
    %c0_72 = arith.constant 0 : index
    %c0_73 = arith.constant 0 : index
    %56 = vector.load %arg8[%c0_71, %c0_72, %c0_73] : memref<1x1x128xf32, #tpu.memory_space<vmem>>, vector<1x1x128xf32>
    %57 = vector.shape_cast %56 : vector<1x1x128xf32> to vector<1x128xf32>
    %58 = vector.shape_cast %55 : vector<1x128xf32> to vector<1x1x128xf32>
    tpu.vector_store %arg8[%c0_71, %c0_72, %c0_73], %58 {strides = array<i32>} : memref<1x1x128xf32, #tpu.memory_space<vmem>>, vector<1x1x128xf32>,
    return
  }
  func.func @transform_0(%arg0: i32) -> (i32, i32, i32, i32) {
    %c0_i32 = arith.constant 0 : i32
    %c0_i32_0 = arith.constant 0 : i32
    %c0_i32_1 = arith.constant 0 : i32
    %c0_i32_2 = arith.constant 0 : i32
    return %arg0, %c0_i32, %c0_i32_0, %c0_i32_1 : i32, i32, i32, i32
  }
  func.func @transform_1(%arg0: i32) -> (i32, i32) {
    %c0_i32 = arith.constant 0 : i32
    %c0_i32_0 = arith.constant 0 : i32
    %c0_i32_1 = arith.constant 0 : i32
    return %c0_i32, %c0_i32_0 : i32, i32
  }
  func.func @transform_2(%arg0: i32) -> (i32, i32) {
    %c0_i32 = arith.constant 0 : i32
    %c0_i32_0 = arith.constant 0 : i32
    %c0_i32_1 = arith.constant 0 : i32
    return %c0_i32, %c0_i32_0 : i32, i32
  }
  func.func @transform_3(%arg0: i32) -> (i32, i32) {
    %c0_i32 = arith.constant 0 : i32
    %c0_i32_0 = arith.constant 0 : i32
    %c0_i32_1 = arith.constant 0 : i32
    return %c0_i32, %c0_i32_0 : i32, i32
  }
  func.func @transform_4(%arg0: i32) -> (i32, i32) {
    %c0_i32 = arith.constant 0 : i32
    %c0_i32_0 = arith.constant 0 : i32
    %c0_i32_1 = arith.constant 0 : i32
    return %c0_i32, %c0_i32_0 : i32, i32
  }
  func.func @transform_5(%arg0: i32) -> (i32, i32, i32, i32) {
    %c0_i32 = arith.constant 0 : i32
    %c0_i32_0 = arith.constant 0 : i32
    %c0_i32_1 = arith.constant 0 : i32
    %c0_i32_2 = arith.constant 0 : i32
    return %arg0, %c0_i32, %c0_i32_0, %c0_i32_1 : i32, i32, i32, i32
  }
  func.func @transform_6(%arg0: i32) -> (i32, i32, i32) {
    %c0_i32 = arith.constant 0 : i32
    %c0_i32_0 = arith.constant 0 : i32
    %c0_i32_1 = arith.constant 0 : i32
    return %arg0, %c0_i32, %c0_i32_0 : i32, i32, i32
  }
  func.func @transform_7(%arg0: i32) -> (i32, i32, i32) {
    %c0_i32 = arith.constant 0 : i32
    %c0_i32_0 = arith.constant 0 : i32
    %c0_i32_1 = arith.constant 0 : i32
    return %arg0, %c0_i32, %c0_i32_0 : i32, i32, i32
  }
}

module attributes {stable_mosaic.version = 11 : i64} {
  func.func @_conv_bn_stats_kernel(%arg0: i32, %arg1: memref<1x16x16x128xf32, #tpu.memory_space<vmem>>, %arg2: memref<1x128xf32, #tpu.memory_space<vmem>>, %arg3: memref<1x128xf32, #tpu.memory_space<vmem>>, %arg4: memref<1152x128xf32, #tpu.memory_space<vmem>>, %arg5: memref<1x128xf32, #tpu.memory_space<vmem>>, %arg6: memref<1x16x16x128xf32, #tpu.memory_space<vmem>>, %arg7: memref<1x1x128xf32, #tpu.memory_space<vmem>>, %arg8: memref<1x1x128xf32, #tpu.memory_space<vmem>>, %arg9: memref<18x18x128xf32, #tpu.memory_space<vmem>>, %arg10: memref<256x1152xf32, #tpu.memory_space<vmem>>) attributes {dimension_semantics = [#tpu.dimension_semantics<parallel>], iteration_bounds = array<i64: 2>, scalar_prefetch = 0 : i64, scratch_operands = 2 : i64, tpu.core_type = #tpu.core_type<tc>, window_params = [{transform_indices = @transform_0, window_bounds = array<i64: 1, 16, 16, 128>}, {pipeline_mode = #tpu.pipeline_mode<synchronous>, transform_indices = @transform_1, window_bounds = array<i64: 1, 128>}, {pipeline_mode = #tpu.pipeline_mode<synchronous>, transform_indices = @transform_2, window_bounds = array<i64: 1, 128>}, {pipeline_mode = #tpu.pipeline_mode<synchronous>, transform_indices = @transform_3, window_bounds = array<i64: 1152, 128>}, {pipeline_mode = #tpu.pipeline_mode<synchronous>, transform_indices = @transform_4, window_bounds = array<i64: 1, 128>}, {transform_indices = @transform_5, window_bounds = array<i64: 1, 16, 16, 128>}, {transform_indices = @transform_6, window_bounds = array<i64: 1, 1, 128>}, {transform_indices = @transform_7, window_bounds = array<i64: 1, 1, 128>}]} {
    %c0 = arith.constant 0 : index
    %c0_0 = arith.constant 0 : index
    %c0_1 = arith.constant 0 : index
    %c0_2 = arith.constant 0 : index
    %0 = vector.load %arg1[%c0, %c0_0, %c0_1, %c0_2] : memref<1x16x16x128xf32, #tpu.memory_space<vmem>>, vector<1x16x16x128xf32>
    %1 = vector.shape_cast %0 : vector<1x16x16x128xf32> to vector<16x16x128xf32>
    %c0_3 = arith.constant 0 : index
    %c0_4 = arith.constant 0 : index
    %2 = vector.load %arg2[%c0_3, %c0_4] : memref<1x128xf32, #tpu.memory_space<vmem>>, vector<1x128xf32>
    %3 = vector.shape_cast %2 : vector<1x128xf32> to vector<1x1x128xf32>
    %4 = vector.broadcast %3 : vector<1x1x128xf32> to vector<16x16x128xf32>
    %5 = arith.mulf %1, %4 : vector<16x16x128xf32>
    %c0_5 = arith.constant 0 : index
    %c0_6 = arith.constant 0 : index
    %6 = vector.load %arg3[%c0_5, %c0_6] : memref<1x128xf32, #tpu.memory_space<vmem>>, vector<1x128xf32>
    %7 = vector.shape_cast %6 : vector<1x128xf32> to vector<1x1x128xf32>
    %8 = vector.broadcast %7 : vector<1x1x128xf32> to vector<16x16x128xf32>
    %9 = arith.addf %5, %8 : vector<16x16x128xf32>
    %cst = arith.constant 0.000000e+00 : f32
    %10 = vector.broadcast %cst : f32 to vector<16x16x128xf32>
    %11 = arith.maximumf %9, %10 : vector<16x16x128xf32>
    %cst_7 = arith.constant 0.000000e+00 : f32
    %12 = vector.broadcast %cst_7 : f32 to vector<1x18x128xf32>
    %c0_8 = arith.constant 0 : index
    %c0_9 = arith.constant 0 : index
    %c0_10 = arith.constant 0 : index
    %13 = vector.load %arg9[%c0_8, %c0_9, %c0_10] : memref<18x18x128xf32, #tpu.memory_space<vmem>>, vector<1x18x128xf32>
    tpu.vector_store %arg9[%c0_8, %c0_9, %c0_10], %12 {strides = array<i32>} : memref<18x18x128xf32, #tpu.memory_space<vmem>>, vector<1x18x128xf32>,
    %cst_11 = arith.constant 0.000000e+00 : f32
    %14 = vector.broadcast %cst_11 : f32 to vector<1x18x128xf32>
    %c17 = arith.constant 17 : index
    %c0_12 = arith.constant 0 : index
    %c0_13 = arith.constant 0 : index
    %15 = vector.load %arg9[%c17, %c0_12, %c0_13] : memref<18x18x128xf32, #tpu.memory_space<vmem>>, vector<1x18x128xf32>
    tpu.vector_store %arg9[%c17, %c0_12, %c0_13], %14 {strides = array<i32>} : memref<18x18x128xf32, #tpu.memory_space<vmem>>, vector<1x18x128xf32>,
    %cst_14 = arith.constant 0.000000e+00 : f32
    %16 = vector.broadcast %cst_14 : f32 to vector<18x1x128xf32>
    %c0_15 = arith.constant 0 : index
    %c0_16 = arith.constant 0 : index
    %c0_17 = arith.constant 0 : index
    %17 = vector.load %arg9[%c0_15, %c0_16, %c0_17] : memref<18x18x128xf32, #tpu.memory_space<vmem>>, vector<18x1x128xf32>
    tpu.vector_store %arg9[%c0_15, %c0_16, %c0_17], %16 {strides = array<i32>} : memref<18x18x128xf32, #tpu.memory_space<vmem>>, vector<18x1x128xf32>,
    %cst_18 = arith.constant 0.000000e+00 : f32
    %18 = vector.broadcast %cst_18 : f32 to vector<18x1x128xf32>
    %c0_19 = arith.constant 0 : index
    %c17_20 = arith.constant 17 : index
    %c0_21 = arith.constant 0 : index
    %19 = vector.load %arg9[%c0_19, %c17_20, %c0_21] : memref<18x18x128xf32, #tpu.memory_space<vmem>>, vector<18x1x128xf32>
    tpu.vector_store %arg9[%c0_19, %c17_20, %c0_21], %18 {strides = array<i32>} : memref<18x18x128xf32, #tpu.memory_space<vmem>>, vector<18x1x128xf32>,
    %c1 = arith.constant 1 : index
    %c1_22 = arith.constant 1 : index
    %c0_23 = arith.constant 0 : index
    %20 = vector.load %arg9[%c1, %c1_22, %c0_23] : memref<18x18x128xf32, #tpu.memory_space<vmem>>, vector<16x16x128xf32>
    tpu.vector_store %arg9[%c1, %c1_22, %c0_23], %11 {strides = array<i32>} : memref<18x18x128xf32, #tpu.memory_space<vmem>>, vector<16x16x128xf32>,
    %c0_24 = arith.constant 0 : index
    %c0_25 = arith.constant 0 : index
    %c0_26 = arith.constant 0 : index
    %21 = vector.load %arg9[%c0_24, %c0_25, %c0_26] : memref<18x18x128xf32, #tpu.memory_space<vmem>>, vector<16x16x128xf32>
    %22 = vector.shape_cast %21 : vector<16x16x128xf32> to vector<256x128xf32>
    %c0_27 = arith.constant 0 : index
    %c0_28 = arith.constant 0 : index
    %23 = vector.load %arg10[%c0_27, %c0_28] : memref<256x1152xf32, #tpu.memory_space<vmem>>, vector<256x128xf32>
    tpu.vector_store %arg10[%c0_27, %c0_28], %22 {strides = array<i32>} : memref<256x1152xf32, #tpu.memory_space<vmem>>, vector<256x128xf32>,
    %c0_29 = arith.constant 0 : index
    %c1_30 = arith.constant 1 : index
    %c0_31 = arith.constant 0 : index
    %24 = vector.load %arg9[%c0_29, %c1_30, %c0_31] : memref<18x18x128xf32, #tpu.memory_space<vmem>>, vector<16x16x128xf32>
    %25 = vector.shape_cast %24 : vector<16x16x128xf32> to vector<256x128xf32>
    %c0_32 = arith.constant 0 : index
    %c128 = arith.constant 128 : index
    %26 = vector.load %arg10[%c0_32, %c128] : memref<256x1152xf32, #tpu.memory_space<vmem>>, vector<256x128xf32>
    tpu.vector_store %arg10[%c0_32, %c128], %25 {strides = array<i32>} : memref<256x1152xf32, #tpu.memory_space<vmem>>, vector<256x128xf32>,
    %c0_33 = arith.constant 0 : index
    %c2 = arith.constant 2 : index
    %c0_34 = arith.constant 0 : index
    %27 = vector.load %arg9[%c0_33, %c2, %c0_34] : memref<18x18x128xf32, #tpu.memory_space<vmem>>, vector<16x16x128xf32>
    %28 = vector.shape_cast %27 : vector<16x16x128xf32> to vector<256x128xf32>
    %c0_35 = arith.constant 0 : index
    %c256 = arith.constant 256 : index
    %29 = vector.load %arg10[%c0_35, %c256] : memref<256x1152xf32, #tpu.memory_space<vmem>>, vector<256x128xf32>
    tpu.vector_store %arg10[%c0_35, %c256], %28 {strides = array<i32>} : memref<256x1152xf32, #tpu.memory_space<vmem>>, vector<256x128xf32>,
    %c1_36 = arith.constant 1 : index
    %c0_37 = arith.constant 0 : index
    %c0_38 = arith.constant 0 : index
    %30 = vector.load %arg9[%c1_36, %c0_37, %c0_38] : memref<18x18x128xf32, #tpu.memory_space<vmem>>, vector<16x16x128xf32>
    %31 = vector.shape_cast %30 : vector<16x16x128xf32> to vector<256x128xf32>
    %c0_39 = arith.constant 0 : index
    %c384 = arith.constant 384 : index
    %32 = vector.load %arg10[%c0_39, %c384] : memref<256x1152xf32, #tpu.memory_space<vmem>>, vector<256x128xf32>
    tpu.vector_store %arg10[%c0_39, %c384], %31 {strides = array<i32>} : memref<256x1152xf32, #tpu.memory_space<vmem>>, vector<256x128xf32>,
    %c1_40 = arith.constant 1 : index
    %c1_41 = arith.constant 1 : index
    %c0_42 = arith.constant 0 : index
    %33 = vector.load %arg9[%c1_40, %c1_41, %c0_42] : memref<18x18x128xf32, #tpu.memory_space<vmem>>, vector<16x16x128xf32>
    %34 = vector.shape_cast %33 : vector<16x16x128xf32> to vector<256x128xf32>
    %c0_43 = arith.constant 0 : index
    %c512 = arith.constant 512 : index
    %35 = vector.load %arg10[%c0_43, %c512] : memref<256x1152xf32, #tpu.memory_space<vmem>>, vector<256x128xf32>
    tpu.vector_store %arg10[%c0_43, %c512], %34 {strides = array<i32>} : memref<256x1152xf32, #tpu.memory_space<vmem>>, vector<256x128xf32>,
    %c1_44 = arith.constant 1 : index
    %c2_45 = arith.constant 2 : index
    %c0_46 = arith.constant 0 : index
    %36 = vector.load %arg9[%c1_44, %c2_45, %c0_46] : memref<18x18x128xf32, #tpu.memory_space<vmem>>, vector<16x16x128xf32>
    %37 = vector.shape_cast %36 : vector<16x16x128xf32> to vector<256x128xf32>
    %c0_47 = arith.constant 0 : index
    %c640 = arith.constant 640 : index
    %38 = vector.load %arg10[%c0_47, %c640] : memref<256x1152xf32, #tpu.memory_space<vmem>>, vector<256x128xf32>
    tpu.vector_store %arg10[%c0_47, %c640], %37 {strides = array<i32>} : memref<256x1152xf32, #tpu.memory_space<vmem>>, vector<256x128xf32>,
    %c2_48 = arith.constant 2 : index
    %c0_49 = arith.constant 0 : index
    %c0_50 = arith.constant 0 : index
    %39 = vector.load %arg9[%c2_48, %c0_49, %c0_50] : memref<18x18x128xf32, #tpu.memory_space<vmem>>, vector<16x16x128xf32>
    %40 = vector.shape_cast %39 : vector<16x16x128xf32> to vector<256x128xf32>
    %c0_51 = arith.constant 0 : index
    %c768 = arith.constant 768 : index
    %41 = vector.load %arg10[%c0_51, %c768] : memref<256x1152xf32, #tpu.memory_space<vmem>>, vector<256x128xf32>
    tpu.vector_store %arg10[%c0_51, %c768], %40 {strides = array<i32>} : memref<256x1152xf32, #tpu.memory_space<vmem>>, vector<256x128xf32>,
    %c2_52 = arith.constant 2 : index
    %c1_53 = arith.constant 1 : index
    %c0_54 = arith.constant 0 : index
    %42 = vector.load %arg9[%c2_52, %c1_53, %c0_54] : memref<18x18x128xf32, #tpu.memory_space<vmem>>, vector<16x16x128xf32>
    %43 = vector.shape_cast %42 : vector<16x16x128xf32> to vector<256x128xf32>
    %c0_55 = arith.constant 0 : index
    %c896 = arith.constant 896 : index
    %44 = vector.load %arg10[%c0_55, %c896] : memref<256x1152xf32, #tpu.memory_space<vmem>>, vector<256x128xf32>
    tpu.vector_store %arg10[%c0_55, %c896], %43 {strides = array<i32>} : memref<256x1152xf32, #tpu.memory_space<vmem>>, vector<256x128xf32>,
    %c2_56 = arith.constant 2 : index
    %c2_57 = arith.constant 2 : index
    %c0_58 = arith.constant 0 : index
    %45 = vector.load %arg9[%c2_56, %c2_57, %c0_58] : memref<18x18x128xf32, #tpu.memory_space<vmem>>, vector<16x16x128xf32>
    %46 = vector.shape_cast %45 : vector<16x16x128xf32> to vector<256x128xf32>
    %c0_59 = arith.constant 0 : index
    %c1024 = arith.constant 1024 : index
    %47 = vector.load %arg10[%c0_59, %c1024] : memref<256x1152xf32, #tpu.memory_space<vmem>>, vector<256x128xf32>
    tpu.vector_store %arg10[%c0_59, %c1024], %46 {strides = array<i32>} : memref<256x1152xf32, #tpu.memory_space<vmem>>, vector<256x128xf32>,
    %c0_60 = arith.constant 0 : index
    %c0_61 = arith.constant 0 : index
    %48 = vector.load %arg10[%c0_60, %c0_61] : memref<256x1152xf32, #tpu.memory_space<vmem>>, vector<256x1152xf32>
    %c0_62 = arith.constant 0 : index
    %c0_63 = arith.constant 0 : index
    %49 = vector.load %arg4[%c0_62, %c0_63] : memref<1152x128xf32, #tpu.memory_space<vmem>>, vector<1152x128xf32>
    %cst_64 = arith.constant dense<0.000000e+00> : vector<256x128xf32>
    %50 = tpu.matmul %48, %49, %cst_64 {dimension_numbers = #tpu.dot_dimension_numbers<[1], [0], [0], [1], [0, 0, 1, 1], [], []>} : vector<256x1152xf32>, vector<1152x128xf32>, vector<256x128xf32> -> vector<256x128xf32>
    %c0_65 = arith.constant 0 : index
    %c0_66 = arith.constant 0 : index
    %51 = vector.load %arg5[%c0_65, %c0_66] : memref<1x128xf32, #tpu.memory_space<vmem>>, vector<1x128xf32>
    %52 = vector.broadcast %51 : vector<1x128xf32> to vector<256x128xf32>
    %53 = arith.addf %50, %52 : vector<256x128xf32>
    %54 = vector.shape_cast %53 : vector<256x128xf32> to vector<16x16x128xf32>
    %c0_67 = arith.constant 0 : index
    %c0_68 = arith.constant 0 : index
    %c0_69 = arith.constant 0 : index
    %c0_70 = arith.constant 0 : index
    %55 = vector.load %arg6[%c0_67, %c0_68, %c0_69, %c0_70] : memref<1x16x16x128xf32, #tpu.memory_space<vmem>>, vector<1x16x16x128xf32>
    %56 = vector.shape_cast %55 : vector<1x16x16x128xf32> to vector<16x16x128xf32>
    %57 = vector.shape_cast %54 : vector<16x16x128xf32> to vector<1x16x16x128xf32>
    tpu.vector_store %arg6[%c0_67, %c0_68, %c0_69, %c0_70], %57 {strides = array<i32>} : memref<1x16x16x128xf32, #tpu.memory_space<vmem>>, vector<1x16x16x128xf32>,
    %cst_71 = arith.constant dense<0.000000e+00> : vector<128xf32>
    %58 = vector.multi_reduction <add>, %53, %cst_71 [0] : vector<256x128xf32> to vector<128xf32>
    %59 = vector.shape_cast %58 : vector<128xf32> to vector<1x128xf32>
    %c0_72 = arith.constant 0 : index
    %c0_73 = arith.constant 0 : index
    %c0_74 = arith.constant 0 : index
    %60 = vector.load %arg7[%c0_72, %c0_73, %c0_74] : memref<1x1x128xf32, #tpu.memory_space<vmem>>, vector<1x1x128xf32>
    %61 = vector.shape_cast %60 : vector<1x1x128xf32> to vector<1x128xf32>
    %62 = vector.shape_cast %59 : vector<1x128xf32> to vector<1x1x128xf32>
    tpu.vector_store %arg7[%c0_72, %c0_73, %c0_74], %62 {strides = array<i32>} : memref<1x1x128xf32, #tpu.memory_space<vmem>>, vector<1x1x128xf32>,
    %63 = arith.mulf %53, %53 : vector<256x128xf32>
    %cst_75 = arith.constant dense<0.000000e+00> : vector<128xf32>
    %64 = vector.multi_reduction <add>, %63, %cst_75 [0] : vector<256x128xf32> to vector<128xf32>
    %65 = vector.shape_cast %64 : vector<128xf32> to vector<1x128xf32>
    %c0_76 = arith.constant 0 : index
    %c0_77 = arith.constant 0 : index
    %c0_78 = arith.constant 0 : index
    %66 = vector.load %arg8[%c0_76, %c0_77, %c0_78] : memref<1x1x128xf32, #tpu.memory_space<vmem>>, vector<1x1x128xf32>
    %67 = vector.shape_cast %66 : vector<1x1x128xf32> to vector<1x128xf32>
    %68 = vector.shape_cast %65 : vector<1x128xf32> to vector<1x1x128xf32>
    tpu.vector_store %arg8[%c0_76, %c0_77, %c0_78], %68 {strides = array<i32>} : memref<1x1x128xf32, #tpu.memory_space<vmem>>, vector<1x1x128xf32>,
    return
  }
  func.func @transform_0(%arg0: i32) -> (i32, i32, i32, i32) {
    %c0_i32 = arith.constant 0 : i32
    %c0_i32_0 = arith.constant 0 : i32
    %c0_i32_1 = arith.constant 0 : i32
    %c0_i32_2 = arith.constant 0 : i32
    return %arg0, %c0_i32, %c0_i32_0, %c0_i32_1 : i32, i32, i32, i32
  }
  func.func @transform_1(%arg0: i32) -> (i32, i32) {
    %c0_i32 = arith.constant 0 : i32
    %c0_i32_0 = arith.constant 0 : i32
    %c0_i32_1 = arith.constant 0 : i32
    return %c0_i32, %c0_i32_0 : i32, i32
  }
  func.func @transform_2(%arg0: i32) -> (i32, i32) {
    %c0_i32 = arith.constant 0 : i32
    %c0_i32_0 = arith.constant 0 : i32
    %c0_i32_1 = arith.constant 0 : i32
    return %c0_i32, %c0_i32_0 : i32, i32
  }
  func.func @transform_3(%arg0: i32) -> (i32, i32) {
    %c0_i32 = arith.constant 0 : i32
    %c0_i32_0 = arith.constant 0 : i32
    %c0_i32_1 = arith.constant 0 : i32
    return %c0_i32, %c0_i32_0 : i32, i32
  }
  func.func @transform_4(%arg0: i32) -> (i32, i32) {
    %c0_i32 = arith.constant 0 : i32
    %c0_i32_0 = arith.constant 0 : i32
    %c0_i32_1 = arith.constant 0 : i32
    return %c0_i32, %c0_i32_0 : i32, i32
  }
  func.func @transform_5(%arg0: i32) -> (i32, i32, i32, i32) {
    %c0_i32 = arith.constant 0 : i32
    %c0_i32_0 = arith.constant 0 : i32
    %c0_i32_1 = arith.constant 0 : i32
    %c0_i32_2 = arith.constant 0 : i32
    return %arg0, %c0_i32, %c0_i32_0, %c0_i32_1 : i32, i32, i32, i32
  }
  func.func @transform_6(%arg0: i32) -> (i32, i32, i32) {
    %c0_i32 = arith.constant 0 : i32
    %c0_i32_0 = arith.constant 0 : i32
    %c0_i32_1 = arith.constant 0 : i32
    return %arg0, %c0_i32, %c0_i32_0 : i32, i32, i32
  }
  func.func @transform_7(%arg0: i32) -> (i32, i32, i32) {
    %c0_i32 = arith.constant 0 : i32
    %c0_i32_0 = arith.constant 0 : i32
    %c0_i32_1 = arith.constant 0 : i32
    return %arg0, %c0_i32, %c0_i32_0 : i32, i32, i32
  }
}

module attributes {stable_mosaic.version = 11 : i64} {
  func.func @_bn_relu_kernel(%arg0: i32, %arg1: memref<1x16x16x128xf32, #tpu.memory_space<vmem>>, %arg2: memref<1x128xf32, #tpu.memory_space<vmem>>, %arg3: memref<1x128xf32, #tpu.memory_space<vmem>>, %arg4: memref<1x16x16x128xf32, #tpu.memory_space<vmem>>) attributes {dimension_semantics = [#tpu.dimension_semantics<parallel>], iteration_bounds = array<i64: 2>, scalar_prefetch = 0 : i64, scratch_operands = 0 : i64, tpu.core_type = #tpu.core_type<tc>, window_params = [{transform_indices = @transform_0, window_bounds = array<i64: 1, 16, 16, 128>}, {pipeline_mode = #tpu.pipeline_mode<synchronous>, transform_indices = @transform_1, window_bounds = array<i64: 1, 128>}, {pipeline_mode = #tpu.pipeline_mode<synchronous>, transform_indices = @transform_2, window_bounds = array<i64: 1, 128>}, {transform_indices = @transform_3, window_bounds = array<i64: 1, 16, 16, 128>}]} {
    %c0 = arith.constant 0 : index
    %c0_0 = arith.constant 0 : index
    %c0_1 = arith.constant 0 : index
    %c0_2 = arith.constant 0 : index
    %0 = vector.load %arg1[%c0, %c0_0, %c0_1, %c0_2] : memref<1x16x16x128xf32, #tpu.memory_space<vmem>>, vector<1x16x16x128xf32>
    %1 = vector.shape_cast %0 : vector<1x16x16x128xf32> to vector<16x16x128xf32>
    %c0_3 = arith.constant 0 : index
    %c0_4 = arith.constant 0 : index
    %2 = vector.load %arg2[%c0_3, %c0_4] : memref<1x128xf32, #tpu.memory_space<vmem>>, vector<1x128xf32>
    %3 = vector.shape_cast %2 : vector<1x128xf32> to vector<1x1x128xf32>
    %4 = vector.broadcast %3 : vector<1x1x128xf32> to vector<16x16x128xf32>
    %5 = arith.mulf %1, %4 : vector<16x16x128xf32>
    %c0_5 = arith.constant 0 : index
    %c0_6 = arith.constant 0 : index
    %6 = vector.load %arg3[%c0_5, %c0_6] : memref<1x128xf32, #tpu.memory_space<vmem>>, vector<1x128xf32>
    %7 = vector.shape_cast %6 : vector<1x128xf32> to vector<1x1x128xf32>
    %8 = vector.broadcast %7 : vector<1x1x128xf32> to vector<16x16x128xf32>
    %9 = arith.addf %5, %8 : vector<16x16x128xf32>
    %cst = arith.constant 0.000000e+00 : f32
    %10 = vector.broadcast %cst : f32 to vector<16x16x128xf32>
    %11 = arith.maximumf %9, %10 : vector<16x16x128xf32>
    %c0_7 = arith.constant 0 : index
    %c0_8 = arith.constant 0 : index
    %c0_9 = arith.constant 0 : index
    %c0_10 = arith.constant 0 : index
    %12 = vector.load %arg4[%c0_7, %c0_8, %c0_9, %c0_10] : memref<1x16x16x128xf32, #tpu.memory_space<vmem>>, vector<1x16x16x128xf32>
    %13 = vector.shape_cast %12 : vector<1x16x16x128xf32> to vector<16x16x128xf32>
    %14 = vector.shape_cast %11 : vector<16x16x128xf32> to vector<1x16x16x128xf32>
    tpu.vector_store %arg4[%c0_7, %c0_8, %c0_9, %c0_10], %14 {strides = array<i32>} : memref<1x16x16x128xf32, #tpu.memory_space<vmem>>, vector<1x16x16x128xf32>,
    return
  }
  func.func @transform_0(%arg0: i32) -> (i32, i32, i32, i32) {
    %c0_i32 = arith.constant 0 : i32
    %c0_i32_0 = arith.constant 0 : i32
    %c0_i32_1 = arith.constant 0 : i32
    %c0_i32_2 = arith.constant 0 : i32
    return %arg0, %c0_i32, %c0_i32_0, %c0_i32_1 : i32, i32, i32, i32
  }
  func.func @transform_1(%arg0: i32) -> (i32, i32) {
    %c0_i32 = arith.constant 0 : i32
    %c0_i32_0 = arith.constant 0 : i32
    %c0_i32_1 = arith.constant 0 : i32
    return %c0_i32, %c0_i32_0 : i32, i32
  }
  func.func @transform_2(%arg0: i32) -> (i32, i32) {
    %c0_i32 = arith.constant 0 : i32
    %c0_i32_0 = arith.constant 0 : i32
    %c0_i32_1 = arith.constant 0 : i32
    return %c0_i32, %c0_i32_0 : i32, i32
  }
  func.func @transform_3(%arg0: i32) -> (i32, i32, i32, i32) {
    %c0_i32 = arith.constant 0 : i32
    %c0_i32_0 = arith.constant 0 : i32
    %c0_i32_1 = arith.constant 0 : i32
    %c0_i32_2 = arith.constant 0 : i32
    return %arg0, %c0_i32, %c0_i32_0, %c0_i32_1 : i32, i32, i32, i32
  }
}

</mosaic_0001>

<llo_original>
// kernel: double_conv_forward.5
$region0: #{double_conv_forward.5}
  #allocation0 [shape = 'u32[]', space=smem, size = 0x4, offset = 0x4, fixed_abs, tag = 'smem constant byte address 0x4 - core index']
  #allocation1 [shape = 'u32[144,128]{1,0:T(1,128)}', space=vmem, size = 0x12000, scoped, tag = 'internal scratch']
  %s0 = inlined_call_operand.vmem [shape: f32[2,16,16,128], index: 0, kind: input, shape index: {}]
  %s1 = inlined_call_operand.vmem [shape: f32[1,128], index: 1, kind: input, shape index: {}]
  %s2 = inlined_call_operand.vmem [shape: f32[1,128], index: 2, kind: input, shape index: {}]
  %s3 = inlined_call_operand.vmem [shape: f32[2,16,16,128], index: 3, kind: output, shape index: {}]
  %s4 = sld [smem:[#allocation0]]
  $region45: #{double_conv_forward.5} parent=0
    _
  %s6 = ssub.s32 1, %s4
  %s7 = scalar_select 0, %s6, %s4
  loop: start=0, step=1, limit=4
  $region2: #{double_conv_forward.5} parent=0 // loop_pre_header
    _
  $region3: #{double_conv_forward.5} parent=0 // loop_header
    %s9 = sphi 0, %s13
    %p10 = scmp.ge.s32.totalorder %s9, 4
    %s19 = sphi 0, %s21
    %s22 = sphi 0, %s19
    %s23 = sphi 0, %s22
    %s39 = sphi 0, %s23
    %s43 = sphi 0, %s43
    %s45 = sphi 0, %s43
    %s46 = sphi 0, %s45
    %s60 = sphi 0, %s46
    %s64 = sphi 0, %s64
    %s66 = sphi 0, %s64
    %s67 = sphi 0, %s66
    %s81 = sphi 0, %s67
    %s87 = sphi 0, %s89
    %s90 = sphi 0, %s87
    %s91 = sphi 0, %s90
    %s107 = sphi 0, %s91
  $region4: #{double_conv_forward.5} parent=0 // loop_header_branch
    %12 = sbr.rel (%p10) target = $region8
  $region5: #{double_conv_forward.5} parent=0 // loop_body
    %s14 = ssub.s32 %s9, 1
    %s15 = ssub.s32 %s9, 2
    %s16 = sadd.s32 %s9, 1
    %s17 = ssub.s32 %s9, %s16
    %p18 = scmp.eq.s32.totalorder %s17, 0
    %s20 = sadd.s32 %s19, 1
    %s21 = scalar_select %p18, %s19, %s20
    %p24 = pneg %p18
    %p25 = scmp.eq.s32.totalorder %s9, 1
    %p26 = por %p24, %p25
    %p27 = scmp.ne.s32.totalorder %s19, %s22
    %p28 = scmp.eq.s32.totalorder %s9, 0
    %p29 = por %p27, %p28
    %p30 = scmp.ne.s32.totalorder %s19, %s22
    %p31 = scmp.eq.s32.totalorder %s14, 1
    %p32 = por %p30, %p31
    %p33 = scmp.ne.s32.totalorder %s22, %s23
    %p34 = scmp.eq.s32.totalorder %s14, 0
    %p35 = por %p33, %p34
    %p36 = scmp.ne.s32.totalorder %s22, %s23
    %p37 = scmp.eq.s32.totalorder %s15, 1
    %p38 = por %p36, %p37
    %p40 = scmp.ne.s32.totalorder %s23, %s39
    %p41 = scmp.eq.s32.totalorder %s15, 0
    %p42 = por %p40, %p41
    %s44 = sadd.s32 %s43, 1
    %p47 = scmp.eq.s32.totalorder %s9, 1
    %p48 = scmp.ne.s32.totalorder %s43, %s45
    %p49 = scmp.eq.s32.totalorder %s9, 0
    %p50 = por %p48, %p49
    %p51 = scmp.ne.s32.totalorder %s43, %s45
    %p52 = scmp.eq.s32.totalorder %s14, 1
    %p53 = por %p51, %p52
    %p54 = scmp.ne.s32.totalorder %s45, %s46
    %p55 = scmp.eq.s32.totalorder %s14, 0
    %p56 = por %p54, %p55
    %p57 = scmp.ne.s32.totalorder %s45, %s46
    %p58 = scmp.eq.s32.totalorder %s15, 1
    %p59 = por %p57, %p58
    %p61 = scmp.ne.s32.totalorder %s46, %s60
    %p62 = scmp.eq.s32.totalorder %s15, 0
    %p63 = por %p61, %p62
    %s65 = sadd.s32 %s64, 1
    %p68 = scmp.eq.s32.totalorder %s9, 1
    %p69 = scmp.ne.s32.totalorder %s64, %s66
    %p70 = scmp.eq.s32.totalorder %s9, 0
    %p71 = por %p69, %p70
    %p72 = scmp.ne.s32.totalorder %s64, %s66
    %p73 = scmp.eq.s32.totalorder %s14, 1
    %p74 = por %p72, %p73
    %p75 = scmp.ne.s32.totalorder %s66, %s67
    %p76 = scmp.eq.s32.totalorder %s14, 0
    %p77 = por %p75, %p76
    %p78 = scmp.ne.s32.totalorder %s66, %s67
    %p79 = scmp.eq.s32.totalorder %s15, 1
    %p80 = por %p78, %p79
    %p82 = scmp.ne.s32.totalorder %s67, %s81
    %p83 = scmp.eq.s32.totalorder %s15, 0
    %p84 = por %p82, %p83
    %s85 = ssub.s32 %s9, %s16
    %p86 = scmp.eq.s32.totalorder %s85, 0
    %s88 = sadd.s32 %s87, 1
    %s89 = scalar_select %p86, %s87, %s88
    %p92 = pneg %p86
    %p93 = scmp.eq.s32.totalorder %s9, 1
    %p94 = por %p92, %p93
    %p95 = scmp.ne.s32.totalorder %s87, %s90
    %p96 = scmp.eq.s32.totalorder %s9, 0
    %p97 = por %p95, %p96
    %p98 = scmp.ne.s32.totalorder %s87, %s90
    %p99 = scmp.eq.s32.totalorder %s14, 1
    %p100 = por %p98, %p99
    %p101 = scmp.ne.s32.totalorder %s90, %s91
    %p102 = scmp.eq.s32.totalorder %s14, 0
    %p103 = por %p101, %p102
    %p104 = scmp.ne.s32.totalorder %s90, %s91
    %p105 = scmp.eq.s32.totalorder %s15, 1
    %p106 = por %p104, %p105
    %p108 = scmp.ne.s32.totalorder %s91, %s107
    %p109 = scmp.eq.s32.totalorder %s15, 0
    %p110 = por %p108, %p109
    %p111 = scmp.le.s32.totalorder 1, %s9
    %p112 = scmp.lt.s32.totalorder %s9, 3
    %p113 = pnand %p111, %p112
    %p114 = pneg %p113
    // Predicated region
    $region9: #{double_conv_forward.5} parent=5 // pred_check
      _
    $region10: #{double_conv_forward.5} parent=5 // pred_check_branch
      %116 = sbr.rel (%p113) target = $region12
    $region11: #{double_conv_forward.5} parent=5 // pred_region
      %s117 = ssub.s32 %s9, 1
      // Predicated region
      $region13: #{double_conv_forward.5} parent=11 // pred_check
        %p118 = pneg %p56
      $region14: #{double_conv_forward.5} parent=11 // pred_check_branch
        %120 = sbr.rel (%p118) target = $region16
      $region15: #{double_conv_forward.5} parent=11 // pred_region
        _
      $region16: #{double_conv_forward.5} parent=11 // pred_fallthru
        _
      // Predicated region
      $region17: #{double_conv_forward.5} parent=11 // pred_check
        %p121 = pneg %p77
      $region18: #{double_conv_forward.5} parent=11 // pred_check_branch
        %123 = sbr.rel (%p121) target = $region20
      $region19: #{double_conv_forward.5} parent=11 // pred_region
        _
      $region20: #{double_conv_forward.5} parent=11 // pred_fallthru
        _
    $region12: #{double_conv_forward.5} parent=5 // pred_fallthru
      _
    %p124 = scmp.lt.s32.totalorder %s9, 2
    // Predicated region
    $region21: #{double_conv_forward.5} parent=5 // pred_check
      %p125 = pneg %p124
    $region22: #{double_conv_forward.5} parent=5 // pred_check_branch
      %127 = sbr.rel (%p125) target = $region24
    $region23: #{double_conv_forward.5} parent=5 // pred_region
      // Predicated region
      $region25: #{double_conv_forward.5} parent=23 // pred_check
        %p128 = pneg %p29
      $region26: #{double_conv_forward.5} parent=23 // pred_check_branch
        %130 = sbr.rel (%p128) target = $region28
      $region27: #{double_conv_forward.5} parent=23 // pred_region
        %p131 = scmp.lt.s32.totalorder %s9, 1
        %s132 = scalar_select %p131, %s9, 1
        %s133 = smul.addr %s132, 32
        %s134 = smul.addr %s133, 8
        %s135 = scalar_lea.vmem %s0, %s134
      $region28: #{double_conv_forward.5} parent=23 // pred_fallthru
        _
    $region24: #{double_conv_forward.5} parent=5 // pred_fallthru
      _
    %p136 = scmp.le.s32.totalorder 1, %s9
    %p137 = scmp.lt.s32.totalorder %s9, 3
    %p138 = pnand %p136, %p137
    %p139 = pneg %p138
    // Predicated region
    $region29: #{double_conv_forward.5} parent=5 // pred_check
      _
    $region30: #{double_conv_forward.5} parent=5 // pred_check_branch
      %141 = sbr.rel (%p138) target = $region32
    $region31: #{double_conv_forward.5} parent=5 // pred_region
      %s142 = ssub.s32 %s9, 1
      %p143 = scmp.lt.s32.totalorder %s14, 1
      %s144 = scalar_select %p143, %s14, 1
      %s145 = smul.addr %s144, 32
      %s146 = smul.addr %s145, 8
      %s147 = scalar_lea.vmem %s0, %s146
      %p148 = pneg %p35
      %p149 = pneg %p32
      %p150 = pneg %p56
      %p151 = pneg %p53
      %p152 = pneg %p77
      %p153 = pneg %p74
      %p154 = pneg %p103
      %p155 = pneg %p100
      %p156 = scmp.lt.s32.totalorder %s14, 1
      %s157 = scalar_select %p156, %s14, 1
      %s158 = smul.addr %s157, 32
      %s159 = smul.addr %s158, 8
      %s160 = scalar_lea.vmem %s3, %s159
      %p161 = scmp.lt.s32.totalorder %s14, 1
      %s162 = scalar_select %p161, %s14, 1
      %s163 = smul.addr %s162, 32
      %s164 = smul.addr %s163, 8
      %s165 = scalar_lea.vmem %s0, %s164
      %p166 = scmp.lt.s32.totalorder %s14, 1
      %s167 = scalar_select %p166, %s14, 1
      %s168 = smul.addr %s167, 32
      %s169 = smul.addr %s168, 8
      %s170 = scalar_lea.vmem %s3, %s169
      %v171 = vld [vmem:[%s165] sm:$0xff]
      %v172 = vld [vmem:[%s165 + $0x8] sm:$0xff]
      %v173 = vld [vmem:[%s165 + $0x10] sm:$0xff]
      %v174 = vld [vmem:[%s165 + $0x18] sm:$0xff]
      %v175 = vld [vmem:[%s165 + $0x20] sm:$0xff]
      %v176 = vld [vmem:[%s165 + $0x28] sm:$0xff]
      %v177 = vld [vmem:[%s165 + $0x30] sm:$0xff]
      %v178 = vld [vmem:[%s165 + $0x38] sm:$0xff]
      %v179 = vld [vmem:[%s165 + $0x40] sm:$0xff]
      %v180 = vld [vmem:[%s165 + $0x48] sm:$0xff]
      %v181 = vld [vmem:[%s165 + $0x50] sm:$0xff]
      %v182 = vld [vmem:[%s165 + $0x58] sm:$0xff]
      %v183 = vld [vmem:[%s165 + $0x60] sm:$0xff]
      %v184 = vld [vmem:[%s165 + $0x68] sm:$0xff]
      %v185 = vld [vmem:[%s165 + $0x70] sm:$0xff]
      %v186 = vld [vmem:[%s165 + $0x78] sm:$0xff]
      %v187 = vld [vmem:[%s165 + $0x80] sm:$0xff]
      %v188 = vld [vmem:[%s165 + $0x88] sm:$0xff]
      %v189 = vld [vmem:[%s165 + $0x90] sm:$0xff]
      %v190 = vld [vmem:[%s165 + $0x98] sm:$0xff]
      %v191 = vld [vmem:[%s165 + $0xa0] sm:$0xff]
      %v192 = vld [vmem:[%s165 + $0xa8] sm:$0xff]
      %v193 = vld [vmem:[%s165 + $0xb0] sm:$0xff]
      %v194 = vld [vmem:[%s165 + $0xb8] sm:$0xff]
      %v195 = vld [vmem:[%s165 + $0xc0] sm:$0xff]
      %v196 = vld [vmem:[%s165 + $0xc8] sm:$0xff]
      %v197 = vld [vmem:[%s165 + $0xd0] sm:$0xff]
      %v198 = vld [vmem:[%s165 + $0xd8] sm:$0xff]
      %v199 = vld [vmem:[%s165 + $0xe0] sm:$0xff]
      %v200 = vld [vmem:[%s165 + $0xe8] sm:$0xff]
      %v201 = vld [vmem:[%s165 + $0xf0] sm:$0xff]
      %v202 = vld [vmem:[%s165 + $0xf8] sm:$0xff]
      %v203 = vld [vmem:[%s1] sm:$0x1]
      %v205 = vlaneseq
      %v206 = vshrl.u32 %v205, 7
      %v207 = vsub.s32 0, %v206
      %v208 = vrot.slane %v203, %v207
      %v210 = vmul.f32 %v171, %v208
      %v211 = vmul.f32 %v172, %v208
      %v212 = vmul.f32 %v173, %v208
      %v213 = vmul.f32 %v174, %v208
      %v214 = vmul.f32 %v175, %v208
      %v215 = vmul.f32 %v176, %v208
      %v216 = vmul.f32 %v177, %v208
      %v217 = vmul.f32 %v178, %v208
      %v218 = vmul.f32 %v179, %v208
      %v219 = vmul.f32 %v180, %v208
      %v220 = vmul.f32 %v181, %v208
      %v221 = vmul.f32 %v182, %v208
      %v222 = vmul.f32 %v183, %v208
      %v223 = vmul.f32 %v184, %v208
      %v224 = vmul.f32 %v185, %v208
      %v225 = vmul.f32 %v186, %v208
      %v226 = vmul.f32 %v187, %v208
      %v227 = vmul.f32 %v188, %v208
      %v228 = vmul.f32 %v189, %v208
      %v229 = vmul.f32 %v190, %v208
      %v230 = vmul.f32 %v191, %v208
      %v231 = vmul.f32 %v192, %v208
      %v232 = vmul.f32 %v193, %v208
      %v233 = vmul.f32 %v194, %v208
      %v234 = vmul.f32 %v195, %v208
      %v235 = vmul.f32 %v196, %v208
      %v236 = vmul.f32 %v197, %v208
      %v237 = vmul.f32 %v198, %v208
      %v238 = vmul.f32 %v199, %v208
      %v239 = vmul.f32 %v200, %v208
      %v240 = vmul.f32 %v201, %v208
      %v241 = vmul.f32 %v202, %v208
      %v242 = vld [vmem:[%s2] sm:$0x1]
      %v244 = vlaneseq
      %v245 = vshrl.u32 %v244, 7
      %v246 = vsub.s32 0, %v245
      %v247 = vrot.slane %v242, %v246
      %v249 = vadd.f32 %v210, %v247
      %v250 = vadd.f32 %v211, %v247
      %v251 = vadd.f32 %v212, %v247
      %v252 = vadd.f32 %v213, %v247
      %v253 = vadd.f32 %v214, %v247
      %v254 = vadd.f32 %v215, %v247
      %v255 = vadd.f32 %v216, %v247
      %v256 = vadd.f32 %v217, %v247
      %v257 = vadd.f32 %v218, %v247
      %v258 = vadd.f32 %v219, %v247
      %v259 = vadd.f32 %v220, %v247
      %v260 = vadd.f32 %v221, %v247
      %v261 = vadd.f32 %v222, %v247
      %v262 = vadd.f32 %v223, %v247
      %v263 = vadd.f32 %v224, %v247
      %v264 = vadd.f32 %v225, %v247
      %v265 = vadd.f32 %v226, %v247
      %v266 = vadd.f32 %v227, %v247
      %v267 = vadd.f32 %v228, %v247
      %v268 = vadd.f32 %v229, %v247
      %v269 = vadd.f32 %v230, %v247
      %v270 = vadd.f32 %v231, %v247
      %v271 = vadd.f32 %v232, %v247
      %v272 = vadd.f32 %v233, %v247
      %v273 = vadd.f32 %v234, %v247
      %v274 = vadd.f32 %v235, %v247
      %v275 = vadd.f32 %v236, %v247
      %v276 = vadd.f32 %v237, %v247
      %v277 = vadd.f32 %v238, %v247
      %v278 = vadd.f32 %v239, %v247
      %v279 = vadd.f32 %v240, %v247
      %v280 = vadd.f32 %v241, %v247
      %v281 = vmax.f32 %v249, 0.0
      %v282 = vmax.f32 %v250, 0.0
      %v283 = vmax.f32 %v251, 0.0
      %v284 = vmax.f32 %v252, 0.0
      %v285 = vmax.f32 %v253, 0.0
      %v286 = vmax.f32 %v254, 0.0
      %v287 = vmax.f32 %v255, 0.0
      %v288 = vmax.f32 %v256, 0.0
      %v289 = vmax.f32 %v257, 0.0
      %v290 = vmax.f32 %v258, 0.0
      %v291 = vmax.f32 %v259, 0.0
      %v292 = vmax.f32 %v260, 0.0
      %v293 = vmax.f32 %v261, 0.0
      %v294 = vmax.f32 %v262, 0.0
      %v295 = vmax.f32 %v263, 0.0
      %v296 = vmax.f32 %v264, 0.0
      %v297 = vmax.f32 %v265, 0.0
      %v298 = vmax.f32 %v266, 0.0
      %v299 = vmax.f32 %v267, 0.0
      %v300 = vmax.f32 %v268, 0.0
      %v301 = vmax.f32 %v269, 0.0
      %v302 = vmax.f32 %v270, 0.0
      %v303 = vmax.f32 %v271, 0.0
      %v304 = vmax.f32 %v272, 0.0
      %v305 = vmax.f32 %v273, 0.0
      %v306 = vmax.f32 %v274, 0.0
      %v307 = vmax.f32 %v275, 0.0
      %v308 = vmax.f32 %v276, 0.0
      %v309 = vmax.f32 %v277, 0.0
      %v310 = vmax.f32 %v278, 0.0
      %v311 = vmax.f32 %v279, 0.0
      %v312 = vmax.f32 %v280, 0.0
      %313 = vst [vmem:[%s170] sm:$0xff] %v281
      %314 = vst [vmem:[%s170 + $0x8] sm:$0xff] %v282
      %315 = vst [vmem:[%s170 + $0x10] sm:$0xff] %v283
      %316 = vst [vmem:[%s170 + $0x18] sm:$0xff] %v284
      %317 = vst [vmem:[%s170 + $0x20] sm:$0xff] %v285
      %318 = vst [vmem:[%s170 + $0x28] sm:$0xff] %v286
      %319 = vst [vmem:[%s170 + $0x30] sm:$0xff] %v287
      %320 = vst [vmem:[%s170 + $0x38] sm:$0xff] %v288
      %321 = vst [vmem:[%s170 + $0x40] sm:$0xff] %v289
      %322 = vst [vmem:[%s170 + $0x48] sm:$0xff] %v290
      %323 = vst [vmem:[%s170 + $0x50] sm:$0xff] %v291
      %324 = vst [vmem:[%s170 + $0x58] sm:$0xff] %v292
      %325 = vst [vmem:[%s170 + $0x60] sm:$0xff] %v293
      %326 = vst [vmem:[%s170 + $0x68] sm:$0xff] %v294
      %327 = vst [vmem:[%s170 + $0x70] sm:$0xff] %v295
      %328 = vst [vmem:[%s170 + $0x78] sm:$0xff] %v296
      %329 = vst [vmem:[%s170 + $0x80] sm:$0xff] %v297
      %330 = vst [vmem:[%s170 + $0x88] sm:$0xff] %v298
      %331 = vst [vmem:[%s170 + $0x90] sm:$0xff] %v299
      %332 = vst [vmem:[%s170 + $0x98] sm:$0xff] %v300
      %333 = vst [vmem:[%s170 + $0xa0] sm:$0xff] %v301
      %334 = vst [vmem:[%s170 + $0xa8] sm:$0xff] %v302
      %335 = vst [vmem:[%s170 + $0xb0] sm:$0xff] %v303
      %336 = vst [vmem:[%s170 + $0xb8] sm:$0xff] %v304
      %337 = vst [vmem:[%s170 + $0xc0] sm:$0xff] %v305
      %338 = vst [vmem:[%s170 + $0xc8] sm:$0xff] %v306
      %339 = vst [vmem:[%s170 + $0xd0] sm:$0xff] %v307
      %340 = vst [vmem:[%s170 + $0xd8] sm:$0xff] %v308
      %341 = vst [vmem:[%s170 + $0xe0] sm:$0xff] %v309
      %342 = vst [vmem:[%s170 + $0xe8] sm:$0xff] %v310
      %343 = vst [vmem:[%s170 + $0xf0] sm:$0xff] %v311
      %344 = vst [vmem:[%s170 + $0xf8] sm:$0xff] %v312
      %p345 = scmp.lt.s32.totalorder %s14, 1
      %s346 = scalar_select %p345, %s14, 1
      %s347 = smul.addr %s346, 32
      %s348 = smul.addr %s347, 8
      %s349 = scalar_lea.vmem %s3, %s348
      // Predicated region
      $region33: #{double_conv_forward.5} parent=31 // pred_check
        %p350 = pneg %p100
      $region34: #{double_conv_forward.5} parent=31 // pred_check_branch
        %352 = sbr.rel (%p350) target = $region36
      $region35: #{double_conv_forward.5} parent=31 // pred_region
        _
      $region36: #{double_conv_forward.5} parent=31 // pred_fallthru
        _
    $region32: #{double_conv_forward.5} parent=5 // pred_fallthru
      _
    %p353 = scmp.le.s32.totalorder 2, %s9
    // Predicated region
    $region37: #{double_conv_forward.5} parent=5 // pred_check
      %p354 = pneg %p353
    $region38: #{double_conv_forward.5} parent=5 // pred_check_branch
      %356 = sbr.rel (%p354) target = $region40
    $region39: #{double_conv_forward.5} parent=5 // pred_region
      %s357 = ssub.s32 %s9, 2
      // Predicated region
      $region41: #{double_conv_forward.5} parent=39 // pred_check
        %p358 = pneg %p106
      $region42: #{double_conv_forward.5} parent=39 // pred_check_branch
        %360 = sbr.rel (%p358) target = $region44
      $region43: #{double_conv_forward.5} parent=39 // pred_region
        %p361 = scmp.lt.s32.totalorder %s15, 1
        %s362 = scalar_select %p361, %s15, 1
        %s363 = smul.addr %s362, 32
        %s364 = smul.addr %s363, 8
        %s365 = scalar_lea.vmem %s3, %s364
      $region44: #{double_conv_forward.5} parent=39 // pred_fallthru
        _
    $region40: #{double_conv_forward.5} parent=5 // pred_fallthru
      _
  $region6: #{double_conv_forward.5} parent=0 // loop_footer
    %s13 = sadd.s32 1, %s9
  $region7: #{double_conv_forward.5} parent=0 // loop_footer_branch
    %8 = sbr.rel target = $region3
  $region8: #{double_conv_forward.5} parent=0 // loop_exit
    _

// kernel: double_conv_forward.3
$region0: #{double_conv_forward.3}
  #allocation0 [shape = 'u32[]', space=smem, size = 0x4, offset = 0x4, fixed_abs, tag = 'smem constant byte address 0x4 - core index']
  #allocation1 [shape = 'u32[144,128]{1,0:T(1,128)}', space=vmem, size = 0x12000, scoped, tag = 'internal scratch']
  #allocation2 [shape = 'f32[18,18,128]{2,1,0:T(8,128)}', space=vmem, size = 0x36000, scoped, tag = 'scratch operand']
  #allocation3 [shape = 'f32[256,1152]{1,0:T(8,128)}', space=vmem, size = 0x120000, scoped, tag = 'scratch operand']
  %s0 = inlined_call_operand.vmem [shape: f32[2,16,16,128], index: 0, kind: input, shape index: {}]
  %s1 = inlined_call_operand.vmem [shape: f32[1,128], index: 1, kind: input, shape index: {}]
  %s2 = inlined_call_operand.vmem [shape: f32[1,128], index: 2, kind: input, shape index: {}]
  %s3 = inlined_call_operand.vmem [shape: f32[1152,128], index: 3, kind: input, shape index: {}]
  %s4 = inlined_call_operand.vmem [shape: f32[1,128], index: 4, kind: input, shape index: {}]
  %s5 = inlined_call_operand.vmem [shape: f32[2,16,16,128], index: 5, kind: output, shape index: {0}]
  %s6 = inlined_call_operand.vmem [shape: f32[2,1,128], index: 6, kind: output, shape index: {1}]
  %s7 = inlined_call_operand.vmem [shape: f32[2,1,128], index: 7, kind: output, shape index: {2}]
  %8 = xla_tuple %s5, %s6, %s7
  %s9 = sld [smem:[#allocation0]]
  $region69: #{double_conv_forward.3} parent=0
    _
  %s11 = ssub.s32 1, %s9
  %s12 = scalar_select 0, %s11, %s9
  loop: start=0, step=1, limit=4
  $region2: #{double_conv_forward.3} parent=0 // loop_pre_header
    _
  $region3: #{double_conv_forward.3} parent=0 // loop_header
    %s14 = sphi 0, %s18
    %p15 = scmp.ge.s32.totalorder %s14, 4
    %s24 = sphi 0, %s26
    %s27 = sphi 0, %s24
    %s28 = sphi 0, %s27
    %s44 = sphi 0, %s28
    %s48 = sphi 0, %s48
    %s50 = sphi 0, %s48
    %s51 = sphi 0, %s50
    %s65 = sphi 0, %s51
    %s69 = sphi 0, %s69
    %s71 = sphi 0, %s69
    %s72 = sphi 0, %s71
    %s86 = sphi 0, %s72
    %s90 = sphi 0, %s90
    %s92 = sphi 0, %s90
    %s93 = sphi 0, %s92
    %s107 = sphi 0, %s93
    %s111 = sphi 0, %s111
    %s113 = sphi 0, %s111
    %s114 = sphi 0, %s113
    %s128 = sphi 0, %s114
    %s134 = sphi 0, %s136
    %s137 = sphi 0, %s134
    %s138 = sphi 0, %s137
    %s154 = sphi 0, %s138
    %s160 = sphi 0, %s162
    %s163 = sphi 0, %s160
    %s164 = sphi 0, %s163
    %s180 = sphi 0, %s164
    %s186 = sphi 0, %s188
    %s189 = sphi 0, %s186
    %s190 = sphi 0, %s189
    %s206 = sphi 0, %s190
  $region4: #{double_conv_forward.3} parent=0 // loop_header_branch
    %17 = sbr.rel (%p15) target = $region8
  $region5: #{double_conv_forward.3} parent=0 // loop_body
    %s19 = ssub.s32 %s14, 1
    %s20 = ssub.s32 %s14, 2
    %s21 = sadd.s32 %s14, 1
    %s22 = ssub.s32 %s14, %s21
    %p23 = scmp.eq.s32.totalorder %s22, 0
    %s25 = sadd.s32 %s24, 1
    %s26 = scalar_select %p23, %s24, %s25
    %p29 = pneg %p23
    %p30 = scmp.eq.s32.totalorder %s14, 1
    %p31 = por %p29, %p30
    %p32 = scmp.ne.s32.totalorder %s24, %s27
    %p33 = scmp.eq.s32.totalorder %s14, 0
    %p34 = por %p32, %p33
    %p35 = scmp.ne.s32.totalorder %s24, %s27
    %p36 = scmp.eq.s32.totalorder %s19, 1
    %p37 = por %p35, %p36
    %p38 = scmp.ne.s32.totalorder %s27, %s28
    %p39 = scmp.eq.s32.totalorder %s19, 0
    %p40 = por %p38, %p39
    %p41 = scmp.ne.s32.totalorder %s27, %s28
    %p42 = scmp.eq.s32.totalorder %s20, 1
    %p43 = por %p41, %p42
    %p45 = scmp.ne.s32.totalorder %s28, %s44
    %p46 = scmp.eq.s32.totalorder %s20, 0
    %p47 = por %p45, %p46
    %s49 = sadd.s32 %s48, 1
    %p52 = scmp.eq.s32.totalorder %s14, 1
    %p53 = scmp.ne.s32.totalorder %s48, %s50
    %p54 = scmp.eq.s32.totalorder %s14, 0
    %p55 = por %p53, %p54
    %p56 = scmp.ne.s32.totalorder %s48, %s50
    %p57 = scmp.eq.s32.totalorder %s19, 1
    %p58 = por %p56, %p57
    %p59 = scmp.ne.s32.totalorder %s50, %s51
    %p60 = scmp.eq.s32.totalorder %s19, 0
    %p61 = por %p59, %p60
    %p62 = scmp.ne.s32.totalorder %s50, %s51
    %p63 = scmp.eq.s32.totalorder %s20, 1
    %p64 = por %p62, %p63
    %p66 = scmp.ne.s32.totalorder %s51, %s65
    %p67 = scmp.eq.s32.totalorder %s20, 0
    %p68 = por %p66, %p67
    %s70 = sadd.s32 %s69, 1
    %p73 = scmp.eq.s32.totalorder %s14, 1
    %p74 = scmp.ne.s32.totalorder %s69, %s71
    %p75 = scmp.eq.s32.totalorder %s14, 0
    %p76 = por %p74, %p75
    %p77 = scmp.ne.s32.totalorder %s69, %s71
    %p78 = scmp.eq.s32.totalorder %s19, 1
    %p79 = por %p77, %p78
    %p80 = scmp.ne.s32.totalorder %s71, %s72
    %p81 = scmp.eq.s32.totalorder %s19, 0
    %p82 = por %p80, %p81
    %p83 = scmp.ne.s32.totalorder %s71, %s72
    %p84 = scmp.eq.s32.totalorder %s20, 1
    %p85 = por %p83, %p84
    %p87 = scmp.ne.s32.totalorder %s72, %s86
    %p88 = scmp.eq.s32.totalorder %s20, 0
    %p89 = por %p87, %p88
    %s91 = sadd.s32 %s90, 1
    %p94 = scmp.eq.s32.totalorder %s14, 1
    %p95 = scmp.ne.s32.totalorder %s90, %s92
    %p96 = scmp.eq.s32.totalorder %s14, 0
    %p97 = por %p95, %p96
    %p98 = scmp.ne.s32.totalorder %s90, %s92
    %p99 = scmp.eq.s32.totalorder %s19, 1
    %p100 = por %p98, %p99
    %p101 = scmp.ne.s32.totalorder %s92, %s93
    %p102 = scmp.eq.s32.totalorder %s19, 0
    %p103 = por %p101, %p102
    %p104 = scmp.ne.s32.totalorder %s92, %s93
    %p105 = scmp.eq.s32.totalorder %s20, 1
    %p106 = por %p104, %p105
    %p108 = scmp.ne.s32.totalorder %s93, %s107
    %p109 = scmp.eq.s32.totalorder %s20, 0
    %p110 = por %p108, %p109
    %s112 = sadd.s32 %s111, 1
    %p115 = scmp.eq.s32.totalorder %s14, 1
    %p116 = scmp.ne.s32.totalorder %s111, %s113
    %p117 = scmp.eq.s32.totalorder %s14, 0
    %p118 = por %p116, %p117
    %p119 = scmp.ne.s32.totalorder %s111, %s113
    %p120 = scmp.eq.s32.totalorder %s19, 1
    %p121 = por %p119, %p120
    %p122 = scmp.ne.s32.totalorder %s113, %s114
    %p123 = scmp.eq.s32.totalorder %s19, 0
    %p124 = por %p122, %p123
    %p125 = scmp.ne.s32.totalorder %s113, %s114
    %p126 = scmp.eq.s32.totalorder %s20, 1
    %p127 = por %p125, %p126
    %p129 = scmp.ne.s32.totalorder %s114, %s128
    %p130 = scmp.eq.s32.totalorder %s20, 0
    %p131 = por %p129, %p130
    %s132 = ssub.s32 %s14, %s21
    %p133 = scmp.eq.s32.totalorder %s132, 0
    %s135 = sadd.s32 %s134, 1
    %s136 = scalar_select %p133, %s134, %s135
    %p139 = pneg %p133
    %p140 = scmp.eq.s32.totalorder %s14, 1
    %p141 = por %p139, %p140
    %p142 = scmp.ne.s32.totalorder %s134, %s137
    %p143 = scmp.eq.s32.totalorder %s14, 0
    %p144 = por %p142, %p143
    %p145 = scmp.ne.s32.totalorder %s134, %s137
    %p146 = scmp.eq.s32.totalorder %s19, 1
    %p147 = por %p145, %p146
    %p148 = scmp.ne.s32.totalorder %s137, %s138
    %p149 = scmp.eq.s32.totalorder %s19, 0
    %p150 = por %p148, %p149
    %p151 = scmp.ne.s32.totalorder %s137, %s138
    %p152 = scmp.eq.s32.totalorder %s20, 1
    %p153 = por %p151, %p152
    %p155 = scmp.ne.s32.totalorder %s138, %s154
    %p156 = scmp.eq.s32.totalorder %s20, 0
    %p157 = por %p155, %p156
    %s158 = ssub.s32 %s14, %s21
    %p159 = scmp.eq.s32.totalorder %s158, 0
    %s161 = sadd.s32 %s160, 1
    %s162 = scalar_select %p159, %s160, %s161
    %p165 = pneg %p159
    %p166 = scmp.eq.s32.totalorder %s14, 1
    %p167 = por %p165, %p166
    %p168 = scmp.ne.s32.totalorder %s160, %s163
    %p169 = scmp.eq.s32.totalorder %s14, 0
    %p170 = por %p168, %p169
    %p171 = scmp.ne.s32.totalorder %s160, %s163
    %p172 = scmp.eq.s32.totalorder %s19, 1
    %p173 = por %p171, %p172
    %p174 = scmp.ne.s32.totalorder %s163, %s164
    %p175 = scmp.eq.s32.totalorder %s19, 0
    %p176 = por %p174, %p175
    %p177 = scmp.ne.s32.totalorder %s163, %s164
    %p178 = scmp.eq.s32.totalorder %s20, 1
    %p179 = por %p177, %p178
    %p181 = scmp.ne.s32.totalorder %s164, %s180
    %p182 = scmp.eq.s32.totalorder %s20, 0
    %p183 = por %p181, %p182
    %s184 = ssub.s32 %s14, %s21
    %p185 = scmp.eq.s32.totalorder %s184, 0
    %s187 = sadd.s32 %s186, 1
    %s188 = scalar_select %p185, %s186, %s187
    %p191 = pneg %p185
    %p192 = scmp.eq.s32.totalorder %s14, 1
    %p193 = por %p191, %p192
    %p194 = scmp.ne.s32.totalorder %s186, %s189
    %p195 = scmp.eq.s32.totalorder %s14, 0
    %p196 = por %p194, %p195
    %p197 = scmp.ne.s32.totalorder %s186, %s189
    %p198 = scmp.eq.s32.totalorder %s19, 1
    %p199 = por %p197, %p198
    %p200 = scmp.ne.s32.totalorder %s189, %s190
    %p201 = scmp.eq.s32.totalorder %s19, 0
    %p202 = por %p200, %p201
    %p203 = scmp.ne.s32.totalorder %s189, %s190
    %p204 = scmp.eq.s32.totalorder %s20, 1
    %p205 = por %p203, %p204
    %p207 = scmp.ne.s32.totalorder %s190, %s206
    %p208 = scmp.eq.s32.totalorder %s20, 0
    %p209 = por %p207, %p208
    %p210 = scmp.le.s32.totalorder 1, %s14
    %p211 = scmp.lt.s32.totalorder %s14, 3
    %p212 = pnand %p210, %p211
    %p213 = pneg %p212
    // Predicated region
    $region9: #{double_conv_forward.3} parent=5 // pred_check
      _
    $region10: #{double_conv_forward.3} parent=5 // pred_check_branch
      %215 = sbr.rel (%p212) target = $region12
    $region11: #{double_conv_forward.3} parent=5 // pred_region
      %s216 = ssub.s32 %s14, 1
      // Predicated region
      $region13: #{double_conv_forward.3} parent=11 // pred_check
        %p217 = pneg %p61
      $region14: #{double_conv_forward.3} parent=11 // pred_check_branch
        %219 = sbr.rel (%p217) target = $region16
      $region15: #{double_conv_forward.3} parent=11 // pred_region
        _
      $region16: #{double_conv_forward.3} parent=11 // pred_fallthru
        _
      // Predicated region
      $region17: #{double_conv_forward.3} parent=11 // pred_check
        %p220 = pneg %p82
      $region18: #{double_conv_forward.3} parent=11 // pred_check_branch
        %222 = sbr.rel (%p220) target = $region20
      $region19: #{double_conv_forward.3} parent=11 // pred_region
        _
      $region20: #{double_conv_forward.3} parent=11 // pred_fallthru
        _
      // Predicated region
      $region21: #{double_conv_forward.3} parent=11 // pred_check
        %p223 = pneg %p103
      $region22: #{double_conv_forward.3} parent=11 // pred_check_branch
        %225 = sbr.rel (%p223) target = $region24
      $region23: #{double_conv_forward.3} parent=11 // pred_region
        _
      $region24: #{double_conv_forward.3} parent=11 // pred_fallthru
        _
      // Predicated region
      $region25: #{double_conv_forward.3} parent=11 // pred_check
        %p226 = pneg %p124
      $region26: #{double_conv_forward.3} parent=11 // pred_check_branch
        %228 = sbr.rel (%p226) target = $region28
      $region27: #{double_conv_forward.3} parent=11 // pred_region
        _
      $region28: #{double_conv_forward.3} parent=11 // pred_fallthru
        _
    $region12: #{double_conv_forward.3} parent=5 // pred_fallthru
      _
    %p229 = scmp.lt.s32.totalorder %s14, 2
    // Predicated region
    $region29: #{double_conv_forward.3} parent=5 // pred_check
      %p230 = pneg %p229
    $region30: #{double_conv_forward.3} parent=5 // pred_check_branch
      %232 = sbr.rel (%p230) target = $region32
    $region31: #{double_conv_forward.3} parent=5 // pred_region
      // Predicated region
      $region33: #{double_conv_forward.3} parent=31 // pred_check
        %p233 = pneg %p34
      $region34: #{double_conv_forward.3} parent=31 // pred_check_branch
        %235 = sbr.rel (%p233) target = $region36
      $region35: #{double_conv_forward.3} parent=31 // pred_region
        %p236 = scmp.lt.s32.totalorder %s14, 1
        %s237 = scalar_select %p236, %s14, 1
        %s238 = smul.addr %s237, 32
        %s239 = smul.addr %s238, 8
        %s240 = scalar_lea.vmem %s0, %s239
      $region36: #{double_conv_forward.3} parent=31 // pred_fallthru
        _
    $region32: #{double_conv_forward.3} parent=5 // pred_fallthru
      _
    %p241 = scmp.le.s32.totalorder 1, %s14
    %p242 = scmp.lt.s32.totalorder %s14, 3
    %p243 = pnand %p241, %p242
    %p244 = pneg %p243
    // Predicated region
    $region37: #{double_conv_forward.3} parent=5 // pred_check
      _
    $region38: #{double_conv_forward.3} parent=5 // pred_check_branch
      %246 = sbr.rel (%p243) target = $region40
    $region39: #{double_conv_forward.3} parent=5 // pred_region
      %s247 = ssub.s32 %s14, 1
      %p248 = scmp.lt.s32.totalorder %s19, 1
      %s249 = scalar_select %p248, %s19, 1
      %s250 = smul.addr %s249, 32
      %s251 = smul.addr %s250, 8
      %s252 = scalar_lea.vmem %s0, %s251
      %p253 = pneg %p40
      %p254 = pneg %p37
      %p255 = pneg %p61
      %p256 = pneg %p58
      %p257 = pneg %p82
      %p258 = pneg %p79
      %p259 = pneg %p103
      %p260 = pneg %p100
      %p261 = pneg %p124
      %p262 = pneg %p121
      %p263 = pneg %p150
      %p264 = pneg %p147
      %p265 = scmp.lt.s32.totalorder %s19, 1
      %s266 = scalar_select %p265, %s19, 1
      %s267 = smul.addr %s266, 32
      %s268 = smul.addr %s267, 8
      %s269 = scalar_lea.vmem %s5, %s268
      %p270 = pneg %p176
      %p271 = pneg %p173
      %p272 = scmp.lt.s32.totalorder %s19, 1
      %s273 = scalar_select %p272, %s19, 1
      %s274 = scalar_lea.vmem %s6, %s273
      %p275 = pneg %p202
      %p276 = pneg %p199
      %p277 = scmp.lt.s32.totalorder %s19, 1
      %s278 = scalar_select %p277, %s19, 1
      %s279 = scalar_lea.vmem %s7, %s278
      %p280 = scmp.lt.s32.totalorder %s19, 1
      %s281 = scalar_select %p280, %s19, 1
      %s282 = smul.addr %s281, 32
      %s283 = smul.addr %s282, 8
      %s284 = scalar_lea.vmem %s0, %s283
      %p285 = scmp.lt.s32.totalorder %s19, 1
      %s286 = scalar_select %p285, %s19, 1
      %s287 = smul.addr %s286, 32
      %s288 = smul.addr %s287, 8
      %s289 = scalar_lea.vmem %s5, %s288
      %p290 = scmp.lt.s32.totalorder %s19, 1
      %s291 = scalar_select %p290, %s19, 1
      %s292 = scalar_lea.vmem %s6, %s291
      %p293 = scmp.lt.s32.totalorder %s19, 1
      %s294 = scalar_select %p293, %s19, 1
      %s295 = scalar_lea.vmem %s7, %s294
      %v296 = vld [vmem:[%s284] sm:$0xff]
      %v297 = vld [vmem:[%s284 + $0x8] sm:$0xff]
      %v298 = vld [vmem:[%s284 + $0x10] sm:$0xff]
      %v299 = vld [vmem:[%s284 + $0x18] sm:$0xff]
      %v300 = vld [vmem:[%s284 + $0x20] sm:$0xff]
      %v301 = vld [vmem:[%s284 + $0x28] sm:$0xff]
      %v302 = vld [vmem:[%s284 + $0x30] sm:$0xff]
      %v303 = vld [vmem:[%s284 + $0x38] sm:$0xff]
      %v304 = vld [vmem:[%s284 + $0x40] sm:$0xff]
      %v305 = vld [vmem:[%s284 + $0x48] sm:$0xff]
      %v306 = vld [vmem:[%s284 + $0x50] sm:$0xff]
      %v307 = vld [vmem:[%s284 + $0x58] sm:$0xff]
      %v308 = vld [vmem:[%s284 + $0x60] sm:$0xff]
      %v309 = vld [vmem:[%s284 + $0x68] sm:$0xff]
      %v310 = vld [vmem:[%s284 + $0x70] sm:$0xff]
      %v311 = vld [vmem:[%s284 + $0x78] sm:$0xff]
      %v312 = vld [vmem:[%s284 + $0x80] sm:$0xff]
      %v313 = vld [vmem:[%s284 + $0x88] sm:$0xff]
      %v314 = vld [vmem:[%s284 + $0x90] sm:$0xff]
      %v315 = vld [vmem:[%s284 + $0x98] sm:$0xff]
      %v316 = vld [vmem:[%s284 + $0xa0] sm:$0xff]
      %v317 = vld [vmem:[%s284 + $0xa8] sm:$0xff]
      %v318 = vld [vmem:[%s284 + $0xb0] sm:$0xff]
      %v319 = vld [vmem:[%s284 + $0xb8] sm:$0xff]
      %v320 = vld [vmem:[%s284 + $0xc0] sm:$0xff]
      %v321 = vld [vmem:[%s284 + $0xc8] sm:$0xff]
      %v322 = vld [vmem:[%s284 + $0xd0] sm:$0xff]
      %v323 = vld [vmem:[%s284 + $0xd8] sm:$0xff]
      %v324 = vld [vmem:[%s284 + $0xe0] sm:$0xff]
      %v325 = vld [vmem:[%s284 + $0xe8] sm:$0xff]
      %v326 = vld [vmem:[%s284 + $0xf0] sm:$0xff]
      %v327 = vld [vmem:[%s284 + $0xf8] sm:$0xff]
      %328 = vst [vmem:[#allocation2] sm:$0xff] 0.0
      %329 = vst [vmem:[#allocation2 + $0x8] sm:$0xff] 0.0
      %330 = vst [vmem:[#allocation2 + $0x10] sm:$0x3] 0.0
      %s331 = scalar_lea.vmem [#allocation2], 408
      %332 = vst [vmem:[%s331] sm:$0xff] 0.0
      %333 = vst [vmem:[%s331 + $0x8] sm:$0xff] 0.0
      %334 = vst [vmem:[%s331 + $0x10] sm:$0x3] 0.0
      %335 = vst [vmem:[#allocation2] sm:$0x1] 0.0
      %336 = vst [vmem:[#allocation2 + $0x18] sm:$0x1] 0.0
      %337 = vst [vmem:[#allocation2 + $0x30] sm:$0x1] 0.0
      %338 = vst [vmem:[#allocation2 + $0x48] sm:$0x1] 0.0
      %339 = vst [vmem:[#allocation2 + $0x60] sm:$0x1] 0.0
      %340 = vst [vmem:[#allocation2 + $0x78] sm:$0x1] 0.0
      %341 = vst [vmem:[#allocation2 + $0x90] sm:$0x1] 0.0
      %342 = vst [vmem:[#allocation2 + $0xa8] sm:$0x1] 0.0
      %343 = vst [vmem:[#allocation2 + $0xc0] sm:$0x1] 0.0
      %344 = vst [vmem:[#allocation2 + $0xd8] sm:$0x1] 0.0
      %345 = vst [vmem:[#allocation2 + $0xf0] sm:$0x1] 0.0
      %346 = vst [vmem:[#allocation2 + $0x108] sm:$0x1] 0.0
      %347 = vst [vmem:[#allocation2 + $0x120] sm:$0x1] 0.0
      %348 = vst [vmem:[#allocation2 + $0x138] sm:$0x1] 0.0
      %349 = vst [vmem:[#allocation2 + $0x150] sm:$0x1] 0.0
      %350 = vst [vmem:[#allocation2 + $0x168] sm:$0x1] 0.0
      %351 = vst [vmem:[#allocation2 + $0x180] sm:$0x1] 0.0
      %352 = vst [vmem:[#allocation2 + $0x198] sm:$0x1] 0.0
      %353 = vst [vmem:[#allocation2 + $0x11] sm:$0x1] 0.0
      %354 = vst [vmem:[#allocation2 + $0x29] sm:$0x1] 0.0
      %355 = vst [vmem:[#allocation2 + $0x41] sm:$0x1] 0.0
      %356 = vst [vmem:[#allocation2 + $0x59] sm:$0x1] 0.0
      %357 = vst [vmem:[#allocation2 + $0x71] sm:$0x1] 0.0
      %358 = vst [vmem:[#allocation2 + $0x89] sm:$0x1] 0.0
      %359 = vst [vmem:[#allocation2 + $0xa1] sm:$0x1] 0.0
      %360 = vst [vmem:[#allocation2 + $0xb9] sm:$0x1] 0.0
      %361 = vst [vmem:[#allocation2 + $0xd1] sm:$0x1] 0.0
      %362 = vst [vmem:[#allocation2 + $0xe9] sm:$0x1] 0.0
      %363 = vst [vmem:[#allocation2 + $0x101] sm:$0x1] 0.0
      %364 = vst [vmem:[#allocation2 + $0x119] sm:$0x1] 0.0
      %365 = vst [vmem:[#allocation2 + $0x131] sm:$0x1] 0.0
      %366 = vst [vmem:[#allocation2 + $0x149] sm:$0x1] 0.0
      %367 = vst [vmem:[#allocation2 + $0x161] sm:$0x1] 0.0
      %368 = vst [vmem:[#allocation2 + $0x179] sm:$0x1] 0.0
      %369 = vst [vmem:[#allocation2 + $0x191] sm:$0x1] 0.0
      %370 = vst [vmem:[#allocation2 + $0x1a9] sm:$0x1] 0.0
      %s371 = scalar_lea.vmem [#allocation2], 24
      %372 = vst [vmem:[%s371 + $0x1] sm:$0xff] %v296
      %373 = vst [vmem:[%s371 + $0x9] sm:$0xff] %v297
      %374 = vst [vmem:[%s371 + $0x19] sm:$0xff] %v298
      %375 = vst [vmem:[%s371 + $0x21] sm:$0xff] %v299
      %376 = vst [vmem:[%s371 + $0x31] sm:$0xff] %v300
      %377 = vst [vmem:[%s371 + $0x39] sm:$0xff] %v301
      %378 = vst [vmem:[%s371 + $0x49] sm:$0xff] %v302
      %379 = vst [vmem:[%s371 + $0x51] sm:$0xff] %v303
      %380 = vst [vmem:[%s371 + $0x61] sm:$0xff] %v304
      %381 = vst [vmem:[%s371 + $0x69] sm:$0xff] %v305
      %382 = vst [vmem:[%s371 + $0x79] sm:$0xff] %v306
      %383 = vst [vmem:[%s371 + $0x81] sm:$0xff] %v307
      %384 = vst [vmem:[%s371 + $0x91] sm:$0xff] %v308
      %385 = vst [vmem:[%s371 + $0x99] sm:$0xff] %v309
      %386 = vst [vmem:[%s371 + $0xa9] sm:$0xff] %v310
      %387 = vst [vmem:[%s371 + $0xb1] sm:$0xff] %v311
      %388 = vst [vmem:[%s371 + $0xc1] sm:$0xff] %v312
      %389 = vst [vmem:[%s371 + $0xc9] sm:$0xff] %v313
      %390 = vst [vmem:[%s371 + $0xd9] sm:$0xff] %v314
      %391 = vst [vmem:[%s371 + $0xe1] sm:$0xff] %v315
      %392 = vst [vmem:[%s371 + $0xf1] sm:$0xff] %v316
      %393 = vst [vmem:[%s371 + $0xf9] sm:$0xff] %v317
      %394 = vst [vmem:[%s371 + $0x109] sm:$0xff] %v318
      %395 = vst [vmem:[%s371 + $0x111] sm:$0xff] %v319
      %396 = vst [vmem:[%s371 + $0x121] sm:$0xff] %v320
      %397 = vst [vmem:[%s371 + $0x129] sm:$0xff] %v321
      %398 = vst [vmem:[%s371 + $0x139] sm:$0xff] %v322
      %399 = vst [vmem:[%s371 + $0x141] sm:$0xff] %v323
      %400 = vst [vmem:[%s371 + $0x151] sm:$0xff] %v324
      %401 = vst [vmem:[%s371 + $0x159] sm:$0xff] %v325
      %402 = vst [vmem:[%s371 + $0x169] sm:$0xff] %v326
      %403 = vst [vmem:[%s371 + $0x171] sm:$0xff] %v327
      %v404 = vld [vmem:[#allocation2] sm:$0xff]
      %v405 = vld [vmem:[#allocation2 + $0x8] sm:$0xff]
      %v406 = vld [vmem:[#allocation2 + $0x18] sm:$0xff]
      %v407 = vld [vmem:[#allocation2 + $0x20] sm:$0xff]
      %v408 = vld [vmem:[#allocation2 + $0x30] sm:$0xff]
      %v409 = vld [vmem:[#allocation2 + $0x38] sm:$0xff]
      %v410 = vld [vmem:[#allocation2 + $0x48] sm:$0xff]
      %v411 = vld [vmem:[#allocation2 + $0x50] sm:$0xff]
      %v412 = vld [vmem:[#allocation2 + $0x60] sm:$0xff]
      %v413 = vld [vmem:[#allocation2 + $0x68] sm:$0xff]
      %v414 = vld [vmem:[#allocation2 + $0x78] sm:$0xff]
      %v415 = vld [vmem:[#allocation2 + $0x80] sm:$0xff]
      %v416 = vld [vmem:[#allocation2 + $0x90] sm:$0xff]
      %v417 = vld [vmem:[#allocation2 + $0x98] sm:$0xff]
      %v418 = vld [vmem:[#allocation2 + $0xa8] sm:$0xff]
      %v419 = vld [vmem:[#allocation2 + $0xb0] sm:$0xff]
      %v420 = vld [vmem:[#allocation2 + $0xc0] sm:$0xff]
      %v421 = vld [vmem:[#allocation2 + $0xc8] sm:$0xff]
      %v422 = vld [vmem:[#allocation2 + $0xd8] sm:$0xff]
      %v423 = vld [vmem:[#allocation2 + $0xe0] sm:$0xff]
      %v424 = vld [vmem:[#allocation2 + $0xf0] sm:$0xff]
      %v425 = vld [vmem:[#allocation2 + $0xf8] sm:$0xff]
      %v426 = vld [vmem:[#allocation2 + $0x108] sm:$0xff]
      %v427 = vld [vmem:[#allocation2 + $0x110] sm:$0xff]
      %v428 = vld [vmem:[#allocation2 + $0x120] sm:$0xff]
      %v429 = vld [vmem:[#allocation2 + $0x128] sm:$0xff]
      %v430 = vld [vmem:[#allocation2 + $0x138] sm:$0xff]
      %v431 = vld [vmem:[#allocation2 + $0x140] sm:$0xff]
      %v432 = vld [vmem:[#allocation2 + $0x150] sm:$0xff]
      %v433 = vld [vmem:[#allocation2 + $0x158] sm:$0xff]
      %v434 = vld [vmem:[#allocation2 + $0x168] sm:$0xff]
      %v435 = vld [vmem:[#allocation2 + $0x170] sm:$0xff]
      %436 = vst [vmem:[#allocation3] sm:$0xff] %v404
      %437 = vst [vmem:[#allocation3 + $0x48] sm:$0xff] %v405
      %438 = vst [vmem:[#allocation3 + $0x90] sm:$0xff] %v406
      %439 = vst [vmem:[#allocation3 + $0xd8] sm:$0xff] %v407
      %440 = vst [vmem:[#allocation3 + $0x120] sm:$0xff] %v408
      %441 = vst [vmem:[#allocation3 + $0x168] sm:$0xff] %v409
      %442 = vst [vmem:[#allocation3 + $0x1b0] sm:$0xff] %v410
      %443 = vst [vmem:[#allocation3 + $0x1f8] sm:$0xff] %v411
      %444 = vst [vmem:[#allocation3 + $0x240] sm:$0xff] %v412
      %445 = vst [vmem:[#allocation3 + $0x288] sm:$0xff] %v413
      %446 = vst [vmem:[#allocation3 + $0x2d0] sm:$0xff] %v414
      %447 = vst [vmem:[#allocation3 + $0x318] sm:$0xff] %v415
      %448 = vst [vmem:[#allocation3 + $0x360] sm:$0xff] %v416
      %449 = vst [vmem:[#allocation3 + $0x3a8] sm:$0xff] %v417
      %450 = vst [vmem:[#allocation3 + $0x3f0] sm:$0xff] %v418
      %451 = vst [vmem:[#allocation3 + $0x438] sm:$0xff] %v419
      %452 = vst [vmem:[#allocation3 + $0x480] sm:$0xff] %v420
      %453 = vst [vmem:[#allocation3 + $0x4c8] sm:$0xff] %v421
      %454 = vst [vmem:[#allocation3 + $0x510] sm:$0xff] %v422
      %455 = vst [vmem:[#allocation3 + $0x558] sm:$0xff] %v423
      %456 = vst [vmem:[#allocation3 + $0x5a0] sm:$0xff] %v424
      %457 = vst [vmem:[#allocation3 + $0x5e8] sm:$0xff] %v425
      %458 = vst [vmem:[#allocation3 + $0x630] sm:$0xff] %v426
      %459 = vst [vmem:[#allocation3 + $0x678] sm:$0xff] %v427
      %460 = vst [vmem:[#allocation3 + $0x6c0] sm:$0xff] %v428
      %461 = vst [vmem:[#allocation3 + $0x708] sm:$0xff] %v429
      %462 = vst [vmem:[#allocation3 + $0x750] sm:$0xff] %v430
      %463 = vst [vmem:[#allocation3 + $0x798] sm:$0xff] %v431
      %464 = vst [vmem:[#allocation3 + $0x7e0] sm:$0xff] %v432
      %465 = vst [vmem:[#allocation3 + $0x828] sm:$0xff] %v433
      %466 = vst [vmem:[#allocation3 + $0x870] sm:$0xff] %v434
      %467 = vst [vmem:[#allocation3 + $0x8b8] sm:$0xff] %v435
      %v468 = vld [vmem:[#allocation2 + $0x1] sm:$0xff]
      %v469 = vld [vmem:[#allocation2 + $0x9] sm:$0xff]
      %v470 = vld [vmem:[#allocation2 + $0x19] sm:$0xff]
      %v471 = vld [vmem:[#allocation2 + $0x21] sm:$0xff]
      %v472 = vld [vmem:[#allocation2 + $0x31] sm:$0xff]
      %v473 = vld [vmem:[#allocation2 + $0x39] sm:$0xff]
      %v474 = vld [vmem:[#allocation2 + $0x49] sm:$0xff]
      %v475 = vld [vmem:[#allocation2 + $0x51] sm:$0xff]
      %v476 = vld [vmem:[#allocation2 + $0x61] sm:$0xff]
      %v477 = vld [vmem:[#allocation2 + $0x69] sm:$0xff]
      %v478 = vld [vmem:[#allocation2 + $0x79] sm:$0xff]
      %v479 = vld [vmem:[#allocation2 + $0x81] sm:$0xff]
      %v480 = vld [vmem:[#allocation2 + $0x91] sm:$0xff]
      %v481 = vld [vmem:[#allocation2 + $0x99] sm:$0xff]
      %v482 = vld [vmem:[#allocation2 + $0xa9] sm:$0xff]
      %v483 = vld [vmem:[#allocation2 + $0xb1] sm:$0xff]
      %v484 = vld [vmem:[#allocation2 + $0xc1] sm:$0xff]
      %v485 = vld [vmem:[#allocation2 + $0xc9] sm:$0xff]
      %v486 = vld [vmem:[#allocation2 + $0xd9] sm:$0xff]
      %v487 = vld [vmem:[#allocation2 + $0xe1] sm:$0xff]
      %v488 = vld [vmem:[#allocation2 + $0xf1] sm:$0xff]
      %v489 = vld [vmem:[#allocation2 + $0xf9] sm:$0xff]
      %v490 = vld [vmem:[#allocation2 + $0x109] sm:$0xff]
      %v491 = vld [vmem:[#allocation2 + $0x111] sm:$0xff]
      %v492 = vld [vmem:[#allocation2 + $0x121] sm:$0xff]
      %v493 = vld [vmem:[#allocation2 + $0x129] sm:$0xff]
      %v494 = vld [vmem:[#allocation2 + $0x139] sm:$0xff]
      %v495 = vld [vmem:[#allocation2 + $0x141] sm:$0xff]
      %v496 = vld [vmem:[#allocation2 + $0x151] sm:$0xff]
      %v497 = vld [vmem:[#allocation2 + $0x159] sm:$0xff]
      %v498 = vld [vmem:[#allocation2 + $0x169] sm:$0xff]
      %v499 = vld [vmem:[#allocation2 + $0x171] sm:$0xff]
      %500 = vst [vmem:[#allocation3 + $0x8] sm:$0xff] %v468
      %501 = vst [vmem:[#allocation3 + $0x50] sm:$0xff] %v469
      %502 = vst [vmem:[#allocation3 + $0x98] sm:$0xff] %v470
      %503 = vst [vmem:[#allocation3 + $0xe0] sm:$0xff] %v471
      %504 = vst [vmem:[#allocation3 + $0x128] sm:$0xff] %v472
      %505 = vst [vmem:[#allocation3 + $0x170] sm:$0xff] %v473
      %506 = vst [vmem:[#allocation3 + $0x1b8] sm:$0xff] %v474
      %507 = vst [vmem:[#allocation3 + $0x200] sm:$0xff] %v475
      %508 = vst [vmem:[#allocation3 + $0x248] sm:$0xff] %v476
      %509 = vst [vmem:[#allocation3 + $0x290] sm:$0xff] %v477
      %510 = vst [vmem:[#allocation3 + $0x2d8] sm:$0xff] %v478
      %511 = vst [vmem:[#allocation3 + $0x320] sm:$0xff] %v479
      %512 = vst [vmem:[#allocation3 + $0x368] sm:$0xff] %v480
      %513 = vst [vmem:[#allocation3 + $0x3b0] sm:$0xff] %v481
      %514 = vst [vmem:[#allocation3 + $0x3f8] sm:$0xff] %v482
      %515 = vst [vmem:[#allocation3 + $0x440] sm:$0xff] %v483
      %516 = vst [vmem:[#allocation3 + $0x488] sm:$0xff] %v484
      %517 = vst [vmem:[#allocation3 + $0x4d0] sm:$0xff] %v485
      %518 = vst [vmem:[#allocation3 + $0x518] sm:$0xff] %v486
      %519 = vst [vmem:[#allocation3 + $0x560] sm:$0xff] %v487
      %520 = vst [vmem:[#allocation3 + $0x5a8] sm:$0xff] %v488
      %521 = vst [vmem:[#allocation3 + $0x5f0] sm:$0xff] %v489
      %522 = vst [vmem:[#allocation3 + $0x638] sm:$0xff] %v490
      %523 = vst [vmem:[#allocation3 + $0x680] sm:$0xff] %v491
      %524 = vst [vmem:[#allocation3 + $0x6c8] sm:$0xff] %v492
      %525 = vst [vmem:[#allocation3 + $0x710] sm:$0xff] %v493
      %526 = vst [vmem:[#allocation3 + $0x758] sm:$0xff] %v494
      %527 = vst [vmem:[#allocation3 + $0x7a0] sm:$0xff] %v495
      %528 = vst [vmem:[#allocation3 + $0x7e8] sm:$0xff] %v496
      %529 = vst [vmem:[#allocation3 + $0x830] sm:$0xff] %v497
      %530 = vst [vmem:[#allocation3 + $0x878] sm:$0xff] %v498
      %531 = vst [vmem:[#allocation3 + $0x8c0] sm:$0xff] %v499
      %v532 = vld [vmem:[#allocation2 + $0x2] sm:$0xff]
      %v533 = vld [vmem:[#allocation2 + $0xa] sm:$0xff]
      %v534 = vld [vmem:[#allocation2 + $0x1a] sm:$0xff]
      %v535 = vld [vmem:[#allocation2 + $0x22] sm:$0xff]
      %v536 = vld [vmem:[#allocation2 + $0x32] sm:$0xff]
      %v537 = vld [vmem:[#allocation2 + $0x3a] sm:$0xff]
      %v538 = vld [vmem:[#allocation2 + $0x4a] sm:$0xff]
      %v539 = vld [vmem:[#allocation2 + $0x52] sm:$0xff]
      %v540 = vld [vmem:[#allocation2 + $0x62] sm:$0xff]
      %v541 = vld [vmem:[#allocation2 + $0x6a] sm:$0xff]
      %v542 = vld [vmem:[#allocation2 + $0x7a] sm:$0xff]
      %v543 = vld [vmem:[#allocation2 + $0x82] sm:$0xff]
      %v544 = vld [vmem:[#allocation2 + $0x92] sm:$0xff]
      %v545 = vld [vmem:[#allocation2 + $0x9a] sm:$0xff]
      %v546 = vld [vmem:[#allocation2 + $0xaa] sm:$0xff]
      %v547 = vld [vmem:[#allocation2 + $0xb2] sm:$0xff]
      %v548 = vld [vmem:[#allocation2 + $0xc2] sm:$0xff]
      %v549 = vld [vmem:[#allocation2 + $0xca] sm:$0xff]
      %v550 = vld [vmem:[#allocation2 + $0xda] sm:$0xff]
      %v551 = vld [vmem:[#allocation2 + $0xe2] sm:$0xff]
      %v552 = vld [vmem:[#allocation2 + $0xf2] sm:$0xff]
      %v553 = vld [vmem:[#allocation2 + $0xfa] sm:$0xff]
      %v554 = vld [vmem:[#allocation2 + $0x10a] sm:$0xff]
      %v555 = vld [vmem:[#allocation2 + $0x112] sm:$0xff]
      %v556 = vld [vmem:[#allocation2 + $0x122] sm:$0xff]
      %v557 = vld [vmem:[#allocation2 + $0x12a] sm:$0xff]
      %v558 = vld [vmem:[#allocation2 + $0x13a] sm:$0xff]
      %v559 = vld [vmem:[#allocation2 + $0x142] sm:$0xff]
      %v560 = vld [vmem:[#allocation2 + $0x152] sm:$0xff]
      %v561 = vld [vmem:[#allocation2 + $0x15a] sm:$0xff]
      %v562 = vld [vmem:[#allocation2 + $0x16a] sm:$0xff]
      %v563 = vld [vmem:[#allocation2 + $0x172] sm:$0xff]
      %564 = vst [vmem:[#allocation3 + $0x10] sm:$0xff] %v532
      %565 = vst [vmem:[#allocation3 + $0x58] sm:$0xff] %v533
      %566 = vst [vmem:[#allocation3 + $0xa0] sm:$0xff] %v534
      %567 = vst [vmem:[#allocation3 + $0xe8] sm:$0xff] %v535
      %568 = vst [vmem:[#allocation3 + $0x130] sm:$0xff] %v536
      %569 = vst [vmem:[#allocation3 + $0x178] sm:$0xff] %v537
      %570 = vst [vmem:[#allocation3 + $0x1c0] sm:$0xff] %v538
      %571 = vst [vmem:[#allocation3 + $0x208] sm:$0xff] %v539
      %572 = vst [vmem:[#allocation3 + $0x250] sm:$0xff] %v540
      %573 = vst [vmem:[#allocation3 + $0x298] sm:$0xff] %v541
      %574 = vst [vmem:[#allocation3 + $0x2e0] sm:$0xff] %v542
      %575 = vst [vmem:[#allocation3 + $0x328] sm:$0xff] %v543
      %576 = vst [vmem:[#allocation3 + $0x370] sm:$0xff] %v544
      %577 = vst [vmem:[#allocation3 + $0x3b8] sm:$0xff] %v545
      %578 = vst [vmem:[#allocation3 + $0x400] sm:$0xff] %v546
      %579 = vst [vmem:[#allocation3 + $0x448] sm:$0xff] %v547
      %580 = vst [vmem:[#allocation3 + $0x490] sm:$0xff] %v548
      %581 = vst [vmem:[#allocation3 + $0x4d8] sm:$0xff] %v549
      %582 = vst [vmem:[#allocation3 + $0x520] sm:$0xff] %v550
      %583 = vst [vmem:[#allocation3 + $0x568] sm:$0xff] %v551
      %584 = vst [vmem:[#allocation3 + $0x5b0] sm:$0xff] %v552
      %585 = vst [vmem:[#allocation3 + $0x5f8] sm:$0xff] %v553
      %586 = vst [vmem:[#allocation3 + $0x640] sm:$0xff] %v554
      %587 = vst [vmem:[#allocation3 + $0x688] sm:$0xff] %v555
      %588 = vst [vmem:[#allocation3 + $0x6d0] sm:$0xff] %v556
      %589 = vst [vmem:[#allocation3 + $0x718] sm:$0xff] %v557
      %590 = vst [vmem:[#allocation3 + $0x760] sm:$0xff] %v558
      %591 = vst [vmem:[#allocation3 + $0x7a8] sm:$0xff] %v559
      %592 = vst [vmem:[#allocation3 + $0x7f0] sm:$0xff] %v560
      %593 = vst [vmem:[#allocation3 + $0x838] sm:$0xff] %v561
      %594 = vst [vmem:[#allocation3 + $0x880] sm:$0xff] %v562
      %595 = vst [vmem:[#allocation3 + $0x8c8] sm:$0xff] %v563
      %v596 = vld [vmem:[%s371] sm:$0xff]
      %v597 = vld [vmem:[%s371 + $0x8] sm:$0xff]
      %v598 = vld [vmem:[%s371 + $0x18] sm:$0xff]
      %v599 = vld [vmem:[%s371 + $0x20] sm:$0xff]
      %v600 = vld [vmem:[%s371 + $0x30] sm:$0xff]
      %v601 = vld [vmem:[%s371 + $0x38] sm:$0xff]
      %v602 = vld [vmem:[%s371 + $0x48] sm:$0xff]
      %v603 = vld [vmem:[%s371 + $0x50] sm:$0xff]
      %v604 = vld [vmem:[%s371 + $0x60] sm:$0xff]
      %v605 = vld [vmem:[%s371 + $0x68] sm:$0xff]
      %v606 = vld [vmem:[%s371 + $0x78] sm:$0xff]
      %v607 = vld [vmem:[%s371 + $0x80] sm:$0xff]
      %v608 = vld [vmem:[%s371 + $0x90] sm:$0xff]
      %v609 = vld [vmem:[%s371 + $0x98] sm:$0xff]
      %v610 = vld [vmem:[%s371 + $0xa8] sm:$0xff]
      %v611 = vld [vmem:[%s371 + $0xb0] sm:$0xff]
      %v612 = vld [vmem:[%s371 + $0xc0] sm:$0xff]
      %v613 = vld [vmem:[%s371 + $0xc8] sm:$0xff]
      %v614 = vld [vmem:[%s371 + $0xd8] sm:$0xff]
      %v615 = vld [vmem:[%s371 + $0xe0] sm:$0xff]
      %v616 = vld [vmem:[%s371 + $0xf0] sm:$0xff]
      %v617 = vld [vmem:[%s371 + $0xf8] sm:$0xff]
      %v618 = vld [vmem:[%s371 + $0x108] sm:$0xff]
      %v619 = vld [vmem:[%s371 + $0x110] sm:$0xff]
      %v620 = vld [vmem:[%s371 + $0x120] sm:$0xff]
      %v621 = vld [vmem:[%s371 + $0x128] sm:$0xff]
      %v622 = vld [vmem:[%s371 + $0x138] sm:$0xff]
      %v623 = vld [vmem:[%s371 + $0x140] sm:$0xff]
      %v624 = vld [vmem:[%s371 + $0x150] sm:$0xff]
      %v625 = vld [vmem:[%s371 + $0x158] sm:$0xff]
      %v626 = vld [vmem:[%s371 + $0x168] sm:$0xff]
      %v627 = vld [vmem:[%s371 + $0x170] sm:$0xff]
      %628 = vst [vmem:[#allocation3 + $0x18] sm:$0xff] %v596
      %629 = vst [vmem:[#allocation3 + $0x60] sm:$0xff] %v597
      %630 = vst [vmem:[#allocation3 + $0xa8] sm:$0xff] %v598
      %631 = vst [vmem:[#allocation3 + $0xf0] sm:$0xff] %v599
      %632 = vst [vmem:[#allocation3 + $0x138] sm:$0xff] %v600
      %633 = vst [vmem:[#allocation3 + $0x180] sm:$0xff] %v601
      %634 = vst [vmem:[#allocation3 + $0x1c8] sm:$0xff] %v602
      %635 = vst [vmem:[#allocation3 + $0x210] sm:$0xff] %v603
      %636 = vst [vmem:[#allocation3 + $0x258] sm:$0xff] %v604
      %637 = vst [vmem:[#allocation3 + $0x2a0] sm:$0xff] %v605
      %638 = vst [vmem:[#allocation3 + $0x2e8] sm:$0xff] %v606
      %639 = vst [vmem:[#allocation3 + $0x330] sm:$0xff] %v607
      %640 = vst [vmem:[#allocation3 + $0x378] sm:$0xff] %v608
      %641 = vst [vmem:[#allocation3 + $0x3c0] sm:$0xff] %v609
      %642 = vst [vmem:[#allocation3 + $0x408] sm:$0xff] %v610
      %643 = vst [vmem:[#allocation3 + $0x450] sm:$0xff] %v611
      %644 = vst [vmem:[#allocation3 + $0x498] sm:$0xff] %v612
      %645 = vst [vmem:[#allocation3 + $0x4e0] sm:$0xff] %v613
      %646 = vst [vmem:[#allocation3 + $0x528] sm:$0xff] %v614
      %647 = vst [vmem:[#allocation3 + $0x570] sm:$0xff] %v615
      %648 = vst [vmem:[#allocation3 + $0x5b8] sm:$0xff] %v616
      %649 = vst [vmem:[#allocation3 + $0x600] sm:$0xff] %v617
      %650 = vst [vmem:[#allocation3 + $0x648] sm:$0xff] %v618
      %651 = vst [vmem:[#allocation3 + $0x690] sm:$0xff] %v619
      %652 = vst [vmem:[#allocation3 + $0x6d8] sm:$0xff] %v620
      %653 = vst [vmem:[#allocation3 + $0x720] sm:$0xff] %v621
      %654 = vst [vmem:[#allocation3 + $0x768] sm:$0xff] %v622
      %655 = vst [vmem:[#allocation3 + $0x7b0] sm:$0xff] %v623
      %656 = vst [vmem:[#allocation3 + $0x7f8] sm:$0xff] %v624
      %657 = vst [vmem:[#allocation3 + $0x840] sm:$0xff] %v625
      %658 = vst [vmem:[#allocation3 + $0x888] sm:$0xff] %v626
      %659 = vst [vmem:[#allocation3 + $0x8d0] sm:$0xff] %v627
      %v660 = vld [vmem:[%s371 + $0x1] sm:$0xff]
      %v661 = vld [vmem:[%s371 + $0x9] sm:$0xff]
      %v662 = vld [vmem:[%s371 + $0x19] sm:$0xff]
      %v663 = vld [vmem:[%s371 + $0x21] sm:$0xff]
      %v664 = vld [vmem:[%s371 + $0x31] sm:$0xff]
      %v665 = vld [vmem:[%s371 + $0x39] sm:$0xff]
      %v666 = vld [vmem:[%s371 + $0x49] sm:$0xff]
      %v667 = vld [vmem:[%s371 + $0x51] sm:$0xff]
      %v668 = vld [vmem:[%s371 + $0x61] sm:$0xff]
      %v669 = vld [vmem:[%s371 + $0x69] sm:$0xff]
      %v670 = vld [vmem:[%s371 + $0x79] sm:$0xff]
      %v671 = vld [vmem:[%s371 + $0x81] sm:$0xff]
      %v672 = vld [vmem:[%s371 + $0x91] sm:$0xff]
      %v673 = vld [vmem:[%s371 + $0x99] sm:$0xff]
      %v674 = vld [vmem:[%s371 + $0xa9] sm:$0xff]
      %v675 = vld [vmem:[%s371 + $0xb1] sm:$0xff]
      %v676 = vld [vmem:[%s371 + $0xc1] sm:$0xff]
      %v677 = vld [vmem:[%s371 + $0xc9] sm:$0xff]
      %v678 = vld [vmem:[%s371 + $0xd9] sm:$0xff]
      %v679 = vld [vmem:[%s371 + $0xe1] sm:$0xff]
      %v680 = vld [vmem:[%s371 + $0xf1] sm:$0xff]
      %v681 = vld [vmem:[%s371 + $0xf9] sm:$0xff]
      %v682 = vld [vmem:[%s371 + $0x109] sm:$0xff]
      %v683 = vld [vmem:[%s371 + $0x111] sm:$0xff]
      %v684 = vld [vmem:[%s371 + $0x121] sm:$0xff]
      %v685 = vld [vmem:[%s371 + $0x129] sm:$0xff]
      %v686 = vld [vmem:[%s371 + $0x139] sm:$0xff]
      %v687 = vld [vmem:[%s371 + $0x141] sm:$0xff]
      %v688 = vld [vmem:[%s371 + $0x151] sm:$0xff]
      %v689 = vld [vmem:[%s371 + $0x159] sm:$0xff]
      %v690 = vld [vmem:[%s371 + $0x169] sm:$0xff]
      %v691 = vld [vmem:[%s371 + $0x171] sm:$0xff]
      %692 = vst [vmem:[#allocation3 + $0x20] sm:$0xff] %v660
      %693 = vst [vmem:[#allocation3 + $0x68] sm:$0xff] %v661
      %694 = vst [vmem:[#allocation3 + $0xb0] sm:$0xff] %v662
      %695 = vst [vmem:[#allocation3 + $0xf8] sm:$0xff] %v663
      %696 = vst [vmem:[#allocation3 + $0x140] sm:$0xff] %v664
      %697 = vst [vmem:[#allocation3 + $0x188] sm:$0xff] %v665
      %698 = vst [vmem:[#allocation3 + $0x1d0] sm:$0xff] %v666
      %699 = vst [vmem:[#allocation3 + $0x218] sm:$0xff] %v667
      %700 = vst [vmem:[#allocation3 + $0x260] sm:$0xff] %v668
      %701 = vst [vmem:[#allocation3 + $0x2a8] sm:$0xff] %v669
      %702 = vst [vmem:[#allocation3 + $0x2f0] sm:$0xff] %v670
      %703 = vst [vmem:[#allocation3 + $0x338] sm:$0xff] %v671
      %704 = vst [vmem:[#allocation3 + $0x380] sm:$0xff] %v672
      %705 = vst [vmem:[#allocation3 + $0x3c8] sm:$0xff] %v673
      %706 = vst [vmem:[#allocation3 + $0x410] sm:$0xff] %v674
      %707 = vst [vmem:[#allocation3 + $0x458] sm:$0xff] %v675
      %708 = vst [vmem:[#allocation3 + $0x4a0] sm:$0xff] %v676
      %709 = vst [vmem:[#allocation3 + $0x4e8] sm:$0xff] %v677
      %710 = vst [vmem:[#allocation3 + $0x530] sm:$0xff] %v678
      %711 = vst [vmem:[#allocation3 + $0x578] sm:$0xff] %v679
      %712 = vst [vmem:[#allocation3 + $0x5c0] sm:$0xff] %v680
      %713 = vst [vmem:[#allocation3 + $0x608] sm:$0xff] %v681
      %714 = vst [vmem:[#allocation3 + $0x650] sm:$0xff] %v682
      %715 = vst [vmem:[#allocation3 + $0x698] sm:$0xff] %v683
      %716 = vst [vmem:[#allocation3 + $0x6e0] sm:$0xff] %v684
      %717 = vst [vmem:[#allocation3 + $0x728] sm:$0xff] %v685
      %718 = vst [vmem:[#allocation3 + $0x770] sm:$0xff] %v686
      %719 = vst [vmem:[#allocation3 + $0x7b8] sm:$0xff] %v687
      %720 = vst [vmem:[#allocation3 + $0x800] sm:$0xff] %v688
      %721 = vst [vmem:[#allocation3 + $0x848] sm:$0xff] %v689
      %722 = vst [vmem:[#allocation3 + $0x890] sm:$0xff] %v690
      %723 = vst [vmem:[#allocation3 + $0x8d8] sm:$0xff] %v691
      %v724 = vld [vmem:[%s371 + $0x2] sm:$0xff]
      %v725 = vld [vmem:[%s371 + $0xa] sm:$0xff]
      %v726 = vld [vmem:[%s371 + $0x1a] sm:$0xff]
      %v727 = vld [vmem:[%s371 + $0x22] sm:$0xff]
      %v728 = vld [vmem:[%s371 + $0x32] sm:$0xff]
      %v729 = vld [vmem:[%s371 + $0x3a] sm:$0xff]
      %v730 = vld [vmem:[%s371 + $0x4a] sm:$0xff]
      %v731 = vld [vmem:[%s371 + $0x52] sm:$0xff]
      %v732 = vld [vmem:[%s371 + $0x62] sm:$0xff]
      %v733 = vld [vmem:[%s371 + $0x6a] sm:$0xff]
      %v734 = vld [vmem:[%s371 + $0x7a] sm:$0xff]
      %v735 = vld [vmem:[%s371 + $0x82] sm:$0xff]
      %v736 = vld [vmem:[%s371 + $0x92] sm:$0xff]
      %v737 = vld [vmem:[%s371 + $0x9a] sm:$0xff]
      %v738 = vld [vmem:[%s371 + $0xaa] sm:$0xff]
      %v739 = vld [vmem:[%s371 + $0xb2] sm:$0xff]
      %v740 = vld [vmem:[%s371 + $0xc2] sm:$0xff]
      %v741 = vld [vmem:[%s371 + $0xca] sm:$0xff]
      %v742 = vld [vmem:[%s371 + $0xda] sm:$0xff]
      %v743 = vld [vmem:[%s371 + $0xe2] sm:$0xff]
      %v744 = vld [vmem:[%s371 + $0xf2] sm:$0xff]
      %v745 = vld [vmem:[%s371 + $0xfa] sm:$0xff]
      %v746 = vld [vmem:[%s371 + $0x10a] sm:$0xff]
      %v747 = vld [vmem:[%s371 + $0x112] sm:$0xff]
      %v748 = vld [vmem:[%s371 + $0x122] sm:$0xff]
      %v749 = vld [vmem:[%s371 + $0x12a] sm:$0xff]
      %v750 = vld [vmem:[%s371 + $0x13a] sm:$0xff]
      %v751 = vld [vmem:[%s371 + $0x142] sm:$0xff]
      %v752 = vld [vmem:[%s371 + $0x152] sm:$0xff]
      %v753 = vld [vmem:[%s371 + $0x15a] sm:$0xff]
      %v754 = vld [vmem:[%s371 + $0x16a] sm:$0xff]
      %v755 = vld [vmem:[%s371 + $0x172] sm:$0xff]
      %756 = vst [vmem:[#allocation3 + $0x28] sm:$0xff] %v724
      %757 = vst [vmem:[#allocation3 + $0x70] sm:$0xff] %v725
      %758 = vst [vmem:[#allocation3 + $0xb8] sm:$0xff] %v726
      %759 = vst [vmem:[#allocation3 + $0x100] sm:$0xff] %v727
      %760 = vst [vmem:[#allocation3 + $0x148] sm:$0xff] %v728
      %761 = vst [vmem:[#allocation3 + $0x190] sm:$0xff] %v729
      %762 = vst [vmem:[#allocation3 + $0x1d8] sm:$0xff] %v730
      %763 = vst [vmem:[#allocation3 + $0x220] sm:$0xff] %v731
      %764 = vst [vmem:[#allocation3 + $0x268] sm:$0xff] %v732
      %765 = vst [vmem:[#allocation3 + $0x2b0] sm:$0xff] %v733
      %766 = vst [vmem:[#allocation3 + $0x2f8] sm:$0xff] %v734
      %767 = vst [vmem:[#allocation3 + $0x340] sm:$0xff] %v735
      %768 = vst [vmem:[#allocation3 + $0x388] sm:$0xff] %v736
      %769 = vst [vmem:[#allocation3 + $0x3d0] sm:$0xff] %v737
      %770 = vst [vmem:[#allocation3 + $0x418] sm:$0xff] %v738
      %771 = vst [vmem:[#allocation3 + $0x460] sm:$0xff] %v739
      %772 = vst [vmem:[#allocation3 + $0x4a8] sm:$0xff] %v740
      %773 = vst [vmem:[#allocation3 + $0x4f0] sm:$0xff] %v741
      %774 = vst [vmem:[#allocation3 + $0x538] sm:$0xff] %v742
      %775 = vst [vmem:[#allocation3 + $0x580] sm:$0xff] %v743
      %776 = vst [vmem:[#allocation3 + $0x5c8] sm:$0xff] %v744
      %777 = vst [vmem:[#allocation3 + $0x610] sm:$0xff] %v745
      %778 = vst [vmem:[#allocation3 + $0x658] sm:$0xff] %v746
      %779 = vst [vmem:[#allocation3 + $0x6a0] sm:$0xff] %v747
      %780 = vst [vmem:[#allocation3 + $0x6e8] sm:$0xff] %v748
      %781 = vst [vmem:[#allocation3 + $0x730] sm:$0xff] %v749
      %782 = vst [vmem:[#allocation3 + $0x778] sm:$0xff] %v750
      %783 = vst [vmem:[#allocation3 + $0x7c0] sm:$0xff] %v751
      %784 = vst [vmem:[#allocation3 + $0x808] sm:$0xff] %v752
      %785 = vst [vmem:[#allocation3 + $0x850] sm:$0xff] %v753
      %786 = vst [vmem:[#allocation3 + $0x898] sm:$0xff] %v754
      %787 = vst [vmem:[#allocation3 + $0x8e0] sm:$0xff] %v755
      %s788 = scalar_lea.vmem [#allocation2], 48
      %v789 = vld [vmem:[%s788] sm:$0xff]
      %v790 = vld [vmem:[%s788 + $0x8] sm:$0xff]
      %v791 = vld [vmem:[%s788 + $0x18] sm:$0xff]
      %v792 = vld [vmem:[%s788 + $0x20] sm:$0xff]
      %v793 = vld [vmem:[%s788 + $0x30] sm:$0xff]
      %v794 = vld [vmem:[%s788 + $0x38] sm:$0xff]
      %v795 = vld [vmem:[%s788 + $0x48] sm:$0xff]
      %v796 = vld [vmem:[%s788 + $0x50] sm:$0xff]
      %v797 = vld [vmem:[%s788 + $0x60] sm:$0xff]
      %v798 = vld [vmem:[%s788 + $0x68] sm:$0xff]
      %v799 = vld [vmem:[%s788 + $0x78] sm:$0xff]
      %v800 = vld [vmem:[%s788 + $0x80] sm:$0xff]
      %v801 = vld [vmem:[%s788 + $0x90] sm:$0xff]
      %v802 = vld [vmem:[%s788 + $0x98] sm:$0xff]
      %v803 = vld [vmem:[%s788 + $0xa8] sm:$0xff]
      %v804 = vld [vmem:[%s788 + $0xb0] sm:$0xff]
      %v805 = vld [vmem:[%s788 + $0xc0] sm:$0xff]
      %v806 = vld [vmem:[%s788 + $0xc8] sm:$0xff]
      %v807 = vld [vmem:[%s788 + $0xd8] sm:$0xff]
      %v808 = vld [vmem:[%s788 + $0xe0] sm:$0xff]
      %v809 = vld [vmem:[%s788 + $0xf0] sm:$0xff]
      %v810 = vld [vmem:[%s788 + $0xf8] sm:$0xff]
      %v811 = vld [vmem:[%s788 + $0x108] sm:$0xff]
      %v812 = vld [vmem:[%s788 + $0x110] sm:$0xff]
      %v813 = vld [vmem:[%s788 + $0x120] sm:$0xff]
      %v814 = vld [vmem:[%s788 + $0x128] sm:$0xff]
      %v815 = vld [vmem:[%s788 + $0x138] sm:$0xff]
      %v816 = vld [vmem:[%s788 + $0x140] sm:$0xff]
      %v817 = vld [vmem:[%s788 + $0x150] sm:$0xff]
      %v818 = vld [vmem:[%s788 + $0x158] sm:$0xff]
      %v819 = vld [vmem:[%s788 + $0x168] sm:$0xff]
      %v820 = vld [vmem:[%s788 + $0x170] sm:$0xff]
      %821 = vst [vmem:[#allocation3 + $0x30] sm:$0xff] %v789
      %822 = vst [vmem:[#allocation3 + $0x78] sm:$0xff] %v790
      %823 = vst [vmem:[#allocation3 + $0xc0] sm:$0xff] %v791
      %824 = vst [vmem:[#allocation3 + $0x108] sm:$0xff] %v792
      %825 = vst [vmem:[#allocation3 + $0x150] sm:$0xff] %v793
      %826 = vst [vmem:[#allocation3 + $0x198] sm:$0xff] %v794
      %827 = vst [vmem:[#allocation3 + $0x1e0] sm:$0xff] %v795
      %828 = vst [vmem:[#allocation3 + $0x228] sm:$0xff] %v796
      %829 = vst [vmem:[#allocation3 + $0x270] sm:$0xff] %v797
      %830 = vst [vmem:[#allocation3 + $0x2b8] sm:$0xff] %v798
      %831 = vst [vmem:[#allocation3 + $0x300] sm:$0xff] %v799
      %832 = vst [vmem:[#allocation3 + $0x348] sm:$0xff] %v800
      %833 = vst [vmem:[#allocation3 + $0x390] sm:$0xff] %v801
      %834 = vst [vmem:[#allocation3 + $0x3d8] sm:$0xff] %v802
      %835 = vst [vmem:[#allocation3 + $0x420] sm:$0xff] %v803
      %836 = vst [vmem:[#allocation3 + $0x468] sm:$0xff] %v804
      %837 = vst [vmem:[#allocation3 + $0x4b0] sm:$0xff] %v805
      %838 = vst [vmem:[#allocation3 + $0x4f8] sm:$0xff] %v806
      %839 = vst [vmem:[#allocation3 + $0x540] sm:$0xff] %v807
      %840 = vst [vmem:[#allocation3 + $0x588] sm:$0xff] %v808
      %841 = vst [vmem:[#allocation3 + $0x5d0] sm:$0xff] %v809
      %842 = vst [vmem:[#allocation3 + $0x618] sm:$0xff] %v810
      %843 = vst [vmem:[#allocation3 + $0x660] sm:$0xff] %v811
      %844 = vst [vmem:[#allocation3 + $0x6a8] sm:$0xff] %v812
      %845 = vst [vmem:[#allocation3 + $0x6f0] sm:$0xff] %v813
      %846 = vst [vmem:[#allocation3 + $0x738] sm:$0xff] %v814
      %847 = vst [vmem:[#allocation3 + $0x780] sm:$0xff] %v815
      %848 = vst [vmem:[#allocation3 + $0x7c8] sm:$0xff] %v816
      %849 = vst [vmem:[#allocation3 + $0x810] sm:$0xff] %v817
      %850 = vst [vmem:[#allocation3 + $0x858] sm:$0xff] %v818
      %851 = vst [vmem:[#allocation3 + $0x8a0] sm:$0xff] %v819
      %852 = vst [vmem:[#allocation3 + $0x8e8] sm:$0xff] %v820
      %v853 = vld [vmem:[%s788 + $0x1] sm:$0xff]
      %v854 = vld [vmem:[%s788 + $0x9] sm:$0xff]
      %v855 = vld [vmem:[%s788 + $0x19] sm:$0xff]
      %v856 = vld [vmem:[%s788 + $0x21] sm:$0xff]
      %v857 = vld [vmem:[%s788 + $0x31] sm:$0xff]
      %v858 = vld [vmem:[%s788 + $0x39] sm:$0xff]
      %v859 = vld [vmem:[%s788 + $0x49] sm:$0xff]
      %v860 = vld [vmem:[%s788 + $0x51] sm:$0xff]
      %v861 = vld [vmem:[%s788 + $0x61] sm:$0xff]
      %v862 = vld [vmem:[%s788 + $0x69] sm:$0xff]
      %v863 = vld [vmem:[%s788 + $0x79] sm:$0xff]
      %v864 = vld [vmem:[%s788 + $0x81] sm:$0xff]
      %v865 = vld [vmem:[%s788 + $0x91] sm:$0xff]
      %v866 = vld [vmem:[%s788 + $0x99] sm:$0xff]
      %v867 = vld [vmem:[%s788 + $0xa9] sm:$0xff]
      %v868 = vld [vmem:[%s788 + $0xb1] sm:$0xff]
      %v869 = vld [vmem:[%s788 + $0xc1] sm:$0xff]
      %v870 = vld [vmem:[%s788 + $0xc9] sm:$0xff]
      %v871 = vld [vmem:[%s788 + $0xd9] sm:$0xff]
      %v872 = vld [vmem:[%s788 + $0xe1] sm:$0xff]
      %v873 = vld [vmem:[%s788 + $0xf1] sm:$0xff]
      %v874 = vld [vmem:[%s788 + $0xf9] sm:$0xff]
      %v875 = vld [vmem:[%s788 + $0x109] sm:$0xff]
      %v876 = vld [vmem:[%s788 + $0x111] sm:$0xff]
      %v877 = vld [vmem:[%s788 + $0x121] sm:$0xff]
      %v878 = vld [vmem:[%s788 + $0x129] sm:$0xff]
      %v879 = vld [vmem:[%s788 + $0x139] sm:$0xff]
      %v880 = vld [vmem:[%s788 + $0x141] sm:$0xff]
      %v881 = vld [vmem:[%s788 + $0x151] sm:$0xff]
      %v882 = vld [vmem:[%s788 + $0x159] sm:$0xff]
      %v883 = vld [vmem:[%s788 + $0x169] sm:$0xff]
      %v884 = vld [vmem:[%s788 + $0x171] sm:$0xff]
      %885 = vst [vmem:[#allocation3 + $0x38] sm:$0xff] %v853
      %886 = vst [vmem:[#allocation3 + $0x80] sm:$0xff] %v854
      %887 = vst [vmem:[#allocation3 + $0xc8] sm:$0xff] %v855
      %888 = vst [vmem:[#allocation3 + $0x110] sm:$0xff] %v856
      %889 = vst [vmem:[#allocation3 + $0x158] sm:$0xff] %v857
      %890 = vst [vmem:[#allocation3 + $0x1a0] sm:$0xff] %v858
      %891 = vst [vmem:[#allocation3 + $0x1e8] sm:$0xff] %v859
      %892 = vst [vmem:[#allocation3 + $0x230] sm:$0xff] %v860
      %893 = vst [vmem:[#allocation3 + $0x278] sm:$0xff] %v861
      %894 = vst [vmem:[#allocation3 + $0x2c0] sm:$0xff] %v862
      %895 = vst [vmem:[#allocation3 + $0x308] sm:$0xff] %v863
      %896 = vst [vmem:[#allocation3 + $0x350] sm:$0xff] %v864
      %897 = vst [vmem:[#allocation3 + $0x398] sm:$0xff] %v865
      %898 = vst [vmem:[#allocation3 + $0x3e0] sm:$0xff] %v866
      %899 = vst [vmem:[#allocation3 + $0x428] sm:$0xff] %v867
      %900 = vst [vmem:[#allocation3 + $0x470] sm:$0xff] %v868
      %901 = vst [vmem:[#allocation3 + $0x4b8] sm:$0xff] %v869
      %902 = vst [vmem:[#allocation3 + $0x500] sm:$0xff] %v870
      %903 = vst [vmem:[#allocation3 + $0x548] sm:$0xff] %v871
      %904 = vst [vmem:[#allocation3 + $0x590] sm:$0xff] %v872
      %905 = vst [vmem:[#allocation3 + $0x5d8] sm:$0xff] %v873
      %906 = vst [vmem:[#allocation3 + $0x620] sm:$0xff] %v874
      %907 = vst [vmem:[#allocation3 + $0x668] sm:$0xff] %v875
      %908 = vst [vmem:[#allocation3 + $0x6b0] sm:$0xff] %v876
      %909 = vst [vmem:[#allocation3 + $0x6f8] sm:$0xff] %v877
      %910 = vst [vmem:[#allocation3 + $0x740] sm:$0xff] %v878
      %911 = vst [vmem:[#allocation3 + $0x788] sm:$0xff] %v879
      %912 = vst [vmem:[#allocation3 + $0x7d0] sm:$0xff] %v880
      %913 = vst [vmem:[#allocation3 + $0x818] sm:$0xff] %v881
      %914 = vst [vmem:[#allocation3 + $0x860] sm:$0xff] %v882
      %915 = vst [vmem:[#allocation3 + $0x8a8] sm:$0xff] %v883
      %916 = vst [vmem:[#allocation3 + $0x8f0] sm:$0xff] %v884
      %v917 = vld [vmem:[%s788 + $0x2] sm:$0xff]
      %v918 = vld [vmem:[%s788 + $0xa] sm:$0xff]
      %v919 = vld [vmem:[%s788 + $0x1a] sm:$0xff]
      %v920 = vld [vmem:[%s788 + $0x22] sm:$0xff]
      %v921 = vld [vmem:[%s788 + $0x32] sm:$0xff]
      %v922 = vld [vmem:[%s788 + $0x3a] sm:$0xff]
      %v923 = vld [vmem:[%s788 + $0x4a] sm:$0xff]
      %v924 = vld [vmem:[%s788 + $0x52] sm:$0xff]
      %v925 = vld [vmem:[%s788 + $0x62] sm:$0xff]
      %v926 = vld [vmem:[%s788 + $0x6a] sm:$0xff]
      %v927 = vld [vmem:[%s788 + $0x7a] sm:$0xff]
      %v928 = vld [vmem:[%s788 + $0x82] sm:$0xff]
      %v929 = vld [vmem:[%s788 + $0x92] sm:$0xff]
      %v930 = vld [vmem:[%s788 + $0x9a] sm:$0xff]
      %v931 = vld [vmem:[%s788 + $0xaa] sm:$0xff]
      %v932 = vld [vmem:[%s788 + $0xb2] sm:$0xff]
      %v933 = vld [vmem:[%s788 + $0xc2] sm:$0xff]
      %v934 = vld [vmem:[%s788 + $0xca] sm:$0xff]
      %v935 = vld [vmem:[%s788 + $0xda] sm:$0xff]
      %v936 = vld [vmem:[%s788 + $0xe2] sm:$0xff]
      %v937 = vld [vmem:[%s788 + $0xf2] sm:$0xff]
      %v938 = vld [vmem:[%s788 + $0xfa] sm:$0xff]
      %v939 = vld [vmem:[%s788 + $0x10a] sm:$0xff]
      %v940 = vld [vmem:[%s788 + $0x112] sm:$0xff]
      %v941 = vld [vmem:[%s788 + $0x122] sm:$0xff]
      %v942 = vld [vmem:[%s788 + $0x12a] sm:$0xff]
      %v943 = vld [vmem:[%s788 + $0x13a] sm:$0xff]
      %v944 = vld [vmem:[%s788 + $0x142] sm:$0xff]
      %v945 = vld [vmem:[%s788 + $0x152] sm:$0xff]
      %v946 = vld [vmem:[%s788 + $0x15a] sm:$0xff]
      %v947 = vld [vmem:[%s788 + $0x16a] sm:$0xff]
      %v948 = vld [vmem:[%s788 + $0x172] sm:$0xff]
      %949 = vst [vmem:[#allocation3 + $0x40] sm:$0xff] %v917
      %950 = vst [vmem:[#allocation3 + $0x88] sm:$0xff] %v918
      %951 = vst [vmem:[#allocation3 + $0xd0] sm:$0xff] %v919
      %952 = vst [vmem:[#allocation3 + $0x118] sm:$0xff] %v920
      %953 = vst [vmem:[#allocation3 + $0x160] sm:$0xff] %v921
      %954 = vst [vmem:[#allocation3 + $0x1a8] sm:$0xff] %v922
      %955 = vst [vmem:[#allocation3 + $0x1f0] sm:$0xff] %v923
      %956 = vst [vmem:[#allocation3 + $0x238] sm:$0xff] %v924
      %957 = vst [vmem:[#allocation3 + $0x280] sm:$0xff] %v925
      %958 = vst [vmem:[#allocation3 + $0x2c8] sm:$0xff] %v926
      %959 = vst [vmem:[#allocation3 + $0x310] sm:$0xff] %v927
      %960 = vst [vmem:[#allocation3 + $0x358] sm:$0xff] %v928
      %961 = vst [vmem:[#allocation3 + $0x3a0] sm:$0xff] %v929
      %962 = vst [vmem:[#allocation3 + $0x3e8] sm:$0xff] %v930
      %963 = vst [vmem:[#allocation3 + $0x430] sm:$0xff] %v931
      %964 = vst [vmem:[#allocation3 + $0x478] sm:$0xff] %v932
      %965 = vst [vmem:[#allocation3 + $0x4c0] sm:$0xff] %v933
      %966 = vst [vmem:[#allocation3 + $0x508] sm:$0xff] %v934
      %967 = vst [vmem:[#allocation3 + $0x550] sm:$0xff] %v935
      %968 = vst [vmem:[#allocation3 + $0x598] sm:$0xff] %v936
      %969 = vst [vmem:[#allocation3 + $0x5e0] sm:$0xff] %v937
      %970 = vst [vmem:[#allocation3 + $0x628] sm:$0xff] %v938
      %971 = vst [vmem:[#allocation3 + $0x670] sm:$0xff] %v939
      %972 = vst [vmem:[#allocation3 + $0x6b8] sm:$0xff] %v940
      %973 = vst [vmem:[#allocation3 + $0x700] sm:$0xff] %v941
      %974 = vst [vmem:[#allocation3 + $0x748] sm:$0xff] %v942
      %975 = vst [vmem:[#allocation3 + $0x790] sm:$0xff] %v943
      %976 = vst [vmem:[#allocation3 + $0x7d8] sm:$0xff] %v944
      %977 = vst [vmem:[#allocation3 + $0x820] sm:$0xff] %v945
      %978 = vst [vmem:[#allocation3 + $0x868] sm:$0xff] %v946
      %979 = vst [vmem:[#allocation3 + $0x8b0] sm:$0xff] %v947
      %980 = vst [vmem:[#allocation3 + $0x8f8] sm:$0xff] %v948
      %v981 = vld [vmem:[#allocation3] sm:$0xff]
      %v982 = vld [vmem:[#allocation3 + $0x8] sm:$0xff]
      %v983 = vld [vmem:[#allocation3 + $0x10] sm:$0xff]
      %v984 = vld [vmem:[#allocation3 + $0x18] sm:$0xff]
      %v985 = vld [vmem:[#allocation3 + $0x20] sm:$0xff]
      %v986 = vld [vmem:[#allocation3 + $0x28] sm:$0xff]
      %v987 = vld [vmem:[#allocation3 + $0x30] sm:$0xff]
      %v988 = vld [vmem:[#allocation3 + $0x38] sm:$0xff]
      %v989 = vld [vmem:[#allocation3 + $0x40] sm:$0xff]
      %v990 = vld [vmem:[#allocation3 + $0x48] sm:$0xff]
      %v991 = vld [vmem:[#allocation3 + $0x50] sm:$0xff]
      %v992 = vld [vmem:[#allocation3 + $0x58] sm:$0xff]
      %v993 = vld [vmem:[#allocation3 + $0x60] sm:$0xff]
      %v994 = vld [vmem:[#allocation3 + $0x68] sm:$0xff]
      %v995 = vld [vmem:[#allocation3 + $0x70] sm:$0xff]
      %v996 = vld [vmem:[#allocation3 + $0x78] sm:$0xff]
      %v997 = vld [vmem:[#allocation3 + $0x80] sm:$0xff]
      %v998 = vld [vmem:[#allocation3 + $0x88] sm:$0xff]
      %v999 = vld [vmem:[#allocation3 + $0x90] sm:$0xff]
      %v1000 = vld [vmem:[#allocation3 + $0x98] sm:$0xff]
      %v1001 = vld [vmem:[#allocation3 + $0xa0] sm:$0xff]
      %v1002 = vld [vmem:[#allocation3 + $0xa8] sm:$0xff]
      %v1003 = vld [vmem:[#allocation3 + $0xb0] sm:$0xff]
      %v1004 = vld [vmem:[#allocation3 + $0xb8] sm:$0xff]
      %v1005 = vld [vmem:[#allocation3 + $0xc0] sm:$0xff]
      %v1006 = vld [vmem:[#allocation3 + $0xc8] sm:$0xff]
      %v1007 = vld [vmem:[#allocation3 + $0xd0] sm:$0xff]
      %v1008 = vld [vmem:[#allocation3 + $0xd8] sm:$0xff]
      %v1009 = vld [vmem:[#allocation3 + $0xe0] sm:$0xff]
      %v1010 = vld [vmem:[#allocation3 + $0xe8] sm:$0xff]
      %v1011 = vld [vmem:[#allocation3 + $0xf0] sm:$0xff]
      %v1012 = vld [vmem:[#allocation3 + $0xf8] sm:$0xff]
      %v1013 = vld [vmem:[#allocation3 + $0x100] sm:$0xff]
      %v1014 = vld [vmem:[#allocation3 + $0x108] sm:$0xff]
      %v1015 = vld [vmem:[#allocation3 + $0x110] sm:$0xff]
      %v1016 = vld [vmem:[#allocation3 + $0x118] sm:$0xff]
      %v1017 = vld [vmem:[#allocation3 + $0x120] sm:$0xff]
      %v1018 = vld [vmem:[#allocation3 + $0x128] sm:$0xff]
      %v1019 = vld [vmem:[#allocation3 + $0x130] sm:$0xff]
      %v1020 = vld [vmem:[#allocation3 + $0x138] sm:$0xff]
      %v1021 = vld [vmem:[#allocation3 + $0x140] sm:$0xff]
      %v1022 = vld [vmem:[#allocation3 + $0x148] sm:$0xff]
      %v1023 = vld [vmem:[#allocation3 + $0x150] sm:$0xff]
      %v1024 = vld [vmem:[#allocation3 + $0x158] sm:$0xff]
      %v1025 = vld [vmem:[#allocation3 + $0x160] sm:$0xff]
      %v1026 = vld [vmem:[#allocation3 + $0x168] sm:$0xff]
      %v1027 = vld [vmem:[#allocation3 + $0x170] sm:$0xff]
      %v1028 = vld [vmem:[#allocation3 + $0x178] sm:$0xff]
      %v1029 = vld [vmem:[#allocation3 + $0x180] sm:$0xff]
      %v1030 = vld [vmem:[#allocation3 + $0x188] sm:$0xff]
      %v1031 = vld [vmem:[#allocation3 + $0x190] sm:$0xff]
      %v1032 = vld [vmem:[#allocation3 + $0x198] sm:$0xff]
      %v1033 = vld [vmem:[#allocation3 + $0x1a0] sm:$0xff]
      %v1034 = vld [vmem:[#allocation3 + $0x1a8] sm:$0xff]
      %v1035 = vld [vmem:[#allocation3 + $0x1b0] sm:$0xff]
      %v1036 = vld [vmem:[#allocation3 + $0x1b8] sm:$0xff]
      %v1037 = vld [vmem:[#allocation3 + $0x1c0] sm:$0xff]
      %v1038 = vld [vmem:[#allocation3 + $0x1c8] sm:$0xff]
      %v1039 = vld [vmem:[#allocation3 + $0x1d0] sm:$0xff]
      %v1040 = vld [vmem:[#allocation3 + $0x1d8] sm:$0xff]
      %v1041 = vld [vmem:[#allocation3 + $0x1e0] sm:$0xff]
      %v1042 = vld [vmem:[#allocation3 + $0x1e8] sm:$0xff]
      %v1043 = vld [vmem:[#allocation3 + $0x1f0] sm:$0xff]
      %v1044 = vld [vmem:[#allocation3 + $0x1f8] sm:$0xff]
      %v1045 = vld [vmem:[#allocation3 + $0x200] sm:$0xff]
      %v1046 = vld [vmem:[#allocation3 + $0x208] sm:$0xff]
      %v1047 = vld [vmem:[#allocation3 + $0x210] sm:$0xff]
      %v1048 = vld [vmem:[#allocation3 + $0x218] sm:$0xff]
      %v1049 = vld [vmem:[#allocation3 + $0x220] sm:$0xff]
      %v1050 = vld [vmem:[#allocation3 + $0x228] sm:$0xff]
      %v1051 = vld [vmem:[#allocation3 + $0x230] sm:$0xff]
      %v1052 = vld [vmem:[#allocation3 + $0x238] sm:$0xff]
      %v1053 = vld [vmem:[#allocation3 + $0x240] sm:$0xff]
      %v1054 = vld [vmem:[#allocation3 + $0x248] sm:$0xff]
      %v1055 = vld [vmem:[#allocation3 + $0x250] sm:$0xff]
      %v1056 = vld [vmem:[#allocation3 + $0x258] sm:$0xff]
      %v1057 = vld [vmem:[#allocation3 + $0x260] sm:$0xff]
      %v1058 = vld [vmem:[#allocation3 + $0x268] sm:$0xff]
      %v1059 = vld [vmem:[#allocation3 + $0x270] sm:$0xff]
      %v1060 = vld [vmem:[#allocation3 + $0x278] sm:$0xff]
      %v1061 = vld [vmem:[#allocation3 + $0x280] sm:$0xff]
      %v1062 = vld [vmem:[#allocation3 + $0x288] sm:$0xff]
      %v1063 = vld [vmem:[#allocation3 + $0x290] sm:$0xff]
      %v1064 = vld [vmem:[#allocation3 + $0x298] sm:$0xff]
      %v1065 = vld [vmem:[#allocation3 + $0x2a0] sm:$0xff]
      %v1066 = vld [vmem:[#allocation3 + $0x2a8] sm:$0xff]
      %v1067 = vld [vmem:[#allocation3 + $0x2b0] sm:$0xff]
      %v1068 = vld [vmem:[#allocation3 + $0x2b8] sm:$0xff]
      %v1069 = vld [vmem:[#allocation3 + $0x2c0] sm:$0xff]
      %v1070 = vld [vmem:[#allocation3 + $0x2c8] sm:$0xff]
      %v1071 = vld [vmem:[#allocation3 + $0x2d0] sm:$0xff]
      %v1072 = vld [vmem:[#allocation3 + $0x2d8] sm:$0xff]
      %v1073 = vld [vmem:[#allocation3 + $0x2e0] sm:$0xff]
      %v1074 = vld [vmem:[#allocation3 + $0x2e8] sm:$0xff]
      %v1075 = vld [vmem:[#allocation3 + $0x2f0] sm:$0xff]
      %v1076 = vld [vmem:[#allocation3 + $0x2f8] sm:$0xff]
      %v1077 = vld [vmem:[#allocation3 + $0x300] sm:$0xff]
      %v1078 = vld [vmem:[#allocation3 + $0x308] sm:$0xff]
      %v1079 = vld [vmem:[#allocation3 + $0x310] sm:$0xff]
      %v1080 = vld [vmem:[#allocation3 + $0x318] sm:$0xff]
      %v1081 = vld [vmem:[#allocation3 + $0x320] sm:$0xff]
      %v1082 = vld [vmem:[#allocation3 + $0x328] sm:$0xff]
      %v1083 = vld [vmem:[#allocation3 + $0x330] sm:$0xff]
      %v1084 = vld [vmem:[#allocation3 + $0x338] sm:$0xff]
      %v1085 = vld [vmem:[#allocation3 + $0x340] sm:$0xff]
      %v1086 = vld [vmem:[#allocation3 + $0x348] sm:$0xff]
      %v1087 = vld [vmem:[#allocation3 + $0x350] sm:$0xff]
      %v1088 = vld [vmem:[#allocation3 + $0x358] sm:$0xff]
      %v1089 = vld [vmem:[#allocation3 + $0x360] sm:$0xff]
      %v1090 = vld [vmem:[#allocation3 + $0x368] sm:$0xff]
      %v1091 = vld [vmem:[#allocation3 + $0x370] sm:$0xff]
      %v1092 = vld [vmem:[#allocation3 + $0x378] sm:$0xff]
      %v1093 = vld [vmem:[#allocation3 + $0x380] sm:$0xff]
      %v1094 = vld [vmem:[#allocation3 + $0x388] sm:$0xff]
      %v1095 = vld [vmem:[#allocation3 + $0x390] sm:$0xff]
      %v1096 = vld [vmem:[#allocation3 + $0x398] sm:$0xff]
      %v1097 = vld [vmem:[#allocation3 + $0x3a0] sm:$0xff]
      %v1098 = vld [vmem:[#allocation3 + $0x3a8] sm:$0xff]
      %v1099 = vld [vmem:[#allocation3 + $0x3b0] sm:$0xff]
      %v1100 = vld [vmem:[#allocation3 + $0x3b8] sm:$0xff]
      %v1101 = vld [vmem:[#allocation3 + $0x3c0] sm:$0xff]
      %v1102 = vld [vmem:[#allocation3 + $0x3c8] sm:$0xff]
      %v1103 = vld [vmem:[#allocation3 + $0x3d0] sm:$0xff]
      %v1104 = vld [vmem:[#allocation3 + $0x3d8] sm:$0xff]
      %v1105 = vld [vmem:[#allocation3 + $0x3e0] sm:$0xff]
      %v1106 = vld [vmem:[#allocation3 + $0x3e8] sm:$0xff]
      %v1107 = vld [vmem:[#allocation3 + $0x3f0] sm:$0xff]
      %v1108 = vld [vmem:[#allocation3 + $0x3f8] sm:$0xff]
      %v1109 = vld [vmem:[#allocation3 + $0x400] sm:$0xff]
      %v1110 = vld [vmem:[#allocation3 + $0x408] sm:$0xff]
      %v1111 = vld [vmem:[#allocation3 + $0x410] sm:$0xff]
      %v1112 = vld [vmem:[#allocation3 + $0x418] sm:$0xff]
      %v1113 = vld [vmem:[#allocation3 + $0x420] sm:$0xff]
      %v1114 = vld [vmem:[#allocation3 + $0x428] sm:$0xff]
      %v1115 = vld [vmem:[#allocation3 + $0x430] sm:$0xff]
      %v1116 = vld [vmem:[#allocation3 + $0x438] sm:$0xff]
      %v1117 = vld [vmem:[#allocation3 + $0x440] sm:$0xff]
      %v1118 = vld [vmem:[#allocation3 + $0x448] sm:$0xff]
      %v1119 = vld [vmem:[#allocation3 + $0x450] sm:$0xff]
      %v1120 = vld [vmem:[#allocation3 + $0x458] sm:$0xff]
      %v1121 = vld [vmem:[#allocation3 + $0x460] sm:$0xff]
      %v1122 = vld [vmem:[#allocation3 + $0x468] sm:$0xff]
      %v1123 = vld [vmem:[#allocation3 + $0x470] sm:$0xff]
      %v1124 = vld [vmem:[#allocation3 + $0x478] sm:$0xff]
      %v1125 = vld [vmem:[#allocation3 + $0x480] sm:$0xff]
      %v1126 = vld [vmem:[#allocation3 + $0x488] sm:$0xff]
      %v1127 = vld [vmem:[#allocation3 + $0x490] sm:$0xff]
      %v1128 = vld [vmem:[#allocation3 + $0x498] sm:$0xff]
      %v1129 = vld [vmem:[#allocation3 + $0x4a0] sm:$0xff]
      %v1130 = vld [vmem:[#allocation3 + $0x4a8] sm:$0xff]
      %v1131 = vld [vmem:[#allocation3 + $0x4b0] sm:$0xff]
      %v1132 = vld [vmem:[#allocation3 + $0x4b8] sm:$0xff]
      %v1133 = vld [vmem:[#allocation3 + $0x4c0] sm:$0xff]
      %v1134 = vld [vmem:[#allocation3 + $0x4c8] sm:$0xff]
      %v1135 = vld [vmem:[#allocation3 + $0x4d0] sm:$0xff]
      %v1136 = vld [vmem:[#allocation3 + $0x4d8] sm:$0xff]
      %v1137 = vld [vmem:[#allocation3 + $0x4e0] sm:$0xff]
      %v1138 = vld [vmem:[#allocation3 + $0x4e8] sm:$0xff]
      %v1139 = vld [vmem:[#allocation3 + $0x4f0] sm:$0xff]
      %v1140 = vld [vmem:[#allocation3 + $0x4f8] sm:$0xff]
      %v1141 = vld [vmem:[#allocation3 + $0x500] sm:$0xff]
      %v1142 = vld [vmem:[#allocation3 + $0x508] sm:$0xff]
      %v1143 = vld [vmem:[#allocation3 + $0x510] sm:$0xff]
      %v1144 = vld [vmem:[#allocation3 + $0x518] sm:$0xff]
      %v1145 = vld [vmem:[#allocation3 + $0x520] sm:$0xff]
      %v1146 = vld [vmem:[#allocation3 + $0x528] sm:$0xff]
      %v1147 = vld [vmem:[#allocation3 + $0x530] sm:$0xff]
      %v1148 = vld [vmem:[#allocation3 + $0x538] sm:$0xff]
      %v1149 = vld [vmem:[#allocation3 + $0x540] sm:$0xff]
      %v1150 = vld [vmem:[#allocation3 + $0x548] sm:$0xff]
      %v1151 = vld [vmem:[#allocation3 + $0x550] sm:$0xff]
      %v1152 = vld [vmem:[#allocation3 + $0x558] sm:$0xff]
      %v1153 = vld [vmem:[#allocation3 + $0x560] sm:$0xff]
      %v1154 = vld [vmem:[#allocation3 + $0x568] sm:$0xff]
      %v1155 = vld [vmem:[#allocation3 + $0x570] sm:$0xff]
      %v1156 = vld [vmem:[#allocation3 + $0x578] sm:$0xff]
      %v1157 = vld [vmem:[#allocation3 + $0x580] sm:$0xff]
      %v1158 = vld [vmem:[#allocation3 + $0x588] sm:$0xff]
      %v1159 = vld [vmem:[#allocation3 + $0x590] sm:$0xff]
      %v1160 = vld [vmem:[#allocation3 + $0x598] sm:$0xff]
      %v1161 = vld [vmem:[#allocation3 + $0x5a0] sm:$0xff]
      %v1162 = vld [vmem:[#allocation3 + $0x5a8] sm:$0xff]
      %v1163 = vld [vmem:[#allocation3 + $0x5b0] sm:$0xff]
      %v1164 = vld [vmem:[#allocation3 + $0x5b8] sm:$0xff]
      %v1165 = vld [vmem:[#allocation3 + $0x5c0] sm:$0xff]
      %v1166 = vld [vmem:[#allocation3 + $0x5c8] sm:$0xff]
      %v1167 = vld [vmem:[#allocation3 + $0x5d0] sm:$0xff]
      %v1168 = vld [vmem:[#allocation3 + $0x5d8] sm:$0xff]
      %v1169 = vld [vmem:[#allocation3 + $0x5e0] sm:$0xff]
      %v1170 = vld [vmem:[#allocation3 + $0x5e8] sm:$0xff]
      %v1171 = vld [vmem:[#allocation3 + $0x5f0] sm:$0xff]
      %v1172 = vld [vmem:[#allocation3 + $0x5f8] sm:$0xff]
      %v1173 = vld [vmem:[#allocation3 + $0x600] sm:$0xff]
      %v1174 = vld [vmem:[#allocation3 + $0x608] sm:$0xff]
      %v1175 = vld [vmem:[#allocation3 + $0x610] sm:$0xff]
      %v1176 = vld [vmem:[#allocation3 + $0x618] sm:$0xff]
      %v1177 = vld [vmem:[#allocation3 + $0x620] sm:$0xff]
      %v1178 = vld [vmem:[#allocation3 + $0x628] sm:$0xff]
      %v1179 = vld [vmem:[#allocation3 + $0x630] sm:$0xff]
      %v1180 = vld [vmem:[#allocation3 + $0x638] sm:$0xff]
      %v1181 = vld [vmem:[#allocation3 + $0x640] sm:$0xff]
      %v1182 = vld [vmem:[#allocation3 + $0x648] sm:$0xff]
      %v1183 = vld [vmem:[#allocation3 + $0x650] sm:$0xff]
      %v1184 = vld [vmem:[#allocation3 + $0x658] sm:$0xff]
      %v1185 = vld [vmem:[#allocation3 + $0x660] sm:$0xff]
      %v1186 = vld [vmem:[#allocation3 + $0x668] sm:$0xff]
      %v1187 = vld [vmem:[#allocation3 + $0x670] sm:$0xff]
      %v1188 = vld [vmem:[#allocation3 + $0x678] sm:$0xff]
      %v1189 = vld [vmem:[#allocation3 + $0x680] sm:$0xff]
      %v1190 = vld [vmem:[#allocation3 + $0x688] sm:$0xff]
      %v1191 = vld [vmem:[#allocation3 + $0x690] sm:$0xff]
      %v1192 = vld [vmem:[#allocation3 + $0x698] sm:$0xff]
      %v1193 = vld [vmem:[#allocation3 + $0x6a0] sm:$0xff]
      %v1194 = vld [vmem:[#allocation3 + $0x6a8] sm:$0xff]
      %v1195 = vld [vmem:[#allocation3 + $0x6b0] sm:$0xff]
      %v1196 = vld [vmem:[#allocation3 + $0x6b8] sm:$0xff]
      %v1197 = vld [vmem:[#allocation3 + $0x6c0] sm:$0xff]
      %v1198 = vld [vmem:[#allocation3 + $0x6c8] sm:$0xff]
      %v1199 = vld [vmem:[#allocation3 + $0x6d0] sm:$0xff]
      %v1200 = vld [vmem:[#allocation3 + $0x6d8] sm:$0xff]
      %v1201 = vld [vmem:[#allocation3 + $0x6e0] sm:$0xff]
      %v1202 = vld [vmem:[#allocation3 + $0x6e8] sm:$0xff]
      %v1203 = vld [vmem:[#allocation3 + $0x6f0] sm:$0xff]
      %v1204 = vld [vmem:[#allocation3 + $0x6f8] sm:$0xff]
      %v1205 = vld [vmem:[#allocation3 + $0x700] sm:$0xff]
      %v1206 = vld [vmem:[#allocation3 + $0x708] sm:$0xff]
      %v1207 = vld [vmem:[#allocation3 + $0x710] sm:$0xff]
      %v1208 = vld [vmem:[#allocation3 + $0x718] sm:$0xff]
      %v1209 = vld [vmem:[#allocation3 + $0x720] sm:$0xff]
      %v1210 = vld [vmem:[#allocation3 + $0x728] sm:$0xff]
      %v1211 = vld [vmem:[#allocation3 + $0x730] sm:$0xff]
      %v1212 = vld [vmem:[#allocation3 + $0x738] sm:$0xff]
      %v1213 = vld [vmem:[#allocation3 + $0x740] sm:$0xff]
      %v1214 = vld [vmem:[#allocation3 + $0x748] sm:$0xff]
      %v1215 = vld [vmem:[#allocation3 + $0x750] sm:$0xff]
      %v1216 = vld [vmem:[#allocation3 + $0x758] sm:$0xff]
      %v1217 = vld [vmem:[#allocation3 + $0x760] sm:$0xff]
      %v1218 = vld [vmem:[#allocation3 + $0x768] sm:$0xff]
      %v1219 = vld [vmem:[#allocation3 + $0x770] sm:$0xff]
      %v1220 = vld [vmem:[#allocation3 + $0x778] sm:$0xff]
      %v1221 = vld [vmem:[#allocation3 + $0x780] sm:$0xff]
      %v1222 = vld [vmem:[#allocation3 + $0x788] sm:$0xff]
      %v1223 = vld [vmem:[#allocation3 + $0x790] sm:$0xff]
      %v1224 = vld [vmem:[#allocation3 + $0x798] sm:$0xff]
      %v1225 = vld [vmem:[#allocation3 + $0x7a0] sm:$0xff]
      %v1226 = vld [vmem:[#allocation3 + $0x7a8] sm:$0xff]
      %v1227 = vld [vmem:[#allocation3 + $0x7b0] sm:$0xff]
      %v1228 = vld [vmem:[#allocation3 + $0x7b8] sm:$0xff]
      %v1229 = vld [vmem:[#allocation3 + $0x7c0] sm:$0xff]
      %v1230 = vld [vmem:[#allocation3 + $0x7c8] sm:$0xff]
      %v1231 = vld [vmem:[#allocation3 + $0x7d0] sm:$0xff]
      %v1232 = vld [vmem:[#allocation3 + $0x7d8] sm:$0xff]
      %v1233 = vld [vmem:[#allocation3 + $0x7e0] sm:$0xff]
      %v1234 = vld [vmem:[#allocation3 + $0x7e8] sm:$0xff]
      %v1235 = vld [vmem:[#allocation3 + $0x7f0] sm:$0xff]
      %v1236 = vld [vmem:[#allocation3 + $0x7f8] sm:$0xff]
      %v1237 = vld [vmem:[#allocation3 + $0x800] sm:$0xff]
      %v1238 = vld [vmem:[#allocation3 + $0x808] sm:$0xff]
      %v1239 = vld [vmem:[#allocation3 + $0x810] sm:$0xff]
      %v1240 = vld [vmem:[#allocation3 + $0x818] sm:$0xff]
      %v1241 = vld [vmem:[#allocation3 + $0x820] sm:$0xff]
      %v1242 = vld [vmem:[#allocation3 + $0x828] sm:$0xff]
      %v1243 = vld [vmem:[#allocation3 + $0x830] sm:$0xff]
      %v1244 = vld [vmem:[#allocation3 + $0x838] sm:$0xff]
      %v1245 = vld [vmem:[#allocation3 + $0x840] sm:$0xff]
      %v1246 = vld [vmem:[#allocation3 + $0x848] sm:$0xff]
      %v1247 = vld [vmem:[#allocation3 + $0x850] sm:$0xff]
      %v1248 = vld [vmem:[#allocation3 + $0x858] sm:$0xff]
      %v1249 = vld [vmem:[#allocation3 + $0x860] sm:$0xff]
      %v1250 = vld [vmem:[#allocation3 + $0x868] sm:$0xff]
      %v1251 = vld [vmem:[#allocation3 + $0x870] sm:$0xff]
      %v1252 = vld [vmem:[#allocation3 + $0x878] sm:$0xff]
      %v1253 = vld [vmem:[#allocation3 + $0x880] sm:$0xff]
      %v1254 = vld [vmem:[#allocation3 + $0x888] sm:$0xff]
      %v1255 = vld [vmem:[#allocation3 + $0x890] sm:$0xff]
      %v1256 = vld [vmem:[#allocation3 + $0x898] sm:$0xff]
      %v1257 = vld [vmem:[#allocation3 + $0x8a0] sm:$0xff]
      %v1258 = vld [vmem:[#allocation3 + $0x8a8] sm:$0xff]
      %v1259 = vld [vmem:[#allocation3 + $0x8b0] sm:$0xff]
      %v1260 = vld [vmem:[#allocation3 + $0x8b8] sm:$0xff]
      %v1261 = vld [vmem:[#allocation3 + $0x8c0] sm:$0xff]
      %v1262 = vld [vmem:[#allocation3 + $0x8c8] sm:$0xff]
      %v1263 = vld [vmem:[#allocation3 + $0x8d0] sm:$0xff]
      %v1264 = vld [vmem:[#allocation3 + $0x8d8] sm:$0xff]
      %v1265 = vld [vmem:[#allocation3 + $0x8e0] sm:$0xff]
      %v1266 = vld [vmem:[#allocation3 + $0x8e8] sm:$0xff]
      %v1267 = vld [vmem:[#allocation3 + $0x8f0] sm:$0xff]
      %v1268 = vld [vmem:[#allocation3 + $0x8f8] sm:$0xff]
      %v1269 = vld [vmem:[%s3] sm:$0xff]
      %v1270 = vld [vmem:[%s3 + $0x8] sm:$0xff]
      %v1271 = vld [vmem:[%s3 + $0x10] sm:$0xff]
      %v1272 = vld [vmem:[%s3 + $0x18] sm:$0xff]
      %v1273 = vld [vmem:[%s3 + $0x20] sm:$0xff]
      %v1274 = vld [vmem:[%s3 + $0x28] sm:$0xff]
      %v1275 = vld [vmem:[%s3 + $0x30] sm:$0xff]
      %v1276 = vld [vmem:[%s3 + $0x38] sm:$0xff]
      %v1277 = vld [vmem:[%s3 + $0x40] sm:$0xff]
      %v1278 = vld [vmem:[%s3 + $0x48] sm:$0xff]
      %v1279 = vld [vmem:[%s3 + $0x50] sm:$0xff]
      %v1280 = vld [vmem:[%s3 + $0x58] sm:$0xff]
      %v1281 = vld [vmem:[%s3 + $0x60] sm:$0xff]
      %v1282 = vld [vmem:[%s3 + $0x68] sm:$0xff]
      %v1283 = vld [vmem:[%s3 + $0x70] sm:$0xff]
      %v1284 = vld [vmem:[%s3 + $0x78] sm:$0xff]
      %v1285 = vld [vmem:[%s3 + $0x80] sm:$0xff]
      %v1286 = vld [vmem:[%s3 + $0x88] sm:$0xff]
      %v1287 = vld [vmem:[%s3 + $0x90] sm:$0xff]
      %v1288 = vld [vmem:[%s3 + $0x98] sm:$0xff]
      %v1289 = vld [vmem:[%s3 + $0xa0] sm:$0xff]
      %v1290 = vld [vmem:[%s3 + $0xa8] sm:$0xff]
      %v1291 = vld [vmem:[%s3 + $0xb0] sm:$0xff]
      %v1292 = vld [vmem:[%s3 + $0xb8] sm:$0xff]
      %v1293 = vld [vmem:[%s3 + $0xc0] sm:$0xff]
      %v1294 = vld [vmem:[%s3 + $0xc8] sm:$0xff]
      %v1295 = vld [vmem:[%s3 + $0xd0] sm:$0xff]
      %v1296 = vld [vmem:[%s3 + $0xd8] sm:$0xff]
      %v1297 = vld [vmem:[%s3 + $0xe0] sm:$0xff]
      %v1298 = vld [vmem:[%s3 + $0xe8] sm:$0xff]
      %v1299 = vld [vmem:[%s3 + $0xf0] sm:$0xff]
      %v1300 = vld [vmem:[%s3 + $0xf8] sm:$0xff]
      %v1301 = vld [vmem:[%s3 + $0x100] sm:$0xff]
      %v1302 = vld [vmem:[%s3 + $0x108] sm:$0xff]
      %v1303 = vld [vmem:[%s3 + $0x110] sm:$0xff]
      %v1304 = vld [vmem:[%s3 + $0x118] sm:$0xff]
      %v1305 = vld [vmem:[%s3 + $0x120] sm:$0xff]
      %v1306 = vld [vmem:[%s3 + $0x128] sm:$0xff]
      %v1307 = vld [vmem:[%s3 + $0x130] sm:$0xff]
      %v1308 = vld [vmem:[%s3 + $0x138] sm:$0xff]
      %v1309 = vld [vmem:[%s3 + $0x140] sm:$0xff]
      %v1310 = vld [vmem:[%s3 + $0x148] sm:$0xff]
      %v1311 = vld [vmem:[%s3 + $0x150] sm:$0xff]
      %v1312 = vld [vmem:[%s3 + $0x158] sm:$0xff]
      %v1313 = vld [vmem:[%s3 + $0x160] sm:$0xff]
      %v1314 = vld [vmem:[%s3 + $0x168] sm:$0xff]
      %v1315 = vld [vmem:[%s3 + $0x170] sm:$0xff]
      %v1316 = vld [vmem:[%s3 + $0x178] sm:$0xff]
      %v1317 = vld [vmem:[%s3 + $0x180] sm:$0xff]
      %v1318 = vld [vmem:[%s3 + $0x188] sm:$0xff]
      %v1319 = vld [vmem:[%s3 + $0x190] sm:$0xff]
      %v1320 = vld [vmem:[%s3 + $0x198] sm:$0xff]
      %v1321 = vld [vmem:[%s3 + $0x1a0] sm:$0xff]
      %v1322 = vld [vmem:[%s3 + $0x1a8] sm:$0xff]
      %v1323 = vld [vmem:[%s3 + $0x1b0] sm:$0xff]
      %v1324 = vld [vmem:[%s3 + $0x1b8] sm:$0xff]
      %v1325 = vld [vmem:[%s3 + $0x1c0] sm:$0xff]
      %v1326 = vld [vmem:[%s3 + $0x1c8] sm:$0xff]
      %v1327 = vld [vmem:[%s3 + $0x1d0] sm:$0xff]
      %v1328 = vld [vmem:[%s3 + $0x1d8] sm:$0xff]
      %v1329 = vld [vmem:[%s3 + $0x1e0] sm:$0xff]
      %v1330 = vld [vmem:[%s3 + $0x1e8] sm:$0xff]
      %v1331 = vld [vmem:[%s3 + $0x1f0] sm:$0xff]
      %v1332 = vld [vmem:[%s3 + $0x1f8] sm:$0xff]
      %v1333 = vld [vmem:[%s3 + $0x200] sm:$0xff]
      %v1334 = vld [vmem:[%s3 + $0x208] sm:$0xff]
      %v1335 = vld [vmem:[%s3 + $0x210] sm:$0xff]
      %v1336 = vld [vmem:[%s3 + $0x218] sm:$0xff]
      %v1337 = vld [vmem:[%s3 + $0x220] sm:$0xff]
      %v1338 = vld [vmem:[%s3 + $0x228] sm:$0xff]
      %v1339 = vld [vmem:[%s3 + $0x230] sm:$0xff]
      %v1340 = vld [vmem:[%s3 + $0x238] sm:$0xff]
      %v1341 = vld [vmem:[%s3 + $0x240] sm:$0xff]
      %v1342 = vld [vmem:[%s3 + $0x248] sm:$0xff]
      %v1343 = vld [vmem:[%s3 + $0x250] sm:$0xff]
      %v1344 = vld [vmem:[%s3 + $0x258] sm:$0xff]
      %v1345 = vld [vmem:[%s3 + $0x260] sm:$0xff]
      %v1346 = vld [vmem:[%s3 + $0x268] sm:$0xff]
      %v1347 = vld [vmem:[%s3 + $0x270] sm:$0xff]
      %v1348 = vld [vmem:[%s3 + $0x278] sm:$0xff]
      %v1349 = vld [vmem:[%s3 + $0x280] sm:$0xff]
      %v1350 = vld [vmem:[%s3 + $0x288] sm:$0xff]
      %v1351 = vld [vmem:[%s3 + $0x290] sm:$0xff]
      %v1352 = vld [vmem:[%s3 + $0x298] sm:$0xff]
      %v1353 = vld [vmem:[%s3 + $0x2a0] sm:$0xff]
      %v1354 = vld [vmem:[%s3 + $0x2a8] sm:$0xff]
      %v1355 = vld [vmem:[%s3 + $0x2b0] sm:$0xff]
      %v1356 = vld [vmem:[%s3 + $0x2b8] sm:$0xff]
      %v1357 = vld [vmem:[%s3 + $0x2c0] sm:$0xff]
      %v1358 = vld [vmem:[%s3 + $0x2c8] sm:$0xff]
      %v1359 = vld [vmem:[%s3 + $0x2d0] sm:$0xff]
      %v1360 = vld [vmem:[%s3 + $0x2d8] sm:$0xff]
      %v1361 = vld [vmem:[%s3 + $0x2e0] sm:$0xff]
      %v1362 = vld [vmem:[%s3 + $0x2e8] sm:$0xff]
      %v1363 = vld [vmem:[%s3 + $0x2f0] sm:$0xff]
      %v1364 = vld [vmem:[%s3 + $0x2f8] sm:$0xff]
      %v1365 = vld [vmem:[%s3 + $0x300] sm:$0xff]
      %v1366 = vld [vmem:[%s3 + $0x308] sm:$0xff]
      %v1367 = vld [vmem:[%s3 + $0x310] sm:$0xff]
      %v1368 = vld [vmem:[%s3 + $0x318] sm:$0xff]
      %v1369 = vld [vmem:[%s3 + $0x320] sm:$0xff]
      %v1370 = vld [vmem:[%s3 + $0x328] sm:$0xff]
      %v1371 = vld [vmem:[%s3 + $0x330] sm:$0xff]
      %v1372 = vld [vmem:[%s3 + $0x338] sm:$0xff]
      %v1373 = vld [vmem:[%s3 + $0x340] sm:$0xff]
      %v1374 = vld [vmem:[%s3 + $0x348] sm:$0xff]
      %v1375 = vld [vmem:[%s3 + $0x350] sm:$0xff]
      %v1376 = vld [vmem:[%s3 + $0x358] sm:$0xff]
      %v1377 = vld [vmem:[%s3 + $0x360] sm:$0xff]
      %v1378 = vld [vmem:[%s3 + $0x368] sm:$0xff]
      %v1379 = vld [vmem:[%s3 + $0x370] sm:$0xff]
      %v1380 = vld [vmem:[%s3 + $0x378] sm:$0xff]
      %v1381 = vld [vmem:[%s3 + $0x380] sm:$0xff]
      %v1382 = vld [vmem:[%s3 + $0x388] sm:$0xff]
      %v1383 = vld [vmem:[%s3 + $0x390] sm:$0xff]
      %v1384 = vld [vmem:[%s3 + $0x398] sm:$0xff]
      %v1385 = vld [vmem:[%s3 + $0x3a0] sm:$0xff]
      %v1386 = vld [vmem:[%s3 + $0x3a8] sm:$0xff]
      %v1387 = vld [vmem:[%s3 + $0x3b0] sm:$0xff]
      %v1388 = vld [vmem:[%s3 + $0x3b8] sm:$0xff]
      %v1389 = vld [vmem:[%s3 + $0x3c0] sm:$0xff]
      %v1390 = vld [vmem:[%s3 + $0x3c8] sm:$0xff]
      %v1391 = vld [vmem:[%s3 + $0x3d0] sm:$0xff]
      %v1392 = vld [vmem:[%s3 + $0x3d8] sm:$0xff]
      %v1393 = vld [vmem:[%s3 + $0x3e0] sm:$0xff]
      %v1394 = vld [vmem:[%s3 + $0x3e8] sm:$0xff]
      %v1395 = vld [vmem:[%s3 + $0x3f0] sm:$0xff]
      %v1396 = vld [vmem:[%s3 + $0x3f8] sm:$0xff]
      %v1397 = vld [vmem:[%s3 + $0x400] sm:$0xff]
      %v1398 = vld [vmem:[%s3 + $0x408] sm:$0xff]
      %v1399 = vld [vmem:[%s3 + $0x410] sm:$0xff]
      %v1400 = vld [vmem:[%s3 + $0x418] sm:$0xff]
      %v1401 = vld [vmem:[%s3 + $0x420] sm:$0xff]
      %v1402 = vld [vmem:[%s3 + $0x428] sm:$0xff]
      %v1403 = vld [vmem:[%s3 + $0x430] sm:$0xff]
      %v1404 = vld [vmem:[%s3 + $0x438] sm:$0xff]
      %v1405 = vld [vmem:[%s3 + $0x440] sm:$0xff]
      %v1406 = vld [vmem:[%s3 + $0x448] sm:$0xff]
      %v1407 = vld [vmem:[%s3 + $0x450] sm:$0xff]
      %v1408 = vld [vmem:[%s3 + $0x458] sm:$0xff]
      %v1409 = vld [vmem:[%s3 + $0x460] sm:$0xff]
      %v1410 = vld [vmem:[%s3 + $0x468] sm:$0xff]
      %v1411 = vld [vmem:[%s3 + $0x470] sm:$0xff]
      %v1412 = vld [vmem:[%s3 + $0x478] sm:$0xff]
      %v1413 = vld [vmem:[%s4] sm:$0x1]
      %v1415 = vlaneseq
      %v1416 = vshrl.u32 %v1415, 7
      %v1417 = vsub.s32 0, %v1416
      %v1418 = vrot.slane %v1413, %v1417
      %1420 = vmatprep.subr.mxu0 0.0
      %1421 = vmatpush1.msra.mxu0 %v1269
      %1422 = vmatprep.subr.mxu0 0.0
      %1423 = vmatpush1.msra.mxu0 %v1270
      %1424 = vmatprep.subr.mxu0 0.0
      %1425 = vmatpush1.msra.mxu0 %v1271
      %1426 = vmatprep.subr.mxu0 0.0
      %1427 = vmatpush1.msra.mxu0 %v1272
      %1428 = vmatprep.subr.mxu0 0.0
      %1429 = vmatpush1.msra.mxu0 %v1273
      %1430 = vmatprep.subr.mxu0 0.0
      %1431 = vmatpush1.msra.mxu0 %v1274
      %1432 = vmatprep.subr.mxu0 0.0
      %1433 = vmatpush1.msra.mxu0 %v1275
      %1434 = vmatprep.subr.mxu0 0.0
      %1435 = vmatpush1.msra.mxu0 %v1276
      %1436 = vmatprep.subr.mxu0 0.0
      %1437 = vmatpush1.msra.mxu0 %v1277
      %1438 = vmatprep.subr.mxu0 0.0
      %1439 = vmatpush1.msra.mxu0 %v1278
      %1440 = vmatprep.subr.mxu0 0.0
      %1441 = vmatpush1.msra.mxu0 %v1279
      %1442 = vmatprep.subr.mxu0 0.0
      %1443 = vmatpush1.msra.mxu0 %v1280
      %1444 = vmatprep.subr.mxu0 0.0
      %1445 = vmatpush1.msra.mxu0 %v1281
      %1446 = vmatprep.subr.mxu0 0.0
      %1447 = vmatpush1.msra.mxu0 %v1282
      %1448 = vmatprep.subr.mxu0 0.0
      %1449 = vmatpush1.msra.mxu0 %v1283
      %1450 = vmatprep.subr.mxu0 0.0
      %1451 = vmatpush1.msra.mxu0 %v1284
      %1452 = vmatprep.subr.mxu0 0.0
      %1453 = vmatpush1.msra.mxu0 %v1285
      %1454 = vmatprep.subr.mxu0 0.0
      %1455 = vmatpush1.msra.mxu0 %v1286
      %1456 = vmatprep.subr.mxu0 0.0
      %1457 = vmatpush1.msra.mxu0 %v1287
      %1458 = vmatprep.subr.mxu0 0.0
      %1459 = vmatpush1.msra.mxu0 %v1288
      %1460 = vmatprep.subr.mxu0 0.0
      %1461 = vmatpush1.msra.mxu0 %v1289
      %1462 = vmatprep.subr.mxu0 0.0
      %1463 = vmatpush1.msra.mxu0 %v1290
      %1464 = vmatprep.subr.mxu0 0.0
      %1465 = vmatpush1.msra.mxu0 %v1291
      %1466 = vmatprep.subr.mxu0 0.0
      %1467 = vmatpush1.msra.mxu0 %v1292
      %1468 = vmatprep.subr.mxu0 0.0
      %1469 = vmatpush1.msra.mxu0 %v1293
      %1470 = vmatprep.subr.mxu0 0.0
      %1471 = vmatpush1.msra.mxu0 %v1294
      %1472 = vmatprep.subr.mxu0 0.0
      %1473 = vmatpush1.msra.mxu0 %v1295
      %1474 = vmatprep.subr.mxu0 0.0
      %1475 = vmatpush1.msra.mxu0 %v1296
      %1476 = vmatprep.subr.mxu0 0.0
      %1477 = vmatpush1.msra.mxu0 %v1297
      %1478 = vmatprep.subr.mxu0 0.0
      %1479 = vmatpush1.msra.mxu0 %v1298
      %1480 = vmatprep.subr.mxu0 0.0
      %1481 = vmatpush1.msra.mxu0 %v1299
      %1482 = vmatprep.subr.mxu0 0.0
      %1483 = vmatpush1.msra.mxu0 %v1300
      %1484 = vmatprep.mubr.f32.mxu0 %v982
      %1485 = vmatmul.mubr.f32.gmra.mrb[0].mxu0 %v981
      %v1486 = vpop.f32.mrb[0].mxu0
      %v1487 = vadd.f32 %v1418, %v1486
      %v1488 = vpop.f32.mrb[0].mxu0
      %1489 = vmatprep.mubr.f32.mxu0 %v991
      %1490 = vmatmul.mubr.f32.gmra.mrb[0].mxu0 %v990
      %v1491 = vpop.f32.mrb[0].mxu0
      %v1492 = vadd.f32 %v1418, %v1491
      %v1493 = vpop.f32.mrb[0].mxu0
      %1494 = vmatprep.mubr.f32.mxu0 %v1000
      %1495 = vmatmul.mubr.f32.gmra.mrb[0].mxu0 %v999
      %v1496 = vpop.f32.mrb[0].mxu0
      %v1497 = vadd.f32 %v1418, %v1496
      %v1498 = vpop.f32.mrb[0].mxu0
      %1499 = vmatprep.mubr.f32.mxu0 %v1009
      %1500 = vmatmul.mubr.f32.gmra.mrb[0].mxu0 %v1008
      %v1501 = vpop.f32.mrb[0].mxu0
      %v1502 = vadd.f32 %v1418, %v1501
      %v1503 = vpop.f32.mrb[0].mxu0
      %1504 = vmatprep.mubr.f32.mxu0 %v1018
      %1505 = vmatmul.mubr.f32.gmra.mrb[0].mxu0 %v1017
      %v1506 = vpop.f32.mrb[0].mxu0
      %v1507 = vadd.f32 %v1418, %v1506
      %v1508 = vpop.f32.mrb[0].mxu0
      %1509 = vmatprep.mubr.f32.mxu0 %v1027
      %1510 = vmatmul.mubr.f32.gmra.mrb[0].mxu0 %v1026
      %v1511 = vpop.f32.mrb[0].mxu0
      %v1512 = vadd.f32 %v1418, %v1511
      %v1513 = vpop.f32.mrb[0].mxu0
      %1514 = vmatprep.mubr.f32.mxu0 %v1036
      %1515 = vmatmul.mubr.f32.gmra.mrb[0].mxu0 %v1035
      %v1516 = vpop.f32.mrb[0].mxu0
      %v1517 = vadd.f32 %v1418, %v1516
      %v1518 = vpop.f32.mrb[0].mxu0
      %1519 = vmatprep.mubr.f32.mxu0 %v1045
      %1520 = vmatmul.mubr.f32.gmra.mrb[0].mxu0 %v1044
      %v1521 = vpop.f32.mrb[0].mxu0
      %v1522 = vadd.f32 %v1418, %v1521
      %v1523 = vpop.f32.mrb[0].mxu0
      %1524 = vmatprep.mubr.f32.mxu0 %v1054
      %1525 = vmatmul.mubr.f32.gmra.mrb[0].mxu0 %v1053
      %v1526 = vpop.f32.mrb[0].mxu0
      %v1527 = vadd.f32 %v1418, %v1526
      %v1528 = vpop.f32.mrb[0].mxu0
      %1529 = vmatprep.mubr.f32.mxu0 %v1063
      %1530 = vmatmul.mubr.f32.gmra.mrb[0].mxu0 %v1062
      %v1531 = vpop.f32.mrb[0].mxu0
      %v1532 = vadd.f32 %v1418, %v1531
      %v1533 = vpop.f32.mrb[0].mxu0
      %1534 = vmatprep.mubr.f32.mxu0 %v1072
      %1535 = vmatmul.mubr.f32.gmra.mrb[0].mxu0 %v1071
      %v1536 = vpop.f32.mrb[0].mxu0
      %v1537 = vadd.f32 %v1418, %v1536
      %v1538 = vpop.f32.mrb[0].mxu0
      %1539 = vmatprep.mubr.f32.mxu0 %v1081
      %1540 = vmatmul.mubr.f32.gmra.mrb[0].mxu0 %v1080
      %v1541 = vpop.f32.mrb[0].mxu0
      %v1542 = vadd.f32 %v1418, %v1541
      %v1543 = vpop.f32.mrb[0].mxu0
      %1544 = vmatprep.mubr.f32.mxu0 %v1090
      %1545 = vmatmul.mubr.f32.gmra.mrb[0].mxu0 %v1089
      %v1546 = vpop.f32.mrb[0].mxu0
      %v1547 = vadd.f32 %v1418, %v1546
      %v1548 = vpop.f32.mrb[0].mxu0
      %1549 = vmatprep.mubr.f32.mxu0 %v1099
      %1550 = vmatmul.mubr.f32.gmra.mrb[0].mxu0 %v1098
      %v1551 = vpop.f32.mrb[0].mxu0
      %v1552 = vadd.f32 %v1418, %v1551
      %v1553 = vpop.f32.mrb[0].mxu0
      %1554 = vmatprep.mubr.f32.mxu0 %v1108
      %1555 = vmatmul.mubr.f32.gmra.mrb[0].mxu0 %v1107
      %v1556 = vpop.f32.mrb[0].mxu0
      %v1557 = vadd.f32 %v1418, %v1556
      %v1558 = vpop.f32.mrb[0].mxu0
      %1559 = vmatprep.mubr.f32.mxu0 %v1117
      %1560 = vmatmul.mubr.f32.gmra.mrb[0].mxu0 %v1116
      %v1561 = vpop.f32.mrb[0].mxu0
      %v1562 = vadd.f32 %v1418, %v1561
      %v1563 = vpop.f32.mrb[0].mxu0
      %1564 = vmatprep.mubr.f32.mxu0 %v1126
      %1565 = vmatmul.mubr.f32.gmra.mrb[0].mxu0 %v1125
      %v1566 = vpop.f32.mrb[0].mxu0
      %v1567 = vadd.f32 %v1418, %v1566
      %v1568 = vpop.f32.mrb[0].mxu0
      %1569 = vmatprep.mubr.f32.mxu0 %v1135
      %1570 = vmatmul.mubr.f32.gmra.mrb[0].mxu0 %v1134
      %v1571 = vpop.f32.mrb[0].mxu0
      %v1572 = vadd.f32 %v1418, %v1571
      %v1573 = vpop.f32.mrb[0].mxu0
      %1574 = vmatprep.mubr.f32.mxu0 %v1144
      %1575 = vmatmul.mubr.f32.gmra.mrb[0].mxu0 %v1143
      %v1576 = vpop.f32.mrb[0].mxu0
      %v1577 = vadd.f32 %v1418, %v1576
      %v1578 = vpop.f32.mrb[0].mxu0
      %1579 = vmatprep.mubr.f32.mxu0 %v1153
      %1580 = vmatmul.mubr.f32.gmra.mrb[0].mxu0 %v1152
      %v1581 = vpop.f32.mrb[0].mxu0
      %v1582 = vadd.f32 %v1418, %v1581
      %v1583 = vpop.f32.mrb[0].mxu0
      %1584 = vmatprep.mubr.f32.mxu0 %v1162
      %1585 = vmatmul.mubr.f32.gmra.mrb[0].mxu0 %v1161
      %v1586 = vpop.f32.mrb[0].mxu0
      %v1587 = vadd.f32 %v1418, %v1586
      %v1588 = vpop.f32.mrb[0].mxu0
      %1589 = vmatprep.mubr.f32.mxu0 %v1171
      %1590 = vmatmul.mubr.f32.gmra.mrb[0].mxu0 %v1170
      %v1591 = vpop.f32.mrb[0].mxu0
      %v1592 = vadd.f32 %v1418, %v1591
      %v1593 = vpop.f32.mrb[0].mxu0
      %1594 = vmatprep.mubr.f32.mxu0 %v1180
      %1595 = vmatmul.mubr.f32.gmra.mrb[0].mxu0 %v1179
      %v1596 = vpop.f32.mrb[0].mxu0
      %v1597 = vadd.f32 %v1418, %v1596
      %v1598 = vpop.f32.mrb[0].mxu0
      %1599 = vmatprep.mubr.f32.mxu0 %v1189
      %1600 = vmatmul.mubr.f32.gmra.mrb[0].mxu0 %v1188
      %v1601 = vpop.f32.mrb[0].mxu0
      %v1602 = vadd.f32 %v1418, %v1601
      %v1603 = vpop.f32.mrb[0].mxu0
      %1604 = vmatprep.mubr.f32.mxu0 %v1198
      %1605 = vmatmul.mubr.f32.gmra.mrb[0].mxu0 %v1197
      %v1606 = vpop.f32.mrb[0].mxu0
      %v1607 = vadd.f32 %v1418, %v1606
      %v1608 = vpop.f32.mrb[0].mxu0
      %1609 = vmatprep.mubr.f32.mxu0 %v1207
      %1610 = vmatmul.mubr.f32.gmra.mrb[0].mxu0 %v1206
      %v1611 = vpop.f32.mrb[0].mxu0
      %v1612 = vadd.f32 %v1418, %v1611
      %v1613 = vpop.f32.mrb[0].mxu0
      %1614 = vmatprep.mubr.f32.mxu0 %v1216
      %1615 = vmatmul.mubr.f32.gmra.mrb[0].mxu0 %v1215
      %v1616 = vpop.f32.mrb[0].mxu0
      %v1617 = vadd.f32 %v1418, %v1616
      %v1618 = vpop.f32.mrb[0].mxu0
      %1619 = vmatprep.mubr.f32.mxu0 %v1225
      %1620 = vmatmul.mubr.f32.gmra.mrb[0].mxu0 %v1224
      %v1621 = vpop.f32.mrb[0].mxu0
      %v1622 = vadd.f32 %v1418, %v1621
      %v1623 = vpop.f32.mrb[0].mxu0
      %1624 = vmatprep.mubr.f32.mxu0 %v1234
      %1625 = vmatmul.mubr.f32.gmra.mrb[0].mxu0 %v1233
      %v1626 = vpop.f32.mrb[0].mxu0
      %v1627 = vadd.f32 %v1418, %v1626
      %v1628 = vpop.f32.mrb[0].mxu0
      %1629 = vmatprep.mubr.f32.mxu0 %v1243
      %1630 = vmatmul.mubr.f32.gmra.mrb[0].mxu0 %v1242
      %v1631 = vpop.f32.mrb[0].mxu0
      %v1632 = vadd.f32 %v1418, %v1631
      %v1633 = vpop.f32.mrb[0].mxu0
      %1634 = vmatprep.mubr.f32.mxu0 %v1252
      %1635 = vmatmul.mubr.f32.gmra.mrb[0].mxu0 %v1251
      %v1636 = vpop.f32.mrb[0].mxu0
      %v1637 = vadd.f32 %v1418, %v1636
      %v1638 = vpop.f32.mrb[0].mxu0
      %1639 = vmatprep.mubr.f32.mxu0 %v1261
      %1640 = vmatmul.mubr.f32.gmra.mrb[0].mxu0 %v1260
      %v1641 = vpop.f32.mrb[0].mxu0
      %v1642 = vadd.f32 %v1418, %v1641
      %v1643 = vpop.f32.mrb[0].mxu0
      %1644 = vdwg.mxu0
      %1645 = vmatprep.subr.mxu0 0.0
      %1646 = vmatpush1.msra.mxu0 %v1301
      %1647 = vmatprep.subr.mxu0 0.0
      %1648 = vmatpush1.msra.mxu0 %v1302
      %1649 = vmatprep.subr.mxu0 0.0
      %1650 = vmatpush1.msra.mxu0 %v1303
      %1651 = vmatprep.subr.mxu0 0.0
      %1652 = vmatpush1.msra.mxu0 %v1304
      %1653 = vmatprep.subr.mxu0 0.0
      %1654 = vmatpush1.msra.mxu0 %v1305
      %1655 = vmatprep.subr.mxu0 0.0
      %1656 = vmatpush1.msra.mxu0 %v1306
      %1657 = vmatprep.subr.mxu0 0.0
      %1658 = vmatpush1.msra.mxu0 %v1307
      %1659 = vmatprep.subr.mxu0 0.0
      %1660 = vmatpush1.msra.mxu0 %v1308
      %1661 = vmatprep.subr.mxu0 0.0
      %1662 = vmatpush1.msra.mxu0 %v1309
      %1663 = vmatprep.subr.mxu0 0.0
      %1664 = vmatpush1.msra.mxu0 %v1310
      %1665 = vmatprep.subr.mxu0 0.0
      %1666 = vmatpush1.msra.mxu0 %v1311
      %1667 = vmatprep.subr.mxu0 0.0
      %1668 = vmatpush1.msra.mxu0 %v1312
      %1669 = vmatprep.subr.mxu0 0.0
      %1670 = vmatpush1.msra.mxu0 %v1313
      %1671 = vmatprep.subr.mxu0 0.0
      %1672 = vmatpush1.msra.mxu0 %v1314
      %1673 = vmatprep.subr.mxu0 0.0
      %1674 = vmatpush1.msra.mxu0 %v1315
      %1675 = vmatprep.subr.mxu0 0.0
      %1676 = vmatpush1.msra.mxu0 %v1316
      %1677 = vmatprep.subr.mxu0 0.0
      %1678 = vmatpush1.msra.mxu0 %v1317
      %1679 = vmatprep.subr.mxu0 0.0
      %1680 = vmatpush1.msra.mxu0 %v1318
      %1681 = vmatprep.subr.mxu0 0.0
      %1682 = vmatpush1.msra.mxu0 %v1319
      %1683 = vmatprep.subr.mxu0 0.0
      %1684 = vmatpush1.msra.mxu0 %v1320
      %1685 = vmatprep.subr.mxu0 0.0
      %1686 = vmatpush1.msra.mxu0 %v1321
      %1687 = vmatprep.subr.mxu0 0.0
      %1688 = vmatpush1.msra.mxu0 %v1322
      %1689 = vmatprep.subr.mxu0 0.0
      %1690 = vmatpush1.msra.mxu0 %v1323
      %1691 = vmatprep.subr.mxu0 0.0
      %1692 = vmatpush1.msra.mxu0 %v1324
      %1693 = vmatprep.subr.mxu0 0.0
      %1694 = vmatpush1.msra.mxu0 %v1325
      %1695 = vmatprep.subr.mxu0 0.0
      %1696 = vmatpush1.msra.mxu0 %v1326
      %1697 = vmatprep.subr.mxu0 0.0
      %1698 = vmatpush1.msra.mxu0 %v1327
      %1699 = vmatprep.subr.mxu0 0.0
      %1700 = vmatpush1.msra.mxu0 %v1328
      %1701 = vmatprep.subr.mxu0 0.0
      %1702 = vmatpush1.msra.mxu0 %v1329
      %1703 = vmatprep.subr.mxu0 0.0
      %1704 = vmatpush1.msra.mxu0 %v1330
      %1705 = vmatprep.subr.mxu0 0.0
      %1706 = vmatpush1.msra.mxu0 %v1331
      %1707 = vmatprep.subr.mxu0 0.0
      %1708 = vmatpush1.msra.mxu0 %v1332
      %1709 = vmatprep.mubr.f32.mxu0 %v984
      %1710 = vmatmul.mubr.f32.gmra.mrb[0].mxu0 %v983
      %v1711 = vpop.f32.mrb[0].mxu0
      %v1712 = vadd.f32 %v1487, %v1711
      %v1713 = vpop.f32.mrb[0].mxu0
      %1714 = vmatprep.mubr.f32.mxu0 %v993
      %1715 = vmatmul.mubr.f32.gmra.mrb[0].mxu0 %v992
      %v1716 = vpop.f32.mrb[0].mxu0
      %v1717 = vadd.f32 %v1492, %v1716
      %v1718 = vpop.f32.mrb[0].mxu0
      %1719 = vmatprep.mubr.f32.mxu0 %v1002
      %1720 = vmatmul.mubr.f32.gmra.mrb[0].mxu0 %v1001
      %v1721 = vpop.f32.mrb[0].mxu0
      %v1722 = vadd.f32 %v1497, %v1721
      %v1723 = vpop.f32.mrb[0].mxu0
      %1724 = vmatprep.mubr.f32.mxu0 %v1011
      %1725 = vmatmul.mubr.f32.gmra.mrb[0].mxu0 %v1010
      %v1726 = vpop.f32.mrb[0].mxu0
      %v1727 = vadd.f32 %v1502, %v1726
      %v1728 = vpop.f32.mrb[0].mxu0
      %1729 = vmatprep.mubr.f32.mxu0 %v1020
      %1730 = vmatmul.mubr.f32.gmra.mrb[0].mxu0 %v1019
      %v1731 = vpop.f32.mrb[0].mxu0
      %v1732 = vadd.f32 %v1507, %v1731
      %v1733 = vpop.f32.mrb[0].mxu0
      %1734 = vmatprep.mubr.f32.mxu0 %v1029
      %1735 = vmatmul.mubr.f32.gmra.mrb[0].mxu0 %v1028
      %v1736 = vpop.f32.mrb[0].mxu0
      %v1737 = vadd.f32 %v1512, %v1736
      %v1738 = vpop.f32.mrb[0].mxu0
      %1739 = vmatprep.mubr.f32.mxu0 %v1038
      %1740 = vmatmul.mubr.f32.gmra.mrb[0].mxu0 %v1037
      %v1741 = vpop.f32.mrb[0].mxu0
      %v1742 = vadd.f32 %v1517, %v1741
      %v1743 = vpop.f32.mrb[0].mxu0
      %1744 = vmatprep.mubr.f32.mxu0 %v1047
      %1745 = vmatmul.mubr.f32.gmra.mrb[0].mxu0 %v1046
      %v1746 = vpop.f32.mrb[0].mxu0
      %v1747 = vadd.f32 %v1522, %v1746
      %v1748 = vpop.f32.mrb[0].mxu0
      %1749 = vmatprep.mubr.f32.mxu0 %v1056
      %1750 = vmatmul.mubr.f32.gmra.mrb[0].mxu0 %v1055
      %v1751 = vpop.f32.mrb[0].mxu0
      %v1752 = vadd.f32 %v1527, %v1751
      %v1753 = vpop.f32.mrb[0].mxu0
      %1754 = vmatprep.mubr.f32.mxu0 %v1065
      %1755 = vmatmul.mubr.f32.gmra.mrb[0].mxu0 %v1064
      %v1756 = vpop.f32.mrb[0].mxu0
      %v1757 = vadd.f32 %v1532, %v1756
      %v1758 = vpop.f32.mrb[0].mxu0
      %1759 = vmatprep.mubr.f32.mxu0 %v1074
      %1760 = vmatmul.mubr.f32.gmra.mrb[0].mxu0 %v1073
      %v1761 = vpop.f32.mrb[0].mxu0
      %v1762 = vadd.f32 %v1537, %v1761
      %v1763 = vpop.f32.mrb[0].mxu0
      %1764 = vmatprep.mubr.f32.mxu0 %v1083
      %1765 = vmatmul.mubr.f32.gmra.mrb[0].mxu0 %v1082
      %v1766 = vpop.f32.mrb[0].mxu0
      %v1767 = vadd.f32 %v1542, %v1766
      %v1768 = vpop.f32.mrb[0].mxu0
      %1769 = vmatprep.mubr.f32.mxu0 %v1092
      %1770 = vmatmul.mubr.f32.gmra.mrb[0].mxu0 %v1091
      %v1771 = vpop.f32.mrb[0].mxu0
      %v1772 = vadd.f32 %v1547, %v1771
      %v1773 = vpop.f32.mrb[0].mxu0
      %1774 = vmatprep.mubr.f32.mxu0 %v1101
      %1775 = vmatmul.mubr.f32.gmra.mrb[0].mxu0 %v1100
      %v1776 = vpop.f32.mrb[0].mxu0
      %v1777 = vadd.f32 %v1552, %v1776
      %v1778 = vpop.f32.mrb[0].mxu0
      %1779 = vmatprep.mubr.f32.mxu0 %v1110
      %1780 = vmatmul.mubr.f32.gmra.mrb[0].mxu0 %v1109
      %v1781 = vpop.f32.mrb[0].mxu0
      %v1782 = vadd.f32 %v1557, %v1781
      %v1783 = vpop.f32.mrb[0].mxu0
      %1784 = vmatprep.mubr.f32.mxu0 %v1119
      %1785 = vmatmul.mubr.f32.gmra.mrb[0].mxu0 %v1118
      %v1786 = vpop.f32.mrb[0].mxu0
      %v1787 = vadd.f32 %v1562, %v1786
      %v1788 = vpop.f32.mrb[0].mxu0
      %1789 = vmatprep.mubr.f32.mxu0 %v1128
      %1790 = vmatmul.mubr.f32.gmra.mrb[0].mxu0 %v1127
      %v1791 = vpop.f32.mrb[0].mxu0
      %v1792 = vadd.f32 %v1567, %v1791
      %v1793 = vpop.f32.mrb[0].mxu0
      %1794 = vmatprep.mubr.f32.mxu0 %v1137
      %1795 = vmatmul.mubr.f32.gmra.mrb[0].mxu0 %v1136
      %v1796 = vpop.f32.mrb[0].mxu0
      %v1797 = vadd.f32 %v1572, %v1796
      %v1798 = vpop.f32.mrb[0].mxu0
      %1799 = vmatprep.mubr.f32.mxu0 %v1146
      %1800 = vmatmul.mubr.f32.gmra.mrb[0].mxu0 %v1145
      %v1801 = vpop.f32.mrb[0].mxu0
      %v1802 = vadd.f32 %v1577, %v1801
      %v1803 = vpop.f32.mrb[0].mxu0
      %1804 = vmatprep.mubr.f32.mxu0 %v1155
      %1805 = vmatmul.mubr.f32.gmra.mrb[0].mxu0 %v1154
      %v1806 = vpop.f32.mrb[0].mxu0
      %v1807 = vadd.f32 %v1582, %v1806
      %v1808 = vpop.f32.mrb[0].mxu0
      %1809 = vmatprep.mubr.f32.mxu0 %v1164
      %1810 = vmatmul.mubr.f32.gmra.mrb[0].mxu0 %v1163
      %v1811 = vpop.f32.mrb[0].mxu0
      %v1812 = vadd.f32 %v1587, %v1811
      %v1813 = vpop.f32.mrb[0].mxu0
      %1814 = vmatprep.mubr.f32.mxu0 %v1173
      %1815 = vmatmul.mubr.f32.gmra.mrb[0].mxu0 %v1172
      %v1816 = vpop.f32.mrb[0].mxu0
      %v1817 = vadd.f32 %v1592, %v1816
      %v1818 = vpop.f32.mrb[0].mxu0
      %1819 = vmatprep.mubr.f32.mxu0 %v1182
      %1820 = vmatmul.mubr.f32.gmra.mrb[0].mxu0 %v1181
      %v1821 = vpop.f32.mrb[0].mxu0
      %v1822 = vadd.f32 %v1597, %v1821
      %v1823 = vpop.f32.mrb[0].mxu0
      %1824 = vmatprep.mubr.f32.mxu0 %v1191
      %1825 = vmatmul.mubr.f32.gmra.mrb[0].mxu0 %v1190
      %v1826 = vpop.f32.mrb[0].mxu0
      %v1827 = vadd.f32 %v1602, %v1826
      %v1828 = vpop.f32.mrb[0].mxu0
      %1829 = vmatprep.mubr.f32.mxu0 %v1200
      %1830 = vmatmul.mubr.f32.gmra.mrb[0].mxu0 %v1199
      %v1831 = vpop.f32.mrb[0].mxu0
      %v1832 = vadd.f32 %v1607, %v1831
      %v1833 = vpop.f32.mrb[0].mxu0
      %1834 = vmatprep.mubr.f32.mxu0 %v1209
      %1835 = vmatmul.mubr.f32.gmra.mrb[0].mxu0 %v1208
      %v1836 = vpop.f32.mrb[0].mxu0
      %v1837 = vadd.f32 %v1612, %v1836
      %v1838 = vpop.f32.mrb[0].mxu0
      %1839 = vmatprep.mubr.f32.mxu0 %v1218
      %1840 = vmatmul.mubr.f32.gmra.mrb[0].mxu0 %v1217
      %v1841 = vpop.f32.mrb[0].mxu0
      %v1842 = vadd.f32 %v1617, %v1841
      %v1843 = vpop.f32.mrb[0].mxu0
      %1844 = vmatprep.mubr.f32.mxu0 %v1227
      %1845 = vmatmul.mubr.f32.gmra.mrb[0].mxu0 %v1226
      %v1846 = vpop.f32.mrb[0].mxu0
      %v1847 = vadd.f32 %v1622, %v1846
      %v1848 = vpop.f32.mrb[0].mxu0
      %1849 = vmatprep.mubr.f32.mxu0 %v1236
      %1850 = vmatmul.mubr.f32.gmra.mrb[0].mxu0 %v1235
      %v1851 = vpop.f32.mrb[0].mxu0
      %v1852 = vadd.f32 %v1627, %v1851
      %v1853 = vpop.f32.mrb[0].mxu0
      %1854 = vmatprep.mubr.f32.mxu0 %v1245
      %1855 = vmatmul.mubr.f32.gmra.mrb[0].mxu0 %v1244
      %v1856 = vpop.f32.mrb[0].mxu0
      %v1857 = vadd.f32 %v1632, %v1856
      %v1858 = vpop.f32.mrb[0].mxu0
      %1859 = vmatprep.mubr.f32.mxu0 %v1254
      %1860 = vmatmul.mubr.f32.gmra.mrb[0].mxu0 %v1253
      %v1861 = vpop.f32.mrb[0].mxu0
      %v1862 = vadd.f32 %v1637, %v1861
      %v1863 = vpop.f32.mrb[0].mxu0
      %1864 = vmatprep.mubr.f32.mxu0 %v1263
      %1865 = vmatmul.mubr.f32.gmra.mrb[0].mxu0 %v1262
      %v1866 = vpop.f32.mrb[0].mxu0
      %v1867 = vadd.f32 %v1642, %v1866
      %v1868 = vpop.f32.mrb[0].mxu0
      %1869 = vdwg.mxu0
      %1870 = vmatprep.subr.mxu0 0.0
      %1871 = vmatpush1.msra.mxu0 %v1333
      %1872 = vmatprep.subr.mxu0 0.0
      %1873 = vmatpush1.msra.mxu0 %v1334
      %1874 = vmatprep.subr.mxu0 0.0
      %1875 = vmatpush1.msra.mxu0 %v1335
      %1876 = vmatprep.subr.mxu0 0.0
      %1877 = vmatpush1.msra.mxu0 %v1336
      %1878 = vmatprep.subr.mxu0 0.0
      %1879 = vmatpush1.msra.mxu0 %v1337
      %1880 = vmatprep.subr.mxu0 0.0
      %1881 = vmatpush1.msra.mxu0 %v1338
      %1882 = vmatprep.subr.mxu0 0.0
      %1883 = vmatpush1.msra.mxu0 %v1339
      %1884 = vmatprep.subr.mxu0 0.0
      %1885 = vmatpush1.msra.mxu0 %v1340
      %1886 = vmatprep.subr.mxu0 0.0
      %1887 = vmatpush1.msra.mxu0 %v1341
      %1888 = vmatprep.subr.mxu0 0.0
      %1889 = vmatpush1.msra.mxu0 %v1342
      %1890 = vmatprep.subr.mxu0 0.0
      %1891 = vmatpush1.msra.mxu0 %v1343
      %1892 = vmatprep.subr.mxu0 0.0
      %1893 = vmatpush1.msra.mxu0 %v1344
      %1894 = vmatprep.subr.mxu0 0.0
      %1895 = vmatpush1.msra.mxu0 %v1345
      %1896 = vmatprep.subr.mxu0 0.0
      %1897 = vmatpush1.msra.mxu0 %v1346
      %1898 = vmatprep.subr.mxu0 0.0
      %1899 = vmatpush1.msra.mxu0 %v1347
      %1900 = vmatprep.subr.mxu0 0.0
      %1901 = vmatpush1.msra.mxu0 %v1348
      %1902 = vmatprep.subr.mxu0 0.0
      %1903 = vmatpush1.msra.mxu0 %v1349
      %1904 = vmatprep.subr.mxu0 0.0
      %1905 = vmatpush1.msra.mxu0 %v1350
      %1906 = vmatprep.subr.mxu0 0.0
      %1907 = vmatpush1.msra.mxu0 %v1351
      %1908 = vmatprep.subr.mxu0 0.0
      %1909 = vmatpush1.msra.mxu0 %v1352
      %1910 = vmatprep.subr.mxu0 0.0
      %1911 = vmatpush1.msra.mxu0 %v1353
      %1912 = vmatprep.subr.mxu0 0.0
      %1913 = vmatpush1.msra.mxu0 %v1354
      %1914 = vmatprep.subr.mxu0 0.0
      %1915 = vmatpush1.msra.mxu0 %v1355
      %1916 = vmatprep.subr.mxu0 0.0
      %1917 = vmatpush1.msra.mxu0 %v1356
      %1918 = vmatprep.subr.mxu0 0.0
      %1919 = vmatpush1.msra.mxu0 %v1357
      %1920 = vmatprep.subr.mxu0 0.0
      %1921 = vmatpush1.msra.mxu0 %v1358
      %1922 = vmatprep.subr.mxu0 0.0
      %1923 = vmatpush1.msra.mxu0 %v1359
      %1924 = vmatprep.subr.mxu0 0.0
      %1925 = vmatpush1.msra.mxu0 %v1360
      %1926 = vmatprep.subr.mxu0 0.0
      %1927 = vmatpush1.msra.mxu0 %v1361
      %1928 = vmatprep.subr.mxu0 0.0
      %1929 = vmatpush1.msra.mxu0 %v1362
      %1930 = vmatprep.subr.mxu0 0.0
      %1931 = vmatpush1.msra.mxu0 %v1363
      %1932 = vmatprep.subr.mxu0 0.0
      %1933 = vmatpush1.msra.mxu0 %v1364
      %1934 = vmatprep.mubr.f32.mxu0 %v986
      %1935 = vmatmul.mubr.f32.gmra.mrb[0].mxu0 %v985
      %v1936 = vpop.f32.mrb[0].mxu0
      %v1937 = vadd.f32 %v1712, %v1936
      %v1938 = vpop.f32.mrb[0].mxu0
      %1939 = vmatprep.mubr.f32.mxu0 %v995
      %1940 = vmatmul.mubr.f32.gmra.mrb[0].mxu0 %v994
      %v1941 = vpop.f32.mrb[0].mxu0
      %v1942 = vadd.f32 %v1717, %v1941
      %v1943 = vpop.f32.mrb[0].mxu0
      %1944 = vmatprep.mubr.f32.mxu0 %v1004
      %1945 = vmatmul.mubr.f32.gmra.mrb[0].mxu0 %v1003
      %v1946 = vpop.f32.mrb[0].mxu0
      %v1947 = vadd.f32 %v1722, %v1946
      %v1948 = vpop.f32.mrb[0].mxu0
      %1949 = vmatprep.mubr.f32.mxu0 %v1013
      %1950 = vmatmul.mubr.f32.gmra.mrb[0].mxu0 %v1012
      %v1951 = vpop.f32.mrb[0].mxu0
      %v1952 = vadd.f32 %v1727, %v1951
      %v1953 = vpop.f32.mrb[0].mxu0
      %1954 = vmatprep.mubr.f32.mxu0 %v1022
      %1955 = vmatmul.mubr.f32.gmra.mrb[0].mxu0 %v1021
      %v1956 = vpop.f32.mrb[0].mxu0
      %v1957 = vadd.f32 %v1732, %v1956
      %v1958 = vpop.f32.mrb[0].mxu0
      %1959 = vmatprep.mubr.f32.mxu0 %v1031
      %1960 = vmatmul.mubr.f32.gmra.mrb[0].mxu0 %v1030
      %v1961 = vpop.f32.mrb[0].mxu0
      %v1962 = vadd.f32 %v1737, %v1961
      %v1963 = vpop.f32.mrb[0].mxu0
      %1964 = vmatprep.mubr.f32.mxu0 %v1040
      %1965 = vmatmul.mubr.f32.gmra.mrb[0].mxu0 %v1039
      %v1966 = vpop.f32.mrb[0].mxu0
      %v1967 = vadd.f32 %v1742, %v1966
      %v1968 = vpop.f32.mrb[0].mxu0
      %1969 = vmatprep.mubr.f32.mxu0 %v1049
      %1970 = vmatmul.mubr.f32.gmra.mrb[0].mxu0 %v1048
      %v1971 = vpop.f32.mrb[0].mxu0
      %v1972 = vadd.f32 %v1747, %v1971
      %v1973 = vpop.f32.mrb[0].mxu0
      %1974 = vmatprep.mubr.f32.mxu0 %v1058
      %1975 = vmatmul.mubr.f32.gmra.mrb[0].mxu0 %v1057
      %v1976 = vpop.f32.mrb[0].mxu0
      %v1977 = vadd.f32 %v1752, %v1976
      %v1978 = vpop.f32.mrb[0].mxu0
      %1979 = vmatprep.mubr.f32.mxu0 %v1067
      %1980 = vmatmul.mubr.f32.gmra.mrb[0].mxu0 %v1066
      %v1981 = vpop.f32.mrb[0].mxu0
      %v1982 = vadd.f32 %v1757, %v1981
      %v1983 = vpop.f32.mrb[0].mxu0
      %1984 = vmatprep.mubr.f32.mxu0 %v1076
      %1985 = vmatmul.mubr.f32.gmra.mrb[0].mxu0 %v1075
      %v1986 = vpop.f32.mrb[0].mxu0
      %v1987 = vadd.f32 %v1762, %v1986
      %v1988 = vpop.f32.mrb[0].mxu0
      %1989 = vmatprep.mubr.f32.mxu0 %v1085
      %1990 = vmatmul.mubr.f32.gmra.mrb[0].mxu0 %v1084
      %v1991 = vpop.f32.mrb[0].mxu0
      %v1992 = vadd.f32 %v1767, %v1991
      %v1993 = vpop.f32.mrb[0].mxu0
      %1994 = vmatprep.mubr.f32.mxu0 %v1094
      %1995 = vmatmul.mubr.f32.gmra.mrb[0].mxu0 %v1093
      %v1996 = vpop.f32.mrb[0].mxu0
      %v1997 = vadd.f32 %v1772, %v1996
      %v1998 = vpop.f32.mrb[0].mxu0
      %1999 = vmatprep.mubr.f32.mxu0 %v1103
      %2000 = vmatmul.mubr.f32.gmra.mrb[0].mxu0 %v1102
      %v2001 = vpop.f32.mrb[0].mxu0
      %v2002 = vadd.f32 %v1777, %v2001
      %v2003 = vpop.f32.mrb[0].mxu0
      %2004 = vmatprep.mubr.f32.mxu0 %v1112
      %2005 = vmatmul.mubr.f32.gmra.mrb[0].mxu0 %v1111
      %v2006 = vpop.f32.mrb[0].mxu0
      %v2007 = vadd.f32 %v1782, %v2006
      %v2008 = vpop.f32.mrb[0].mxu0
      %2009 = vmatprep.mubr.f32.mxu0 %v1121
      %2010 = vmatmul.mubr.f32.gmra.mrb[0].mxu0 %v1120
      %v2011 = vpop.f32.mrb[0].mxu0
      %v2012 = vadd.f32 %v1787, %v2011
      %v2013 = vpop.f32.mrb[0].mxu0
      %2014 = vmatprep.mubr.f32.mxu0 %v1130
      %2015 = vmatmul.mubr.f32.gmra.mrb[0].mxu0 %v1129
      %v2016 = vpop.f32.mrb[0].mxu0
      %v2017 = vadd.f32 %v1792, %v2016
      %v2018 = vpop.f32.mrb[0].mxu0
      %2019 = vmatprep.mubr.f32.mxu0 %v1139
      %2020 = vmatmul.mubr.f32.gmra.mrb[0].mxu0 %v1138
      %v2021 = vpop.f32.mrb[0].mxu0
      %v2022 = vadd.f32 %v1797, %v2021
      %v2023 = vpop.f32.mrb[0].mxu0
      %2024 = vmatprep.mubr.f32.mxu0 %v1148
      %2025 = vmatmul.mubr.f32.gmra.mrb[0].mxu0 %v1147
      %v2026 = vpop.f32.mrb[0].mxu0
      %v2027 = vadd.f32 %v1802, %v2026
      %v2028 = vpop.f32.mrb[0].mxu0
      %2029 = vmatprep.mubr.f32.mxu0 %v1157
      %2030 = vmatmul.mubr.f32.gmra.mrb[0].mxu0 %v1156
      %v2031 = vpop.f32.mrb[0].mxu0
      %v2032 = vadd.f32 %v1807, %v2031
      %v2033 = vpop.f32.mrb[0].mxu0
      %2034 = vmatprep.mubr.f32.mxu0 %v1166
      %2035 = vmatmul.mubr.f32.gmra.mrb[0].mxu0 %v1165
      %v2036 = vpop.f32.mrb[0].mxu0
      %v2037 = vadd.f32 %v1812, %v2036
      %v2038 = vpop.f32.mrb[0].mxu0
      %2039 = vmatprep.mubr.f32.mxu0 %v1175
      %2040 = vmatmul.mubr.f32.gmra.mrb[0].mxu0 %v1174
      %v2041 = vpop.f32.mrb[0].mxu0
      %v2042 = vadd.f32 %v1817, %v2041
      %v2043 = vpop.f32.mrb[0].mxu0
      %2044 = vmatprep.mubr.f32.mxu0 %v1184
      %2045 = vmatmul.mubr.f32.gmra.mrb[0].mxu0 %v1183
      %v2046 = vpop.f32.mrb[0].mxu0
      %v2047 = vadd.f32 %v1822, %v2046
      %v2048 = vpop.f32.mrb[0].mxu0
      %2049 = vmatprep.mubr.f32.mxu0 %v1193
      %2050 = vmatmul.mubr.f32.gmra.mrb[0].mxu0 %v1192
      %v2051 = vpop.f32.mrb[0].mxu0
      %v2052 = vadd.f32 %v1827, %v2051
      %v2053 = vpop.f32.mrb[0].mxu0
      %2054 = vmatprep.mubr.f32.mxu0 %v1202
      %2055 = vmatmul.mubr.f32.gmra.mrb[0].mxu0 %v1201
      %v2056 = vpop.f32.mrb[0].mxu0
      %v2057 = vadd.f32 %v1832, %v2056
      %v2058 = vpop.f32.mrb[0].mxu0
      %2059 = vmatprep.mubr.f32.mxu0 %v1211
      %2060 = vmatmul.mubr.f32.gmra.mrb[0].mxu0 %v1210
      %v2061 = vpop.f32.mrb[0].mxu0
      %v2062 = vadd.f32 %v1837, %v2061
      %v2063 = vpop.f32.mrb[0].mxu0
      %2064 = vmatprep.mubr.f32.mxu0 %v1220
      %2065 = vmatmul.mubr.f32.gmra.mrb[0].mxu0 %v1219
      %v2066 = vpop.f32.mrb[0].mxu0
      %v2067 = vadd.f32 %v1842, %v2066
      %v2068 = vpop.f32.mrb[0].mxu0
      %2069 = vmatprep.mubr.f32.mxu0 %v1229
      %2070 = vmatmul.mubr.f32.gmra.mrb[0].mxu0 %v1228
      %v2071 = vpop.f32.mrb[0].mxu0
      %v2072 = vadd.f32 %v1847, %v2071
      %v2073 = vpop.f32.mrb[0].mxu0
      %2074 = vmatprep.mubr.f32.mxu0 %v1238
      %2075 = vmatmul.mubr.f32.gmra.mrb[0].mxu0 %v1237
      %v2076 = vpop.f32.mrb[0].mxu0
      %v2077 = vadd.f32 %v1852, %v2076
      %v2078 = vpop.f32.mrb[0].mxu0
      %2079 = vmatprep.mubr.f32.mxu0 %v1247
      %2080 = vmatmul.mubr.f32.gmra.mrb[0].mxu0 %v1246
      %v2081 = vpop.f32.mrb[0].mxu0
      %v2082 = vadd.f32 %v1857, %v2081
      %v2083 = vpop.f32.mrb[0].mxu0
      %2084 = vmatprep.mubr.f32.mxu0 %v1256
      %2085 = vmatmul.mubr.f32.gmra.mrb[0].mxu0 %v1255
      %v2086 = vpop.f32.mrb[0].mxu0
      %v2087 = vadd.f32 %v1862, %v2086
      %v2088 = vpop.f32.mrb[0].mxu0
      %2089 = vmatprep.mubr.f32.mxu0 %v1265
      %2090 = vmatmul.mubr.f32.gmra.mrb[0].mxu0 %v1264
      %v2091 = vpop.f32.mrb[0].mxu0
      %v2092 = vadd.f32 %v1867, %v2091
      %v2093 = vpop.f32.mrb[0].mxu0
      %2094 = vdwg.mxu0
      %2095 = vmatprep.subr.mxu0 0.0
      %2096 = vmatpush1.msra.mxu0 %v1365
      %2097 = vmatprep.subr.mxu0 0.0
      %2098 = vmatpush1.msra.mxu0 %v1366
      %2099 = vmatprep.subr.mxu0 0.0
      %2100 = vmatpush1.msra.mxu0 %v1367
      %2101 = vmatprep.subr.mxu0 0.0
      %2102 = vmatpush1.msra.mxu0 %v1368
      %2103 = vmatprep.subr.mxu0 0.0
      %2104 = vmatpush1.msra.mxu0 %v1369
      %2105 = vmatprep.subr.mxu0 0.0
      %2106 = vmatpush1.msra.mxu0 %v1370
      %2107 = vmatprep.subr.mxu0 0.0
      %2108 = vmatpush1.msra.mxu0 %v1371
      %2109 = vmatprep.subr.mxu0 0.0
      %2110 = vmatpush1.msra.mxu0 %v1372
      %2111 = vmatprep.subr.mxu0 0.0
      %2112 = vmatpush1.msra.mxu0 %v1373
      %2113 = vmatprep.subr.mxu0 0.0
      %2114 = vmatpush1.msra.mxu0 %v1374
      %2115 = vmatprep.subr.mxu0 0.0
      %2116 = vmatpush1.msra.mxu0 %v1375
      %2117 = vmatprep.subr.mxu0 0.0
      %2118 = vmatpush1.msra.mxu0 %v1376
      %2119 = vmatprep.subr.mxu0 0.0
      %2120 = vmatpush1.msra.mxu0 %v1377
      %2121 = vmatprep.subr.mxu0 0.0
      %2122 = vmatpush1.msra.mxu0 %v1378
      %2123 = vmatprep.subr.mxu0 0.0
      %2124 = vmatpush1.msra.mxu0 %v1379
      %2125 = vmatprep.subr.mxu0 0.0
      %2126 = vmatpush1.msra.mxu0 %v1380
      %2127 = vmatprep.subr.mxu0 0.0
      %2128 = vmatpush1.msra.mxu0 %v1381
      %2129 = vmatprep.subr.mxu0 0.0
      %2130 = vmatpush1.msra.mxu0 %v1382
      %2131 = vmatprep.subr.mxu0 0.0
      %2132 = vmatpush1.msra.mxu0 %v1383
      %2133 = vmatprep.subr.mxu0 0.0
      %2134 = vmatpush1.msra.mxu0 %v1384
      %2135 = vmatprep.subr.mxu0 0.0
      %2136 = vmatpush1.msra.mxu0 %v1385
      %2137 = vmatprep.subr.mxu0 0.0
      %2138 = vmatpush1.msra.mxu0 %v1386
      %2139 = vmatprep.subr.mxu0 0.0
      %2140 = vmatpush1.msra.mxu0 %v1387
      %2141 = vmatprep.subr.mxu0 0.0
      %2142 = vmatpush1.msra.mxu0 %v1388
      %2143 = vmatprep.subr.mxu0 0.0
      %2144 = vmatpush1.msra.mxu0 %v1389
      %2145 = vmatprep.subr.mxu0 0.0
      %2146 = vmatpush1.msra.mxu0 %v1390
      %2147 = vmatprep.subr.mxu0 0.0
      %2148 = vmatpush1.msra.mxu0 %v1391
      %2149 = vmatprep.subr.mxu0 0.0
      %2150 = vmatpush1.msra.mxu0 %v1392
      %2151 = vmatprep.subr.mxu0 0.0
      %2152 = vmatpush1.msra.mxu0 %v1393
      %2153 = vmatprep.subr.mxu0 0.0
      %2154 = vmatpush1.msra.mxu0 %v1394
      %2155 = vmatprep.subr.mxu0 0.0
      %2156 = vmatpush1.msra.mxu0 %v1395
      %2157 = vmatprep.subr.mxu0 0.0
      %2158 = vmatpush1.msra.mxu0 %v1396
      %2159 = vmatprep.mubr.f32.mxu0 %v988
      %2160 = vmatmul.mubr.f32.gmra.mrb[0].mxu0 %v987
      %v2161 = vpop.f32.mrb[0].mxu0
      %v2162 = vadd.f32 %v1937, %v2161
      %v2163 = vpop.f32.mrb[0].mxu0
      %2164 = vmatprep.mubr.f32.mxu0 %v997
      %2165 = vmatmul.mubr.f32.gmra.mrb[0].mxu0 %v996
      %v2166 = vpop.f32.mrb[0].mxu0
      %v2167 = vadd.f32 %v1942, %v2166
      %v2168 = vpop.f32.mrb[0].mxu0
      %2169 = vmatprep.mubr.f32.mxu0 %v1006
      %2170 = vmatmul.mubr.f32.gmra.mrb[0].mxu0 %v1005
      %v2171 = vpop.f32.mrb[0].mxu0
      %v2172 = vadd.f32 %v1947, %v2171
      %v2173 = vpop.f32.mrb[0].mxu0
      %2174 = vmatprep.mubr.f32.mxu0 %v1015
      %2175 = vmatmul.mubr.f32.gmra.mrb[0].mxu0 %v1014
      %v2176 = vpop.f32.mrb[0].mxu0
      %v2177 = vadd.f32 %v1952, %v2176
      %v2178 = vpop.f32.mrb[0].mxu0
      %2179 = vmatprep.mubr.f32.mxu0 %v1024
      %2180 = vmatmul.mubr.f32.gmra.mrb[0].mxu0 %v1023
      %v2181 = vpop.f32.mrb[0].mxu0
      %v2182 = vadd.f32 %v1957, %v2181
      %v2183 = vpop.f32.mrb[0].mxu0
      %2184 = vmatprep.mubr.f32.mxu0 %v1033
      %2185 = vmatmul.mubr.f32.gmra.mrb[0].mxu0 %v1032
      %v2186 = vpop.f32.mrb[0].mxu0
      %v2187 = vadd.f32 %v1962, %v2186
      %v2188 = vpop.f32.mrb[0].mxu0
      %2189 = vmatprep.mubr.f32.mxu0 %v1042
      %2190 = vmatmul.mubr.f32.gmra.mrb[0].mxu0 %v1041
      %v2191 = vpop.f32.mrb[0].mxu0
      %v2192 = vadd.f32 %v1967, %v2191
      %v2193 = vpop.f32.mrb[0].mxu0
      %2194 = vmatprep.mubr.f32.mxu0 %v1051
      %2195 = vmatmul.mubr.f32.gmra.mrb[0].mxu0 %v1050
      %v2196 = vpop.f32.mrb[0].mxu0
      %v2197 = vadd.f32 %v1972, %v2196
      %v2198 = vpop.f32.mrb[0].mxu0
      %2199 = vmatprep.mubr.f32.mxu0 %v1060
      %2200 = vmatmul.mubr.f32.gmra.mrb[0].mxu0 %v1059
      %v2201 = vpop.f32.mrb[0].mxu0
      %v2202 = vadd.f32 %v1977, %v2201
      %v2203 = vpop.f32.mrb[0].mxu0
      %2204 = vmatprep.mubr.f32.mxu0 %v1069
      %2205 = vmatmul.mubr.f32.gmra.mrb[0].mxu0 %v1068
      %v2206 = vpop.f32.mrb[0].mxu0
      %v2207 = vadd.f32 %v1982, %v2206
      %v2208 = vpop.f32.mrb[0].mxu0
      %2209 = vmatprep.mubr.f32.mxu0 %v1078
      %2210 = vmatmul.mubr.f32.gmra.mrb[0].mxu0 %v1077
      %v2211 = vpop.f32.mrb[0].mxu0
      %v2212 = vadd.f32 %v1987, %v2211
      %v2213 = vpop.f32.mrb[0].mxu0
      %2214 = vmatprep.mubr.f32.mxu0 %v1087
      %2215 = vmatmul.mubr.f32.gmra.mrb[0].mxu0 %v1086
      %v2216 = vpop.f32.mrb[0].mxu0
      %v2217 = vadd.f32 %v1992, %v2216
      %v2218 = vpop.f32.mrb[0].mxu0
      %2219 = vmatprep.mubr.f32.mxu0 %v1096
      %2220 = vmatmul.mubr.f32.gmra.mrb[0].mxu0 %v1095
      %v2221 = vpop.f32.mrb[0].mxu0
      %v2222 = vadd.f32 %v1997, %v2221
      %v2223 = vpop.f32.mrb[0].mxu0
      %2224 = vmatprep.mubr.f32.mxu0 %v1105
      %2225 = vmatmul.mubr.f32.gmra.mrb[0].mxu0 %v1104
      %v2226 = vpop.f32.mrb[0].mxu0
      %v2227 = vadd.f32 %v2002, %v2226
      %v2228 = vpop.f32.mrb[0].mxu0
      %2229 = vmatprep.mubr.f32.mxu0 %v1114
      %2230 = vmatmul.mubr.f32.gmra.mrb[0].mxu0 %v1113
      %v2231 = vpop.f32.mrb[0].mxu0
      %v2232 = vadd.f32 %v2007, %v2231
      %v2233 = vpop.f32.mrb[0].mxu0
      %2234 = vmatprep.mubr.f32.mxu0 %v1123
      %2235 = vmatmul.mubr.f32.gmra.mrb[0].mxu0 %v1122
      %v2236 = vpop.f32.mrb[0].mxu0
      %v2237 = vadd.f32 %v2012, %v2236
      %v2238 = vpop.f32.mrb[0].mxu0
      %2239 = vmatprep.mubr.f32.mxu0 %v1132
      %2240 = vmatmul.mubr.f32.gmra.mrb[0].mxu0 %v1131
      %v2241 = vpop.f32.mrb[0].mxu0
      %v2242 = vadd.f32 %v2017, %v2241
      %v2243 = vpop.f32.mrb[0].mxu0
      %2244 = vmatprep.mubr.f32.mxu0 %v1141
      %2245 = vmatmul.mubr.f32.gmra.mrb[0].mxu0 %v1140
      %v2246 = vpop.f32.mrb[0].mxu0
      %v2247 = vadd.f32 %v2022, %v2246
      %v2248 = vpop.f32.mrb[0].mxu0
      %2249 = vmatprep.mubr.f32.mxu0 %v1150
      %2250 = vmatmul.mubr.f32.gmra.mrb[0].mxu0 %v1149
      %v2251 = vpop.f32.mrb[0].mxu0
      %v2252 = vadd.f32 %v2027, %v2251
      %v2253 = vpop.f32.mrb[0].mxu0
      %2254 = vmatprep.mubr.f32.mxu0 %v1159
      %2255 = vmatmul.mubr.f32.gmra.mrb[0].mxu0 %v1158
      %v2256 = vpop.f32.mrb[0].mxu0
      %v2257 = vadd.f32 %v2032, %v2256
      %v2258 = vpop.f32.mrb[0].mxu0
      %2259 = vmatprep.mubr.f32.mxu0 %v1168
      %2260 = vmatmul.mubr.f32.gmra.mrb[0].mxu0 %v1167
      %v2261 = vpop.f32.mrb[0].mxu0
      %v2262 = vadd.f32 %v2037, %v2261
      %v2263 = vpop.f32.mrb[0].mxu0
      %2264 = vmatprep.mubr.f32.mxu0 %v1177
      %2265 = vmatmul.mubr.f32.gmra.mrb[0].mxu0 %v1176
      %v2266 = vpop.f32.mrb[0].mxu0
      %v2267 = vadd.f32 %v2042, %v2266
      %v2268 = vpop.f32.mrb[0].mxu0
      %2269 = vmatprep.mubr.f32.mxu0 %v1186
      %2270 = vmatmul.mubr.f32.gmra.mrb[0].mxu0 %v1185
      %v2271 = vpop.f32.mrb[0].mxu0
      %v2272 = vadd.f32 %v2047, %v2271
      %v2273 = vpop.f32.mrb[0].mxu0
      %2274 = vmatprep.mubr.f32.mxu0 %v1195
      %2275 = vmatmul.mubr.f32.gmra.mrb[0].mxu0 %v1194
      %v2276 = vpop.f32.mrb[0].mxu0
      %v2277 = vadd.f32 %v2052, %v2276
      %v2278 = vpop.f32.mrb[0].mxu0
      %2279 = vmatprep.mubr.f32.mxu0 %v1204
      %2280 = vmatmul.mubr.f32.gmra.mrb[0].mxu0 %v1203
      %v2281 = vpop.f32.mrb[0].mxu0
      %v2282 = vadd.f32 %v2057, %v2281
      %v2283 = vpop.f32.mrb[0].mxu0
      %2284 = vmatprep.mubr.f32.mxu0 %v1213
      %2285 = vmatmul.mubr.f32.gmra.mrb[0].mxu0 %v1212
      %v2286 = vpop.f32.mrb[0].mxu0
      %v2287 = vadd.f32 %v2062, %v2286
      %v2288 = vpop.f32.mrb[0].mxu0
      %2289 = vmatprep.mubr.f32.mxu0 %v1222
      %2290 = vmatmul.mubr.f32.gmra.mrb[0].mxu0 %v1221
      %v2291 = vpop.f32.mrb[0].mxu0
      %v2292 = vadd.f32 %v2067, %v2291
      %v2293 = vpop.f32.mrb[0].mxu0
      %2294 = vmatprep.mubr.f32.mxu0 %v1231
      %2295 = vmatmul.mubr.f32.gmra.mrb[0].mxu0 %v1230
      %v2296 = vpop.f32.mrb[0].mxu0
      %v2297 = vadd.f32 %v2072, %v2296
      %v2298 = vpop.f32.mrb[0].mxu0
      %2299 = vmatprep.mubr.f32.mxu0 %v1240
      %2300 = vmatmul.mubr.f32.gmra.mrb[0].mxu0 %v1239
      %v2301 = vpop.f32.mrb[0].mxu0
      %v2302 = vadd.f32 %v2077, %v2301
      %v2303 = vpop.f32.mrb[0].mxu0
      %2304 = vmatprep.mubr.f32.mxu0 %v1249
      %2305 = vmatmul.mubr.f32.gmra.mrb[0].mxu0 %v1248
      %v2306 = vpop.f32.mrb[0].mxu0
      %v2307 = vadd.f32 %v2082, %v2306
      %v2308 = vpop.f32.mrb[0].mxu0
      %2309 = vmatprep.mubr.f32.mxu0 %v1258
      %2310 = vmatmul.mubr.f32.gmra.mrb[0].mxu0 %v1257
      %v2311 = vpop.f32.mrb[0].mxu0
      %v2312 = vadd.f32 %v2087, %v2311
      %v2313 = vpop.f32.mrb[0].mxu0
      %2314 = vmatprep.mubr.f32.mxu0 %v1267
      %2315 = vmatmul.mubr.f32.gmra.mrb[0].mxu0 %v1266
      %v2316 = vpop.f32.mrb[0].mxu0
      %v2317 = vadd.f32 %v2092, %v2316
      %v2318 = vpop.f32.mrb[0].mxu0
      %2319 = vdwg.mxu0
      %2320 = vmatprep.subr.mxu0 0.0
      %2321 = vmatpush1.msra.mxu0 %v1397
      %2322 = vmatprep.subr.mxu0 0.0
      %2323 = vmatpush1.msra.mxu0 %v1398
      %2324 = vmatprep.subr.mxu0 0.0
      %2325 = vmatpush1.msra.mxu0 %v1399
      %2326 = vmatprep.subr.mxu0 0.0
      %2327 = vmatpush1.msra.mxu0 %v1400
      %2328 = vmatprep.subr.mxu0 0.0
      %2329 = vmatpush1.msra.mxu0 %v1401
      %2330 = vmatprep.subr.mxu0 0.0
      %2331 = vmatpush1.msra.mxu0 %v1402
      %2332 = vmatprep.subr.mxu0 0.0
      %2333 = vmatpush1.msra.mxu0 %v1403
      %2334 = vmatprep.subr.mxu0 0.0
      %2335 = vmatpush1.msra.mxu0 %v1404
      %2336 = vmatprep.subr.mxu0 0.0
      %2337 = vmatpush1.msra.mxu0 %v1405
      %2338 = vmatprep.subr.mxu0 0.0
      %2339 = vmatpush1.msra.mxu0 %v1406
      %2340 = vmatprep.subr.mxu0 0.0
      %2341 = vmatpush1.msra.mxu0 %v1407
      %2342 = vmatprep.subr.mxu0 0.0
      %2343 = vmatpush1.msra.mxu0 %v1408
      %2344 = vmatprep.subr.mxu0 0.0
      %2345 = vmatpush1.msra.mxu0 %v1409
      %2346 = vmatprep.subr.mxu0 0.0
      %2347 = vmatpush1.msra.mxu0 %v1410
      %2348 = vmatprep.subr.mxu0 0.0
      %2349 = vmatpush1.msra.mxu0 %v1411
      %2350 = vmatprep.subr.mxu0 0.0
      %2351 = vmatpush1.msra.mxu0 %v1412
      %2352 = vmatprep.subr.mxu0 0.0
      %2353 = vmatpush1.msra.mxu0 0.0
      %2354 = vmatprep.subr.mxu0 0.0
      %2355 = vmatpush1.msra.mxu0 0.0
      %2356 = vmatprep.subr.mxu0 0.0
      %2357 = vmatpush1.msra.mxu0 0.0
      %2358 = vmatprep.subr.mxu0 0.0
      %2359 = vmatpush1.msra.mxu0 0.0
      %2360 = vmatprep.subr.mxu0 0.0
      %2361 = vmatpush1.msra.mxu0 0.0
      %2362 = vmatprep.subr.mxu0 0.0
      %2363 = vmatpush1.msra.mxu0 0.0
      %2364 = vmatprep.subr.mxu0 0.0
      %2365 = vmatpush1.msra.mxu0 0.0
      %2366 = vmatprep.subr.mxu0 0.0
      %2367 = vmatpush1.msra.mxu0 0.0
      %2368 = vmatprep.subr.mxu0 0.0
      %2369 = vmatpush1.msra.mxu0 0.0
      %2370 = vmatprep.subr.mxu0 0.0
      %2371 = vmatpush1.msra.mxu0 0.0
      %2372 = vmatprep.subr.mxu0 0.0
      %2373 = vmatpush1.msra.mxu0 0.0
      %2374 = vmatprep.subr.mxu0 0.0
      %2375 = vmatpush1.msra.mxu0 0.0
      %2376 = vmatprep.subr.mxu0 0.0
      %2377 = vmatpush1.msra.mxu0 0.0
      %2378 = vmatprep.subr.mxu0 0.0
      %2379 = vmatpush1.msra.mxu0 0.0
      %2380 = vmatprep.subr.mxu0 0.0
      %2381 = vmatpush1.msra.mxu0 0.0
      %2382 = vmatprep.subr.mxu0 0.0
      %2383 = vmatpush1.msra.mxu0 0.0
      %2384 = vmatprep.mubr.f32.mxu0 0.0
      %2385 = vmatmul.mubr.f32.gmra.mrb[0].mxu0 %v989
      %v2386 = vpop.f32.mrb[0].mxu0
      %v2387 = vadd.f32 %v2162, %v2386
      %v2388 = vpop.f32.mrb[0].mxu0
      %2389 = vmatprep.mubr.f32.mxu0 0.0
      %2390 = vmatmul.mubr.f32.gmra.mrb[0].mxu0 %v998
      %v2391 = vpop.f32.mrb[0].mxu0
      %v2392 = vadd.f32 %v2167, %v2391
      %v2393 = vpop.f32.mrb[0].mxu0
      %2394 = vmatprep.mubr.f32.mxu0 0.0
      %2395 = vmatmul.mubr.f32.gmra.mrb[0].mxu0 %v1007
      %v2396 = vpop.f32.mrb[0].mxu0
      %v2397 = vadd.f32 %v2172, %v2396
      %v2398 = vpop.f32.mrb[0].mxu0
      %2399 = vmatprep.mubr.f32.mxu0 0.0
      %2400 = vmatmul.mubr.f32.gmra.mrb[0].mxu0 %v1016
      %v2401 = vpop.f32.mrb[0].mxu0
      %v2402 = vadd.f32 %v2177, %v2401
      %v2403 = vpop.f32.mrb[0].mxu0
      %2404 = vmatprep.mubr.f32.mxu0 0.0
      %2405 = vmatmul.mubr.f32.gmra.mrb[0].mxu0 %v1025
      %v2406 = vpop.f32.mrb[0].mxu0
      %v2407 = vadd.f32 %v2182, %v2406
      %v2408 = vpop.f32.mrb[0].mxu0
      %2409 = vmatprep.mubr.f32.mxu0 0.0
      %2410 = vmatmul.mubr.f32.gmra.mrb[0].mxu0 %v1034
      %v2411 = vpop.f32.mrb[0].mxu0
      %v2412 = vadd.f32 %v2187, %v2411
      %v2413 = vpop.f32.mrb[0].mxu0
      %2414 = vmatprep.mubr.f32.mxu0 0.0
      %2415 = vmatmul.mubr.f32.gmra.mrb[0].mxu0 %v1043
      %v2416 = vpop.f32.mrb[0].mxu0
      %v2417 = vadd.f32 %v2192, %v2416
      %v2418 = vpop.f32.mrb[0].mxu0
      %2419 = vmatprep.mubr.f32.mxu0 0.0
      %2420 = vmatmul.mubr.f32.gmra.mrb[0].mxu0 %v1052
      %v2421 = vpop.f32.mrb[0].mxu0
      %v2422 = vadd.f32 %v2197, %v2421
      %v2423 = vpop.f32.mrb[0].mxu0
      %2424 = vmatprep.mubr.f32.mxu0 0.0
      %2425 = vmatmul.mubr.f32.gmra.mrb[0].mxu0 %v1061
      %v2426 = vpop.f32.mrb[0].mxu0
      %v2427 = vadd.f32 %v2202, %v2426
      %v2428 = vpop.f32.mrb[0].mxu0
      %2429 = vmatprep.mubr.f32.mxu0 0.0
      %2430 = vmatmul.mubr.f32.gmra.mrb[0].mxu0 %v1070
      %v2431 = vpop.f32.mrb[0].mxu0
      %v2432 = vadd.f32 %v2207, %v2431
      %v2433 = vpop.f32.mrb[0].mxu0
      %2434 = vmatprep.mubr.f32.mxu0 0.0
      %2435 = vmatmul.mubr.f32.gmra.mrb[0].mxu0 %v1079
      %v2436 = vpop.f32.mrb[0].mxu0
      %v2437 = vadd.f32 %v2212, %v2436
      %v2438 = vpop.f32.mrb[0].mxu0
      %2439 = vmatprep.mubr.f32.mxu0 0.0
      %2440 = vmatmul.mubr.f32.gmra.mrb[0].mxu0 %v1088
      %v2441 = vpop.f32.mrb[0].mxu0
      %v2442 = vadd.f32 %v2217, %v2441
      %v2443 = vpop.f32.mrb[0].mxu0
      %2444 = vmatprep.mubr.f32.mxu0 0.0
      %2445 = vmatmul.mubr.f32.gmra.mrb[0].mxu0 %v1097
      %v2446 = vpop.f32.mrb[0].mxu0
      %v2447 = vadd.f32 %v2222, %v2446
      %v2448 = vpop.f32.mrb[0].mxu0
      %2449 = vmatprep.mubr.f32.mxu0 0.0
      %2450 = vmatmul.mubr.f32.gmra.mrb[0].mxu0 %v1106
      %v2451 = vpop.f32.mrb[0].mxu0
      %v2452 = vadd.f32 %v2227, %v2451
      %v2453 = vpop.f32.mrb[0].mxu0
      %2454 = vmatprep.mubr.f32.mxu0 0.0
      %2455 = vmatmul.mubr.f32.gmra.mrb[0].mxu0 %v1115
      %v2456 = vpop.f32.mrb[0].mxu0
      %v2457 = vadd.f32 %v2232, %v2456
      %v2458 = vpop.f32.mrb[0].mxu0
      %2459 = vmatprep.mubr.f32.mxu0 0.0
      %2460 = vmatmul.mubr.f32.gmra.mrb[0].mxu0 %v1124
      %v2461 = vpop.f32.mrb[0].mxu0
      %v2462 = vadd.f32 %v2237, %v2461
      %v2463 = vpop.f32.mrb[0].mxu0
      %2464 = vmatprep.mubr.f32.mxu0 0.0
      %2465 = vmatmul.mubr.f32.gmra.mrb[0].mxu0 %v1133
      %v2466 = vpop.f32.mrb[0].mxu0
      %v2467 = vadd.f32 %v2242, %v2466
      %v2468 = vpop.f32.mrb[0].mxu0
      %2469 = vmatprep.mubr.f32.mxu0 0.0
      %2470 = vmatmul.mubr.f32.gmra.mrb[0].mxu0 %v1142
      %v2471 = vpop.f32.mrb[0].mxu0
      %v2472 = vadd.f32 %v2247, %v2471
      %v2473 = vpop.f32.mrb[0].mxu0
      %2474 = vmatprep.mubr.f32.mxu0 0.0
      %2475 = vmatmul.mubr.f32.gmra.mrb[0].mxu0 %v1151
      %v2476 = vpop.f32.mrb[0].mxu0
      %v2477 = vadd.f32 %v2252, %v2476
      %v2478 = vpop.f32.mrb[0].mxu0
      %2479 = vmatprep.mubr.f32.mxu0 0.0
      %2480 = vmatmul.mubr.f32.gmra.mrb[0].mxu0 %v1160
      %v2481 = vpop.f32.mrb[0].mxu0
      %v2482 = vadd.f32 %v2257, %v2481
      %v2483 = vpop.f32.mrb[0].mxu0
      %2484 = vmatprep.mubr.f32.mxu0 0.0
      %2485 = vmatmul.mubr.f32.gmra.mrb[0].mxu0 %v1169
      %v2486 = vpop.f32.mrb[0].mxu0
      %v2487 = vadd.f32 %v2262, %v2486
      %v2488 = vpop.f32.mrb[0].mxu0
      %2489 = vmatprep.mubr.f32.mxu0 0.0
      %2490 = vmatmul.mubr.f32.gmra.mrb[0].mxu0 %v1178
      %v2491 = vpop.f32.mrb[0].mxu0
      %v2492 = vadd.f32 %v2267, %v2491
      %v2493 = vpop.f32.mrb[0].mxu0
      %2494 = vmatprep.mubr.f32.mxu0 0.0
      %2495 = vmatmul.mubr.f32.gmra.mrb[0].mxu0 %v1187
      %v2496 = vpop.f32.mrb[0].mxu0
      %v2497 = vadd.f32 %v2272, %v2496
      %v2498 = vpop.f32.mrb[0].mxu0
      %2499 = vmatprep.mubr.f32.mxu0 0.0
      %2500 = vmatmul.mubr.f32.gmra.mrb[0].mxu0 %v1196
      %v2501 = vpop.f32.mrb[0].mxu0
      %v2502 = vadd.f32 %v2277, %v2501
      %v2503 = vpop.f32.mrb[0].mxu0
      %2504 = vmatprep.mubr.f32.mxu0 0.0
      %2505 = vmatmul.mubr.f32.gmra.mrb[0].mxu0 %v1205
      %v2506 = vpop.f32.mrb[0].mxu0
      %v2507 = vadd.f32 %v2282, %v2506
      %v2508 = vpop.f32.mrb[0].mxu0
      %2509 = vmatprep.mubr.f32.mxu0 0.0
      %2510 = vmatmul.mubr.f32.gmra.mrb[0].mxu0 %v1214
      %v2511 = vpop.f32.mrb[0].mxu0
      %v2512 = vadd.f32 %v2287, %v2511
      %v2513 = vpop.f32.mrb[0].mxu0
      %2514 = vmatprep.mubr.f32.mxu0 0.0
      %2515 = vmatmul.mubr.f32.gmra.mrb[0].mxu0 %v1223
      %v2516 = vpop.f32.mrb[0].mxu0
      %v2517 = vadd.f32 %v2292, %v2516
      %v2518 = vpop.f32.mrb[0].mxu0
      %2519 = vmatprep.mubr.f32.mxu0 0.0
      %2520 = vmatmul.mubr.f32.gmra.mrb[0].mxu0 %v1232
      %v2521 = vpop.f32.mrb[0].mxu0
      %v2522 = vadd.f32 %v2297, %v2521
      %v2523 = vpop.f32.mrb[0].mxu0
      %2524 = vmatprep.mubr.f32.mxu0 0.0
      %2525 = vmatmul.mubr.f32.gmra.mrb[0].mxu0 %v1241
      %v2526 = vpop.f32.mrb[0].mxu0
      %v2527 = vadd.f32 %v2302, %v2526
      %v2528 = vpop.f32.mrb[0].mxu0
      %2529 = vmatprep.mubr.f32.mxu0 0.0
      %2530 = vmatmul.mubr.f32.gmra.mrb[0].mxu0 %v1250
      %v2531 = vpop.f32.mrb[0].mxu0
      %v2532 = vadd.f32 %v2307, %v2531
      %v2533 = vpop.f32.mrb[0].mxu0
      %2534 = vmatprep.mubr.f32.mxu0 0.0
      %2535 = vmatmul.mubr.f32.gmra.mrb[0].mxu0 %v1259
      %v2536 = vpop.f32.mrb[0].mxu0
      %v2537 = vadd.f32 %v2312, %v2536
      %v2538 = vpop.f32.mrb[0].mxu0
      %2539 = vmatprep.mubr.f32.mxu0 0.0
      %2540 = vmatmul.mubr.f32.gmra.mrb[0].mxu0 %v1268
      %v2541 = vpop.f32.mrb[0].mxu0
      %v2542 = vadd.f32 %v2317, %v2541
      %v2543 = vpop.f32.mrb[0].mxu0
      %2544 = vdwg.mxu0
      %2545 = vst [vmem:[%s289] sm:$0xff] %v2387
      %2546 = vst [vmem:[%s289 + $0x8] sm:$0xff] %v2392
      %2547 = vst [vmem:[%s289 + $0x10] sm:$0xff] %v2397
      %2548 = vst [vmem:[%s289 + $0x18] sm:$0xff] %v2402
      %2549 = vst [vmem:[%s289 + $0x20] sm:$0xff] %v2407
      %2550 = vst [vmem:[%s289 + $0x28] sm:$0xff] %v2412
      %2551 = vst [vmem:[%s289 + $0x30] sm:$0xff] %v2417
      %2552 = vst [vmem:[%s289 + $0x38] sm:$0xff] %v2422
      %2553 = vst [vmem:[%s289 + $0x40] sm:$0xff] %v2427
      %2554 = vst [vmem:[%s289 + $0x48] sm:$0xff] %v2432
      %2555 = vst [vmem:[%s289 + $0x50] sm:$0xff] %v2437
      %2556 = vst [vmem:[%s289 + $0x58] sm:$0xff] %v2442
      %2557 = vst [vmem:[%s289 + $0x60] sm:$0xff] %v2447
      %2558 = vst [vmem:[%s289 + $0x68] sm:$0xff] %v2452
      %2559 = vst [vmem:[%s289 + $0x70] sm:$0xff] %v2457
      %2560 = vst [vmem:[%s289 + $0x78] sm:$0xff] %v2462
      %2561 = vst [vmem:[%s289 + $0x80] sm:$0xff] %v2467
      %2562 = vst [vmem:[%s289 + $0x88] sm:$0xff] %v2472
      %2563 = vst [vmem:[%s289 + $0x90] sm:$0xff] %v2477
      %2564 = vst [vmem:[%s289 + $0x98] sm:$0xff] %v2482
      %2565 = vst [vmem:[%s289 + $0xa0] sm:$0xff] %v2487
      %2566 = vst [vmem:[%s289 + $0xa8] sm:$0xff] %v2492
      %2567 = vst [vmem:[%s289 + $0xb0] sm:$0xff] %v2497
      %2568 = vst [vmem:[%s289 + $0xb8] sm:$0xff] %v2502
      %2569 = vst [vmem:[%s289 + $0xc0] sm:$0xff] %v2507
      %2570 = vst [vmem:[%s289 + $0xc8] sm:$0xff] %v2512
      %2571 = vst [vmem:[%s289 + $0xd0] sm:$0xff] %v2517
      %2572 = vst [vmem:[%s289 + $0xd8] sm:$0xff] %v2522
      %2573 = vst [vmem:[%s289 + $0xe0] sm:$0xff] %v2527
      %2574 = vst [vmem:[%s289 + $0xe8] sm:$0xff] %v2532
      %2575 = vst [vmem:[%s289 + $0xf0] sm:$0xff] %v2537
      %2576 = vst [vmem:[%s289 + $0xf8] sm:$0xff] %v2542
      %v2577 = vadd.f32 %v2387, %v2392
      %v2578 = vadd.f32 %v2577, %v2397
      %v2579 = vadd.f32 %v2578, %v2402
      %v2580 = vadd.f32 %v2579, %v2407
      %v2581 = vadd.f32 %v2580, %v2412
      %v2582 = vadd.f32 %v2581, %v2417
      %v2583 = vadd.f32 %v2582, %v2422
      %v2584 = vadd.f32 %v2583, %v2427
      %v2585 = vadd.f32 %v2584, %v2432
      %v2586 = vadd.f32 %v2585, %v2437
      %v2587 = vadd.f32 %v2586, %v2442
      %v2588 = vadd.f32 %v2587, %v2447
      %v2589 = vadd.f32 %v2588, %v2452
      %v2590 = vadd.f32 %v2589, %v2457
      %v2591 = vadd.f32 %v2590, %v2462
      %v2592 = vadd.f32 %v2591, %v2467
      %v2593 = vadd.f32 %v2592, %v2472
      %v2594 = vadd.f32 %v2593, %v2477
      %v2595 = vadd.f32 %v2594, %v2482
      %v2596 = vadd.f32 %v2595, %v2487
      %v2597 = vadd.f32 %v2596, %v2492
      %v2598 = vadd.f32 %v2597, %v2497
      %v2599 = vadd.f32 %v2598, %v2502
      %v2600 = vadd.f32 %v2599, %v2507
      %v2601 = vadd.f32 %v2600, %v2512
      %v2602 = vadd.f32 %v2601, %v2517
      %v2603 = vadd.f32 %v2602, %v2522
      %v2604 = vadd.f32 %v2603, %v2527
      %v2605 = vadd.f32 %v2604, %v2532
      %v2606 = vadd.f32 %v2605, %v2537
      %v2607 = vadd.f32 %v2606, %v2542
      %v2608 = vrot.slane %v2607, 4
      %v2609 = vadd.f32 %v2607, %v2608
      %v2610 = vrot.slane %v2609, 2
      %v2611 = vadd.f32 %v2609, %v2610
      %v2612 = vrot.slane %v2611, 1
      %v2613 = vadd.f32 %v2611, %v2612
      %2614 = vst [vmem:[%s292] sm:$0x1] %v2613
      %v2615 = vmul.f32 %v2387, %v2387
      %v2616 = vmul.f32 %v2392, %v2392
      %v2617 = vmul.f32 %v2397, %v2397
      %v2618 = vmul.f32 %v2402, %v2402
      %v2619 = vmul.f32 %v2407, %v2407
      %v2620 = vmul.f32 %v2412, %v2412
      %v2621 = vmul.f32 %v2417, %v2417
      %v2622 = vmul.f32 %v2422, %v2422
      %v2623 = vmul.f32 %v2427, %v2427
      %v2624 = vmul.f32 %v2432, %v2432
      %v2625 = vmul.f32 %v2437, %v2437
      %v2626 = vmul.f32 %v2442, %v2442
      %v2627 = vmul.f32 %v2447, %v2447
      %v2628 = vmul.f32 %v2452, %v2452
      %v2629 = vmul.f32 %v2457, %v2457
      %v2630 = vmul.f32 %v2462, %v2462
      %v2631 = vmul.f32 %v2467, %v2467
      %v2632 = vmul.f32 %v2472, %v2472
      %v2633 = vmul.f32 %v2477, %v2477
      %v2634 = vmul.f32 %v2482, %v2482
      %v2635 = vmul.f32 %v2487, %v2487
      %v2636 = vmul.f32 %v2492, %v2492
      %v2637 = vmul.f32 %v2497, %v2497
      %v2638 = vmul.f32 %v2502, %v2502
      %v2639 = vmul.f32 %v2507, %v2507
      %v2640 = vmul.f32 %v2512, %v2512
      %v2641 = vmul.f32 %v2517, %v2517
      %v2642 = vmul.f32 %v2522, %v2522
      %v2643 = vmul.f32 %v2527, %v2527
      %v2644 = vmul.f32 %v2532, %v2532
      %v2645 = vmul.f32 %v2537, %v2537
      %v2646 = vmul.f32 %v2542, %v2542
      %v2647 = vadd.f32 %v2615, %v2616
      %v2648 = vadd.f32 %v2647, %v2617
      %v2649 = vadd.f32 %v2648, %v2618
      %v2650 = vadd.f32 %v2649, %v2619
      %v2651 = vadd.f32 %v2650, %v2620
      %v2652 = vadd.f32 %v2651, %v2621
      %v2653 = vadd.f32 %v2652, %v2622
      %v2654 = vadd.f32 %v2653, %v2623
      %v2655 = vadd.f32 %v2654, %v2624
      %v2656 = vadd.f32 %v2655, %v2625
      %v2657 = vadd.f32 %v2656, %v2626
      %v2658 = vadd.f32 %v2657, %v2627
      %v2659 = vadd.f32 %v2658, %v2628
      %v2660 = vadd.f32 %v2659, %v2629
      %v2661 = vadd.f32 %v2660, %v2630
      %v2662 = vadd.f32 %v2661, %v2631
      %v2663 = vadd.f32 %v2662, %v2632
      %v2664 = vadd.f32 %v2663, %v2633
      %v2665 = vadd.f32 %v2664, %v2634
      %v2666 = vadd.f32 %v2665, %v2635
      %v2667 = vadd.f32 %v2666, %v2636
      %v2668 = vadd.f32 %v2667, %v2637
      %v2669 = vadd.f32 %v2668, %v2638
      %v2670 = vadd.f32 %v2669, %v2639
      %v2671 = vadd.f32 %v2670, %v2640
      %v2672 = vadd.f32 %v2671, %v2641
      %v2673 = vadd.f32 %v2672, %v2642
      %v2674 = vadd.f32 %v2673, %v2643
      %v2675 = vadd.f32 %v2674, %v2644
      %v2676 = vadd.f32 %v2675, %v2645
      %v2677 = vadd.f32 %v2676, %v2646
      %v2678 = vrot.slane %v2677, 4
      %v2679 = vadd.f32 %v2677, %v2678
      %v2680 = vrot.slane %v2679, 2
      %v2681 = vadd.f32 %v2679, %v2680
      %v2682 = vrot.slane %v2681, 1
      %v2683 = vadd.f32 %v2681, %v2682
      %2684 = vst [vmem:[%s295] sm:$0x1] %v2683
      %p2685 = scmp.lt.s32.totalorder %s19, 1
      %s2686 = scalar_select %p2685, %s19, 1
      %s2687 = smul.addr %s2686, 32
      %s2688 = smul.addr %s2687, 8
      %s2689 = scalar_lea.vmem %s5, %s2688
      %p2690 = scmp.lt.s32.totalorder %s19, 1
      %s2691 = scalar_select %p2690, %s19, 1
      %s2692 = scalar_lea.vmem %s6, %s2691
      %p2693 = scmp.lt.s32.totalorder %s19, 1
      %s2694 = scalar_select %p2693, %s19, 1
      %s2695 = scalar_lea.vmem %s7, %s2694
      // Predicated region
      $region41: #{double_conv_forward.3} parent=39 // pred_check
        %p2696 = pneg %p147
      $region42: #{double_conv_forward.3} parent=39 // pred_check_branch
        %2698 = sbr.rel (%p2696) target = $region44
      $region43: #{double_conv_forward.3} parent=39 // pred_region
        _
      $region44: #{double_conv_forward.3} parent=39 // pred_fallthru
        _
      // Predicated region
      $region45: #{double_conv_forward.3} parent=39 // pred_check
        %p2699 = pneg %p173
      $region46: #{double_conv_forward.3} parent=39 // pred_check_branch
        %2701 = sbr.rel (%p2699) target = $region48
      $region47: #{double_conv_forward.3} parent=39 // pred_region
        _
      $region48: #{double_conv_forward.3} parent=39 // pred_fallthru
        _
      // Predicated region
      $region49: #{double_conv_forward.3} parent=39 // pred_check
        %p2702 = pneg %p199
      $region50: #{double_conv_forward.3} parent=39 // pred_check_branch
        %2704 = sbr.rel (%p2702) target = $region52
      $region51: #{double_conv_forward.3} parent=39 // pred_region
        _
      $region52: #{double_conv_forward.3} parent=39 // pred_fallthru
        _
    $region40: #{double_conv_forward.3} parent=5 // pred_fallthru
      _
    %p2705 = scmp.le.s32.totalorder 2, %s14
    // Predicated region
    $region53: #{double_conv_forward.3} parent=5 // pred_check
      %p2706 = pneg %p2705
    $region54: #{double_conv_forward.3} parent=5 // pred_check_branch
      %2708 = sbr.rel (%p2706) target = $region56
    $region55: #{double_conv_forward.3} parent=5 // pred_region
      %s2709 = ssub.s32 %s14, 2
      // Predicated region
      $region57: #{double_conv_forward.3} parent=55 // pred_check
        %p2710 = pneg %p153
      $region58: #{double_conv_forward.3} parent=55 // pred_check_branch
        %2712 = sbr.rel (%p2710) target = $region60
      $region59: #{double_conv_forward.3} parent=55 // pred_region
        %p2713 = scmp.lt.s32.totalorder %s20, 1
        %s2714 = scalar_select %p2713, %s20, 1
        %s2715 = smul.addr %s2714, 32
        %s2716 = smul.addr %s2715, 8
        %s2717 = scalar_lea.vmem %s5, %s2716
      $region60: #{double_conv_forward.3} parent=55 // pred_fallthru
        _
      // Predicated region
      $region61: #{double_conv_forward.3} parent=55 // pred_check
        %p2718 = pneg %p179
      $region62: #{double_conv_forward.3} parent=55 // pred_check_branch
        %2720 = sbr.rel (%p2718) target = $region64
      $region63: #{double_conv_forward.3} parent=55 // pred_region
        %p2721 = scmp.lt.s32.totalorder %s20, 1
        %s2722 = scalar_select %p2721, %s20, 1
        %s2723 = scalar_lea.vmem %s6, %s2722
      $region64: #{double_conv_forward.3} parent=55 // pred_fallthru
        _
      // Predicated region
      $region65: #{double_conv_forward.3} parent=55 // pred_check
        %p2724 = pneg %p205
      $region66: #{double_conv_forward.3} parent=55 // pred_check_branch
        %2726 = sbr.rel (%p2724) target = $region68
      $region67: #{double_conv_forward.3} parent=55 // pred_region
        %p2727 = scmp.lt.s32.totalorder %s20, 1
        %s2728 = scalar_select %p2727, %s20, 1
        %s2729 = scalar_lea.vmem %s7, %s2728
      $region68: #{double_conv_forward.3} parent=55 // pred_fallthru
        _
    $region56: #{double_conv_forward.3} parent=5 // pred_fallthru
      _
  $region6: #{double_conv_forward.3} parent=0 // loop_footer
    %s18 = sadd.s32 1, %s14
  $region7: #{double_conv_forward.3} parent=0 // loop_footer_branch
    %13 = sbr.rel target = $region3
  $region8: #{double_conv_forward.3} parent=0 // loop_exit
    _

// kernel: double_conv_forward.4
$region0: #{double_conv_forward.4}
  #allocation0 [shape = 'u32[]', space=smem, size = 0x4, offset = 0x4, fixed_abs, tag = 'smem constant byte address 0x4 - core index']
  #allocation1 [shape = 'u32[144,128]{1,0:T(1,128)}', space=vmem, size = 0x12000, scoped, tag = 'internal scratch']
  #allocation2 [shape = 'f32[18,18,128]{2,1,0:T(8,128)}', space=vmem, size = 0x36000, scoped, tag = 'scratch operand']
  #allocation3 [shape = 'f32[256,1152]{1,0:T(8,128)}', space=vmem, size = 0x120000, scoped, tag = 'scratch operand']
  %s0 = inlined_call_operand.vmem [shape: f32[2,16,16,128], index: 0, kind: input, shape index: {}]
  %s1 = inlined_call_operand.vmem [shape: f32[1,128], index: 1, kind: input, shape index: {}]
  %s2 = inlined_call_operand.vmem [shape: f32[1,128], index: 2, kind: input, shape index: {}]
  %s3 = inlined_call_operand.vmem [shape: f32[1152,128], index: 3, kind: input, shape index: {}]
  %s4 = inlined_call_operand.vmem [shape: f32[1,128], index: 4, kind: input, shape index: {}]
  %s5 = inlined_call_operand.vmem [shape: f32[2,16,16,128], index: 5, kind: output, shape index: {0}]
  %s6 = inlined_call_operand.vmem [shape: f32[2,1,128], index: 6, kind: output, shape index: {1}]
  %s7 = inlined_call_operand.vmem [shape: f32[2,1,128], index: 7, kind: output, shape index: {2}]
  %8 = xla_tuple %s5, %s6, %s7
  %s9 = sld [smem:[#allocation0]]
  $region69: #{double_conv_forward.4} parent=0
    _
  %s11 = ssub.s32 1, %s9
  %s12 = scalar_select 0, %s11, %s9
  loop: start=0, step=1, limit=4
  $region2: #{double_conv_forward.4} parent=0 // loop_pre_header
    _
  $region3: #{double_conv_forward.4} parent=0 // loop_header
    %s14 = sphi 0, %s18
    %p15 = scmp.ge.s32.totalorder %s14, 4
    %s24 = sphi 0, %s26
    %s27 = sphi 0, %s24
    %s28 = sphi 0, %s27
    %s44 = sphi 0, %s28
    %s48 = sphi 0, %s48
    %s50 = sphi 0, %s48
    %s51 = sphi 0, %s50
    %s65 = sphi 0, %s51
    %s69 = sphi 0, %s69
    %s71 = sphi 0, %s69
    %s72 = sphi 0, %s71
    %s86 = sphi 0, %s72
    %s90 = sphi 0, %s90
    %s92 = sphi 0, %s90
    %s93 = sphi 0, %s92
    %s107 = sphi 0, %s93
    %s111 = sphi 0, %s111
    %s113 = sphi 0, %s111
    %s114 = sphi 0, %s113
    %s128 = sphi 0, %s114
    %s134 = sphi 0, %s136
    %s137 = sphi 0, %s134
    %s138 = sphi 0, %s137
    %s154 = sphi 0, %s138
    %s160 = sphi 0, %s162
    %s163 = sphi 0, %s160
    %s164 = sphi 0, %s163
    %s180 = sphi 0, %s164
    %s186 = sphi 0, %s188
    %s189 = sphi 0, %s186
    %s190 = sphi 0, %s189
    %s206 = sphi 0, %s190
  $region4: #{double_conv_forward.4} parent=0 // loop_header_branch
    %17 = sbr.rel (%p15) target = $region8
  $region5: #{double_conv_forward.4} parent=0 // loop_body
    %s19 = ssub.s32 %s14, 1
    %s20 = ssub.s32 %s14, 2
    %s21 = sadd.s32 %s14, 1
    %s22 = ssub.s32 %s14, %s21
    %p23 = scmp.eq.s32.totalorder %s22, 0
    %s25 = sadd.s32 %s24, 1
    %s26 = scalar_select %p23, %s24, %s25
    %p29 = pneg %p23
    %p30 = scmp.eq.s32.totalorder %s14, 1
    %p31 = por %p29, %p30
    %p32 = scmp.ne.s32.totalorder %s24, %s27
    %p33 = scmp.eq.s32.totalorder %s14, 0
    %p34 = por %p32, %p33
    %p35 = scmp.ne.s32.totalorder %s24, %s27
    %p36 = scmp.eq.s32.totalorder %s19, 1
    %p37 = por %p35, %p36
    %p38 = scmp.ne.s32.totalorder %s27, %s28
    %p39 = scmp.eq.s32.totalorder %s19, 0
    %p40 = por %p38, %p39
    %p41 = scmp.ne.s32.totalorder %s27, %s28
    %p42 = scmp.eq.s32.totalorder %s20, 1
    %p43 = por %p41, %p42
    %p45 = scmp.ne.s32.totalorder %s28, %s44
    %p46 = scmp.eq.s32.totalorder %s20, 0
    %p47 = por %p45, %p46
    %s49 = sadd.s32 %s48, 1
    %p52 = scmp.eq.s32.totalorder %s14, 1
    %p53 = scmp.ne.s32.totalorder %s48, %s50
    %p54 = scmp.eq.s32.totalorder %s14, 0
    %p55 = por %p53, %p54
    %p56 = scmp.ne.s32.totalorder %s48, %s50
    %p57 = scmp.eq.s32.totalorder %s19, 1
    %p58 = por %p56, %p57
    %p59 = scmp.ne.s32.totalorder %s50, %s51
    %p60 = scmp.eq.s32.totalorder %s19, 0
    %p61 = por %p59, %p60
    %p62 = scmp.ne.s32.totalorder %s50, %s51
    %p63 = scmp.eq.s32.totalorder %s20, 1
    %p64 = por %p62, %p63
    %p66 = scmp.ne.s32.totalorder %s51, %s65
    %p67 = scmp.eq.s32.totalorder %s20, 0
    %p68 = por %p66, %p67
    %s70 = sadd.s32 %s69, 1
    %p73 = scmp.eq.s32.totalorder %s14, 1
    %p74 = scmp.ne.s32.totalorder %s69, %s71
    %p75 = scmp.eq.s32.totalorder %s14, 0
    %p76 = por %p74, %p75
    %p77 = scmp.ne.s32.totalorder %s69, %s71
    %p78 = scmp.eq.s32.totalorder %s19, 1
    %p79 = por %p77, %p78
    %p80 = scmp.ne.s32.totalorder %s71, %s72
    %p81 = scmp.eq.s32.totalorder %s19, 0
    %p82 = por %p80, %p81
    %p83 = scmp.ne.s32.totalorder %s71, %s72
    %p84 = scmp.eq.s32.totalorder %s20, 1
    %p85 = por %p83, %p84
    %p87 = scmp.ne.s32.totalorder %s72, %s86
    %p88 = scmp.eq.s32.totalorder %s20, 0
    %p89 = por %p87, %p88
    %s91 = sadd.s32 %s90, 1
    %p94 = scmp.eq.s32.totalorder %s14, 1
    %p95 = scmp.ne.s32.totalorder %s90, %s92
    %p96 = scmp.eq.s32.totalorder %s14, 0
    %p97 = por %p95, %p96
    %p98 = scmp.ne.s32.totalorder %s90, %s92
    %p99 = scmp.eq.s32.totalorder %s19, 1
    %p100 = por %p98, %p99
    %p101 = scmp.ne.s32.totalorder %s92, %s93
    %p102 = scmp.eq.s32.totalorder %s19, 0
    %p103 = por %p101, %p102
    %p104 = scmp.ne.s32.totalorder %s92, %s93
    %p105 = scmp.eq.s32.totalorder %s20, 1
    %p106 = por %p104, %p105
    %p108 = scmp.ne.s32.totalorder %s93, %s107
    %p109 = scmp.eq.s32.totalorder %s20, 0
    %p110 = por %p108, %p109
    %s112 = sadd.s32 %s111, 1
    %p115 = scmp.eq.s32.totalorder %s14, 1
    %p116 = scmp.ne.s32.totalorder %s111, %s113
    %p117 = scmp.eq.s32.totalorder %s14, 0
    %p118 = por %p116, %p117
    %p119 = scmp.ne.s32.totalorder %s111, %s113
    %p120 = scmp.eq.s32.totalorder %s19, 1
    %p121 = por %p119, %p120
    %p122 = scmp.ne.s32.totalorder %s113, %s114
    %p123 = scmp.eq.s32.totalorder %s19, 0
    %p124 = por %p122, %p123
    %p125 = scmp.ne.s32.totalorder %s113, %s114
    %p126 = scmp.eq.s32.totalorder %s20, 1
    %p127 = por %p125, %p126
    %p129 = scmp.ne.s32.totalorder %s114, %s128
    %p130 = scmp.eq.s32.totalorder %s20, 0
    %p131 = por %p129, %p130
    %s132 = ssub.s32 %s14, %s21
    %p133 = scmp.eq.s32.totalorder %s132, 0
    %s135 = sadd.s32 %s134, 1
    %s136 = scalar_select %p133, %s134, %s135
    %p139 = pneg %p133
    %p140 = scmp.eq.s32.totalorder %s14, 1
    %p141 = por %p139, %p140
    %p142 = scmp.ne.s32.totalorder %s134, %s137
    %p143 = scmp.eq.s32.totalorder %s14, 0
    %p144 = por %p142, %p143
    %p145 = scmp.ne.s32.totalorder %s134, %s137
    %p146 = scmp.eq.s32.totalorder %s19, 1
    %p147 = por %p145, %p146
    %p148 = scmp.ne.s32.totalorder %s137, %s138
    %p149 = scmp.eq.s32.totalorder %s19, 0
    %p150 = por %p148, %p149
    %p151 = scmp.ne.s32.totalorder %s137, %s138
    %p152 = scmp.eq.s32.totalorder %s20, 1
    %p153 = por %p151, %p152
    %p155 = scmp.ne.s32.totalorder %s138, %s154
    %p156 = scmp.eq.s32.totalorder %s20, 0
    %p157 = por %p155, %p156
    %s158 = ssub.s32 %s14, %s21
    %p159 = scmp.eq.s32.totalorder %s158, 0
    %s161 = sadd.s32 %s160, 1
    %s162 = scalar_select %p159, %s160, %s161
    %p165 = pneg %p159
    %p166 = scmp.eq.s32.totalorder %s14, 1
    %p167 = por %p165, %p166
    %p168 = scmp.ne.s32.totalorder %s160, %s163
    %p169 = scmp.eq.s32.totalorder %s14, 0
    %p170 = por %p168, %p169
    %p171 = scmp.ne.s32.totalorder %s160, %s163
    %p172 = scmp.eq.s32.totalorder %s19, 1
    %p173 = por %p171, %p172
    %p174 = scmp.ne.s32.totalorder %s163, %s164
    %p175 = scmp.eq.s32.totalorder %s19, 0
    %p176 = por %p174, %p175
    %p177 = scmp.ne.s32.totalorder %s163, %s164
    %p178 = scmp.eq.s32.totalorder %s20, 1
    %p179 = por %p177, %p178
    %p181 = scmp.ne.s32.totalorder %s164, %s180
    %p182 = scmp.eq.s32.totalorder %s20, 0
    %p183 = por %p181, %p182
    %s184 = ssub.s32 %s14, %s21
    %p185 = scmp.eq.s32.totalorder %s184, 0
    %s187 = sadd.s32 %s186, 1
    %s188 = scalar_select %p185, %s186, %s187
    %p191 = pneg %p185
    %p192 = scmp.eq.s32.totalorder %s14, 1
    %p193 = por %p191, %p192
    %p194 = scmp.ne.s32.totalorder %s186, %s189
    %p195 = scmp.eq.s32.totalorder %s14, 0
    %p196 = por %p194, %p195
    %p197 = scmp.ne.s32.totalorder %s186, %s189
    %p198 = scmp.eq.s32.totalorder %s19, 1
    %p199 = por %p197, %p198
    %p200 = scmp.ne.s32.totalorder %s189, %s190
    %p201 = scmp.eq.s32.totalorder %s19, 0
    %p202 = por %p200, %p201
    %p203 = scmp.ne.s32.totalorder %s189, %s190
    %p204 = scmp.eq.s32.totalorder %s20, 1
    %p205 = por %p203, %p204
    %p207 = scmp.ne.s32.totalorder %s190, %s206
    %p208 = scmp.eq.s32.totalorder %s20, 0
    %p209 = por %p207, %p208
    %p210 = scmp.le.s32.totalorder 1, %s14
    %p211 = scmp.lt.s32.totalorder %s14, 3
    %p212 = pnand %p210, %p211
    %p213 = pneg %p212
    // Predicated region
    $region9: #{double_conv_forward.4} parent=5 // pred_check
      _
    $region10: #{double_conv_forward.4} parent=5 // pred_check_branch
      %215 = sbr.rel (%p212) target = $region12
    $region11: #{double_conv_forward.4} parent=5 // pred_region
      %s216 = ssub.s32 %s14, 1
      // Predicated region
      $region13: #{double_conv_forward.4} parent=11 // pred_check
        %p217 = pneg %p61
      $region14: #{double_conv_forward.4} parent=11 // pred_check_branch
        %219 = sbr.rel (%p217) target = $region16
      $region15: #{double_conv_forward.4} parent=11 // pred_region
        _
      $region16: #{double_conv_forward.4} parent=11 // pred_fallthru
        _
      // Predicated region
      $region17: #{double_conv_forward.4} parent=11 // pred_check
        %p220 = pneg %p82
      $region18: #{double_conv_forward.4} parent=11 // pred_check_branch
        %222 = sbr.rel (%p220) target = $region20
      $region19: #{double_conv_forward.4} parent=11 // pred_region
        _
      $region20: #{double_conv_forward.4} parent=11 // pred_fallthru
        _
      // Predicated region
      $region21: #{double_conv_forward.4} parent=11 // pred_check
        %p223 = pneg %p103
      $region22: #{double_conv_forward.4} parent=11 // pred_check_branch
        %225 = sbr.rel (%p223) target = $region24
      $region23: #{double_conv_forward.4} parent=11 // pred_region
        _
      $region24: #{double_conv_forward.4} parent=11 // pred_fallthru
        _
      // Predicated region
      $region25: #{double_conv_forward.4} parent=11 // pred_check
        %p226 = pneg %p124
      $region26: #{double_conv_forward.4} parent=11 // pred_check_branch
        %228 = sbr.rel (%p226) target = $region28
      $region27: #{double_conv_forward.4} parent=11 // pred_region
        _
      $region28: #{double_conv_forward.4} parent=11 // pred_fallthru
        _
    $region12: #{double_conv_forward.4} parent=5 // pred_fallthru
      _
    %p229 = scmp.lt.s32.totalorder %s14, 2
    // Predicated region
    $region29: #{double_conv_forward.4} parent=5 // pred_check
      %p230 = pneg %p229
    $region30: #{double_conv_forward.4} parent=5 // pred_check_branch
      %232 = sbr.rel (%p230) target = $region32
    $region31: #{double_conv_forward.4} parent=5 // pred_region
      // Predicated region
      $region33: #{double_conv_forward.4} parent=31 // pred_check
        %p233 = pneg %p34
      $region34: #{double_conv_forward.4} parent=31 // pred_check_branch
        %235 = sbr.rel (%p233) target = $region36
      $region35: #{double_conv_forward.4} parent=31 // pred_region
        %p236 = scmp.lt.s32.totalorder %s14, 1
        %s237 = scalar_select %p236, %s14, 1
        %s238 = smul.addr %s237, 32
        %s239 = smul.addr %s238, 8
        %s240 = scalar_lea.vmem %s0, %s239
      $region36: #{double_conv_forward.4} parent=31 // pred_fallthru
        _
    $region32: #{double_conv_forward.4} parent=5 // pred_fallthru
      _
    %p241 = scmp.le.s32.totalorder 1, %s14
    %p242 = scmp.lt.s32.totalorder %s14, 3
    %p243 = pnand %p241, %p242
    %p244 = pneg %p243
    // Predicated region
    $region37: #{double_conv_forward.4} parent=5 // pred_check
      _
    $region38: #{double_conv_forward.4} parent=5 // pred_check_branch
      %246 = sbr.rel (%p243) target = $region40
    $region39: #{double_conv_forward.4} parent=5 // pred_region
      %s247 = ssub.s32 %s14, 1
      %p248 = scmp.lt.s32.totalorder %s19, 1
      %s249 = scalar_select %p248, %s19, 1
      %s250 = smul.addr %s249, 32
      %s251 = smul.addr %s250, 8
      %s252 = scalar_lea.vmem %s0, %s251
      %p253 = pneg %p40
      %p254 = pneg %p37
      %p255 = pneg %p61
      %p256 = pneg %p58
      %p257 = pneg %p82
      %p258 = pneg %p79
      %p259 = pneg %p103
      %p260 = pneg %p100
      %p261 = pneg %p124
      %p262 = pneg %p121
      %p263 = pneg %p150
      %p264 = pneg %p147
      %p265 = scmp.lt.s32.totalorder %s19, 1
      %s266 = scalar_select %p265, %s19, 1
      %s267 = smul.addr %s266, 32
      %s268 = smul.addr %s267, 8
      %s269 = scalar_lea.vmem %s5, %s268
      %p270 = pneg %p176
      %p271 = pneg %p173
      %p272 = scmp.lt.s32.totalorder %s19, 1
      %s273 = scalar_select %p272, %s19, 1
      %s274 = scalar_lea.vmem %s6, %s273
      %p275 = pneg %p202
      %p276 = pneg %p199
      %p277 = scmp.lt.s32.totalorder %s19, 1
      %s278 = scalar_select %p277, %s19, 1
      %s279 = scalar_lea.vmem %s7, %s278
      %p280 = scmp.lt.s32.totalorder %s19, 1
      %s281 = scalar_select %p280, %s19, 1
      %s282 = smul.addr %s281, 32
      %s283 = smul.addr %s282, 8
      %s284 = scalar_lea.vmem %s0, %s283
      %p285 = scmp.lt.s32.totalorder %s19, 1
      %s286 = scalar_select %p285, %s19, 1
      %s287 = smul.addr %s286, 32
      %s288 = smul.addr %s287, 8
      %s289 = scalar_lea.vmem %s5, %s288
      %p290 = scmp.lt.s32.totalorder %s19, 1
      %s291 = scalar_select %p290, %s19, 1
      %s292 = scalar_lea.vmem %s6, %s291
      %p293 = scmp.lt.s32.totalorder %s19, 1
      %s294 = scalar_select %p293, %s19, 1
      %s295 = scalar_lea.vmem %s7, %s294
      %v296 = vld [vmem:[%s284] sm:$0xff]
      %v297 = vld [vmem:[%s284 + $0x8] sm:$0xff]
      %v298 = vld [vmem:[%s284 + $0x10] sm:$0xff]
      %v299 = vld [vmem:[%s284 + $0x18] sm:$0xff]
      %v300 = vld [vmem:[%s284 + $0x20] sm:$0xff]
      %v301 = vld [vmem:[%s284 + $0x28] sm:$0xff]
      %v302 = vld [vmem:[%s284 + $0x30] sm:$0xff]
      %v303 = vld [vmem:[%s284 + $0x38] sm:$0xff]
      %v304 = vld [vmem:[%s284 + $0x40] sm:$0xff]
      %v305 = vld [vmem:[%s284 + $0x48] sm:$0xff]
      %v306 = vld [vmem:[%s284 + $0x50] sm:$0xff]
      %v307 = vld [vmem:[%s284 + $0x58] sm:$0xff]
      %v308 = vld [vmem:[%s284 + $0x60] sm:$0xff]
      %v309 = vld [vmem:[%s284 + $0x68] sm:$0xff]
      %v310 = vld [vmem:[%s284 + $0x70] sm:$0xff]
      %v311 = vld [vmem:[%s284 + $0x78] sm:$0xff]
      %v312 = vld [vmem:[%s284 + $0x80] sm:$0xff]
      %v313 = vld [vmem:[%s284 + $0x88] sm:$0xff]
      %v314 = vld [vmem:[%s284 + $0x90] sm:$0xff]
      %v315 = vld [vmem:[%s284 + $0x98] sm:$0xff]
      %v316 = vld [vmem:[%s284 + $0xa0] sm:$0xff]
      %v317 = vld [vmem:[%s284 + $0xa8] sm:$0xff]
      %v318 = vld [vmem:[%s284 + $0xb0] sm:$0xff]
      %v319 = vld [vmem:[%s284 + $0xb8] sm:$0xff]
      %v320 = vld [vmem:[%s284 + $0xc0] sm:$0xff]
      %v321 = vld [vmem:[%s284 + $0xc8] sm:$0xff]
      %v322 = vld [vmem:[%s284 + $0xd0] sm:$0xff]
      %v323 = vld [vmem:[%s284 + $0xd8] sm:$0xff]
      %v324 = vld [vmem:[%s284 + $0xe0] sm:$0xff]
      %v325 = vld [vmem:[%s284 + $0xe8] sm:$0xff]
      %v326 = vld [vmem:[%s284 + $0xf0] sm:$0xff]
      %v327 = vld [vmem:[%s284 + $0xf8] sm:$0xff]
      %v328 = vld [vmem:[%s1] sm:$0x1]
      %v330 = vlaneseq
      %v331 = vshrl.u32 %v330, 7
      %v332 = vsub.s32 0, %v331
      %v333 = vrot.slane %v328, %v332
      %v335 = vmul.f32 %v296, %v333
      %v336 = vmul.f32 %v297, %v333
      %v337 = vmul.f32 %v298, %v333
      %v338 = vmul.f32 %v299, %v333
      %v339 = vmul.f32 %v300, %v333
      %v340 = vmul.f32 %v301, %v333
      %v341 = vmul.f32 %v302, %v333
      %v342 = vmul.f32 %v303, %v333
      %v343 = vmul.f32 %v304, %v333
      %v344 = vmul.f32 %v305, %v333
      %v345 = vmul.f32 %v306, %v333
      %v346 = vmul.f32 %v307, %v333
      %v347 = vmul.f32 %v308, %v333
      %v348 = vmul.f32 %v309, %v333
      %v349 = vmul.f32 %v310, %v333
      %v350 = vmul.f32 %v311, %v333
      %v351 = vmul.f32 %v312, %v333
      %v352 = vmul.f32 %v313, %v333
      %v353 = vmul.f32 %v314, %v333
      %v354 = vmul.f32 %v315, %v333
      %v355 = vmul.f32 %v316, %v333
      %v356 = vmul.f32 %v317, %v333
      %v357 = vmul.f32 %v318, %v333
      %v358 = vmul.f32 %v319, %v333
      %v359 = vmul.f32 %v320, %v333
      %v360 = vmul.f32 %v321, %v333
      %v361 = vmul.f32 %v322, %v333
      %v362 = vmul.f32 %v323, %v333
      %v363 = vmul.f32 %v324, %v333
      %v364 = vmul.f32 %v325, %v333
      %v365 = vmul.f32 %v326, %v333
      %v366 = vmul.f32 %v327, %v333
      %v367 = vld [vmem:[%s2] sm:$0x1]
      %v369 = vlaneseq
      %v370 = vshrl.u32 %v369, 7
      %v371 = vsub.s32 0, %v370
      %v372 = vrot.slane %v367, %v371
      %v374 = vadd.f32 %v335, %v372
      %v375 = vadd.f32 %v336, %v372
      %v376 = vadd.f32 %v337, %v372
      %v377 = vadd.f32 %v338, %v372
      %v378 = vadd.f32 %v339, %v372
      %v379 = vadd.f32 %v340, %v372
      %v380 = vadd.f32 %v341, %v372
      %v381 = vadd.f32 %v342, %v372
      %v382 = vadd.f32 %v343, %v372
      %v383 = vadd.f32 %v344, %v372
      %v384 = vadd.f32 %v345, %v372
      %v385 = vadd.f32 %v346, %v372
      %v386 = vadd.f32 %v347, %v372
      %v387 = vadd.f32 %v348, %v372
      %v388 = vadd.f32 %v349, %v372
      %v389 = vadd.f32 %v350, %v372
      %v390 = vadd.f32 %v351, %v372
      %v391 = vadd.f32 %v352, %v372
      %v392 = vadd.f32 %v353, %v372
      %v393 = vadd.f32 %v354, %v372
      %v394 = vadd.f32 %v355, %v372
      %v395 = vadd.f32 %v356, %v372
      %v396 = vadd.f32 %v357, %v372
      %v397 = vadd.f32 %v358, %v372
      %v398 = vadd.f32 %v359, %v372
      %v399 = vadd.f32 %v360, %v372
      %v400 = vadd.f32 %v361, %v372
      %v401 = vadd.f32 %v362, %v372
      %v402 = vadd.f32 %v363, %v372
      %v403 = vadd.f32 %v364, %v372
      %v404 = vadd.f32 %v365, %v372
      %v405 = vadd.f32 %v366, %v372
      %v406 = vmax.f32 %v374, 0.0
      %v407 = vmax.f32 %v375, 0.0
      %v408 = vmax.f32 %v376, 0.0
      %v409 = vmax.f32 %v377, 0.0
      %v410 = vmax.f32 %v378, 0.0
      %v411 = vmax.f32 %v379, 0.0
      %v412 = vmax.f32 %v380, 0.0
      %v413 = vmax.f32 %v381, 0.0
      %v414 = vmax.f32 %v382, 0.0
      %v415 = vmax.f32 %v383, 0.0
      %v416 = vmax.f32 %v384, 0.0
      %v417 = vmax.f32 %v385, 0.0
      %v418 = vmax.f32 %v386, 0.0
      %v419 = vmax.f32 %v387, 0.0
      %v420 = vmax.f32 %v388, 0.0
      %v421 = vmax.f32 %v389, 0.0
      %v422 = vmax.f32 %v390, 0.0
      %v423 = vmax.f32 %v391, 0.0
      %v424 = vmax.f32 %v392, 0.0
      %v425 = vmax.f32 %v393, 0.0
      %v426 = vmax.f32 %v394, 0.0
      %v427 = vmax.f32 %v395, 0.0
      %v428 = vmax.f32 %v396, 0.0
      %v429 = vmax.f32 %v397, 0.0
      %v430 = vmax.f32 %v398, 0.0
      %v431 = vmax.f32 %v399, 0.0
      %v432 = vmax.f32 %v400, 0.0
      %v433 = vmax.f32 %v401, 0.0
      %v434 = vmax.f32 %v402, 0.0
      %v435 = vmax.f32 %v403, 0.0
      %v436 = vmax.f32 %v404, 0.0
      %v437 = vmax.f32 %v405, 0.0
      %438 = vst [vmem:[#allocation2] sm:$0xff] 0.0
      %439 = vst [vmem:[#allocation2 + $0x8] sm:$0xff] 0.0
      %440 = vst [vmem:[#allocation2 + $0x10] sm:$0x3] 0.0
      %s441 = scalar_lea.vmem [#allocation2], 408
      %442 = vst [vmem:[%s441] sm:$0xff] 0.0
      %443 = vst [vmem:[%s441 + $0x8] sm:$0xff] 0.0
      %444 = vst [vmem:[%s441 + $0x10] sm:$0x3] 0.0
      %445 = vst [vmem:[#allocation2] sm:$0x1] 0.0
      %446 = vst [vmem:[#allocation2 + $0x18] sm:$0x1] 0.0
      %447 = vst [vmem:[#allocation2 + $0x30] sm:$0x1] 0.0
      %448 = vst [vmem:[#allocation2 + $0x48] sm:$0x1] 0.0
      %449 = vst [vmem:[#allocation2 + $0x60] sm:$0x1] 0.0
      %450 = vst [vmem:[#allocation2 + $0x78] sm:$0x1] 0.0
      %451 = vst [vmem:[#allocation2 + $0x90] sm:$0x1] 0.0
      %452 = vst [vmem:[#allocation2 + $0xa8] sm:$0x1] 0.0
      %453 = vst [vmem:[#allocation2 + $0xc0] sm:$0x1] 0.0
      %454 = vst [vmem:[#allocation2 + $0xd8] sm:$0x1] 0.0
      %455 = vst [vmem:[#allocation2 + $0xf0] sm:$0x1] 0.0
      %456 = vst [vmem:[#allocation2 + $0x108] sm:$0x1] 0.0
      %457 = vst [vmem:[#allocation2 + $0x120] sm:$0x1] 0.0
      %458 = vst [vmem:[#allocation2 + $0x138] sm:$0x1] 0.0
      %459 = vst [vmem:[#allocation2 + $0x150] sm:$0x1] 0.0
      %460 = vst [vmem:[#allocation2 + $0x168] sm:$0x1] 0.0
      %461 = vst [vmem:[#allocation2 + $0x180] sm:$0x1] 0.0
      %462 = vst [vmem:[#allocation2 + $0x198] sm:$0x1] 0.0
      %463 = vst [vmem:[#allocation2 + $0x11] sm:$0x1] 0.0
      %464 = vst [vmem:[#allocation2 + $0x29] sm:$0x1] 0.0
      %465 = vst [vmem:[#allocation2 + $0x41] sm:$0x1] 0.0
      %466 = vst [vmem:[#allocation2 + $0x59] sm:$0x1] 0.0
      %467 = vst [vmem:[#allocation2 + $0x71] sm:$0x1] 0.0
      %468 = vst [vmem:[#allocation2 + $0x89] sm:$0x1] 0.0
      %469 = vst [vmem:[#allocation2 + $0xa1] sm:$0x1] 0.0
      %470 = vst [vmem:[#allocation2 + $0xb9] sm:$0x1] 0.0
      %471 = vst [vmem:[#allocation2 + $0xd1] sm:$0x1] 0.0
      %472 = vst [vmem:[#allocation2 + $0xe9] sm:$0x1] 0.0
      %473 = vst [vmem:[#allocation2 + $0x101] sm:$0x1] 0.0
      %474 = vst [vmem:[#allocation2 + $0x119] sm:$0x1] 0.0
      %475 = vst [vmem:[#allocation2 + $0x131] sm:$0x1] 0.0
      %476 = vst [vmem:[#allocation2 + $0x149] sm:$0x1] 0.0
      %477 = vst [vmem:[#allocation2 + $0x161] sm:$0x1] 0.0
      %478 = vst [vmem:[#allocation2 + $0x179] sm:$0x1] 0.0
      %479 = vst [vmem:[#allocation2 + $0x191] sm:$0x1] 0.0
      %480 = vst [vmem:[#allocation2 + $0x1a9] sm:$0x1] 0.0
      %s481 = scalar_lea.vmem [#allocation2], 24
      %482 = vst [vmem:[%s481 + $0x1] sm:$0xff] %v406
      %483 = vst [vmem:[%s481 + $0x9] sm:$0xff] %v407
      %484 = vst [vmem:[%s481 + $0x19] sm:$0xff] %v408
      %485 = vst [vmem:[%s481 + $0x21] sm:$0xff] %v409
      %486 = vst [vmem:[%s481 + $0x31] sm:$0xff] %v410
      %487 = vst [vmem:[%s481 + $0x39] sm:$0xff] %v411
      %488 = vst [vmem:[%s481 + $0x49] sm:$0xff] %v412
      %489 = vst [vmem:[%s481 + $0x51] sm:$0xff] %v413
      %490 = vst [vmem:[%s481 + $0x61] sm:$0xff] %v414
      %491 = vst [vmem:[%s481 + $0x69] sm:$0xff] %v415
      %492 = vst [vmem:[%s481 + $0x79] sm:$0xff] %v416
      %493 = vst [vmem:[%s481 + $0x81] sm:$0xff] %v417
      %494 = vst [vmem:[%s481 + $0x91] sm:$0xff] %v418
      %495 = vst [vmem:[%s481 + $0x99] sm:$0xff] %v419
      %496 = vst [vmem:[%s481 + $0xa9] sm:$0xff] %v420
      %497 = vst [vmem:[%s481 + $0xb1] sm:$0xff] %v421
      %498 = vst [vmem:[%s481 + $0xc1] sm:$0xff] %v422
      %499 = vst [vmem:[%s481 + $0xc9] sm:$0xff] %v423
      %500 = vst [vmem:[%s481 + $0xd9] sm:$0xff] %v424
      %501 = vst [vmem:[%s481 + $0xe1] sm:$0xff] %v425
      %502 = vst [vmem:[%s481 + $0xf1] sm:$0xff] %v426
      %503 = vst [vmem:[%s481 + $0xf9] sm:$0xff] %v427
      %504 = vst [vmem:[%s481 + $0x109] sm:$0xff] %v428
      %505 = vst [vmem:[%s481 + $0x111] sm:$0xff] %v429
      %506 = vst [vmem:[%s481 + $0x121] sm:$0xff] %v430
      %507 = vst [vmem:[%s481 + $0x129] sm:$0xff] %v431
      %508 = vst [vmem:[%s481 + $0x139] sm:$0xff] %v432
      %509 = vst [vmem:[%s481 + $0x141] sm:$0xff] %v433
      %510 = vst [vmem:[%s481 + $0x151] sm:$0xff] %v434
      %511 = vst [vmem:[%s481 + $0x159] sm:$0xff] %v435
      %512 = vst [vmem:[%s481 + $0x169] sm:$0xff] %v436
      %513 = vst [vmem:[%s481 + $0x171] sm:$0xff] %v437
      %v514 = vld [vmem:[#allocation2] sm:$0xff]
      %v515 = vld [vmem:[#allocation2 + $0x8] sm:$0xff]
      %v516 = vld [vmem:[#allocation2 + $0x18] sm:$0xff]
      %v517 = vld [vmem:[#allocation2 + $0x20] sm:$0xff]
      %v518 = vld [vmem:[#allocation2 + $0x30] sm:$0xff]
      %v519 = vld [vmem:[#allocation2 + $0x38] sm:$0xff]
      %v520 = vld [vmem:[#allocation2 + $0x48] sm:$0xff]
      %v521 = vld [vmem:[#allocation2 + $0x50] sm:$0xff]
      %v522 = vld [vmem:[#allocation2 + $0x60] sm:$0xff]
      %v523 = vld [vmem:[#allocation2 + $0x68] sm:$0xff]
      %v524 = vld [vmem:[#allocation2 + $0x78] sm:$0xff]
      %v525 = vld [vmem:[#allocation2 + $0x80] sm:$0xff]
      %v526 = vld [vmem:[#allocation2 + $0x90] sm:$0xff]
      %v527 = vld [vmem:[#allocation2 + $0x98] sm:$0xff]
      %v528 = vld [vmem:[#allocation2 + $0xa8] sm:$0xff]
      %v529 = vld [vmem:[#allocation2 + $0xb0] sm:$0xff]
      %v530 = vld [vmem:[#allocation2 + $0xc0] sm:$0xff]
      %v531 = vld [vmem:[#allocation2 + $0xc8] sm:$0xff]
      %v532 = vld [vmem:[#allocation2 + $0xd8] sm:$0xff]
      %v533 = vld [vmem:[#allocation2 + $0xe0] sm:$0xff]
      %v534 = vld [vmem:[#allocation2 + $0xf0] sm:$0xff]
      %v535 = vld [vmem:[#allocation2 + $0xf8] sm:$0xff]
      %v536 = vld [vmem:[#allocation2 + $0x108] sm:$0xff]
      %v537 = vld [vmem:[#allocation2 + $0x110] sm:$0xff]
      %v538 = vld [vmem:[#allocation2 + $0x120] sm:$0xff]
      %v539 = vld [vmem:[#allocation2 + $0x128] sm:$0xff]
      %v540 = vld [vmem:[#allocation2 + $0x138] sm:$0xff]
      %v541 = vld [vmem:[#allocation2 + $0x140] sm:$0xff]
      %v542 = vld [vmem:[#allocation2 + $0x150] sm:$0xff]
      %v543 = vld [vmem:[#allocation2 + $0x158] sm:$0xff]
      %v544 = vld [vmem:[#allocation2 + $0x168] sm:$0xff]
      %v545 = vld [vmem:[#allocation2 + $0x170] sm:$0xff]
      %546 = vst [vmem:[#allocation3] sm:$0xff] %v514
      %547 = vst [vmem:[#allocation3 + $0x48] sm:$0xff] %v515
      %548 = vst [vmem:[#allocation3 + $0x90] sm:$0xff] %v516
      %549 = vst [vmem:[#allocation3 + $0xd8] sm:$0xff] %v517
      %550 = vst [vmem:[#allocation3 + $0x120] sm:$0xff] %v518
      %551 = vst [vmem:[#allocation3 + $0x168] sm:$0xff] %v519
      %552 = vst [vmem:[#allocation3 + $0x1b0] sm:$0xff] %v520
      %553 = vst [vmem:[#allocation3 + $0x1f8] sm:$0xff] %v521
      %554 = vst [vmem:[#allocation3 + $0x240] sm:$0xff] %v522
      %555 = vst [vmem:[#allocation3 + $0x288] sm:$0xff] %v523
      %556 = vst [vmem:[#allocation3 + $0x2d0] sm:$0xff] %v524
      %557 = vst [vmem:[#allocation3 + $0x318] sm:$0xff] %v525
      %558 = vst [vmem:[#allocation3 + $0x360] sm:$0xff] %v526
      %559 = vst [vmem:[#allocation3 + $0x3a8] sm:$0xff] %v527
      %560 = vst [vmem:[#allocation3 + $0x3f0] sm:$0xff] %v528
      %561 = vst [vmem:[#allocation3 + $0x438] sm:$0xff] %v529
      %562 = vst [vmem:[#allocation3 + $0x480] sm:$0xff] %v530
      %563 = vst [vmem:[#allocation3 + $0x4c8] sm:$0xff] %v531
      %564 = vst [vmem:[#allocation3 + $0x510] sm:$0xff] %v532
      %565 = vst [vmem:[#allocation3 + $0x558] sm:$0xff] %v533
      %566 = vst [vmem:[#allocation3 + $0x5a0] sm:$0xff] %v534
      %567 = vst [vmem:[#allocation3 + $0x5e8] sm:$0xff] %v535
      %568 = vst [vmem:[#allocation3 + $0x630] sm:$0xff] %v536
      %569 = vst [vmem:[#allocation3 + $0x678] sm:$0xff] %v537
      %570 = vst [vmem:[#allocation3 + $0x6c0] sm:$0xff] %v538
      %571 = vst [vmem:[#allocation3 + $0x708] sm:$0xff] %v539
      %572 = vst [vmem:[#allocation3 + $0x750] sm:$0xff] %v540
      %573 = vst [vmem:[#allocation3 + $0x798] sm:$0xff] %v541
      %574 = vst [vmem:[#allocation3 + $0x7e0] sm:$0xff] %v542
      %575 = vst [vmem:[#allocation3 + $0x828] sm:$0xff] %v543
      %576 = vst [vmem:[#allocation3 + $0x870] sm:$0xff] %v544
      %577 = vst [vmem:[#allocation3 + $0x8b8] sm:$0xff] %v545
      %v578 = vld [vmem:[#allocation2 + $0x1] sm:$0xff]
      %v579 = vld [vmem:[#allocation2 + $0x9] sm:$0xff]
      %v580 = vld [vmem:[#allocation2 + $0x19] sm:$0xff]
      %v581 = vld [vmem:[#allocation2 + $0x21] sm:$0xff]
      %v582 = vld [vmem:[#allocation2 + $0x31] sm:$0xff]
      %v583 = vld [vmem:[#allocation2 + $0x39] sm:$0xff]
      %v584 = vld [vmem:[#allocation2 + $0x49] sm:$0xff]
      %v585 = vld [vmem:[#allocation2 + $0x51] sm:$0xff]
      %v586 = vld [vmem:[#allocation2 + $0x61] sm:$0xff]
      %v587 = vld [vmem:[#allocation2 + $0x69] sm:$0xff]
      %v588 = vld [vmem:[#allocation2 + $0x79] sm:$0xff]
      %v589 = vld [vmem:[#allocation2 + $0x81] sm:$0xff]
      %v590 = vld [vmem:[#allocation2 + $0x91] sm:$0xff]
      %v591 = vld [vmem:[#allocation2 + $0x99] sm:$0xff]
      %v592 = vld [vmem:[#allocation2 + $0xa9] sm:$0xff]
      %v593 = vld [vmem:[#allocation2 + $0xb1] sm:$0xff]
      %v594 = vld [vmem:[#allocation2 + $0xc1] sm:$0xff]
      %v595 = vld [vmem:[#allocation2 + $0xc9] sm:$0xff]
      %v596 = vld [vmem:[#allocation2 + $0xd9] sm:$0xff]
      %v597 = vld [vmem:[#allocation2 + $0xe1] sm:$0xff]
      %v598 = vld [vmem:[#allocation2 + $0xf1] sm:$0xff]
      %v599 = vld [vmem:[#allocation2 + $0xf9] sm:$0xff]
      %v600 = vld [vmem:[#allocation2 + $0x109] sm:$0xff]
      %v601 = vld [vmem:[#allocation2 + $0x111] sm:$0xff]
      %v602 = vld [vmem:[#allocation2 + $0x121] sm:$0xff]
      %v603 = vld [vmem:[#allocation2 + $0x129] sm:$0xff]
      %v604 = vld [vmem:[#allocation2 + $0x139] sm:$0xff]
      %v605 = vld [vmem:[#allocation2 + $0x141] sm:$0xff]
      %v606 = vld [vmem:[#allocation2 + $0x151] sm:$0xff]
      %v607 = vld [vmem:[#allocation2 + $0x159] sm:$0xff]
      %v608 = vld [vmem:[#allocation2 + $0x169] sm:$0xff]
      %v609 = vld [vmem:[#allocation2 + $0x171] sm:$0xff]
      %610 = vst [vmem:[#allocation3 + $0x8] sm:$0xff] %v578
      %611 = vst [vmem:[#allocation3 + $0x50] sm:$0xff] %v579
      %612 = vst [vmem:[#allocation3 + $0x98] sm:$0xff] %v580
      %613 = vst [vmem:[#allocation3 + $0xe0] sm:$0xff] %v581
      %614 = vst [vmem:[#allocation3 + $0x128] sm:$0xff] %v582
      %615 = vst [vmem:[#allocation3 + $0x170] sm:$0xff] %v583
      %616 = vst [vmem:[#allocation3 + $0x1b8] sm:$0xff] %v584
      %617 = vst [vmem:[#allocation3 + $0x200] sm:$0xff] %v585
      %618 = vst [vmem:[#allocation3 + $0x248] sm:$0xff] %v586
      %619 = vst [vmem:[#allocation3 + $0x290] sm:$0xff] %v587
      %620 = vst [vmem:[#allocation3 + $0x2d8] sm:$0xff] %v588
      %621 = vst [vmem:[#allocation3 + $0x320] sm:$0xff] %v589
      %622 = vst [vmem:[#allocation3 + $0x368] sm:$0xff] %v590
      %623 = vst [vmem:[#allocation3 + $0x3b0] sm:$0xff] %v591
      %624 = vst [vmem:[#allocation3 + $0x3f8] sm:$0xff] %v592
      %625 = vst [vmem:[#allocation3 + $0x440] sm:$0xff] %v593
      %626 = vst [vmem:[#allocation3 + $0x488] sm:$0xff] %v594
      %627 = vst [vmem:[#allocation3 + $0x4d0] sm:$0xff] %v595
      %628 = vst [vmem:[#allocation3 + $0x518] sm:$0xff] %v596
      %629 = vst [vmem:[#allocation3 + $0x560] sm:$0xff] %v597
      %630 = vst [vmem:[#allocation3 + $0x5a8] sm:$0xff] %v598
      %631 = vst [vmem:[#allocation3 + $0x5f0] sm:$0xff] %v599
      %632 = vst [vmem:[#allocation3 + $0x638] sm:$0xff] %v600
      %633 = vst [vmem:[#allocation3 + $0x680] sm:$0xff] %v601
      %634 = vst [vmem:[#allocation3 + $0x6c8] sm:$0xff] %v602
      %635 = vst [vmem:[#allocation3 + $0x710] sm:$0xff] %v603
      %636 = vst [vmem:[#allocation3 + $0x758] sm:$0xff] %v604
      %637 = vst [vmem:[#allocation3 + $0x7a0] sm:$0xff] %v605
      %638 = vst [vmem:[#allocation3 + $0x7e8] sm:$0xff] %v606
      %639 = vst [vmem:[#allocation3 + $0x830] sm:$0xff] %v607
      %640 = vst [vmem:[#allocation3 + $0x878] sm:$0xff] %v608
      %641 = vst [vmem:[#allocation3 + $0x8c0] sm:$0xff] %v609
      %v642 = vld [vmem:[#allocation2 + $0x2] sm:$0xff]
      %v643 = vld [vmem:[#allocation2 + $0xa] sm:$0xff]
      %v644 = vld [vmem:[#allocation2 + $0x1a] sm:$0xff]
      %v645 = vld [vmem:[#allocation2 + $0x22] sm:$0xff]
      %v646 = vld [vmem:[#allocation2 + $0x32] sm:$0xff]
      %v647 = vld [vmem:[#allocation2 + $0x3a] sm:$0xff]
      %v648 = vld [vmem:[#allocation2 + $0x4a] sm:$0xff]
      %v649 = vld [vmem:[#allocation2 + $0x52] sm:$0xff]
      %v650 = vld [vmem:[#allocation2 + $0x62] sm:$0xff]
      %v651 = vld [vmem:[#allocation2 + $0x6a] sm:$0xff]
      %v652 = vld [vmem:[#allocation2 + $0x7a] sm:$0xff]
      %v653 = vld [vmem:[#allocation2 + $0x82] sm:$0xff]
      %v654 = vld [vmem:[#allocation2 + $0x92] sm:$0xff]
      %v655 = vld [vmem:[#allocation2 + $0x9a] sm:$0xff]
      %v656 = vld [vmem:[#allocation2 + $0xaa] sm:$0xff]
      %v657 = vld [vmem:[#allocation2 + $0xb2] sm:$0xff]
      %v658 = vld [vmem:[#allocation2 + $0xc2] sm:$0xff]
      %v659 = vld [vmem:[#allocation2 + $0xca] sm:$0xff]
      %v660 = vld [vmem:[#allocation2 + $0xda] sm:$0xff]
      %v661 = vld [vmem:[#allocation2 + $0xe2] sm:$0xff]
      %v662 = vld [vmem:[#allocation2 + $0xf2] sm:$0xff]
      %v663 = vld [vmem:[#allocation2 + $0xfa] sm:$0xff]
      %v664 = vld [vmem:[#allocation2 + $0x10a] sm:$0xff]
      %v665 = vld [vmem:[#allocation2 + $0x112] sm:$0xff]
      %v666 = vld [vmem:[#allocation2 + $0x122] sm:$0xff]
      %v667 = vld [vmem:[#allocation2 + $0x12a] sm:$0xff]
      %v668 = vld [vmem:[#allocation2 + $0x13a] sm:$0xff]
      %v669 = vld [vmem:[#allocation2 + $0x142] sm:$0xff]
      %v670 = vld [vmem:[#allocation2 + $0x152] sm:$0xff]
      %v671 = vld [vmem:[#allocation2 + $0x15a] sm:$0xff]
      %v672 = vld [vmem:[#allocation2 + $0x16a] sm:$0xff]
      %v673 = vld [vmem:[#allocation2 + $0x172] sm:$0xff]
      %674 = vst [vmem:[#allocation3 + $0x10] sm:$0xff] %v642
      %675 = vst [vmem:[#allocation3 + $0x58] sm:$0xff] %v643
      %676 = vst [vmem:[#allocation3 + $0xa0] sm:$0xff] %v644
      %677 = vst [vmem:[#allocation3 + $0xe8] sm:$0xff] %v645
      %678 = vst [vmem:[#allocation3 + $0x130] sm:$0xff] %v646
      %679 = vst [vmem:[#allocation3 + $0x178] sm:$0xff] %v647
      %680 = vst [vmem:[#allocation3 + $0x1c0] sm:$0xff] %v648
      %681 = vst [vmem:[#allocation3 + $0x208] sm:$0xff] %v649
      %682 = vst [vmem:[#allocation3 + $0x250] sm:$0xff] %v650
      %683 = vst [vmem:[#allocation3 + $0x298] sm:$0xff] %v651
      %684 = vst [vmem:[#allocation3 + $0x2e0] sm:$0xff] %v652
      %685 = vst [vmem:[#allocation3 + $0x328] sm:$0xff] %v653
      %686 = vst [vmem:[#allocation3 + $0x370] sm:$0xff] %v654
      %687 = vst [vmem:[#allocation3 + $0x3b8] sm:$0xff] %v655
      %688 = vst [vmem:[#allocation3 + $0x400] sm:$0xff] %v656
      %689 = vst [vmem:[#allocation3 + $0x448] sm:$0xff] %v657
      %690 = vst [vmem:[#allocation3 + $0x490] sm:$0xff] %v658
      %691 = vst [vmem:[#allocation3 + $0x4d8] sm:$0xff] %v659
      %692 = vst [vmem:[#allocation3 + $0x520] sm:$0xff] %v660
      %693 = vst [vmem:[#allocation3 + $0x568] sm:$0xff] %v661
      %694 = vst [vmem:[#allocation3 + $0x5b0] sm:$0xff] %v662
      %695 = vst [vmem:[#allocation3 + $0x5f8] sm:$0xff] %v663
      %696 = vst [vmem:[#allocation3 + $0x640] sm:$0xff] %v664
      %697 = vst [vmem:[#allocation3 + $0x688] sm:$0xff] %v665
      %698 = vst [vmem:[#allocation3 + $0x6d0] sm:$0xff] %v666
      %699 = vst [vmem:[#allocation3 + $0x718] sm:$0xff] %v667
      %700 = vst [vmem:[#allocation3 + $0x760] sm:$0xff] %v668
      %701 = vst [vmem:[#allocation3 + $0x7a8] sm:$0xff] %v669
      %702 = vst [vmem:[#allocation3 + $0x7f0] sm:$0xff] %v670
      %703 = vst [vmem:[#allocation3 + $0x838] sm:$0xff] %v671
      %704 = vst [vmem:[#allocation3 + $0x880] sm:$0xff] %v672
      %705 = vst [vmem:[#allocation3 + $0x8c8] sm:$0xff] %v673
      %v706 = vld [vmem:[%s481] sm:$0xff]
      %v707 = vld [vmem:[%s481 + $0x8] sm:$0xff]
      %v708 = vld [vmem:[%s481 + $0x18] sm:$0xff]
      %v709 = vld [vmem:[%s481 + $0x20] sm:$0xff]
      %v710 = vld [vmem:[%s481 + $0x30] sm:$0xff]
      %v711 = vld [vmem:[%s481 + $0x38] sm:$0xff]
      %v712 = vld [vmem:[%s481 + $0x48] sm:$0xff]
      %v713 = vld [vmem:[%s481 + $0x50] sm:$0xff]
      %v714 = vld [vmem:[%s481 + $0x60] sm:$0xff]
      %v715 = vld [vmem:[%s481 + $0x68] sm:$0xff]
      %v716 = vld [vmem:[%s481 + $0x78] sm:$0xff]
      %v717 = vld [vmem:[%s481 + $0x80] sm:$0xff]
      %v718 = vld [vmem:[%s481 + $0x90] sm:$0xff]
      %v719 = vld [vmem:[%s481 + $0x98] sm:$0xff]
      %v720 = vld [vmem:[%s481 + $0xa8] sm:$0xff]
      %v721 = vld [vmem:[%s481 + $0xb0] sm:$0xff]
      %v722 = vld [vmem:[%s481 + $0xc0] sm:$0xff]
      %v723 = vld [vmem:[%s481 + $0xc8] sm:$0xff]
      %v724 = vld [vmem:[%s481 + $0xd8] sm:$0xff]
      %v725 = vld [vmem:[%s481 + $0xe0] sm:$0xff]
      %v726 = vld [vmem:[%s481 + $0xf0] sm:$0xff]
      %v727 = vld [vmem:[%s481 + $0xf8] sm:$0xff]
      %v728 = vld [vmem:[%s481 + $0x108] sm:$0xff]
      %v729 = vld [vmem:[%s481 + $0x110] sm:$0xff]
      %v730 = vld [vmem:[%s481 + $0x120] sm:$0xff]
      %v731 = vld [vmem:[%s481 + $0x128] sm:$0xff]
      %v732 = vld [vmem:[%s481 + $0x138] sm:$0xff]
      %v733 = vld [vmem:[%s481 + $0x140] sm:$0xff]
      %v734 = vld [vmem:[%s481 + $0x150] sm:$0xff]
      %v735 = vld [vmem:[%s481 + $0x158] sm:$0xff]
      %v736 = vld [vmem:[%s481 + $0x168] sm:$0xff]
      %v737 = vld [vmem:[%s481 + $0x170] sm:$0xff]
      %738 = vst [vmem:[#allocation3 + $0x18] sm:$0xff] %v706
      %739 = vst [vmem:[#allocation3 + $0x60] sm:$0xff] %v707
      %740 = vst [vmem:[#allocation3 + $0xa8] sm:$0xff] %v708
      %741 = vst [vmem:[#allocation3 + $0xf0] sm:$0xff] %v709
      %742 = vst [vmem:[#allocation3 + $0x138] sm:$0xff] %v710
      %743 = vst [vmem:[#allocation3 + $0x180] sm:$0xff] %v711
      %744 = vst [vmem:[#allocation3 + $0x1c8] sm:$0xff] %v712
      %745 = vst [vmem:[#allocation3 + $0x210] sm:$0xff] %v713
      %746 = vst [vmem:[#allocation3 + $0x258] sm:$0xff] %v714
      %747 = vst [vmem:[#allocation3 + $0x2a0] sm:$0xff] %v715
      %748 = vst [vmem:[#allocation3 + $0x2e8] sm:$0xff] %v716
      %749 = vst [vmem:[#allocation3 + $0x330] sm:$0xff] %v717
      %750 = vst [vmem:[#allocation3 + $0x378] sm:$0xff] %v718
      %751 = vst [vmem:[#allocation3 + $0x3c0] sm:$0xff] %v719
      %752 = vst [vmem:[#allocation3 + $0x408] sm:$0xff] %v720
      %753 = vst [vmem:[#allocation3 + $0x450] sm:$0xff] %v721
      %754 = vst [vmem:[#allocation3 + $0x498] sm:$0xff] %v722
      %755 = vst [vmem:[#allocation3 + $0x4e0] sm:$0xff] %v723
      %756 = vst [vmem:[#allocation3 + $0x528] sm:$0xff] %v724
      %757 = vst [vmem:[#allocation3 + $0x570] sm:$0xff] %v725
      %758 = vst [vmem:[#allocation3 + $0x5b8] sm:$0xff] %v726
      %759 = vst [vmem:[#allocation3 + $0x600] sm:$0xff] %v727
      %760 = vst [vmem:[#allocation3 + $0x648] sm:$0xff] %v728
      %761 = vst [vmem:[#allocation3 + $0x690] sm:$0xff] %v729
      %762 = vst [vmem:[#allocation3 + $0x6d8] sm:$0xff] %v730
      %763 = vst [vmem:[#allocation3 + $0x720] sm:$0xff] %v731
      %764 = vst [vmem:[#allocation3 + $0x768] sm:$0xff] %v732
      %765 = vst [vmem:[#allocation3 + $0x7b0] sm:$0xff] %v733
      %766 = vst [vmem:[#allocation3 + $0x7f8] sm:$0xff] %v734
      %767 = vst [vmem:[#allocation3 + $0x840] sm:$0xff] %v735
      %768 = vst [vmem:[#allocation3 + $0x888] sm:$0xff] %v736
      %769 = vst [vmem:[#allocation3 + $0x8d0] sm:$0xff] %v737
      %v770 = vld [vmem:[%s481 + $0x1] sm:$0xff]
      %v771 = vld [vmem:[%s481 + $0x9] sm:$0xff]
      %v772 = vld [vmem:[%s481 + $0x19] sm:$0xff]
      %v773 = vld [vmem:[%s481 + $0x21] sm:$0xff]
      %v774 = vld [vmem:[%s481 + $0x31] sm:$0xff]
      %v775 = vld [vmem:[%s481 + $0x39] sm:$0xff]
      %v776 = vld [vmem:[%s481 + $0x49] sm:$0xff]
      %v777 = vld [vmem:[%s481 + $0x51] sm:$0xff]
      %v778 = vld [vmem:[%s481 + $0x61] sm:$0xff]
      %v779 = vld [vmem:[%s481 + $0x69] sm:$0xff]
      %v780 = vld [vmem:[%s481 + $0x79] sm:$0xff]
      %v781 = vld [vmem:[%s481 + $0x81] sm:$0xff]
      %v782 = vld [vmem:[%s481 + $0x91] sm:$0xff]
      %v783 = vld [vmem:[%s481 + $0x99] sm:$0xff]
      %v784 = vld [vmem:[%s481 + $0xa9] sm:$0xff]
      %v785 = vld [vmem:[%s481 + $0xb1] sm:$0xff]
      %v786 = vld [vmem:[%s481 + $0xc1] sm:$0xff]
      %v787 = vld [vmem:[%s481 + $0xc9] sm:$0xff]
      %v788 = vld [vmem:[%s481 + $0xd9] sm:$0xff]
      %v789 = vld [vmem:[%s481 + $0xe1] sm:$0xff]
      %v790 = vld [vmem:[%s481 + $0xf1] sm:$0xff]
      %v791 = vld [vmem:[%s481 + $0xf9] sm:$0xff]
      %v792 = vld [vmem:[%s481 + $0x109] sm:$0xff]
      %v793 = vld [vmem:[%s481 + $0x111] sm:$0xff]
      %v794 = vld [vmem:[%s481 + $0x121] sm:$0xff]
      %v795 = vld [vmem:[%s481 + $0x129] sm:$0xff]
      %v796 = vld [vmem:[%s481 + $0x139] sm:$0xff]
      %v797 = vld [vmem:[%s481 + $0x141] sm:$0xff]
      %v798 = vld [vmem:[%s481 + $0x151] sm:$0xff]
      %v799 = vld [vmem:[%s481 + $0x159] sm:$0xff]
      %v800 = vld [vmem:[%s481 + $0x169] sm:$0xff]
      %v801 = vld [vmem:[%s481 + $0x171] sm:$0xff]
      %802 = vst [vmem:[#allocation3 + $0x20] sm:$0xff] %v770
      %803 = vst [vmem:[#allocation3 + $0x68] sm:$0xff] %v771
      %804 = vst [vmem:[#allocation3 + $0xb0] sm:$0xff] %v772
      %805 = vst [vmem:[#allocation3 + $0xf8] sm:$0xff] %v773
      %806 = vst [vmem:[#allocation3 + $0x140] sm:$0xff] %v774
      %807 = vst [vmem:[#allocation3 + $0x188] sm:$0xff] %v775
      %808 = vst [vmem:[#allocation3 + $0x1d0] sm:$0xff] %v776
      %809 = vst [vmem:[#allocation3 + $0x218] sm:$0xff] %v777
      %810 = vst [vmem:[#allocation3 + $0x260] sm:$0xff] %v778
      %811 = vst [vmem:[#allocation3 + $0x2a8] sm:$0xff] %v779
      %812 = vst [vmem:[#allocation3 + $0x2f0] sm:$0xff] %v780
      %813 = vst [vmem:[#allocation3 + $0x338] sm:$0xff] %v781
      %814 = vst [vmem:[#allocation3 + $0x380] sm:$0xff] %v782
      %815 = vst [vmem:[#allocation3 + $0x3c8] sm:$0xff] %v783
      %816 = vst [vmem:[#allocation3 + $0x410] sm:$0xff] %v784
      %817 = vst [vmem:[#allocation3 + $0x458] sm:$0xff] %v785
      %818 = vst [vmem:[#allocation3 + $0x4a0] sm:$0xff] %v786
      %819 = vst [vmem:[#allocation3 + $0x4e8] sm:$0xff] %v787
      %820 = vst [vmem:[#allocation3 + $0x530] sm:$0xff] %v788
      %821 = vst [vmem:[#allocation3 + $0x578] sm:$0xff] %v789
      %822 = vst [vmem:[#allocation3 + $0x5c0] sm:$0xff] %v790
      %823 = vst [vmem:[#allocation3 + $0x608] sm:$0xff] %v791
      %824 = vst [vmem:[#allocation3 + $0x650] sm:$0xff] %v792
      %825 = vst [vmem:[#allocation3 + $0x698] sm:$0xff] %v793
      %826 = vst [vmem:[#allocation3 + $0x6e0] sm:$0xff] %v794
      %827 = vst [vmem:[#allocation3 + $0x728] sm:$0xff] %v795
      %828 = vst [vmem:[#allocation3 + $0x770] sm:$0xff] %v796
      %829 = vst [vmem:[#allocation3 + $0x7b8] sm:$0xff] %v797
      %830 = vst [vmem:[#allocation3 + $0x800] sm:$0xff] %v798
      %831 = vst [vmem:[#allocation3 + $0x848] sm:$0xff] %v799
      %832 = vst [vmem:[#allocation3 + $0x890] sm:$0xff] %v800
      %833 = vst [vmem:[#allocation3 + $0x8d8] sm:$0xff] %v801
      %v834 = vld [vmem:[%s481 + $0x2] sm:$0xff]
      %v835 = vld [vmem:[%s481 + $0xa] sm:$0xff]
      %v836 = vld [vmem:[%s481 + $0x1a] sm:$0xff]
      %v837 = vld [vmem:[%s481 + $0x22] sm:$0xff]
      %v838 = vld [vmem:[%s481 + $0x32] sm:$0xff]
      %v839 = vld [vmem:[%s481 + $0x3a] sm:$0xff]
      %v840 = vld [vmem:[%s481 + $0x4a] sm:$0xff]
      %v841 = vld [vmem:[%s481 + $0x52] sm:$0xff]
      %v842 = vld [vmem:[%s481 + $0x62] sm:$0xff]
      %v843 = vld [vmem:[%s481 + $0x6a] sm:$0xff]
      %v844 = vld [vmem:[%s481 + $0x7a] sm:$0xff]
      %v845 = vld [vmem:[%s481 + $0x82] sm:$0xff]
      %v846 = vld [vmem:[%s481 + $0x92] sm:$0xff]
      %v847 = vld [vmem:[%s481 + $0x9a] sm:$0xff]
      %v848 = vld [vmem:[%s481 + $0xaa] sm:$0xff]
      %v849 = vld [vmem:[%s481 + $0xb2] sm:$0xff]
      %v850 = vld [vmem:[%s481 + $0xc2] sm:$0xff]
      %v851 = vld [vmem:[%s481 + $0xca] sm:$0xff]
      %v852 = vld [vmem:[%s481 + $0xda] sm:$0xff]
      %v853 = vld [vmem:[%s481 + $0xe2] sm:$0xff]
      %v854 = vld [vmem:[%s481 + $0xf2] sm:$0xff]
      %v855 = vld [vmem:[%s481 + $0xfa] sm:$0xff]
      %v856 = vld [vmem:[%s481 + $0x10a] sm:$0xff]
      %v857 = vld [vmem:[%s481 + $0x112] sm:$0xff]
      %v858 = vld [vmem:[%s481 + $0x122] sm:$0xff]
      %v859 = vld [vmem:[%s481 + $0x12a] sm:$0xff]
      %v860 = vld [vmem:[%s481 + $0x13a] sm:$0xff]
      %v861 = vld [vmem:[%s481 + $0x142] sm:$0xff]
      %v862 = vld [vmem:[%s481 + $0x152] sm:$0xff]
      %v863 = vld [vmem:[%s481 + $0x15a] sm:$0xff]
      %v864 = vld [vmem:[%s481 + $0x16a] sm:$0xff]
      %v865 = vld [vmem:[%s481 + $0x172] sm:$0xff]
      %866 = vst [vmem:[#allocation3 + $0x28] sm:$0xff] %v834
      %867 = vst [vmem:[#allocation3 + $0x70] sm:$0xff] %v835
      %868 = vst [vmem:[#allocation3 + $0xb8] sm:$0xff] %v836
      %869 = vst [vmem:[#allocation3 + $0x100] sm:$0xff] %v837
      %870 = vst [vmem:[#allocation3 + $0x148] sm:$0xff] %v838
      %871 = vst [vmem:[#allocation3 + $0x190] sm:$0xff] %v839
      %872 = vst [vmem:[#allocation3 + $0x1d8] sm:$0xff] %v840
      %873 = vst [vmem:[#allocation3 + $0x220] sm:$0xff] %v841
      %874 = vst [vmem:[#allocation3 + $0x268] sm:$0xff] %v842
      %875 = vst [vmem:[#allocation3 + $0x2b0] sm:$0xff] %v843
      %876 = vst [vmem:[#allocation3 + $0x2f8] sm:$0xff] %v844
      %877 = vst [vmem:[#allocation3 + $0x340] sm:$0xff] %v845
      %878 = vst [vmem:[#allocation3 + $0x388] sm:$0xff] %v846
      %879 = vst [vmem:[#allocation3 + $0x3d0] sm:$0xff] %v847
      %880 = vst [vmem:[#allocation3 + $0x418] sm:$0xff] %v848
      %881 = vst [vmem:[#allocation3 + $0x460] sm:$0xff] %v849
      %882 = vst [vmem:[#allocation3 + $0x4a8] sm:$0xff] %v850
      %883 = vst [vmem:[#allocation3 + $0x4f0] sm:$0xff] %v851
      %884 = vst [vmem:[#allocation3 + $0x538] sm:$0xff] %v852
      %885 = vst [vmem:[#allocation3 + $0x580] sm:$0xff] %v853
      %886 = vst [vmem:[#allocation3 + $0x5c8] sm:$0xff] %v854
      %887 = vst [vmem:[#allocation3 + $0x610] sm:$0xff] %v855
      %888 = vst [vmem:[#allocation3 + $0x658] sm:$0xff] %v856
      %889 = vst [vmem:[#allocation3 + $0x6a0] sm:$0xff] %v857
      %890 = vst [vmem:[#allocation3 + $0x6e8] sm:$0xff] %v858
      %891 = vst [vmem:[#allocation3 + $0x730] sm:$0xff] %v859
      %892 = vst [vmem:[#allocation3 + $0x778] sm:$0xff] %v860
      %893 = vst [vmem:[#allocation3 + $0x7c0] sm:$0xff] %v861
      %894 = vst [vmem:[#allocation3 + $0x808] sm:$0xff] %v862
      %895 = vst [vmem:[#allocation3 + $0x850] sm:$0xff] %v863
      %896 = vst [vmem:[#allocation3 + $0x898] sm:$0xff] %v864
      %897 = vst [vmem:[#allocation3 + $0x8e0] sm:$0xff] %v865
      %s898 = scalar_lea.vmem [#allocation2], 48
      %v899 = vld [vmem:[%s898] sm:$0xff]
      %v900 = vld [vmem:[%s898 + $0x8] sm:$0xff]
      %v901 = vld [vmem:[%s898 + $0x18] sm:$0xff]
      %v902 = vld [vmem:[%s898 + $0x20] sm:$0xff]
      %v903 = vld [vmem:[%s898 + $0x30] sm:$0xff]
      %v904 = vld [vmem:[%s898 + $0x38] sm:$0xff]
      %v905 = vld [vmem:[%s898 + $0x48] sm:$0xff]
      %v906 = vld [vmem:[%s898 + $0x50] sm:$0xff]
      %v907 = vld [vmem:[%s898 + $0x60] sm:$0xff]
      %v908 = vld [vmem:[%s898 + $0x68] sm:$0xff]
      %v909 = vld [vmem:[%s898 + $0x78] sm:$0xff]
      %v910 = vld [vmem:[%s898 + $0x80] sm:$0xff]
      %v911 = vld [vmem:[%s898 + $0x90] sm:$0xff]
      %v912 = vld [vmem:[%s898 + $0x98] sm:$0xff]
      %v913 = vld [vmem:[%s898 + $0xa8] sm:$0xff]
      %v914 = vld [vmem:[%s898 + $0xb0] sm:$0xff]
      %v915 = vld [vmem:[%s898 + $0xc0] sm:$0xff]
      %v916 = vld [vmem:[%s898 + $0xc8] sm:$0xff]
      %v917 = vld [vmem:[%s898 + $0xd8] sm:$0xff]
      %v918 = vld [vmem:[%s898 + $0xe0] sm:$0xff]
      %v919 = vld [vmem:[%s898 + $0xf0] sm:$0xff]
      %v920 = vld [vmem:[%s898 + $0xf8] sm:$0xff]
      %v921 = vld [vmem:[%s898 + $0x108] sm:$0xff]
      %v922 = vld [vmem:[%s898 + $0x110] sm:$0xff]
      %v923 = vld [vmem:[%s898 + $0x120] sm:$0xff]
      %v924 = vld [vmem:[%s898 + $0x128] sm:$0xff]
      %v925 = vld [vmem:[%s898 + $0x138] sm:$0xff]
      %v926 = vld [vmem:[%s898 + $0x140] sm:$0xff]
      %v927 = vld [vmem:[%s898 + $0x150] sm:$0xff]
      %v928 = vld [vmem:[%s898 + $0x158] sm:$0xff]
      %v929 = vld [vmem:[%s898 + $0x168] sm:$0xff]
      %v930 = vld [vmem:[%s898 + $0x170] sm:$0xff]
      %931 = vst [vmem:[#allocation3 + $0x30] sm:$0xff] %v899
      %932 = vst [vmem:[#allocation3 + $0x78] sm:$0xff] %v900
      %933 = vst [vmem:[#allocation3 + $0xc0] sm:$0xff] %v901
      %934 = vst [vmem:[#allocation3 + $0x108] sm:$0xff] %v902
      %935 = vst [vmem:[#allocation3 + $0x150] sm:$0xff] %v903
      %936 = vst [vmem:[#allocation3 + $0x198] sm:$0xff] %v904
      %937 = vst [vmem:[#allocation3 + $0x1e0] sm:$0xff] %v905
      %938 = vst [vmem:[#allocation3 + $0x228] sm:$0xff] %v906
      %939 = vst [vmem:[#allocation3 + $0x270] sm:$0xff] %v907
      %940 = vst [vmem:[#allocation3 + $0x2b8] sm:$0xff] %v908
      %941 = vst [vmem:[#allocation3 + $0x300] sm:$0xff] %v909
      %942 = vst [vmem:[#allocation3 + $0x348] sm:$0xff] %v910
      %943 = vst [vmem:[#allocation3 + $0x390] sm:$0xff] %v911
      %944 = vst [vmem:[#allocation3 + $0x3d8] sm:$0xff] %v912
      %945 = vst [vmem:[#allocation3 + $0x420] sm:$0xff] %v913
      %946 = vst [vmem:[#allocation3 + $0x468] sm:$0xff] %v914
      %947 = vst [vmem:[#allocation3 + $0x4b0] sm:$0xff] %v915
      %948 = vst [vmem:[#allocation3 + $0x4f8] sm:$0xff] %v916
      %949 = vst [vmem:[#allocation3 + $0x540] sm:$0xff] %v917
      %950 = vst [vmem:[#allocation3 + $0x588] sm:$0xff] %v918
      %951 = vst [vmem:[#allocation3 + $0x5d0] sm:$0xff] %v919
      %952 = vst [vmem:[#allocation3 + $0x618] sm:$0xff] %v920
      %953 = vst [vmem:[#allocation3 + $0x660] sm:$0xff] %v921
      %954 = vst [vmem:[#allocation3 + $0x6a8] sm:$0xff] %v922
      %955 = vst [vmem:[#allocation3 + $0x6f0] sm:$0xff] %v923
      %956 = vst [vmem:[#allocation3 + $0x738] sm:$0xff] %v924
      %957 = vst [vmem:[#allocation3 + $0x780] sm:$0xff] %v925
      %958 = vst [vmem:[#allocation3 + $0x7c8] sm:$0xff] %v926
      %959 = vst [vmem:[#allocation3 + $0x810] sm:$0xff] %v927
      %960 = vst [vmem:[#allocation3 + $0x858] sm:$0xff] %v928
      %961 = vst [vmem:[#allocation3 + $0x8a0] sm:$0xff] %v929
      %962 = vst [vmem:[#allocation3 + $0x8e8] sm:$0xff] %v930
      %v963 = vld [vmem:[%s898 + $0x1] sm:$0xff]
      %v964 = vld [vmem:[%s898 + $0x9] sm:$0xff]
      %v965 = vld [vmem:[%s898 + $0x19] sm:$0xff]
      %v966 = vld [vmem:[%s898 + $0x21] sm:$0xff]
      %v967 = vld [vmem:[%s898 + $0x31] sm:$0xff]
      %v968 = vld [vmem:[%s898 + $0x39] sm:$0xff]
      %v969 = vld [vmem:[%s898 + $0x49] sm:$0xff]
      %v970 = vld [vmem:[%s898 + $0x51] sm:$0xff]
      %v971 = vld [vmem:[%s898 + $0x61] sm:$0xff]
      %v972 = vld [vmem:[%s898 + $0x69] sm:$0xff]
      %v973 = vld [vmem:[%s898 + $0x79] sm:$0xff]
      %v974 = vld [vmem:[%s898 + $0x81] sm:$0xff]
      %v975 = vld [vmem:[%s898 + $0x91] sm:$0xff]
      %v976 = vld [vmem:[%s898 + $0x99] sm:$0xff]
      %v977 = vld [vmem:[%s898 + $0xa9] sm:$0xff]
      %v978 = vld [vmem:[%s898 + $0xb1] sm:$0xff]
      %v979 = vld [vmem:[%s898 + $0xc1] sm:$0xff]
      %v980 = vld [vmem:[%s898 + $0xc9] sm:$0xff]
      %v981 = vld [vmem:[%s898 + $0xd9] sm:$0xff]
      %v982 = vld [vmem:[%s898 + $0xe1] sm:$0xff]
      %v983 = vld [vmem:[%s898 + $0xf1] sm:$0xff]
      %v984 = vld [vmem:[%s898 + $0xf9] sm:$0xff]
      %v985 = vld [vmem:[%s898 + $0x109] sm:$0xff]
      %v986 = vld [vmem:[%s898 + $0x111] sm:$0xff]
      %v987 = vld [vmem:[%s898 + $0x121] sm:$0xff]
      %v988 = vld [vmem:[%s898 + $0x129] sm:$0xff]
      %v989 = vld [vmem:[%s898 + $0x139] sm:$0xff]
      %v990 = vld [vmem:[%s898 + $0x141] sm:$0xff]
      %v991 = vld [vmem:[%s898 + $0x151] sm:$0xff]
      %v992 = vld [vmem:[%s898 + $0x159] sm:$0xff]
      %v993 = vld [vmem:[%s898 + $0x169] sm:$0xff]
      %v994 = vld [vmem:[%s898 + $0x171] sm:$0xff]
      %995 = vst [vmem:[#allocation3 + $0x38] sm:$0xff] %v963
      %996 = vst [vmem:[#allocation3 + $0x80] sm:$0xff] %v964
      %997 = vst [vmem:[#allocation3 + $0xc8] sm:$0xff] %v965
      %998 = vst [vmem:[#allocation3 + $0x110] sm:$0xff] %v966
      %999 = vst [vmem:[#allocation3 + $0x158] sm:$0xff] %v967
      %1000 = vst [vmem:[#allocation3 + $0x1a0] sm:$0xff] %v968
      %1001 = vst [vmem:[#allocation3 + $0x1e8] sm:$0xff] %v969
      %1002 = vst [vmem:[#allocation3 + $0x230] sm:$0xff] %v970
      %1003 = vst [vmem:[#allocation3 + $0x278] sm:$0xff] %v971
      %1004 = vst [vmem:[#allocation3 + $0x2c0] sm:$0xff] %v972
      %1005 = vst [vmem:[#allocation3 + $0x308] sm:$0xff] %v973
      %1006 = vst [vmem:[#allocation3 + $0x350] sm:$0xff] %v974
      %1007 = vst [vmem:[#allocation3 + $0x398] sm:$0xff] %v975
      %1008 = vst [vmem:[#allocation3 + $0x3e0] sm:$0xff] %v976
      %1009 = vst [vmem:[#allocation3 + $0x428] sm:$0xff] %v977
      %1010 = vst [vmem:[#allocation3 + $0x470] sm:$0xff] %v978
      %1011 = vst [vmem:[#allocation3 + $0x4b8] sm:$0xff] %v979
      %1012 = vst [vmem:[#allocation3 + $0x500] sm:$0xff] %v980
      %1013 = vst [vmem:[#allocation3 + $0x548] sm:$0xff] %v981
      %1014 = vst [vmem:[#allocation3 + $0x590] sm:$0xff] %v982
      %1015 = vst [vmem:[#allocation3 + $0x5d8] sm:$0xff] %v983
      %1016 = vst [vmem:[#allocation3 + $0x620] sm:$0xff] %v984
      %1017 = vst [vmem:[#allocation3 + $0x668] sm:$0xff] %v985
      %1018 = vst [vmem:[#allocation3 + $0x6b0] sm:$0xff] %v986
      %1019 = vst [vmem:[#allocation3 + $0x6f8] sm:$0xff] %v987
      %1020 = vst [vmem:[#allocation3 + $0x740] sm:$0xff] %v988
      %1021 = vst [vmem:[#allocation3 + $0x788] sm:$0xff] %v989
      %1022 = vst [vmem:[#allocation3 + $0x7d0] sm:$0xff] %v990
      %1023 = vst [vmem:[#allocation3 + $0x818] sm:$0xff] %v991
      %1024 = vst [vmem:[#allocation3 + $0x860] sm:$0xff] %v992
      %1025 = vst [vmem:[#allocation3 + $0x8a8] sm:$0xff] %v993
      %1026 = vst [vmem:[#allocation3 + $0x8f0] sm:$0xff] %v994
      %v1027 = vld [vmem:[%s898 + $0x2] sm:$0xff]
      %v1028 = vld [vmem:[%s898 + $0xa] sm:$0xff]
      %v1029 = vld [vmem:[%s898 + $0x1a] sm:$0xff]
      %v1030 = vld [vmem:[%s898 + $0x22] sm:$0xff]
      %v1031 = vld [vmem:[%s898 + $0x32] sm:$0xff]
      %v1032 = vld [vmem:[%s898 + $0x3a] sm:$0xff]
      %v1033 = vld [vmem:[%s898 + $0x4a] sm:$0xff]
      %v1034 = vld [vmem:[%s898 + $0x52] sm:$0xff]
      %v1035 = vld [vmem:[%s898 + $0x62] sm:$0xff]
      %v1036 = vld [vmem:[%s898 + $0x6a] sm:$0xff]
      %v1037 = vld [vmem:[%s898 + $0x7a] sm:$0xff]
      %v1038 = vld [vmem:[%s898 + $0x82] sm:$0xff]
      %v1039 = vld [vmem:[%s898 + $0x92] sm:$0xff]
      %v1040 = vld [vmem:[%s898 + $0x9a] sm:$0xff]
      %v1041 = vld [vmem:[%s898 + $0xaa] sm:$0xff]
      %v1042 = vld [vmem:[%s898 + $0xb2] sm:$0xff]
      %v1043 = vld [vmem:[%s898 + $0xc2] sm:$0xff]
      %v1044 = vld [vmem:[%s898 + $0xca] sm:$0xff]
      %v1045 = vld [vmem:[%s898 + $0xda] sm:$0xff]
      %v1046 = vld [vmem:[%s898 + $0xe2] sm:$0xff]
      %v1047 = vld [vmem:[%s898 + $0xf2] sm:$0xff]
      %v1048 = vld [vmem:[%s898 + $0xfa] sm:$0xff]
      %v1049 = vld [vmem:[%s898 + $0x10a] sm:$0xff]
      %v1050 = vld [vmem:[%s898 + $0x112] sm:$0xff]
      %v1051 = vld [vmem:[%s898 + $0x122] sm:$0xff]
      %v1052 = vld [vmem:[%s898 + $0x12a] sm:$0xff]
      %v1053 = vld [vmem:[%s898 + $0x13a] sm:$0xff]
      %v1054 = vld [vmem:[%s898 + $0x142] sm:$0xff]
      %v1055 = vld [vmem:[%s898 + $0x152] sm:$0xff]
      %v1056 = vld [vmem:[%s898 + $0x15a] sm:$0xff]
      %v1057 = vld [vmem:[%s898 + $0x16a] sm:$0xff]
      %v1058 = vld [vmem:[%s898 + $0x172] sm:$0xff]
      %1059 = vst [vmem:[#allocation3 + $0x40] sm:$0xff] %v1027
      %1060 = vst [vmem:[#allocation3 + $0x88] sm:$0xff] %v1028
      %1061 = vst [vmem:[#allocation3 + $0xd0] sm:$0xff] %v1029
      %1062 = vst [vmem:[#allocation3 + $0x118] sm:$0xff] %v1030
      %1063 = vst [vmem:[#allocation3 + $0x160] sm:$0xff] %v1031
      %1064 = vst [vmem:[#allocation3 + $0x1a8] sm:$0xff] %v1032
      %1065 = vst [vmem:[#allocation3 + $0x1f0] sm:$0xff] %v1033
      %1066 = vst [vmem:[#allocation3 + $0x238] sm:$0xff] %v1034
      %1067 = vst [vmem:[#allocation3 + $0x280] sm:$0xff] %v1035
      %1068 = vst [vmem:[#allocation3 + $0x2c8] sm:$0xff] %v1036
      %1069 = vst [vmem:[#allocation3 + $0x310] sm:$0xff] %v1037
      %1070 = vst [vmem:[#allocation3 + $0x358] sm:$0xff] %v1038
      %1071 = vst [vmem:[#allocation3 + $0x3a0] sm:$0xff] %v1039
      %1072 = vst [vmem:[#allocation3 + $0x3e8] sm:$0xff] %v1040
      %1073 = vst [vmem:[#allocation3 + $0x430] sm:$0xff] %v1041
      %1074 = vst [vmem:[#allocation3 + $0x478] sm:$0xff] %v1042
      %1075 = vst [vmem:[#allocation3 + $0x4c0] sm:$0xff] %v1043
      %1076 = vst [vmem:[#allocation3 + $0x508] sm:$0xff] %v1044
      %1077 = vst [vmem:[#allocation3 + $0x550] sm:$0xff] %v1045
      %1078 = vst [vmem:[#allocation3 + $0x598] sm:$0xff] %v1046
      %1079 = vst [vmem:[#allocation3 + $0x5e0] sm:$0xff] %v1047
      %1080 = vst [vmem:[#allocation3 + $0x628] sm:$0xff] %v1048
      %1081 = vst [vmem:[#allocation3 + $0x670] sm:$0xff] %v1049
      %1082 = vst [vmem:[#allocation3 + $0x6b8] sm:$0xff] %v1050
      %1083 = vst [vmem:[#allocation3 + $0x700] sm:$0xff] %v1051
      %1084 = vst [vmem:[#allocation3 + $0x748] sm:$0xff] %v1052
      %1085 = vst [vmem:[#allocation3 + $0x790] sm:$0xff] %v1053
      %1086 = vst [vmem:[#allocation3 + $0x7d8] sm:$0xff] %v1054
      %1087 = vst [vmem:[#allocation3 + $0x820] sm:$0xff] %v1055
      %1088 = vst [vmem:[#allocation3 + $0x868] sm:$0xff] %v1056
      %1089 = vst [vmem:[#allocation3 + $0x8b0] sm:$0xff] %v1057
      %1090 = vst [vmem:[#allocation3 + $0x8f8] sm:$0xff] %v1058
      %v1091 = vld [vmem:[#allocation3] sm:$0xff]
      %v1092 = vld [vmem:[#allocation3 + $0x8] sm:$0xff]
      %v1093 = vld [vmem:[#allocation3 + $0x10] sm:$0xff]
      %v1094 = vld [vmem:[#allocation3 + $0x18] sm:$0xff]
      %v1095 = vld [vmem:[#allocation3 + $0x20] sm:$0xff]
      %v1096 = vld [vmem:[#allocation3 + $0x28] sm:$0xff]
      %v1097 = vld [vmem:[#allocation3 + $0x30] sm:$0xff]
      %v1098 = vld [vmem:[#allocation3 + $0x38] sm:$0xff]
      %v1099 = vld [vmem:[#allocation3 + $0x40] sm:$0xff]
      %v1100 = vld [vmem:[#allocation3 + $0x48] sm:$0xff]
      %v1101 = vld [vmem:[#allocation3 + $0x50] sm:$0xff]
      %v1102 = vld [vmem:[#allocation3 + $0x58] sm:$0xff]
      %v1103 = vld [vmem:[#allocation3 + $0x60] sm:$0xff]
      %v1104 = vld [vmem:[#allocation3 + $0x68] sm:$0xff]
      %v1105 = vld [vmem:[#allocation3 + $0x70] sm:$0xff]
      %v1106 = vld [vmem:[#allocation3 + $0x78] sm:$0xff]
      %v1107 = vld [vmem:[#allocation3 + $0x80] sm:$0xff]
      %v1108 = vld [vmem:[#allocation3 + $0x88] sm:$0xff]
      %v1109 = vld [vmem:[#allocation3 + $0x90] sm:$0xff]
      %v1110 = vld [vmem:[#allocation3 + $0x98] sm:$0xff]
      %v1111 = vld [vmem:[#allocation3 + $0xa0] sm:$0xff]
      %v1112 = vld [vmem:[#allocation3 + $0xa8] sm:$0xff]
      %v1113 = vld [vmem:[#allocation3 + $0xb0] sm:$0xff]
      %v1114 = vld [vmem:[#allocation3 + $0xb8] sm:$0xff]
      %v1115 = vld [vmem:[#allocation3 + $0xc0] sm:$0xff]
      %v1116 = vld [vmem:[#allocation3 + $0xc8] sm:$0xff]
      %v1117 = vld [vmem:[#allocation3 + $0xd0] sm:$0xff]
      %v1118 = vld [vmem:[#allocation3 + $0xd8] sm:$0xff]
      %v1119 = vld [vmem:[#allocation3 + $0xe0] sm:$0xff]
      %v1120 = vld [vmem:[#allocation3 + $0xe8] sm:$0xff]
      %v1121 = vld [vmem:[#allocation3 + $0xf0] sm:$0xff]
      %v1122 = vld [vmem:[#allocation3 + $0xf8] sm:$0xff]
      %v1123 = vld [vmem:[#allocation3 + $0x100] sm:$0xff]
      %v1124 = vld [vmem:[#allocation3 + $0x108] sm:$0xff]
      %v1125 = vld [vmem:[#allocation3 + $0x110] sm:$0xff]
      %v1126 = vld [vmem:[#allocation3 + $0x118] sm:$0xff]
      %v1127 = vld [vmem:[#allocation3 + $0x120] sm:$0xff]
      %v1128 = vld [vmem:[#allocation3 + $0x128] sm:$0xff]
      %v1129 = vld [vmem:[#allocation3 + $0x130] sm:$0xff]
      %v1130 = vld [vmem:[#allocation3 + $0x138] sm:$0xff]
      %v1131 = vld [vmem:[#allocation3 + $0x140] sm:$0xff]
      %v1132 = vld [vmem:[#allocation3 + $0x148] sm:$0xff]
      %v1133 = vld [vmem:[#allocation3 + $0x150] sm:$0xff]
      %v1134 = vld [vmem:[#allocation3 + $0x158] sm:$0xff]
      %v1135 = vld [vmem:[#allocation3 + $0x160] sm:$0xff]
      %v1136 = vld [vmem:[#allocation3 + $0x168] sm:$0xff]
      %v1137 = vld [vmem:[#allocation3 + $0x170] sm:$0xff]
      %v1138 = vld [vmem:[#allocation3 + $0x178] sm:$0xff]
      %v1139 = vld [vmem:[#allocation3 + $0x180] sm:$0xff]
      %v1140 = vld [vmem:[#allocation3 + $0x188] sm:$0xff]
      %v1141 = vld [vmem:[#allocation3 + $0x190] sm:$0xff]
      %v1142 = vld [vmem:[#allocation3 + $0x198] sm:$0xff]
      %v1143 = vld [vmem:[#allocation3 + $0x1a0] sm:$0xff]
      %v1144 = vld [vmem:[#allocation3 + $0x1a8] sm:$0xff]
      %v1145 = vld [vmem:[#allocation3 + $0x1b0] sm:$0xff]
      %v1146 = vld [vmem:[#allocation3 + $0x1b8] sm:$0xff]
      %v1147 = vld [vmem:[#allocation3 + $0x1c0] sm:$0xff]
      %v1148 = vld [vmem:[#allocation3 + $0x1c8] sm:$0xff]
      %v1149 = vld [vmem:[#allocation3 + $0x1d0] sm:$0xff]
      %v1150 = vld [vmem:[#allocation3 + $0x1d8] sm:$0xff]
      %v1151 = vld [vmem:[#allocation3 + $0x1e0] sm:$0xff]
      %v1152 = vld [vmem:[#allocation3 + $0x1e8] sm:$0xff]
      %v1153 = vld [vmem:[#allocation3 + $0x1f0] sm:$0xff]
      %v1154 = vld [vmem:[#allocation3 + $0x1f8] sm:$0xff]
      %v1155 = vld [vmem:[#allocation3 + $0x200] sm:$0xff]
      %v1156 = vld [vmem:[#allocation3 + $0x208] sm:$0xff]
      %v1157 = vld [vmem:[#allocation3 + $0x210] sm:$0xff]
      %v1158 = vld [vmem:[#allocation3 + $0x218] sm:$0xff]
      %v1159 = vld [vmem:[#allocation3 + $0x220] sm:$0xff]
      %v1160 = vld [vmem:[#allocation3 + $0x228] sm:$0xff]
      %v1161 = vld [vmem:[#allocation3 + $0x230] sm:$0xff]
      %v1162 = vld [vmem:[#allocation3 + $0x238] sm:$0xff]
      %v1163 = vld [vmem:[#allocation3 + $0x240] sm:$0xff]
      %v1164 = vld [vmem:[#allocation3 + $0x248] sm:$0xff]
      %v1165 = vld [vmem:[#allocation3 + $0x250] sm:$0xff]
      %v1166 = vld [vmem:[#allocation3 + $0x258] sm:$0xff]
      %v1167 = vld [vmem:[#allocation3 + $0x260] sm:$0xff]
      %v1168 = vld [vmem:[#allocation3 + $0x268] sm:$0xff]
      %v1169 = vld [vmem:[#allocation3 + $0x270] sm:$0xff]
      %v1170 = vld [vmem:[#allocation3 + $0x278] sm:$0xff]
      %v1171 = vld [vmem:[#allocation3 + $0x280] sm:$0xff]
      %v1172 = vld [vmem:[#allocation3 + $0x288] sm:$0xff]
      %v1173 = vld [vmem:[#allocation3 + $0x290] sm:$0xff]
      %v1174 = vld [vmem:[#allocation3 + $0x298] sm:$0xff]
      %v1175 = vld [vmem:[#allocation3 + $0x2a0] sm:$0xff]
      %v1176 = vld [vmem:[#allocation3 + $0x2a8] sm:$0xff]
      %v1177 = vld [vmem:[#allocation3 + $0x2b0] sm:$0xff]
      %v1178 = vld [vmem:[#allocation3 + $0x2b8] sm:$0xff]
      %v1179 = vld [vmem:[#allocation3 + $0x2c0] sm:$0xff]
      %v1180 = vld [vmem:[#allocation3 + $0x2c8] sm:$0xff]
      %v1181 = vld [vmem:[#allocation3 + $0x2d0] sm:$0xff]
      %v1182 = vld [vmem:[#allocation3 + $0x2d8] sm:$0xff]
      %v1183 = vld [vmem:[#allocation3 + $0x2e0] sm:$0xff]
      %v1184 = vld [vmem:[#allocation3 + $0x2e8] sm:$0xff]
      %v1185 = vld [vmem:[#allocation3 + $0x2f0] sm:$0xff]
      %v1186 = vld [vmem:[#allocation3 + $0x2f8] sm:$0xff]
      %v1187 = vld [vmem:[#allocation3 + $0x300] sm:$0xff]
      %v1188 = vld [vmem:[#allocation3 + $0x308] sm:$0xff]
      %v1189 = vld [vmem:[#allocation3 + $0x310] sm:$0xff]
      %v1190 = vld [vmem:[#allocation3 + $0x318] sm:$0xff]
      %v1191 = vld [vmem:[#allocation3 + $0x320] sm:$0xff]
      %v1192 = vld [vmem:[#allocation3 + $0x328] sm:$0xff]
      %v1193 = vld [vmem:[#allocation3 + $0x330] sm:$0xff]
      %v1194 = vld [vmem:[#allocation3 + $0x338] sm:$0xff]
      %v1195 = vld [vmem:[#allocation3 + $0x340] sm:$0xff]
      %v1196 = vld [vmem:[#allocation3 + $0x348] sm:$0xff]
      %v1197 = vld [vmem:[#allocation3 + $0x350] sm:$0xff]
      %v1198 = vld [vmem:[#allocation3 + $0x358] sm:$0xff]
      %v1199 = vld [vmem:[#allocation3 + $0x360] sm:$0xff]
      %v1200 = vld [vmem:[#allocation3 + $0x368] sm:$0xff]
      %v1201 = vld [vmem:[#allocation3 + $0x370] sm:$0xff]
      %v1202 = vld [vmem:[#allocation3 + $0x378] sm:$0xff]
      %v1203 = vld [vmem:[#allocation3 + $0x380] sm:$0xff]
      %v1204 = vld [vmem:[#allocation3 + $0x388] sm:$0xff]
      %v1205 = vld [vmem:[#allocation3 + $0x390] sm:$0xff]
      %v1206 = vld [vmem:[#allocation3 + $0x398] sm:$0xff]
      %v1207 = vld [vmem:[#allocation3 + $0x3a0] sm:$0xff]
      %v1208 = vld [vmem:[#allocation3 + $0x3a8] sm:$0xff]
      %v1209 = vld [vmem:[#allocation3 + $0x3b0] sm:$0xff]
      %v1210 = vld [vmem:[#allocation3 + $0x3b8] sm:$0xff]
      %v1211 = vld [vmem:[#allocation3 + $0x3c0] sm:$0xff]
      %v1212 = vld [vmem:[#allocation3 + $0x3c8] sm:$0xff]
      %v1213 = vld [vmem:[#allocation3 + $0x3d0] sm:$0xff]
      %v1214 = vld [vmem:[#allocation3 + $0x3d8] sm:$0xff]
      %v1215 = vld [vmem:[#allocation3 + $0x3e0] sm:$0xff]
      %v1216 = vld [vmem:[#allocation3 + $0x3e8] sm:$0xff]
      %v1217 = vld [vmem:[#allocation3 + $0x3f0] sm:$0xff]
      %v1218 = vld [vmem:[#allocation3 + $0x3f8] sm:$0xff]
      %v1219 = vld [vmem:[#allocation3 + $0x400] sm:$0xff]
      %v1220 = vld [vmem:[#allocation3 + $0x408] sm:$0xff]
      %v1221 = vld [vmem:[#allocation3 + $0x410] sm:$0xff]
      %v1222 = vld [vmem:[#allocation3 + $0x418] sm:$0xff]
      %v1223 = vld [vmem:[#allocation3 + $0x420] sm:$0xff]
      %v1224 = vld [vmem:[#allocation3 + $0x428] sm:$0xff]
      %v1225 = vld [vmem:[#allocation3 + $0x430] sm:$0xff]
      %v1226 = vld [vmem:[#allocation3 + $0x438] sm:$0xff]
      %v1227 = vld [vmem:[#allocation3 + $0x440] sm:$0xff]
      %v1228 = vld [vmem:[#allocation3 + $0x448] sm:$0xff]
      %v1229 = vld [vmem:[#allocation3 + $0x450] sm:$0xff]
      %v1230 = vld [vmem:[#allocation3 + $0x458] sm:$0xff]
      %v1231 = vld [vmem:[#allocation3 + $0x460] sm:$0xff]
      %v1232 = vld [vmem:[#allocation3 + $0x468] sm:$0xff]
      %v1233 = vld [vmem:[#allocation3 + $0x470] sm:$0xff]
      %v1234 = vld [vmem:[#allocation3 + $0x478] sm:$0xff]
      %v1235 = vld [vmem:[#allocation3 + $0x480] sm:$0xff]
      %v1236 = vld [vmem:[#allocation3 + $0x488] sm:$0xff]
      %v1237 = vld [vmem:[#allocation3 + $0x490] sm:$0xff]
      %v1238 = vld [vmem:[#allocation3 + $0x498] sm:$0xff]
      %v1239 = vld [vmem:[#allocation3 + $0x4a0] sm:$0xff]
      %v1240 = vld [vmem:[#allocation3 + $0x4a8] sm:$0xff]
      %v1241 = vld [vmem:[#allocation3 + $0x4b0] sm:$0xff]
      %v1242 = vld [vmem:[#allocation3 + $0x4b8] sm:$0xff]
      %v1243 = vld [vmem:[#allocation3 + $0x4c0] sm:$0xff]
      %v1244 = vld [vmem:[#allocation3 + $0x4c8] sm:$0xff]
      %v1245 = vld [vmem:[#allocation3 + $0x4d0] sm:$0xff]
      %v1246 = vld [vmem:[#allocation3 + $0x4d8] sm:$0xff]
      %v1247 = vld [vmem:[#allocation3 + $0x4e0] sm:$0xff]
      %v1248 = vld [vmem:[#allocation3 + $0x4e8] sm:$0xff]
      %v1249 = vld [vmem:[#allocation3 + $0x4f0] sm:$0xff]
      %v1250 = vld [vmem:[#allocation3 + $0x4f8] sm:$0xff]
      %v1251 = vld [vmem:[#allocation3 + $0x500] sm:$0xff]
      %v1252 = vld [vmem:[#allocation3 + $0x508] sm:$0xff]
      %v1253 = vld [vmem:[#allocation3 + $0x510] sm:$0xff]
      %v1254 = vld [vmem:[#allocation3 + $0x518] sm:$0xff]
      %v1255 = vld [vmem:[#allocation3 + $0x520] sm:$0xff]
      %v1256 = vld [vmem:[#allocation3 + $0x528] sm:$0xff]
      %v1257 = vld [vmem:[#allocation3 + $0x530] sm:$0xff]
      %v1258 = vld [vmem:[#allocation3 + $0x538] sm:$0xff]
      %v1259 = vld [vmem:[#allocation3 + $0x540] sm:$0xff]
      %v1260 = vld [vmem:[#allocation3 + $0x548] sm:$0xff]
      %v1261 = vld [vmem:[#allocation3 + $0x550] sm:$0xff]
      %v1262 = vld [vmem:[#allocation3 + $0x558] sm:$0xff]
      %v1263 = vld [vmem:[#allocation3 + $0x560] sm:$0xff]
      %v1264 = vld [vmem:[#allocation3 + $0x568] sm:$0xff]
      %v1265 = vld [vmem:[#allocation3 + $0x570] sm:$0xff]
      %v1266 = vld [vmem:[#allocation3 + $0x578] sm:$0xff]
      %v1267 = vld [vmem:[#allocation3 + $0x580] sm:$0xff]
      %v1268 = vld [vmem:[#allocation3 + $0x588] sm:$0xff]
      %v1269 = vld [vmem:[#allocation3 + $0x590] sm:$0xff]
      %v1270 = vld [vmem:[#allocation3 + $0x598] sm:$0xff]
      %v1271 = vld [vmem:[#allocation3 + $0x5a0] sm:$0xff]
      %v1272 = vld [vmem:[#allocation3 + $0x5a8] sm:$0xff]
      %v1273 = vld [vmem:[#allocation3 + $0x5b0] sm:$0xff]
      %v1274 = vld [vmem:[#allocation3 + $0x5b8] sm:$0xff]
      %v1275 = vld [vmem:[#allocation3 + $0x5c0] sm:$0xff]
      %v1276 = vld [vmem:[#allocation3 + $0x5c8] sm:$0xff]
      %v1277 = vld [vmem:[#allocation3 + $0x5d0] sm:$0xff]
      %v1278 = vld [vmem:[#allocation3 + $0x5d8] sm:$0xff]
      %v1279 = vld [vmem:[#allocation3 + $0x5e0] sm:$0xff]
      %v1280 = vld [vmem:[#allocation3 + $0x5e8] sm:$0xff]
      %v1281 = vld [vmem:[#allocation3 + $0x5f0] sm:$0xff]
      %v1282 = vld [vmem:[#allocation3 + $0x5f8] sm:$0xff]
      %v1283 = vld [vmem:[#allocation3 + $0x600] sm:$0xff]
      %v1284 = vld [vmem:[#allocation3 + $0x608] sm:$0xff]
      %v1285 = vld [vmem:[#allocation3 + $0x610] sm:$0xff]
      %v1286 = vld [vmem:[#allocation3 + $0x618] sm:$0xff]
      %v1287 = vld [vmem:[#allocation3 + $0x620] sm:$0xff]
      %v1288 = vld [vmem:[#allocation3 + $0x628] sm:$0xff]
      %v1289 = vld [vmem:[#allocation3 + $0x630] sm:$0xff]
      %v1290 = vld [vmem:[#allocation3 + $0x638] sm:$0xff]
      %v1291 = vld [vmem:[#allocation3 + $0x640] sm:$0xff]
      %v1292 = vld [vmem:[#allocation3 + $0x648] sm:$0xff]
      %v1293 = vld [vmem:[#allocation3 + $0x650] sm:$0xff]
      %v1294 = vld [vmem:[#allocation3 + $0x658] sm:$0xff]
      %v1295 = vld [vmem:[#allocation3 + $0x660] sm:$0xff]
      %v1296 = vld [vmem:[#allocation3 + $0x668] sm:$0xff]
      %v1297 = vld [vmem:[#allocation3 + $0x670] sm:$0xff]
      %v1298 = vld [vmem:[#allocation3 + $0x678] sm:$0xff]
      %v1299 = vld [vmem:[#allocation3 + $0x680] sm:$0xff]
      %v1300 = vld [vmem:[#allocation3 + $0x688] sm:$0xff]
      %v1301 = vld [vmem:[#allocation3 + $0x690] sm:$0xff]
      %v1302 = vld [vmem:[#allocation3 + $0x698] sm:$0xff]
      %v1303 = vld [vmem:[#allocation3 + $0x6a0] sm:$0xff]
      %v1304 = vld [vmem:[#allocation3 + $0x6a8] sm:$0xff]
      %v1305 = vld [vmem:[#allocation3 + $0x6b0] sm:$0xff]
      %v1306 = vld [vmem:[#allocation3 + $0x6b8] sm:$0xff]
      %v1307 = vld [vmem:[#allocation3 + $0x6c0] sm:$0xff]
      %v1308 = vld [vmem:[#allocation3 + $0x6c8] sm:$0xff]
      %v1309 = vld [vmem:[#allocation3 + $0x6d0] sm:$0xff]
      %v1310 = vld [vmem:[#allocation3 + $0x6d8] sm:$0xff]
      %v1311 = vld [vmem:[#allocation3 + $0x6e0] sm:$0xff]
      %v1312 = vld [vmem:[#allocation3 + $0x6e8] sm:$0xff]
      %v1313 = vld [vmem:[#allocation3 + $0x6f0] sm:$0xff]
      %v1314 = vld [vmem:[#allocation3 + $0x6f8] sm:$0xff]
      %v1315 = vld [vmem:[#allocation3 + $0x700] sm:$0xff]
      %v1316 = vld [vmem:[#allocation3 + $0x708] sm:$0xff]
      %v1317 = vld [vmem:[#allocation3 + $0x710] sm:$0xff]
      %v1318 = vld [vmem:[#allocation3 + $0x718] sm:$0xff]
      %v1319 = vld [vmem:[#allocation3 + $0x720] sm:$0xff]
      %v1320 = vld [vmem:[#allocation3 + $0x728] sm:$0xff]
      %v1321 = vld [vmem:[#allocation3 + $0x730] sm:$0xff]
      %v1322 = vld [vmem:[#allocation3 + $0x738] sm:$0xff]
      %v1323 = vld [vmem:[#allocation3 + $0x740] sm:$0xff]
      %v1324 = vld [vmem:[#allocation3 + $0x748] sm:$0xff]
      %v1325 = vld [vmem:[#allocation3 + $0x750] sm:$0xff]
      %v1326 = vld [vmem:[#allocation3 + $0x758] sm:$0xff]
      %v1327 = vld [vmem:[#allocation3 + $0x760] sm:$0xff]
      %v1328 = vld [vmem:[#allocation3 + $0x768] sm:$0xff]
      %v1329 = vld [vmem:[#allocation3 + $0x770] sm:$0xff]
      %v1330 = vld [vmem:[#allocation3 + $0x778] sm:$0xff]
      %v1331 = vld [vmem:[#allocation3 + $0x780] sm:$0xff]
      %v1332 = vld [vmem:[#allocation3 + $0x788] sm:$0xff]
      %v1333 = vld [vmem:[#allocation3 + $0x790] sm:$0xff]
      %v1334 = vld [vmem:[#allocation3 + $0x798] sm:$0xff]
      %v1335 = vld [vmem:[#allocation3 + $0x7a0] sm:$0xff]
      %v1336 = vld [vmem:[#allocation3 + $0x7a8] sm:$0xff]
      %v1337 = vld [vmem:[#allocation3 + $0x7b0] sm:$0xff]
      %v1338 = vld [vmem:[#allocation3 + $0x7b8] sm:$0xff]
      %v1339 = vld [vmem:[#allocation3 + $0x7c0] sm:$0xff]
      %v1340 = vld [vmem:[#allocation3 + $0x7c8] sm:$0xff]
      %v1341 = vld [vmem:[#allocation3 + $0x7d0] sm:$0xff]
      %v1342 = vld [vmem:[#allocation3 + $0x7d8] sm:$0xff]
      %v1343 = vld [vmem:[#allocation3 + $0x7e0] sm:$0xff]
      %v1344 = vld [vmem:[#allocation3 + $0x7e8] sm:$0xff]
      %v1345 = vld [vmem:[#allocation3 + $0x7f0] sm:$0xff]
      %v1346 = vld [vmem:[#allocation3 + $0x7f8] sm:$0xff]
      %v1347 = vld [vmem:[#allocation3 + $0x800] sm:$0xff]
      %v1348 = vld [vmem:[#allocation3 + $0x808] sm:$0xff]
      %v1349 = vld [vmem:[#allocation3 + $0x810] sm:$0xff]
      %v1350 = vld [vmem:[#allocation3 + $0x818] sm:$0xff]
      %v1351 = vld [vmem:[#allocation3 + $0x820] sm:$0xff]
      %v1352 = vld [vmem:[#allocation3 + $0x828] sm:$0xff]
      %v1353 = vld [vmem:[#allocation3 + $0x830] sm:$0xff]
      %v1354 = vld [vmem:[#allocation3 + $0x838] sm:$0xff]
      %v1355 = vld [vmem:[#allocation3 + $0x840] sm:$0xff]
      %v1356 = vld [vmem:[#allocation3 + $0x848] sm:$0xff]
      %v1357 = vld [vmem:[#allocation3 + $0x850] sm:$0xff]
      %v1358 = vld [vmem:[#allocation3 + $0x858] sm:$0xff]
      %v1359 = vld [vmem:[#allocation3 + $0x860] sm:$0xff]
      %v1360 = vld [vmem:[#allocation3 + $0x868] sm:$0xff]
      %v1361 = vld [vmem:[#allocation3 + $0x870] sm:$0xff]
      %v1362 = vld [vmem:[#allocation3 + $0x878] sm:$0xff]
      %v1363 = vld [vmem:[#allocation3 + $0x880] sm:$0xff]
      %v1364 = vld [vmem:[#allocation3 + $0x888] sm:$0xff]
      %v1365 = vld [vmem:[#allocation3 + $0x890] sm:$0xff]
      %v1366 = vld [vmem:[#allocation3 + $0x898] sm:$0xff]
      %v1367 = vld [vmem:[#allocation3 + $0x8a0] sm:$0xff]
      %v1368 = vld [vmem:[#allocation3 + $0x8a8] sm:$0xff]
      %v1369 = vld [vmem:[#allocation3 + $0x8b0] sm:$0xff]
      %v1370 = vld [vmem:[#allocation3 + $0x8b8] sm:$0xff]
      %v1371 = vld [vmem:[#allocation3 + $0x8c0] sm:$0xff]
      %v1372 = vld [vmem:[#allocation3 + $0x8c8] sm:$0xff]
      %v1373 = vld [vmem:[#allocation3 + $0x8d0] sm:$0xff]
      %v1374 = vld [vmem:[#allocation3 + $0x8d8] sm:$0xff]
      %v1375 = vld [vmem:[#allocation3 + $0x8e0] sm:$0xff]
      %v1376 = vld [vmem:[#allocation3 + $0x8e8] sm:$0xff]
      %v1377 = vld [vmem:[#allocation3 + $0x8f0] sm:$0xff]
      %v1378 = vld [vmem:[#allocation3 + $0x8f8] sm:$0xff]
      %v1379 = vld [vmem:[%s3] sm:$0xff]
      %v1380 = vld [vmem:[%s3 + $0x8] sm:$0xff]
      %v1381 = vld [vmem:[%s3 + $0x10] sm:$0xff]
      %v1382 = vld [vmem:[%s3 + $0x18] sm:$0xff]
      %v1383 = vld [vmem:[%s3 + $0x20] sm:$0xff]
      %v1384 = vld [vmem:[%s3 + $0x28] sm:$0xff]
      %v1385 = vld [vmem:[%s3 + $0x30] sm:$0xff]
      %v1386 = vld [vmem:[%s3 + $0x38] sm:$0xff]
      %v1387 = vld [vmem:[%s3 + $0x40] sm:$0xff]
      %v1388 = vld [vmem:[%s3 + $0x48] sm:$0xff]
      %v1389 = vld [vmem:[%s3 + $0x50] sm:$0xff]
      %v1390 = vld [vmem:[%s3 + $0x58] sm:$0xff]
      %v1391 = vld [vmem:[%s3 + $0x60] sm:$0xff]
      %v1392 = vld [vmem:[%s3 + $0x68] sm:$0xff]
      %v1393 = vld [vmem:[%s3 + $0x70] sm:$0xff]
      %v1394 = vld [vmem:[%s3 + $0x78] sm:$0xff]
      %v1395 = vld [vmem:[%s3 + $0x80] sm:$0xff]
      %v1396 = vld [vmem:[%s3 + $0x88] sm:$0xff]
      %v1397 = vld [vmem:[%s3 + $0x90] sm:$0xff]
      %v1398 = vld [vmem:[%s3 + $0x98] sm:$0xff]
      %v1399 = vld [vmem:[%s3 + $0xa0] sm:$0xff]
      %v1400 = vld [vmem:[%s3 + $0xa8] sm:$0xff]
      %v1401 = vld [vmem:[%s3 + $0xb0] sm:$0xff]
      %v1402 = vld [vmem:[%s3 + $0xb8] sm:$0xff]
      %v1403 = vld [vmem:[%s3 + $0xc0] sm:$0xff]
      %v1404 = vld [vmem:[%s3 + $0xc8] sm:$0xff]
      %v1405 = vld [vmem:[%s3 + $0xd0] sm:$0xff]
      %v1406 = vld [vmem:[%s3 + $0xd8] sm:$0xff]
      %v1407 = vld [vmem:[%s3 + $0xe0] sm:$0xff]
      %v1408 = vld [vmem:[%s3 + $0xe8] sm:$0xff]
      %v1409 = vld [vmem:[%s3 + $0xf0] sm:$0xff]
      %v1410 = vld [vmem:[%s3 + $0xf8] sm:$0xff]
      %v1411 = vld [vmem:[%s3 + $0x100] sm:$0xff]
      %v1412 = vld [vmem:[%s3 + $0x108] sm:$0xff]
      %v1413 = vld [vmem:[%s3 + $0x110] sm:$0xff]
      %v1414 = vld [vmem:[%s3 + $0x118] sm:$0xff]
      %v1415 = vld [vmem:[%s3 + $0x120] sm:$0xff]
      %v1416 = vld [vmem:[%s3 + $0x128] sm:$0xff]
      %v1417 = vld [vmem:[%s3 + $0x130] sm:$0xff]
      %v1418 = vld [vmem:[%s3 + $0x138] sm:$0xff]
      %v1419 = vld [vmem:[%s3 + $0x140] sm:$0xff]
      %v1420 = vld [vmem:[%s3 + $0x148] sm:$0xff]
      %v1421 = vld [vmem:[%s3 + $0x150] sm:$0xff]
      %v1422 = vld [vmem:[%s3 + $0x158] sm:$0xff]
      %v1423 = vld [vmem:[%s3 + $0x160] sm:$0xff]
      %v1424 = vld [vmem:[%s3 + $0x168] sm:$0xff]
      %v1425 = vld [vmem:[%s3 + $0x170] sm:$0xff]
      %v1426 = vld [vmem:[%s3 + $0x178] sm:$0xff]
      %v1427 = vld [vmem:[%s3 + $0x180] sm:$0xff]
      %v1428 = vld [vmem:[%s3 + $0x188] sm:$0xff]
      %v1429 = vld [vmem:[%s3 + $0x190] sm:$0xff]
      %v1430 = vld [vmem:[%s3 + $0x198] sm:$0xff]
      %v1431 = vld [vmem:[%s3 + $0x1a0] sm:$0xff]
      %v1432 = vld [vmem:[%s3 + $0x1a8] sm:$0xff]
      %v1433 = vld [vmem:[%s3 + $0x1b0] sm:$0xff]
      %v1434 = vld [vmem:[%s3 + $0x1b8] sm:$0xff]
      %v1435 = vld [vmem:[%s3 + $0x1c0] sm:$0xff]
      %v1436 = vld [vmem:[%s3 + $0x1c8] sm:$0xff]
      %v1437 = vld [vmem:[%s3 + $0x1d0] sm:$0xff]
      %v1438 = vld [vmem:[%s3 + $0x1d8] sm:$0xff]
      %v1439 = vld [vmem:[%s3 + $0x1e0] sm:$0xff]
      %v1440 = vld [vmem:[%s3 + $0x1e8] sm:$0xff]
      %v1441 = vld [vmem:[%s3 + $0x1f0] sm:$0xff]
      %v1442 = vld [vmem:[%s3 + $0x1f8] sm:$0xff]
      %v1443 = vld [vmem:[%s3 + $0x200] sm:$0xff]
      %v1444 = vld [vmem:[%s3 + $0x208] sm:$0xff]
      %v1445 = vld [vmem:[%s3 + $0x210] sm:$0xff]
      %v1446 = vld [vmem:[%s3 + $0x218] sm:$0xff]
      %v1447 = vld [vmem:[%s3 + $0x220] sm:$0xff]
      %v1448 = vld [vmem:[%s3 + $0x228] sm:$0xff]
      %v1449 = vld [vmem:[%s3 + $0x230] sm:$0xff]
      %v1450 = vld [vmem:[%s3 + $0x238] sm:$0xff]
      %v1451 = vld [vmem:[%s3 + $0x240] sm:$0xff]
      %v1452 = vld [vmem:[%s3 + $0x248] sm:$0xff]
      %v1453 = vld [vmem:[%s3 + $0x250] sm:$0xff]
      %v1454 = vld [vmem:[%s3 + $0x258] sm:$0xff]
      %v1455 = vld [vmem:[%s3 + $0x260] sm:$0xff]
      %v1456 = vld [vmem:[%s3 + $0x268] sm:$0xff]
      %v1457 = vld [vmem:[%s3 + $0x270] sm:$0xff]
      %v1458 = vld [vmem:[%s3 + $0x278] sm:$0xff]
      %v1459 = vld [vmem:[%s3 + $0x280] sm:$0xff]
      %v1460 = vld [vmem:[%s3 + $0x288] sm:$0xff]
      %v1461 = vld [vmem:[%s3 + $0x290] sm:$0xff]
      %v1462 = vld [vmem:[%s3 + $0x298] sm:$0xff]
      %v1463 = vld [vmem:[%s3 + $0x2a0] sm:$0xff]
      %v1464 = vld [vmem:[%s3 + $0x2a8] sm:$0xff]
      %v1465 = vld [vmem:[%s3 + $0x2b0] sm:$0xff]
      %v1466 = vld [vmem:[%s3 + $0x2b8] sm:$0xff]
      %v1467 = vld [vmem:[%s3 + $0x2c0] sm:$0xff]
      %v1468 = vld [vmem:[%s3 + $0x2c8] sm:$0xff]
      %v1469 = vld [vmem:[%s3 + $0x2d0] sm:$0xff]
      %v1470 = vld [vmem:[%s3 + $0x2d8] sm:$0xff]
      %v1471 = vld [vmem:[%s3 + $0x2e0] sm:$0xff]
      %v1472 = vld [vmem:[%s3 + $0x2e8] sm:$0xff]
      %v1473 = vld [vmem:[%s3 + $0x2f0] sm:$0xff]
      %v1474 = vld [vmem:[%s3 + $0x2f8] sm:$0xff]
      %v1475 = vld [vmem:[%s3 + $0x300] sm:$0xff]
      %v1476 = vld [vmem:[%s3 + $0x308] sm:$0xff]
      %v1477 = vld [vmem:[%s3 + $0x310] sm:$0xff]
      %v1478 = vld [vmem:[%s3 + $0x318] sm:$0xff]
      %v1479 = vld [vmem:[%s3 + $0x320] sm:$0xff]
      %v1480 = vld [vmem:[%s3 + $0x328] sm:$0xff]
      %v1481 = vld [vmem:[%s3 + $0x330] sm:$0xff]
      %v1482 = vld [vmem:[%s3 + $0x338] sm:$0xff]
      %v1483 = vld [vmem:[%s3 + $0x340] sm:$0xff]
      %v1484 = vld [vmem:[%s3 + $0x348] sm:$0xff]
      %v1485 = vld [vmem:[%s3 + $0x350] sm:$0xff]
      %v1486 = vld [vmem:[%s3 + $0x358] sm:$0xff]
      %v1487 = vld [vmem:[%s3 + $0x360] sm:$0xff]
      %v1488 = vld [vmem:[%s3 + $0x368] sm:$0xff]
      %v1489 = vld [vmem:[%s3 + $0x370] sm:$0xff]
      %v1490 = vld [vmem:[%s3 + $0x378] sm:$0xff]
      %v1491 = vld [vmem:[%s3 + $0x380] sm:$0xff]
      %v1492 = vld [vmem:[%s3 + $0x388] sm:$0xff]
      %v1493 = vld [vmem:[%s3 + $0x390] sm:$0xff]
      %v1494 = vld [vmem:[%s3 + $0x398] sm:$0xff]
      %v1495 = vld [vmem:[%s3 + $0x3a0] sm:$0xff]
      %v1496 = vld [vmem:[%s3 + $0x3a8] sm:$0xff]
      %v1497 = vld [vmem:[%s3 + $0x3b0] sm:$0xff]
      %v1498 = vld [vmem:[%s3 + $0x3b8] sm:$0xff]
      %v1499 = vld [vmem:[%s3 + $0x3c0] sm:$0xff]
      %v1500 = vld [vmem:[%s3 + $0x3c8] sm:$0xff]
      %v1501 = vld [vmem:[%s3 + $0x3d0] sm:$0xff]
      %v1502 = vld [vmem:[%s3 + $0x3d8] sm:$0xff]
      %v1503 = vld [vmem:[%s3 + $0x3e0] sm:$0xff]
      %v1504 = vld [vmem:[%s3 + $0x3e8] sm:$0xff]
      %v1505 = vld [vmem:[%s3 + $0x3f0] sm:$0xff]
      %v1506 = vld [vmem:[%s3 + $0x3f8] sm:$0xff]
      %v1507 = vld [vmem:[%s3 + $0x400] sm:$0xff]
      %v1508 = vld [vmem:[%s3 + $0x408] sm:$0xff]
      %v1509 = vld [vmem:[%s3 + $0x410] sm:$0xff]
      %v1510 = vld [vmem:[%s3 + $0x418] sm:$0xff]
      %v1511 = vld [vmem:[%s3 + $0x420] sm:$0xff]
      %v1512 = vld [vmem:[%s3 + $0x428] sm:$0xff]
      %v1513 = vld [vmem:[%s3 + $0x430] sm:$0xff]
      %v1514 = vld [vmem:[%s3 + $0x438] sm:$0xff]
      %v1515 = vld [vmem:[%s3 + $0x440] sm:$0xff]
      %v1516 = vld [vmem:[%s3 + $0x448] sm:$0xff]
      %v1517 = vld [vmem:[%s3 + $0x450] sm:$0xff]
      %v1518 = vld [vmem:[%s3 + $0x458] sm:$0xff]
      %v1519 = vld [vmem:[%s3 + $0x460] sm:$0xff]
      %v1520 = vld [vmem:[%s3 + $0x468] sm:$0xff]
      %v1521 = vld [vmem:[%s3 + $0x470] sm:$0xff]
      %v1522 = vld [vmem:[%s3 + $0x478] sm:$0xff]
      %v1523 = vld [vmem:[%s4] sm:$0x1]
      %v1525 = vlaneseq
      %v1526 = vshrl.u32 %v1525, 7
      %v1527 = vsub.s32 0, %v1526
      %v1528 = vrot.slane %v1523, %v1527
      %1530 = vmatprep.subr.mxu0 0.0
      %1531 = vmatpush1.msra.mxu0 %v1379
      %1532 = vmatprep.subr.mxu0 0.0
      %1533 = vmatpush1.msra.mxu0 %v1380
      %1534 = vmatprep.subr.mxu0 0.0
      %1535 = vmatpush1.msra.mxu0 %v1381
      %1536 = vmatprep.subr.mxu0 0.0
      %1537 = vmatpush1.msra.mxu0 %v1382
      %1538 = vmatprep.subr.mxu0 0.0
      %1539 = vmatpush1.msra.mxu0 %v1383
      %1540 = vmatprep.subr.mxu0 0.0
      %1541 = vmatpush1.msra.mxu0 %v1384
      %1542 = vmatprep.subr.mxu0 0.0
      %1543 = vmatpush1.msra.mxu0 %v1385
      %1544 = vmatprep.subr.mxu0 0.0
      %1545 = vmatpush1.msra.mxu0 %v1386
      %1546 = vmatprep.subr.mxu0 0.0
      %1547 = vmatpush1.msra.mxu0 %v1387
      %1548 = vmatprep.subr.mxu0 0.0
      %1549 = vmatpush1.msra.mxu0 %v1388
      %1550 = vmatprep.subr.mxu0 0.0
      %1551 = vmatpush1.msra.mxu0 %v1389
      %1552 = vmatprep.subr.mxu0 0.0
      %1553 = vmatpush1.msra.mxu0 %v1390
      %1554 = vmatprep.subr.mxu0 0.0
      %1555 = vmatpush1.msra.mxu0 %v1391
      %1556 = vmatprep.subr.mxu0 0.0
      %1557 = vmatpush1.msra.mxu0 %v1392
      %1558 = vmatprep.subr.mxu0 0.0
      %1559 = vmatpush1.msra.mxu0 %v1393
      %1560 = vmatprep.subr.mxu0 0.0
      %1561 = vmatpush1.msra.mxu0 %v1394
      %1562 = vmatprep.subr.mxu0 0.0
      %1563 = vmatpush1.msra.mxu0 %v1395
      %1564 = vmatprep.subr.mxu0 0.0
      %1565 = vmatpush1.msra.mxu0 %v1396
      %1566 = vmatprep.subr.mxu0 0.0
      %1567 = vmatpush1.msra.mxu0 %v1397
      %1568 = vmatprep.subr.mxu0 0.0
      %1569 = vmatpush1.msra.mxu0 %v1398
      %1570 = vmatprep.subr.mxu0 0.0
      %1571 = vmatpush1.msra.mxu0 %v1399
      %1572 = vmatprep.subr.mxu0 0.0
      %1573 = vmatpush1.msra.mxu0 %v1400
      %1574 = vmatprep.subr.mxu0 0.0
      %1575 = vmatpush1.msra.mxu0 %v1401
      %1576 = vmatprep.subr.mxu0 0.0
      %1577 = vmatpush1.msra.mxu0 %v1402
      %1578 = vmatprep.subr.mxu0 0.0
      %1579 = vmatpush1.msra.mxu0 %v1403
      %1580 = vmatprep.subr.mxu0 0.0
      %1581 = vmatpush1.msra.mxu0 %v1404
      %1582 = vmatprep.subr.mxu0 0.0
      %1583 = vmatpush1.msra.mxu0 %v1405
      %1584 = vmatprep.subr.mxu0 0.0
      %1585 = vmatpush1.msra.mxu0 %v1406
      %1586 = vmatprep.subr.mxu0 0.0
      %1587 = vmatpush1.msra.mxu0 %v1407
      %1588 = vmatprep.subr.mxu0 0.0
      %1589 = vmatpush1.msra.mxu0 %v1408
      %1590 = vmatprep.subr.mxu0 0.0
      %1591 = vmatpush1.msra.mxu0 %v1409
      %1592 = vmatprep.subr.mxu0 0.0
      %1593 = vmatpush1.msra.mxu0 %v1410
      %1594 = vmatprep.mubr.f32.mxu0 %v1092
      %1595 = vmatmul.mubr.f32.gmra.mrb[0].mxu0 %v1091
      %v1596 = vpop.f32.mrb[0].mxu0
      %v1597 = vadd.f32 %v1528, %v1596
      %v1598 = vpop.f32.mrb[0].mxu0
      %1599 = vmatprep.mubr.f32.mxu0 %v1101
      %1600 = vmatmul.mubr.f32.gmra.mrb[0].mxu0 %v1100
      %v1601 = vpop.f32.mrb[0].mxu0
      %v1602 = vadd.f32 %v1528, %v1601
      %v1603 = vpop.f32.mrb[0].mxu0
      %1604 = vmatprep.mubr.f32.mxu0 %v1110
      %1605 = vmatmul.mubr.f32.gmra.mrb[0].mxu0 %v1109
      %v1606 = vpop.f32.mrb[0].mxu0
      %v1607 = vadd.f32 %v1528, %v1606
      %v1608 = vpop.f32.mrb[0].mxu0
      %1609 = vmatprep.mubr.f32.mxu0 %v1119
      %1610 = vmatmul.mubr.f32.gmra.mrb[0].mxu0 %v1118
      %v1611 = vpop.f32.mrb[0].mxu0
      %v1612 = vadd.f32 %v1528, %v1611
      %v1613 = vpop.f32.mrb[0].mxu0
      %1614 = vmatprep.mubr.f32.mxu0 %v1128
      %1615 = vmatmul.mubr.f32.gmra.mrb[0].mxu0 %v1127
      %v1616 = vpop.f32.mrb[0].mxu0
      %v1617 = vadd.f32 %v1528, %v1616
      %v1618 = vpop.f32.mrb[0].mxu0
      %1619 = vmatprep.mubr.f32.mxu0 %v1137
      %1620 = vmatmul.mubr.f32.gmra.mrb[0].mxu0 %v1136
      %v1621 = vpop.f32.mrb[0].mxu0
      %v1622 = vadd.f32 %v1528, %v1621
      %v1623 = vpop.f32.mrb[0].mxu0
      %1624 = vmatprep.mubr.f32.mxu0 %v1146
      %1625 = vmatmul.mubr.f32.gmra.mrb[0].mxu0 %v1145
      %v1626 = vpop.f32.mrb[0].mxu0
      %v1627 = vadd.f32 %v1528, %v1626
      %v1628 = vpop.f32.mrb[0].mxu0
      %1629 = vmatprep.mubr.f32.mxu0 %v1155
      %1630 = vmatmul.mubr.f32.gmra.mrb[0].mxu0 %v1154
      %v1631 = vpop.f32.mrb[0].mxu0
      %v1632 = vadd.f32 %v1528, %v1631
      %v1633 = vpop.f32.mrb[0].mxu0
      %1634 = vmatprep.mubr.f32.mxu0 %v1164
      %1635 = vmatmul.mubr.f32.gmra.mrb[0].mxu0 %v1163
      %v1636 = vpop.f32.mrb[0].mxu0
      %v1637 = vadd.f32 %v1528, %v1636
      %v1638 = vpop.f32.mrb[0].mxu0
      %1639 = vmatprep.mubr.f32.mxu0 %v1173
      %1640 = vmatmul.mubr.f32.gmra.mrb[0].mxu0 %v1172
      %v1641 = vpop.f32.mrb[0].mxu0
      %v1642 = vadd.f32 %v1528, %v1641
      %v1643 = vpop.f32.mrb[0].mxu0
      %1644 = vmatprep.mubr.f32.mxu0 %v1182
      %1645 = vmatmul.mubr.f32.gmra.mrb[0].mxu0 %v1181
      %v1646 = vpop.f32.mrb[0].mxu0
      %v1647 = vadd.f32 %v1528, %v1646
      %v1648 = vpop.f32.mrb[0].mxu0
      %1649 = vmatprep.mubr.f32.mxu0 %v1191
      %1650 = vmatmul.mubr.f32.gmra.mrb[0].mxu0 %v1190
      %v1651 = vpop.f32.mrb[0].mxu0
      %v1652 = vadd.f32 %v1528, %v1651
      %v1653 = vpop.f32.mrb[0].mxu0
      %1654 = vmatprep.mubr.f32.mxu0 %v1200
      %1655 = vmatmul.mubr.f32.gmra.mrb[0].mxu0 %v1199
      %v1656 = vpop.f32.mrb[0].mxu0
      %v1657 = vadd.f32 %v1528, %v1656
      %v1658 = vpop.f32.mrb[0].mxu0
      %1659 = vmatprep.mubr.f32.mxu0 %v1209
      %1660 = vmatmul.mubr.f32.gmra.mrb[0].mxu0 %v1208
      %v1661 = vpop.f32.mrb[0].mxu0
      %v1662 = vadd.f32 %v1528, %v1661
      %v1663 = vpop.f32.mrb[0].mxu0
      %1664 = vmatprep.mubr.f32.mxu0 %v1218
      %1665 = vmatmul.mubr.f32.gmra.mrb[0].mxu0 %v1217
      %v1666 = vpop.f32.mrb[0].mxu0
      %v1667 = vadd.f32 %v1528, %v1666
      %v1668 = vpop.f32.mrb[0].mxu0
      %1669 = vmatprep.mubr.f32.mxu0 %v1227
      %1670 = vmatmul.mubr.f32.gmra.mrb[0].mxu0 %v1226
      %v1671 = vpop.f32.mrb[0].mxu0
      %v1672 = vadd.f32 %v1528, %v1671
      %v1673 = vpop.f32.mrb[0].mxu0
      %1674 = vmatprep.mubr.f32.mxu0 %v1236
      %1675 = vmatmul.mubr.f32.gmra.mrb[0].mxu0 %v1235
      %v1676 = vpop.f32.mrb[0].mxu0
      %v1677 = vadd.f32 %v1528, %v1676
      %v1678 = vpop.f32.mrb[0].mxu0
      %1679 = vmatprep.mubr.f32.mxu0 %v1245
      %1680 = vmatmul.mubr.f32.gmra.mrb[0].mxu0 %v1244
      %v1681 = vpop.f32.mrb[0].mxu0
      %v1682 = vadd.f32 %v1528, %v1681
      %v1683 = vpop.f32.mrb[0].mxu0
      %1684 = vmatprep.mubr.f32.mxu0 %v1254
      %1685 = vmatmul.mubr.f32.gmra.mrb[0].mxu0 %v1253
      %v1686 = vpop.f32.mrb[0].mxu0
      %v1687 = vadd.f32 %v1528, %v1686
      %v1688 = vpop.f32.mrb[0].mxu0
      %1689 = vmatprep.mubr.f32.mxu0 %v1263
      %1690 = vmatmul.mubr.f32.gmra.mrb[0].mxu0 %v1262
      %v1691 = vpop.f32.mrb[0].mxu0
      %v1692 = vadd.f32 %v1528, %v1691
      %v1693 = vpop.f32.mrb[0].mxu0
      %1694 = vmatprep.mubr.f32.mxu0 %v1272
      %1695 = vmatmul.mubr.f32.gmra.mrb[0].mxu0 %v1271
      %v1696 = vpop.f32.mrb[0].mxu0
      %v1697 = vadd.f32 %v1528, %v1696
      %v1698 = vpop.f32.mrb[0].mxu0
      %1699 = vmatprep.mubr.f32.mxu0 %v1281
      %1700 = vmatmul.mubr.f32.gmra.mrb[0].mxu0 %v1280
      %v1701 = vpop.f32.mrb[0].mxu0
      %v1702 = vadd.f32 %v1528, %v1701
      %v1703 = vpop.f32.mrb[0].mxu0
      %1704 = vmatprep.mubr.f32.mxu0 %v1290
      %1705 = vmatmul.mubr.f32.gmra.mrb[0].mxu0 %v1289
      %v1706 = vpop.f32.mrb[0].mxu0
      %v1707 = vadd.f32 %v1528, %v1706
      %v1708 = vpop.f32.mrb[0].mxu0
      %1709 = vmatprep.mubr.f32.mxu0 %v1299
      %1710 = vmatmul.mubr.f32.gmra.mrb[0].mxu0 %v1298
      %v1711 = vpop.f32.mrb[0].mxu0
      %v1712 = vadd.f32 %v1528, %v1711
      %v1713 = vpop.f32.mrb[0].mxu0
      %1714 = vmatprep.mubr.f32.mxu0 %v1308
      %1715 = vmatmul.mubr.f32.gmra.mrb[0].mxu0 %v1307
      %v1716 = vpop.f32.mrb[0].mxu0
      %v1717 = vadd.f32 %v1528, %v1716
      %v1718 = vpop.f32.mrb[0].mxu0
      %1719 = vmatprep.mubr.f32.mxu0 %v1317
      %1720 = vmatmul.mubr.f32.gmra.mrb[0].mxu0 %v1316
      %v1721 = vpop.f32.mrb[0].mxu0
      %v1722 = vadd.f32 %v1528, %v1721
      %v1723 = vpop.f32.mrb[0].mxu0
      %1724 = vmatprep.mubr.f32.mxu0 %v1326
      %1725 = vmatmul.mubr.f32.gmra.mrb[0].mxu0 %v1325
      %v1726 = vpop.f32.mrb[0].mxu0
      %v1727 = vadd.f32 %v1528, %v1726
      %v1728 = vpop.f32.mrb[0].mxu0
      %1729 = vmatprep.mubr.f32.mxu0 %v1335
      %1730 = vmatmul.mubr.f32.gmra.mrb[0].mxu0 %v1334
      %v1731 = vpop.f32.mrb[0].mxu0
      %v1732 = vadd.f32 %v1528, %v1731
      %v1733 = vpop.f32.mrb[0].mxu0
      %1734 = vmatprep.mubr.f32.mxu0 %v1344
      %1735 = vmatmul.mubr.f32.gmra.mrb[0].mxu0 %v1343
      %v1736 = vpop.f32.mrb[0].mxu0
      %v1737 = vadd.f32 %v1528, %v1736
      %v1738 = vpop.f32.mrb[0].mxu0
      %1739 = vmatprep.mubr.f32.mxu0 %v1353
      %1740 = vmatmul.mubr.f32.gmra.mrb[0].mxu0 %v1352
      %v1741 = vpop.f32.mrb[0].mxu0
      %v1742 = vadd.f32 %v1528, %v1741
      %v1743 = vpop.f32.mrb[0].mxu0
      %1744 = vmatprep.mubr.f32.mxu0 %v1362
      %1745 = vmatmul.mubr.f32.gmra.mrb[0].mxu0 %v1361
      %v1746 = vpop.f32.mrb[0].mxu0
      %v1747 = vadd.f32 %v1528, %v1746
      %v1748 = vpop.f32.mrb[0].mxu0
      %1749 = vmatprep.mubr.f32.mxu0 %v1371
      %1750 = vmatmul.mubr.f32.gmra.mrb[0].mxu0 %v1370
      %v1751 = vpop.f32.mrb[0].mxu0
      %v1752 = vadd.f32 %v1528, %v1751
      %v1753 = vpop.f32.mrb[0].mxu0
      %1754 = vdwg.mxu0
      %1755 = vmatprep.subr.mxu0 0.0
      %1756 = vmatpush1.msra.mxu0 %v1411
      %1757 = vmatprep.subr.mxu0 0.0
      %1758 = vmatpush1.msra.mxu0 %v1412
      %1759 = vmatprep.subr.mxu0 0.0
      %1760 = vmatpush1.msra.mxu0 %v1413
      %1761 = vmatprep.subr.mxu0 0.0
      %1762 = vmatpush1.msra.mxu0 %v1414
      %1763 = vmatprep.subr.mxu0 0.0
      %1764 = vmatpush1.msra.mxu0 %v1415
      %1765 = vmatprep.subr.mxu0 0.0
      %1766 = vmatpush1.msra.mxu0 %v1416
      %1767 = vmatprep.subr.mxu0 0.0
      %1768 = vmatpush1.msra.mxu0 %v1417
      %1769 = vmatprep.subr.mxu0 0.0
      %1770 = vmatpush1.msra.mxu0 %v1418
      %1771 = vmatprep.subr.mxu0 0.0
      %1772 = vmatpush1.msra.mxu0 %v1419
      %1773 = vmatprep.subr.mxu0 0.0
      %1774 = vmatpush1.msra.mxu0 %v1420
      %1775 = vmatprep.subr.mxu0 0.0
      %1776 = vmatpush1.msra.mxu0 %v1421
      %1777 = vmatprep.subr.mxu0 0.0
      %1778 = vmatpush1.msra.mxu0 %v1422
      %1779 = vmatprep.subr.mxu0 0.0
      %1780 = vmatpush1.msra.mxu0 %v1423
      %1781 = vmatprep.subr.mxu0 0.0
      %1782 = vmatpush1.msra.mxu0 %v1424
      %1783 = vmatprep.subr.mxu0 0.0
      %1784 = vmatpush1.msra.mxu0 %v1425
      %1785 = vmatprep.subr.mxu0 0.0
      %1786 = vmatpush1.msra.mxu0 %v1426
      %1787 = vmatprep.subr.mxu0 0.0
      %1788 = vmatpush1.msra.mxu0 %v1427
      %1789 = vmatprep.subr.mxu0 0.0
      %1790 = vmatpush1.msra.mxu0 %v1428
      %1791 = vmatprep.subr.mxu0 0.0
      %1792 = vmatpush1.msra.mxu0 %v1429
      %1793 = vmatprep.subr.mxu0 0.0
      %1794 = vmatpush1.msra.mxu0 %v1430
      %1795 = vmatprep.subr.mxu0 0.0
      %1796 = vmatpush1.msra.mxu0 %v1431
      %1797 = vmatprep.subr.mxu0 0.0
      %1798 = vmatpush1.msra.mxu0 %v1432
      %1799 = vmatprep.subr.mxu0 0.0
      %1800 = vmatpush1.msra.mxu0 %v1433
      %1801 = vmatprep.subr.mxu0 0.0
      %1802 = vmatpush1.msra.mxu0 %v1434
      %1803 = vmatprep.subr.mxu0 0.0
      %1804 = vmatpush1.msra.mxu0 %v1435
      %1805 = vmatprep.subr.mxu0 0.0
      %1806 = vmatpush1.msra.mxu0 %v1436
      %1807 = vmatprep.subr.mxu0 0.0
      %1808 = vmatpush1.msra.mxu0 %v1437
      %1809 = vmatprep.subr.mxu0 0.0
      %1810 = vmatpush1.msra.mxu0 %v1438
      %1811 = vmatprep.subr.mxu0 0.0
      %1812 = vmatpush1.msra.mxu0 %v1439
      %1813 = vmatprep.subr.mxu0 0.0
      %1814 = vmatpush1.msra.mxu0 %v1440
      %1815 = vmatprep.subr.mxu0 0.0
      %1816 = vmatpush1.msra.mxu0 %v1441
      %1817 = vmatprep.subr.mxu0 0.0
      %1818 = vmatpush1.msra.mxu0 %v1442
      %1819 = vmatprep.mubr.f32.mxu0 %v1094
      %1820 = vmatmul.mubr.f32.gmra.mrb[0].mxu0 %v1093
      %v1821 = vpop.f32.mrb[0].mxu0
      %v1822 = vadd.f32 %v1597, %v1821
      %v1823 = vpop.f32.mrb[0].mxu0
      %1824 = vmatprep.mubr.f32.mxu0 %v1103
      %1825 = vmatmul.mubr.f32.gmra.mrb[0].mxu0 %v1102
      %v1826 = vpop.f32.mrb[0].mxu0
      %v1827 = vadd.f32 %v1602, %v1826
      %v1828 = vpop.f32.mrb[0].mxu0
      %1829 = vmatprep.mubr.f32.mxu0 %v1112
      %1830 = vmatmul.mubr.f32.gmra.mrb[0].mxu0 %v1111
      %v1831 = vpop.f32.mrb[0].mxu0
      %v1832 = vadd.f32 %v1607, %v1831
      %v1833 = vpop.f32.mrb[0].mxu0
      %1834 = vmatprep.mubr.f32.mxu0 %v1121
      %1835 = vmatmul.mubr.f32.gmra.mrb[0].mxu0 %v1120
      %v1836 = vpop.f32.mrb[0].mxu0
      %v1837 = vadd.f32 %v1612, %v1836
      %v1838 = vpop.f32.mrb[0].mxu0
      %1839 = vmatprep.mubr.f32.mxu0 %v1130
      %1840 = vmatmul.mubr.f32.gmra.mrb[0].mxu0 %v1129
      %v1841 = vpop.f32.mrb[0].mxu0
      %v1842 = vadd.f32 %v1617, %v1841
      %v1843 = vpop.f32.mrb[0].mxu0
      %1844 = vmatprep.mubr.f32.mxu0 %v1139
      %1845 = vmatmul.mubr.f32.gmra.mrb[0].mxu0 %v1138
      %v1846 = vpop.f32.mrb[0].mxu0
      %v1847 = vadd.f32 %v1622, %v1846
      %v1848 = vpop.f32.mrb[0].mxu0
      %1849 = vmatprep.mubr.f32.mxu0 %v1148
      %1850 = vmatmul.mubr.f32.gmra.mrb[0].mxu0 %v1147
      %v1851 = vpop.f32.mrb[0].mxu0
      %v1852 = vadd.f32 %v1627, %v1851
      %v1853 = vpop.f32.mrb[0].mxu0
      %1854 = vmatprep.mubr.f32.mxu0 %v1157
      %1855 = vmatmul.mubr.f32.gmra.mrb[0].mxu0 %v1156
      %v1856 = vpop.f32.mrb[0].mxu0
      %v1857 = vadd.f32 %v1632, %v1856
      %v1858 = vpop.f32.mrb[0].mxu0
      %1859 = vmatprep.mubr.f32.mxu0 %v1166
      %1860 = vmatmul.mubr.f32.gmra.mrb[0].mxu0 %v1165
      %v1861 = vpop.f32.mrb[0].mxu0
      %v1862 = vadd.f32 %v1637, %v1861
      %v1863 = vpop.f32.mrb[0].mxu0
      %1864 = vmatprep.mubr.f32.mxu0 %v1175
      %1865 = vmatmul.mubr.f32.gmra.mrb[0].mxu0 %v1174
      %v1866 = vpop.f32.mrb[0].mxu0
      %v1867 = vadd.f32 %v1642, %v1866
      %v1868 = vpop.f32.mrb[0].mxu0
      %1869 = vmatprep.mubr.f32.mxu0 %v1184
      %1870 = vmatmul.mubr.f32.gmra.mrb[0].mxu0 %v1183
      %v1871 = vpop.f32.mrb[0].mxu0
      %v1872 = vadd.f32 %v1647, %v1871
      %v1873 = vpop.f32.mrb[0].mxu0
      %1874 = vmatprep.mubr.f32.mxu0 %v1193
      %1875 = vmatmul.mubr.f32.gmra.mrb[0].mxu0 %v1192
      %v1876 = vpop.f32.mrb[0].mxu0
      %v1877 = vadd.f32 %v1652, %v1876
      %v1878 = vpop.f32.mrb[0].mxu0
      %1879 = vmatprep.mubr.f32.mxu0 %v1202
      %1880 = vmatmul.mubr.f32.gmra.mrb[0].mxu0 %v1201
      %v1881 = vpop.f32.mrb[0].mxu0
      %v1882 = vadd.f32 %v1657, %v1881
      %v1883 = vpop.f32.mrb[0].mxu0
      %1884 = vmatprep.mubr.f32.mxu0 %v1211
      %1885 = vmatmul.mubr.f32.gmra.mrb[0].mxu0 %v1210
      %v1886 = vpop.f32.mrb[0].mxu0
      %v1887 = vadd.f32 %v1662, %v1886
      %v1888 = vpop.f32.mrb[0].mxu0
      %1889 = vmatprep.mubr.f32.mxu0 %v1220
      %1890 = vmatmul.mubr.f32.gmra.mrb[0].mxu0 %v1219
      %v1891 = vpop.f32.mrb[0].mxu0
      %v1892 = vadd.f32 %v1667, %v1891
      %v1893 = vpop.f32.mrb[0].mxu0
      %1894 = vmatprep.mubr.f32.mxu0 %v1229
      %1895 = vmatmul.mubr.f32.gmra.mrb[0].mxu0 %v1228
      %v1896 = vpop.f32.mrb[0].mxu0
      %v1897 = vadd.f32 %v1672, %v1896
      %v1898 = vpop.f32.mrb[0].mxu0
      %1899 = vmatprep.mubr.f32.mxu0 %v1238
      %1900 = vmatmul.mubr.f32.gmra.mrb[0].mxu0 %v1237
      %v1901 = vpop.f32.mrb[0].mxu0
      %v1902 = vadd.f32 %v1677, %v1901
      %v1903 = vpop.f32.mrb[0].mxu0
      %1904 = vmatprep.mubr.f32.mxu0 %v1247
      %1905 = vmatmul.mubr.f32.gmra.mrb[0].mxu0 %v1246
      %v1906 = vpop.f32.mrb[0].mxu0
      %v1907 = vadd.f32 %v1682, %v1906
      %v1908 = vpop.f32.mrb[0].mxu0
      %1909 = vmatprep.mubr.f32.mxu0 %v1256
      %1910 = vmatmul.mubr.f32.gmra.mrb[0].mxu0 %v1255
      %v1911 = vpop.f32.mrb[0].mxu0
      %v1912 = vadd.f32 %v1687, %v1911
      %v1913 = vpop.f32.mrb[0].mxu0
      %1914 = vmatprep.mubr.f32.mxu0 %v1265
      %1915 = vmatmul.mubr.f32.gmra.mrb[0].mxu0 %v1264
      %v1916 = vpop.f32.mrb[0].mxu0
      %v1917 = vadd.f32 %v1692, %v1916
      %v1918 = vpop.f32.mrb[0].mxu0
      %1919 = vmatprep.mubr.f32.mxu0 %v1274
      %1920 = vmatmul.mubr.f32.gmra.mrb[0].mxu0 %v1273
      %v1921 = vpop.f32.mrb[0].mxu0
      %v1922 = vadd.f32 %v1697, %v1921
      %v1923 = vpop.f32.mrb[0].mxu0
      %1924 = vmatprep.mubr.f32.mxu0 %v1283
      %1925 = vmatmul.mubr.f32.gmra.mrb[0].mxu0 %v1282
      %v1926 = vpop.f32.mrb[0].mxu0
      %v1927 = vadd.f32 %v1702, %v1926
      %v1928 = vpop.f32.mrb[0].mxu0
      %1929 = vmatprep.mubr.f32.mxu0 %v1292
      %1930 = vmatmul.mubr.f32.gmra.mrb[0].mxu0 %v1291
      %v1931 = vpop.f32.mrb[0].mxu0
      %v1932 = vadd.f32 %v1707, %v1931
      %v1933 = vpop.f32.mrb[0].mxu0
      %1934 = vmatprep.mubr.f32.mxu0 %v1301
      %1935 = vmatmul.mubr.f32.gmra.mrb[0].mxu0 %v1300
      %v1936 = vpop.f32.mrb[0].mxu0
      %v1937 = vadd.f32 %v1712, %v1936
      %v1938 = vpop.f32.mrb[0].mxu0
      %1939 = vmatprep.mubr.f32.mxu0 %v1310
      %1940 = vmatmul.mubr.f32.gmra.mrb[0].mxu0 %v1309
      %v1941 = vpop.f32.mrb[0].mxu0
      %v1942 = vadd.f32 %v1717, %v1941
      %v1943 = vpop.f32.mrb[0].mxu0
      %1944 = vmatprep.mubr.f32.mxu0 %v1319
      %1945 = vmatmul.mubr.f32.gmra.mrb[0].mxu0 %v1318
      %v1946 = vpop.f32.mrb[0].mxu0
      %v1947 = vadd.f32 %v1722, %v1946
      %v1948 = vpop.f32.mrb[0].mxu0
      %1949 = vmatprep.mubr.f32.mxu0 %v1328
      %1950 = vmatmul.mubr.f32.gmra.mrb[0].mxu0 %v1327
      %v1951 = vpop.f32.mrb[0].mxu0
      %v1952 = vadd.f32 %v1727, %v1951
      %v1953 = vpop.f32.mrb[0].mxu0
      %1954 = vmatprep.mubr.f32.mxu0 %v1337
      %1955 = vmatmul.mubr.f32.gmra.mrb[0].mxu0 %v1336
      %v1956 = vpop.f32.mrb[0].mxu0
      %v1957 = vadd.f32 %v1732, %v1956
      %v1958 = vpop.f32.mrb[0].mxu0
      %1959 = vmatprep.mubr.f32.mxu0 %v1346
      %1960 = vmatmul.mubr.f32.gmra.mrb[0].mxu0 %v1345
      %v1961 = vpop.f32.mrb[0].mxu0
      %v1962 = vadd.f32 %v1737, %v1961
      %v1963 = vpop.f32.mrb[0].mxu0
      %1964 = vmatprep.mubr.f32.mxu0 %v1355
      %1965 = vmatmul.mubr.f32.gmra.mrb[0].mxu0 %v1354
      %v1966 = vpop.f32.mrb[0].mxu0
      %v1967 = vadd.f32 %v1742, %v1966
      %v1968 = vpop.f32.mrb[0].mxu0
      %1969 = vmatprep.mubr.f32.mxu0 %v1364
      %1970 = vmatmul.mubr.f32.gmra.mrb[0].mxu0 %v1363
      %v1971 = vpop.f32.mrb[0].mxu0
      %v1972 = vadd.f32 %v1747, %v1971
      %v1973 = vpop.f32.mrb[0].mxu0
      %1974 = vmatprep.mubr.f32.mxu0 %v1373
      %1975 = vmatmul.mubr.f32.gmra.mrb[0].mxu0 %v1372
      %v1976 = vpop.f32.mrb[0].mxu0
      %v1977 = vadd.f32 %v1752, %v1976
      %v1978 = vpop.f32.mrb[0].mxu0
      %1979 = vdwg.mxu0
      %1980 = vmatprep.subr.mxu0 0.0
      %1981 = vmatpush1.msra.mxu0 %v1443
      %1982 = vmatprep.subr.mxu0 0.0
      %1983 = vmatpush1.msra.mxu0 %v1444
      %1984 = vmatprep.subr.mxu0 0.0
      %1985 = vmatpush1.msra.mxu0 %v1445
      %1986 = vmatprep.subr.mxu0 0.0
      %1987 = vmatpush1.msra.mxu0 %v1446
      %1988 = vmatprep.subr.mxu0 0.0
      %1989 = vmatpush1.msra.mxu0 %v1447
      %1990 = vmatprep.subr.mxu0 0.0
      %1991 = vmatpush1.msra.mxu0 %v1448
      %1992 = vmatprep.subr.mxu0 0.0
      %1993 = vmatpush1.msra.mxu0 %v1449
      %1994 = vmatprep.subr.mxu0 0.0
      %1995 = vmatpush1.msra.mxu0 %v1450
      %1996 = vmatprep.subr.mxu0 0.0
      %1997 = vmatpush1.msra.mxu0 %v1451
      %1998 = vmatprep.subr.mxu0 0.0
      %1999 = vmatpush1.msra.mxu0 %v1452
      %2000 = vmatprep.subr.mxu0 0.0
      %2001 = vmatpush1.msra.mxu0 %v1453
      %2002 = vmatprep.subr.mxu0 0.0
      %2003 = vmatpush1.msra.mxu0 %v1454
      %2004 = vmatprep.subr.mxu0 0.0
      %2005 = vmatpush1.msra.mxu0 %v1455
      %2006 = vmatprep.subr.mxu0 0.0
      %2007 = vmatpush1.msra.mxu0 %v1456
      %2008 = vmatprep.subr.mxu0 0.0
      %2009 = vmatpush1.msra.mxu0 %v1457
      %2010 = vmatprep.subr.mxu0 0.0
      %2011 = vmatpush1.msra.mxu0 %v1458
      %2012 = vmatprep.subr.mxu0 0.0
      %2013 = vmatpush1.msra.mxu0 %v1459
      %2014 = vmatprep.subr.mxu0 0.0
      %2015 = vmatpush1.msra.mxu0 %v1460
      %2016 = vmatprep.subr.mxu0 0.0
      %2017 = vmatpush1.msra.mxu0 %v1461
      %2018 = vmatprep.subr.mxu0 0.0
      %2019 = vmatpush1.msra.mxu0 %v1462
      %2020 = vmatprep.subr.mxu0 0.0
      %2021 = vmatpush1.msra.mxu0 %v1463
      %2022 = vmatprep.subr.mxu0 0.0
      %2023 = vmatpush1.msra.mxu0 %v1464
      %2024 = vmatprep.subr.mxu0 0.0
      %2025 = vmatpush1.msra.mxu0 %v1465
      %2026 = vmatprep.subr.mxu0 0.0
      %2027 = vmatpush1.msra.mxu0 %v1466
      %2028 = vmatprep.subr.mxu0 0.0
      %2029 = vmatpush1.msra.mxu0 %v1467
      %2030 = vmatprep.subr.mxu0 0.0
      %2031 = vmatpush1.msra.mxu0 %v1468
      %2032 = vmatprep.subr.mxu0 0.0
      %2033 = vmatpush1.msra.mxu0 %v1469
      %2034 = vmatprep.subr.mxu0 0.0
      %2035 = vmatpush1.msra.mxu0 %v1470
      %2036 = vmatprep.subr.mxu0 0.0
      %2037 = vmatpush1.msra.mxu0 %v1471
      %2038 = vmatprep.subr.mxu0 0.0
      %2039 = vmatpush1.msra.mxu0 %v1472
      %2040 = vmatprep.subr.mxu0 0.0
      %2041 = vmatpush1.msra.mxu0 %v1473
      %2042 = vmatprep.subr.mxu0 0.0
      %2043 = vmatpush1.msra.mxu0 %v1474
      %2044 = vmatprep.mubr.f32.mxu0 %v1096
      %2045 = vmatmul.mubr.f32.gmra.mrb[0].mxu0 %v1095
      %v2046 = vpop.f32.mrb[0].mxu0
      %v2047 = vadd.f32 %v1822, %v2046
      %v2048 = vpop.f32.mrb[0].mxu0
      %2049 = vmatprep.mubr.f32.mxu0 %v1105
      %2050 = vmatmul.mubr.f32.gmra.mrb[0].mxu0 %v1104
      %v2051 = vpop.f32.mrb[0].mxu0
      %v2052 = vadd.f32 %v1827, %v2051
      %v2053 = vpop.f32.mrb[0].mxu0
      %2054 = vmatprep.mubr.f32.mxu0 %v1114
      %2055 = vmatmul.mubr.f32.gmra.mrb[0].mxu0 %v1113
      %v2056 = vpop.f32.mrb[0].mxu0
      %v2057 = vadd.f32 %v1832, %v2056
      %v2058 = vpop.f32.mrb[0].mxu0
      %2059 = vmatprep.mubr.f32.mxu0 %v1123
      %2060 = vmatmul.mubr.f32.gmra.mrb[0].mxu0 %v1122
      %v2061 = vpop.f32.mrb[0].mxu0
      %v2062 = vadd.f32 %v1837, %v2061
      %v2063 = vpop.f32.mrb[0].mxu0
      %2064 = vmatprep.mubr.f32.mxu0 %v1132
      %2065 = vmatmul.mubr.f32.gmra.mrb[0].mxu0 %v1131
      %v2066 = vpop.f32.mrb[0].mxu0
      %v2067 = vadd.f32 %v1842, %v2066
      %v2068 = vpop.f32.mrb[0].mxu0
      %2069 = vmatprep.mubr.f32.mxu0 %v1141
      %2070 = vmatmul.mubr.f32.gmra.mrb[0].mxu0 %v1140
      %v2071 = vpop.f32.mrb[0].mxu0
      %v2072 = vadd.f32 %v1847, %v2071
      %v2073 = vpop.f32.mrb[0].mxu0
      %2074 = vmatprep.mubr.f32.mxu0 %v1150
      %2075 = vmatmul.mubr.f32.gmra.mrb[0].mxu0 %v1149
      %v2076 = vpop.f32.mrb[0].mxu0
      %v2077 = vadd.f32 %v1852, %v2076
      %v2078 = vpop.f32.mrb[0].mxu0
      %2079 = vmatprep.mubr.f32.mxu0 %v1159
      %2080 = vmatmul.mubr.f32.gmra.mrb[0].mxu0 %v1158
      %v2081 = vpop.f32.mrb[0].mxu0
      %v2082 = vadd.f32 %v1857, %v2081
      %v2083 = vpop.f32.mrb[0].mxu0
      %2084 = vmatprep.mubr.f32.mxu0 %v1168
      %2085 = vmatmul.mubr.f32.gmra.mrb[0].mxu0 %v1167
      %v2086 = vpop.f32.mrb[0].mxu0
      %v2087 = vadd.f32 %v1862, %v2086
      %v2088 = vpop.f32.mrb[0].mxu0
      %2089 = vmatprep.mubr.f32.mxu0 %v1177
      %2090 = vmatmul.mubr.f32.gmra.mrb[0].mxu0 %v1176
      %v2091 = vpop.f32.mrb[0].mxu0
      %v2092 = vadd.f32 %v1867, %v2091
      %v2093 = vpop.f32.mrb[0].mxu0
      %2094 = vmatprep.mubr.f32.mxu0 %v1186
      %2095 = vmatmul.mubr.f32.gmra.mrb[0].mxu0 %v1185
      %v2096 = vpop.f32.mrb[0].mxu0
      %v2097 = vadd.f32 %v1872, %v2096
      %v2098 = vpop.f32.mrb[0].mxu0
      %2099 = vmatprep.mubr.f32.mxu0 %v1195
      %2100 = vmatmul.mubr.f32.gmra.mrb[0].mxu0 %v1194
      %v2101 = vpop.f32.mrb[0].mxu0
      %v2102 = vadd.f32 %v1877, %v2101
      %v2103 = vpop.f32.mrb[0].mxu0
      %2104 = vmatprep.mubr.f32.mxu0 %v1204
      %2105 = vmatmul.mubr.f32.gmra.mrb[0].mxu0 %v1203
      %v2106 = vpop.f32.mrb[0].mxu0
      %v2107 = vadd.f32 %v1882, %v2106
      %v2108 = vpop.f32.mrb[0].mxu0
      %2109 = vmatprep.mubr.f32.mxu0 %v1213
      %2110 = vmatmul.mubr.f32.gmra.mrb[0].mxu0 %v1212
      %v2111 = vpop.f32.mrb[0].mxu0
      %v2112 = vadd.f32 %v1887, %v2111
      %v2113 = vpop.f32.mrb[0].mxu0
      %2114 = vmatprep.mubr.f32.mxu0 %v1222
      %2115 = vmatmul.mubr.f32.gmra.mrb[0].mxu0 %v1221
      %v2116 = vpop.f32.mrb[0].mxu0
      %v2117 = vadd.f32 %v1892, %v2116
      %v2118 = vpop.f32.mrb[0].mxu0
      %2119 = vmatprep.mubr.f32.mxu0 %v1231
      %2120 = vmatmul.mubr.f32.gmra.mrb[0].mxu0 %v1230
      %v2121 = vpop.f32.mrb[0].mxu0
      %v2122 = vadd.f32 %v1897, %v2121
      %v2123 = vpop.f32.mrb[0].mxu0
      %2124 = vmatprep.mubr.f32.mxu0 %v1240
      %2125 = vmatmul.mubr.f32.gmra.mrb[0].mxu0 %v1239
      %v2126 = vpop.f32.mrb[0].mxu0
      %v2127 = vadd.f32 %v1902, %v2126
      %v2128 = vpop.f32.mrb[0].mxu0
      %2129 = vmatprep.mubr.f32.mxu0 %v1249
      %2130 = vmatmul.mubr.f32.gmra.mrb[0].mxu0 %v1248
      %v2131 = vpop.f32.mrb[0].mxu0
      %v2132 = vadd.f32 %v1907, %v2131
      %v2133 = vpop.f32.mrb[0].mxu0
      %2134 = vmatprep.mubr.f32.mxu0 %v1258
      %2135 = vmatmul.mubr.f32.gmra.mrb[0].mxu0 %v1257
      %v2136 = vpop.f32.mrb[0].mxu0
      %v2137 = vadd.f32 %v1912, %v2136
      %v2138 = vpop.f32.mrb[0].mxu0
      %2139 = vmatprep.mubr.f32.mxu0 %v1267
      %2140 = vmatmul.mubr.f32.gmra.mrb[0].mxu0 %v1266
      %v2141 = vpop.f32.mrb[0].mxu0
      %v2142 = vadd.f32 %v1917, %v2141
      %v2143 = vpop.f32.mrb[0].mxu0
      %2144 = vmatprep.mubr.f32.mxu0 %v1276
      %2145 = vmatmul.mubr.f32.gmra.mrb[0].mxu0 %v1275
      %v2146 = vpop.f32.mrb[0].mxu0
      %v2147 = vadd.f32 %v1922, %v2146
      %v2148 = vpop.f32.mrb[0].mxu0
      %2149 = vmatprep.mubr.f32.mxu0 %v1285
      %2150 = vmatmul.mubr.f32.gmra.mrb[0].mxu0 %v1284
      %v2151 = vpop.f32.mrb[0].mxu0
      %v2152 = vadd.f32 %v1927, %v2151
      %v2153 = vpop.f32.mrb[0].mxu0
      %2154 = vmatprep.mubr.f32.mxu0 %v1294
      %2155 = vmatmul.mubr.f32.gmra.mrb[0].mxu0 %v1293
      %v2156 = vpop.f32.mrb[0].mxu0
      %v2157 = vadd.f32 %v1932, %v2156
      %v2158 = vpop.f32.mrb[0].mxu0
      %2159 = vmatprep.mubr.f32.mxu0 %v1303
      %2160 = vmatmul.mubr.f32.gmra.mrb[0].mxu0 %v1302
      %v2161 = vpop.f32.mrb[0].mxu0
      %v2162 = vadd.f32 %v1937, %v2161
      %v2163 = vpop.f32.mrb[0].mxu0
      %2164 = vmatprep.mubr.f32.mxu0 %v1312
      %2165 = vmatmul.mubr.f32.gmra.mrb[0].mxu0 %v1311
      %v2166 = vpop.f32.mrb[0].mxu0
      %v2167 = vadd.f32 %v1942, %v2166
      %v2168 = vpop.f32.mrb[0].mxu0
      %2169 = vmatprep.mubr.f32.mxu0 %v1321
      %2170 = vmatmul.mubr.f32.gmra.mrb[0].mxu0 %v1320
      %v2171 = vpop.f32.mrb[0].mxu0
      %v2172 = vadd.f32 %v1947, %v2171
      %v2173 = vpop.f32.mrb[0].mxu0
      %2174 = vmatprep.mubr.f32.mxu0 %v1330
      %2175 = vmatmul.mubr.f32.gmra.mrb[0].mxu0 %v1329
      %v2176 = vpop.f32.mrb[0].mxu0
      %v2177 = vadd.f32 %v1952, %v2176
      %v2178 = vpop.f32.mrb[0].mxu0
      %2179 = vmatprep.mubr.f32.mxu0 %v1339
      %2180 = vmatmul.mubr.f32.gmra.mrb[0].mxu0 %v1338
      %v2181 = vpop.f32.mrb[0].mxu0
      %v2182 = vadd.f32 %v1957, %v2181
      %v2183 = vpop.f32.mrb[0].mxu0
      %2184 = vmatprep.mubr.f32.mxu0 %v1348
      %2185 = vmatmul.mubr.f32.gmra.mrb[0].mxu0 %v1347
      %v2186 = vpop.f32.mrb[0].mxu0
      %v2187 = vadd.f32 %v1962, %v2186
      %v2188 = vpop.f32.mrb[0].mxu0
      %2189 = vmatprep.mubr.f32.mxu0 %v1357
      %2190 = vmatmul.mubr.f32.gmra.mrb[0].mxu0 %v1356
      %v2191 = vpop.f32.mrb[0].mxu0
      %v2192 = vadd.f32 %v1967, %v2191
      %v2193 = vpop.f32.mrb[0].mxu0
      %2194 = vmatprep.mubr.f32.mxu0 %v1366
      %2195 = vmatmul.mubr.f32.gmra.mrb[0].mxu0 %v1365
      %v2196 = vpop.f32.mrb[0].mxu0
      %v2197 = vadd.f32 %v1972, %v2196
      %v2198 = vpop.f32.mrb[0].mxu0
      %2199 = vmatprep.mubr.f32.mxu0 %v1375
      %2200 = vmatmul.mubr.f32.gmra.mrb[0].mxu0 %v1374
      %v2201 = vpop.f32.mrb[0].mxu0
      %v2202 = vadd.f32 %v1977, %v2201
      %v2203 = vpop.f32.mrb[0].mxu0
      %2204 = vdwg.mxu0
      %2205 = vmatprep.subr.mxu0 0.0
      %2206 = vmatpush1.msra.mxu0 %v1475
      %2207 = vmatprep.subr.mxu0 0.0
      %2208 = vmatpush1.msra.mxu0 %v1476
      %2209 = vmatprep.subr.mxu0 0.0
      %2210 = vmatpush1.msra.mxu0 %v1477
      %2211 = vmatprep.subr.mxu0 0.0
      %2212 = vmatpush1.msra.mxu0 %v1478
      %2213 = vmatprep.subr.mxu0 0.0
      %2214 = vmatpush1.msra.mxu0 %v1479
      %2215 = vmatprep.subr.mxu0 0.0
      %2216 = vmatpush1.msra.mxu0 %v1480
      %2217 = vmatprep.subr.mxu0 0.0
      %2218 = vmatpush1.msra.mxu0 %v1481
      %2219 = vmatprep.subr.mxu0 0.0
      %2220 = vmatpush1.msra.mxu0 %v1482
      %2221 = vmatprep.subr.mxu0 0.0
      %2222 = vmatpush1.msra.mxu0 %v1483
      %2223 = vmatprep.subr.mxu0 0.0
      %2224 = vmatpush1.msra.mxu0 %v1484
      %2225 = vmatprep.subr.mxu0 0.0
      %2226 = vmatpush1.msra.mxu0 %v1485
      %2227 = vmatprep.subr.mxu0 0.0
      %2228 = vmatpush1.msra.mxu0 %v1486
      %2229 = vmatprep.subr.mxu0 0.0
      %2230 = vmatpush1.msra.mxu0 %v1487
      %2231 = vmatprep.subr.mxu0 0.0
      %2232 = vmatpush1.msra.mxu0 %v1488
      %2233 = vmatprep.subr.mxu0 0.0
      %2234 = vmatpush1.msra.mxu0 %v1489
      %2235 = vmatprep.subr.mxu0 0.0
      %2236 = vmatpush1.msra.mxu0 %v1490
      %2237 = vmatprep.subr.mxu0 0.0
      %2238 = vmatpush1.msra.mxu0 %v1491
      %2239 = vmatprep.subr.mxu0 0.0
      %2240 = vmatpush1.msra.mxu0 %v1492
      %2241 = vmatprep.subr.mxu0 0.0
      %2242 = vmatpush1.msra.mxu0 %v1493
      %2243 = vmatprep.subr.mxu0 0.0
      %2244 = vmatpush1.msra.mxu0 %v1494
      %2245 = vmatprep.subr.mxu0 0.0
      %2246 = vmatpush1.msra.mxu0 %v1495
      %2247 = vmatprep.subr.mxu0 0.0
      %2248 = vmatpush1.msra.mxu0 %v1496
      %2249 = vmatprep.subr.mxu0 0.0
      %2250 = vmatpush1.msra.mxu0 %v1497
      %2251 = vmatprep.subr.mxu0 0.0
      %2252 = vmatpush1.msra.mxu0 %v1498
      %2253 = vmatprep.subr.mxu0 0.0
      %2254 = vmatpush1.msra.mxu0 %v1499
      %2255 = vmatprep.subr.mxu0 0.0
      %2256 = vmatpush1.msra.mxu0 %v1500
      %2257 = vmatprep.subr.mxu0 0.0
      %2258 = vmatpush1.msra.mxu0 %v1501
      %2259 = vmatprep.subr.mxu0 0.0
      %2260 = vmatpush1.msra.mxu0 %v1502
      %2261 = vmatprep.subr.mxu0 0.0
      %2262 = vmatpush1.msra.mxu0 %v1503
      %2263 = vmatprep.subr.mxu0 0.0
      %2264 = vmatpush1.msra.mxu0 %v1504
      %2265 = vmatprep.subr.mxu0 0.0
      %2266 = vmatpush1.msra.mxu0 %v1505
      %2267 = vmatprep.subr.mxu0 0.0
      %2268 = vmatpush1.msra.mxu0 %v1506
      %2269 = vmatprep.mubr.f32.mxu0 %v1098
      %2270 = vmatmul.mubr.f32.gmra.mrb[0].mxu0 %v1097
      %v2271 = vpop.f32.mrb[0].mxu0
      %v2272 = vadd.f32 %v2047, %v2271
      %v2273 = vpop.f32.mrb[0].mxu0
      %2274 = vmatprep.mubr.f32.mxu0 %v1107
      %2275 = vmatmul.mubr.f32.gmra.mrb[0].mxu0 %v1106
      %v2276 = vpop.f32.mrb[0].mxu0
      %v2277 = vadd.f32 %v2052, %v2276
      %v2278 = vpop.f32.mrb[0].mxu0
      %2279 = vmatprep.mubr.f32.mxu0 %v1116
      %2280 = vmatmul.mubr.f32.gmra.mrb[0].mxu0 %v1115
      %v2281 = vpop.f32.mrb[0].mxu0
      %v2282 = vadd.f32 %v2057, %v2281
      %v2283 = vpop.f32.mrb[0].mxu0
      %2284 = vmatprep.mubr.f32.mxu0 %v1125
      %2285 = vmatmul.mubr.f32.gmra.mrb[0].mxu0 %v1124
      %v2286 = vpop.f32.mrb[0].mxu0
      %v2287 = vadd.f32 %v2062, %v2286
      %v2288 = vpop.f32.mrb[0].mxu0
      %2289 = vmatprep.mubr.f32.mxu0 %v1134
      %2290 = vmatmul.mubr.f32.gmra.mrb[0].mxu0 %v1133
      %v2291 = vpop.f32.mrb[0].mxu0
      %v2292 = vadd.f32 %v2067, %v2291
      %v2293 = vpop.f32.mrb[0].mxu0
      %2294 = vmatprep.mubr.f32.mxu0 %v1143
      %2295 = vmatmul.mubr.f32.gmra.mrb[0].mxu0 %v1142
      %v2296 = vpop.f32.mrb[0].mxu0
      %v2297 = vadd.f32 %v2072, %v2296
      %v2298 = vpop.f32.mrb[0].mxu0
      %2299 = vmatprep.mubr.f32.mxu0 %v1152
      %2300 = vmatmul.mubr.f32.gmra.mrb[0].mxu0 %v1151
      %v2301 = vpop.f32.mrb[0].mxu0
      %v2302 = vadd.f32 %v2077, %v2301
      %v2303 = vpop.f32.mrb[0].mxu0
      %2304 = vmatprep.mubr.f32.mxu0 %v1161
      %2305 = vmatmul.mubr.f32.gmra.mrb[0].mxu0 %v1160
      %v2306 = vpop.f32.mrb[0].mxu0
      %v2307 = vadd.f32 %v2082, %v2306
      %v2308 = vpop.f32.mrb[0].mxu0
      %2309 = vmatprep.mubr.f32.mxu0 %v1170
      %2310 = vmatmul.mubr.f32.gmra.mrb[0].mxu0 %v1169
      %v2311 = vpop.f32.mrb[0].mxu0
      %v2312 = vadd.f32 %v2087, %v2311
      %v2313 = vpop.f32.mrb[0].mxu0
      %2314 = vmatprep.mubr.f32.mxu0 %v1179
      %2315 = vmatmul.mubr.f32.gmra.mrb[0].mxu0 %v1178
      %v2316 = vpop.f32.mrb[0].mxu0
      %v2317 = vadd.f32 %v2092, %v2316
      %v2318 = vpop.f32.mrb[0].mxu0
      %2319 = vmatprep.mubr.f32.mxu0 %v1188
      %2320 = vmatmul.mubr.f32.gmra.mrb[0].mxu0 %v1187
      %v2321 = vpop.f32.mrb[0].mxu0
      %v2322 = vadd.f32 %v2097, %v2321
      %v2323 = vpop.f32.mrb[0].mxu0
      %2324 = vmatprep.mubr.f32.mxu0 %v1197
      %2325 = vmatmul.mubr.f32.gmra.mrb[0].mxu0 %v1196
      %v2326 = vpop.f32.mrb[0].mxu0
      %v2327 = vadd.f32 %v2102, %v2326
      %v2328 = vpop.f32.mrb[0].mxu0
      %2329 = vmatprep.mubr.f32.mxu0 %v1206
      %2330 = vmatmul.mubr.f32.gmra.mrb[0].mxu0 %v1205
      %v2331 = vpop.f32.mrb[0].mxu0
      %v2332 = vadd.f32 %v2107, %v2331
      %v2333 = vpop.f32.mrb[0].mxu0
      %2334 = vmatprep.mubr.f32.mxu0 %v1215
      %2335 = vmatmul.mubr.f32.gmra.mrb[0].mxu0 %v1214
      %v2336 = vpop.f32.mrb[0].mxu0
      %v2337 = vadd.f32 %v2112, %v2336
      %v2338 = vpop.f32.mrb[0].mxu0
      %2339 = vmatprep.mubr.f32.mxu0 %v1224
      %2340 = vmatmul.mubr.f32.gmra.mrb[0].mxu0 %v1223
      %v2341 = vpop.f32.mrb[0].mxu0
      %v2342 = vadd.f32 %v2117, %v2341
      %v2343 = vpop.f32.mrb[0].mxu0
      %2344 = vmatprep.mubr.f32.mxu0 %v1233
      %2345 = vmatmul.mubr.f32.gmra.mrb[0].mxu0 %v1232
      %v2346 = vpop.f32.mrb[0].mxu0
      %v2347 = vadd.f32 %v2122, %v2346
      %v2348 = vpop.f32.mrb[0].mxu0
      %2349 = vmatprep.mubr.f32.mxu0 %v1242
      %2350 = vmatmul.mubr.f32.gmra.mrb[0].mxu0 %v1241
      %v2351 = vpop.f32.mrb[0].mxu0
      %v2352 = vadd.f32 %v2127, %v2351
      %v2353 = vpop.f32.mrb[0].mxu0
      %2354 = vmatprep.mubr.f32.mxu0 %v1251
      %2355 = vmatmul.mubr.f32.gmra.mrb[0].mxu0 %v1250
      %v2356 = vpop.f32.mrb[0].mxu0
      %v2357 = vadd.f32 %v2132, %v2356
      %v2358 = vpop.f32.mrb[0].mxu0
      %2359 = vmatprep.mubr.f32.mxu0 %v1260
      %2360 = vmatmul.mubr.f32.gmra.mrb[0].mxu0 %v1259
      %v2361 = vpop.f32.mrb[0].mxu0
      %v2362 = vadd.f32 %v2137, %v2361
      %v2363 = vpop.f32.mrb[0].mxu0
      %2364 = vmatprep.mubr.f32.mxu0 %v1269
      %2365 = vmatmul.mubr.f32.gmra.mrb[0].mxu0 %v1268
      %v2366 = vpop.f32.mrb[0].mxu0
      %v2367 = vadd.f32 %v2142, %v2366
      %v2368 = vpop.f32.mrb[0].mxu0
      %2369 = vmatprep.mubr.f32.mxu0 %v1278
      %2370 = vmatmul.mubr.f32.gmra.mrb[0].mxu0 %v1277
      %v2371 = vpop.f32.mrb[0].mxu0
      %v2372 = vadd.f32 %v2147, %v2371
      %v2373 = vpop.f32.mrb[0].mxu0
      %2374 = vmatprep.mubr.f32.mxu0 %v1287
      %2375 = vmatmul.mubr.f32.gmra.mrb[0].mxu0 %v1286
      %v2376 = vpop.f32.mrb[0].mxu0
      %v2377 = vadd.f32 %v2152, %v2376
      %v2378 = vpop.f32.mrb[0].mxu0
      %2379 = vmatprep.mubr.f32.mxu0 %v1296
      %2380 = vmatmul.mubr.f32.gmra.mrb[0].mxu0 %v1295
      %v2381 = vpop.f32.mrb[0].mxu0
      %v2382 = vadd.f32 %v2157, %v2381
      %v2383 = vpop.f32.mrb[0].mxu0
      %2384 = vmatprep.mubr.f32.mxu0 %v1305
      %2385 = vmatmul.mubr.f32.gmra.mrb[0].mxu0 %v1304
      %v2386 = vpop.f32.mrb[0].mxu0
      %v2387 = vadd.f32 %v2162, %v2386
      %v2388 = vpop.f32.mrb[0].mxu0
      %2389 = vmatprep.mubr.f32.mxu0 %v1314
      %2390 = vmatmul.mubr.f32.gmra.mrb[0].mxu0 %v1313
      %v2391 = vpop.f32.mrb[0].mxu0
      %v2392 = vadd.f32 %v2167, %v2391
      %v2393 = vpop.f32.mrb[0].mxu0
      %2394 = vmatprep.mubr.f32.mxu0 %v1323
      %2395 = vmatmul.mubr.f32.gmra.mrb[0].mxu0 %v1322
      %v2396 = vpop.f32.mrb[0].mxu0
      %v2397 = vadd.f32 %v2172, %v2396
      %v2398 = vpop.f32.mrb[0].mxu0
      %2399 = vmatprep.mubr.f32.mxu0 %v1332
      %2400 = vmatmul.mubr.f32.gmra.mrb[0].mxu0 %v1331
      %v2401 = vpop.f32.mrb[0].mxu0
      %v2402 = vadd.f32 %v2177, %v2401
      %v2403 = vpop.f32.mrb[0].mxu0
      %2404 = vmatprep.mubr.f32.mxu0 %v1341
      %2405 = vmatmul.mubr.f32.gmra.mrb[0].mxu0 %v1340
      %v2406 = vpop.f32.mrb[0].mxu0
      %v2407 = vadd.f32 %v2182, %v2406
      %v2408 = vpop.f32.mrb[0].mxu0
      %2409 = vmatprep.mubr.f32.mxu0 %v1350
      %2410 = vmatmul.mubr.f32.gmra.mrb[0].mxu0 %v1349
      %v2411 = vpop.f32.mrb[0].mxu0
      %v2412 = vadd.f32 %v2187, %v2411
      %v2413 = vpop.f32.mrb[0].mxu0
      %2414 = vmatprep.mubr.f32.mxu0 %v1359
      %2415 = vmatmul.mubr.f32.gmra.mrb[0].mxu0 %v1358
      %v2416 = vpop.f32.mrb[0].mxu0
      %v2417 = vadd.f32 %v2192, %v2416
      %v2418 = vpop.f32.mrb[0].mxu0
      %2419 = vmatprep.mubr.f32.mxu0 %v1368
      %2420 = vmatmul.mubr.f32.gmra.mrb[0].mxu0 %v1367
      %v2421 = vpop.f32.mrb[0].mxu0
      %v2422 = vadd.f32 %v2197, %v2421
      %v2423 = vpop.f32.mrb[0].mxu0
      %2424 = vmatprep.mubr.f32.mxu0 %v1377
      %2425 = vmatmul.mubr.f32.gmra.mrb[0].mxu0 %v1376
      %v2426 = vpop.f32.mrb[0].mxu0
      %v2427 = vadd.f32 %v2202, %v2426
      %v2428 = vpop.f32.mrb[0].mxu0
      %2429 = vdwg.mxu0
      %2430 = vmatprep.subr.mxu0 0.0
      %2431 = vmatpush1.msra.mxu0 %v1507
      %2432 = vmatprep.subr.mxu0 0.0
      %2433 = vmatpush1.msra.mxu0 %v1508
      %2434 = vmatprep.subr.mxu0 0.0
      %2435 = vmatpush1.msra.mxu0 %v1509
      %2436 = vmatprep.subr.mxu0 0.0
      %2437 = vmatpush1.msra.mxu0 %v1510
      %2438 = vmatprep.subr.mxu0 0.0
      %2439 = vmatpush1.msra.mxu0 %v1511
      %2440 = vmatprep.subr.mxu0 0.0
      %2441 = vmatpush1.msra.mxu0 %v1512
      %2442 = vmatprep.subr.mxu0 0.0
      %2443 = vmatpush1.msra.mxu0 %v1513
      %2444 = vmatprep.subr.mxu0 0.0
      %2445 = vmatpush1.msra.mxu0 %v1514
      %2446 = vmatprep.subr.mxu0 0.0
      %2447 = vmatpush1.msra.mxu0 %v1515
      %2448 = vmatprep.subr.mxu0 0.0
      %2449 = vmatpush1.msra.mxu0 %v1516
      %2450 = vmatprep.subr.mxu0 0.0
      %2451 = vmatpush1.msra.mxu0 %v1517
      %2452 = vmatprep.subr.mxu0 0.0
      %2453 = vmatpush1.msra.mxu0 %v1518
      %2454 = vmatprep.subr.mxu0 0.0
      %2455 = vmatpush1.msra.mxu0 %v1519
      %2456 = vmatprep.subr.mxu0 0.0
      %2457 = vmatpush1.msra.mxu0 %v1520
      %2458 = vmatprep.subr.mxu0 0.0
      %2459 = vmatpush1.msra.mxu0 %v1521
      %2460 = vmatprep.subr.mxu0 0.0
      %2461 = vmatpush1.msra.mxu0 %v1522
      %2462 = vmatprep.subr.mxu0 0.0
      %2463 = vmatpush1.msra.mxu0 0.0
      %2464 = vmatprep.subr.mxu0 0.0
      %2465 = vmatpush1.msra.mxu0 0.0
      %2466 = vmatprep.subr.mxu0 0.0
      %2467 = vmatpush1.msra.mxu0 0.0
      %2468 = vmatprep.subr.mxu0 0.0
      %2469 = vmatpush1.msra.mxu0 0.0
      %2470 = vmatprep.subr.mxu0 0.0
      %2471 = vmatpush1.msra.mxu0 0.0
      %2472 = vmatprep.subr.mxu0 0.0
      %2473 = vmatpush1.msra.mxu0 0.0
      %2474 = vmatprep.subr.mxu0 0.0
      %2475 = vmatpush1.msra.mxu0 0.0
      %2476 = vmatprep.subr.mxu0 0.0
      %2477 = vmatpush1.msra.mxu0 0.0
      %2478 = vmatprep.subr.mxu0 0.0
      %2479 = vmatpush1.msra.mxu0 0.0
      %2480 = vmatprep.subr.mxu0 0.0
      %2481 = vmatpush1.msra.mxu0 0.0
      %2482 = vmatprep.subr.mxu0 0.0
      %2483 = vmatpush1.msra.mxu0 0.0
      %2484 = vmatprep.subr.mxu0 0.0
      %2485 = vmatpush1.msra.mxu0 0.0
      %2486 = vmatprep.subr.mxu0 0.0
      %2487 = vmatpush1.msra.mxu0 0.0
      %2488 = vmatprep.subr.mxu0 0.0
      %2489 = vmatpush1.msra.mxu0 0.0
      %2490 = vmatprep.subr.mxu0 0.0
      %2491 = vmatpush1.msra.mxu0 0.0
      %2492 = vmatprep.subr.mxu0 0.0
      %2493 = vmatpush1.msra.mxu0 0.0
      %2494 = vmatprep.mubr.f32.mxu0 0.0
      %2495 = vmatmul.mubr.f32.gmra.mrb[0].mxu0 %v1099
      %v2496 = vpop.f32.mrb[0].mxu0
      %v2497 = vadd.f32 %v2272, %v2496
      %v2498 = vpop.f32.mrb[0].mxu0
      %2499 = vmatprep.mubr.f32.mxu0 0.0
      %2500 = vmatmul.mubr.f32.gmra.mrb[0].mxu0 %v1108
      %v2501 = vpop.f32.mrb[0].mxu0
      %v2502 = vadd.f32 %v2277, %v2501
      %v2503 = vpop.f32.mrb[0].mxu0
      %2504 = vmatprep.mubr.f32.mxu0 0.0
      %2505 = vmatmul.mubr.f32.gmra.mrb[0].mxu0 %v1117
      %v2506 = vpop.f32.mrb[0].mxu0
      %v2507 = vadd.f32 %v2282, %v2506
      %v2508 = vpop.f32.mrb[0].mxu0
      %2509 = vmatprep.mubr.f32.mxu0 0.0
      %2510 = vmatmul.mubr.f32.gmra.mrb[0].mxu0 %v1126
      %v2511 = vpop.f32.mrb[0].mxu0
      %v2512 = vadd.f32 %v2287, %v2511
      %v2513 = vpop.f32.mrb[0].mxu0
      %2514 = vmatprep.mubr.f32.mxu0 0.0
      %2515 = vmatmul.mubr.f32.gmra.mrb[0].mxu0 %v1135
      %v2516 = vpop.f32.mrb[0].mxu0
      %v2517 = vadd.f32 %v2292, %v2516
      %v2518 = vpop.f32.mrb[0].mxu0
      %2519 = vmatprep.mubr.f32.mxu0 0.0
      %2520 = vmatmul.mubr.f32.gmra.mrb[0].mxu0 %v1144
      %v2521 = vpop.f32.mrb[0].mxu0
      %v2522 = vadd.f32 %v2297, %v2521
      %v2523 = vpop.f32.mrb[0].mxu0
      %2524 = vmatprep.mubr.f32.mxu0 0.0
      %2525 = vmatmul.mubr.f32.gmra.mrb[0].mxu0 %v1153
      %v2526 = vpop.f32.mrb[0].mxu0
      %v2527 = vadd.f32 %v2302, %v2526
      %v2528 = vpop.f32.mrb[0].mxu0
      %2529 = vmatprep.mubr.f32.mxu0 0.0
      %2530 = vmatmul.mubr.f32.gmra.mrb[0].mxu0 %v1162
      %v2531 = vpop.f32.mrb[0].mxu0
      %v2532 = vadd.f32 %v2307, %v2531
      %v2533 = vpop.f32.mrb[0].mxu0
      %2534 = vmatprep.mubr.f32.mxu0 0.0
      %2535 = vmatmul.mubr.f32.gmra.mrb[0].mxu0 %v1171
      %v2536 = vpop.f32.mrb[0].mxu0
      %v2537 = vadd.f32 %v2312, %v2536
      %v2538 = vpop.f32.mrb[0].mxu0
      %2539 = vmatprep.mubr.f32.mxu0 0.0
      %2540 = vmatmul.mubr.f32.gmra.mrb[0].mxu0 %v1180
      %v2541 = vpop.f32.mrb[0].mxu0
      %v2542 = vadd.f32 %v2317, %v2541
      %v2543 = vpop.f32.mrb[0].mxu0
      %2544 = vmatprep.mubr.f32.mxu0 0.0
      %2545 = vmatmul.mubr.f32.gmra.mrb[0].mxu0 %v1189
      %v2546 = vpop.f32.mrb[0].mxu0
      %v2547 = vadd.f32 %v2322, %v2546
      %v2548 = vpop.f32.mrb[0].mxu0
      %2549 = vmatprep.mubr.f32.mxu0 0.0
      %2550 = vmatmul.mubr.f32.gmra.mrb[0].mxu0 %v1198
      %v2551 = vpop.f32.mrb[0].mxu0
      %v2552 = vadd.f32 %v2327, %v2551
      %v2553 = vpop.f32.mrb[0].mxu0
      %2554 = vmatprep.mubr.f32.mxu0 0.0
      %2555 = vmatmul.mubr.f32.gmra.mrb[0].mxu0 %v1207
      %v2556 = vpop.f32.mrb[0].mxu0
      %v2557 = vadd.f32 %v2332, %v2556
      %v2558 = vpop.f32.mrb[0].mxu0
      %2559 = vmatprep.mubr.f32.mxu0 0.0
      %2560 = vmatmul.mubr.f32.gmra.mrb[0].mxu0 %v1216
      %v2561 = vpop.f32.mrb[0].mxu0
      %v2562 = vadd.f32 %v2337, %v2561
      %v2563 = vpop.f32.mrb[0].mxu0
      %2564 = vmatprep.mubr.f32.mxu0 0.0
      %2565 = vmatmul.mubr.f32.gmra.mrb[0].mxu0 %v1225
      %v2566 = vpop.f32.mrb[0].mxu0
      %v2567 = vadd.f32 %v2342, %v2566
      %v2568 = vpop.f32.mrb[0].mxu0
      %2569 = vmatprep.mubr.f32.mxu0 0.0
      %2570 = vmatmul.mubr.f32.gmra.mrb[0].mxu0 %v1234
      %v2571 = vpop.f32.mrb[0].mxu0
      %v2572 = vadd.f32 %v2347, %v2571
      %v2573 = vpop.f32.mrb[0].mxu0
      %2574 = vmatprep.mubr.f32.mxu0 0.0
      %2575 = vmatmul.mubr.f32.gmra.mrb[0].mxu0 %v1243
      %v2576 = vpop.f32.mrb[0].mxu0
      %v2577 = vadd.f32 %v2352, %v2576
      %v2578 = vpop.f32.mrb[0].mxu0
      %2579 = vmatprep.mubr.f32.mxu0 0.0
      %2580 = vmatmul.mubr.f32.gmra.mrb[0].mxu0 %v1252
      %v2581 = vpop.f32.mrb[0].mxu0
      %v2582 = vadd.f32 %v2357, %v2581
      %v2583 = vpop.f32.mrb[0].mxu0
      %2584 = vmatprep.mubr.f32.mxu0 0.0
      %2585 = vmatmul.mubr.f32.gmra.mrb[0].mxu0 %v1261
      %v2586 = vpop.f32.mrb[0].mxu0
      %v2587 = vadd.f32 %v2362, %v2586
      %v2588 = vpop.f32.mrb[0].mxu0
      %2589 = vmatprep.mubr.f32.mxu0 0.0
      %2590 = vmatmul.mubr.f32.gmra.mrb[0].mxu0 %v1270
      %v2591 = vpop.f32.mrb[0].mxu0
      %v2592 = vadd.f32 %v2367, %v2591
      %v2593 = vpop.f32.mrb[0].mxu0
      %2594 = vmatprep.mubr.f32.mxu0 0.0
      %2595 = vmatmul.mubr.f32.gmra.mrb[0].mxu0 %v1279
      %v2596 = vpop.f32.mrb[0].mxu0
      %v2597 = vadd.f32 %v2372, %v2596
      %v2598 = vpop.f32.mrb[0].mxu0
      %2599 = vmatprep.mubr.f32.mxu0 0.0
      %2600 = vmatmul.mubr.f32.gmra.mrb[0].mxu0 %v1288
      %v2601 = vpop.f32.mrb[0].mxu0
      %v2602 = vadd.f32 %v2377, %v2601
      %v2603 = vpop.f32.mrb[0].mxu0
      %2604 = vmatprep.mubr.f32.mxu0 0.0
      %2605 = vmatmul.mubr.f32.gmra.mrb[0].mxu0 %v1297
      %v2606 = vpop.f32.mrb[0].mxu0
      %v2607 = vadd.f32 %v2382, %v2606
      %v2608 = vpop.f32.mrb[0].mxu0
      %2609 = vmatprep.mubr.f32.mxu0 0.0
      %2610 = vmatmul.mubr.f32.gmra.mrb[0].mxu0 %v1306
      %v2611 = vpop.f32.mrb[0].mxu0
      %v2612 = vadd.f32 %v2387, %v2611
      %v2613 = vpop.f32.mrb[0].mxu0
      %2614 = vmatprep.mubr.f32.mxu0 0.0
      %2615 = vmatmul.mubr.f32.gmra.mrb[0].mxu0 %v1315
      %v2616 = vpop.f32.mrb[0].mxu0
      %v2617 = vadd.f32 %v2392, %v2616
      %v2618 = vpop.f32.mrb[0].mxu0
      %2619 = vmatprep.mubr.f32.mxu0 0.0
      %2620 = vmatmul.mubr.f32.gmra.mrb[0].mxu0 %v1324
      %v2621 = vpop.f32.mrb[0].mxu0
      %v2622 = vadd.f32 %v2397, %v2621
      %v2623 = vpop.f32.mrb[0].mxu0
      %2624 = vmatprep.mubr.f32.mxu0 0.0
      %2625 = vmatmul.mubr.f32.gmra.mrb[0].mxu0 %v1333
      %v2626 = vpop.f32.mrb[0].mxu0
      %v2627 = vadd.f32 %v2402, %v2626
      %v2628 = vpop.f32.mrb[0].mxu0
      %2629 = vmatprep.mubr.f32.mxu0 0.0
      %2630 = vmatmul.mubr.f32.gmra.mrb[0].mxu0 %v1342
      %v2631 = vpop.f32.mrb[0].mxu0
      %v2632 = vadd.f32 %v2407, %v2631
      %v2633 = vpop.f32.mrb[0].mxu0
      %2634 = vmatprep.mubr.f32.mxu0 0.0
      %2635 = vmatmul.mubr.f32.gmra.mrb[0].mxu0 %v1351
      %v2636 = vpop.f32.mrb[0].mxu0
      %v2637 = vadd.f32 %v2412, %v2636
      %v2638 = vpop.f32.mrb[0].mxu0
      %2639 = vmatprep.mubr.f32.mxu0 0.0
      %2640 = vmatmul.mubr.f32.gmra.mrb[0].mxu0 %v1360
      %v2641 = vpop.f32.mrb[0].mxu0
      %v2642 = vadd.f32 %v2417, %v2641
      %v2643 = vpop.f32.mrb[0].mxu0
      %2644 = vmatprep.mubr.f32.mxu0 0.0
      %2645 = vmatmul.mubr.f32.gmra.mrb[0].mxu0 %v1369
      %v2646 = vpop.f32.mrb[0].mxu0
      %v2647 = vadd.f32 %v2422, %v2646
      %v2648 = vpop.f32.mrb[0].mxu0
      %2649 = vmatprep.mubr.f32.mxu0 0.0
      %2650 = vmatmul.mubr.f32.gmra.mrb[0].mxu0 %v1378
      %v2651 = vpop.f32.mrb[0].mxu0
      %v2652 = vadd.f32 %v2427, %v2651
      %v2653 = vpop.f32.mrb[0].mxu0
      %2654 = vdwg.mxu0
      %2655 = vst [vmem:[%s289] sm:$0xff] %v2497
      %2656 = vst [vmem:[%s289 + $0x8] sm:$0xff] %v2502
      %2657 = vst [vmem:[%s289 + $0x10] sm:$0xff] %v2507
      %2658 = vst [vmem:[%s289 + $0x18] sm:$0xff] %v2512
      %2659 = vst [vmem:[%s289 + $0x20] sm:$0xff] %v2517
      %2660 = vst [vmem:[%s289 + $0x28] sm:$0xff] %v2522
      %2661 = vst [vmem:[%s289 + $0x30] sm:$0xff] %v2527
      %2662 = vst [vmem:[%s289 + $0x38] sm:$0xff] %v2532
      %2663 = vst [vmem:[%s289 + $0x40] sm:$0xff] %v2537
      %2664 = vst [vmem:[%s289 + $0x48] sm:$0xff] %v2542
      %2665 = vst [vmem:[%s289 + $0x50] sm:$0xff] %v2547
      %2666 = vst [vmem:[%s289 + $0x58] sm:$0xff] %v2552
      %2667 = vst [vmem:[%s289 + $0x60] sm:$0xff] %v2557
      %2668 = vst [vmem:[%s289 + $0x68] sm:$0xff] %v2562
      %2669 = vst [vmem:[%s289 + $0x70] sm:$0xff] %v2567
      %2670 = vst [vmem:[%s289 + $0x78] sm:$0xff] %v2572
      %2671 = vst [vmem:[%s289 + $0x80] sm:$0xff] %v2577
      %2672 = vst [vmem:[%s289 + $0x88] sm:$0xff] %v2582
      %2673 = vst [vmem:[%s289 + $0x90] sm:$0xff] %v2587
      %2674 = vst [vmem:[%s289 + $0x98] sm:$0xff] %v2592
      %2675 = vst [vmem:[%s289 + $0xa0] sm:$0xff] %v2597
      %2676 = vst [vmem:[%s289 + $0xa8] sm:$0xff] %v2602
      %2677 = vst [vmem:[%s289 + $0xb0] sm:$0xff] %v2607
      %2678 = vst [vmem:[%s289 + $0xb8] sm:$0xff] %v2612
      %2679 = vst [vmem:[%s289 + $0xc0] sm:$0xff] %v2617
      %2680 = vst [vmem:[%s289 + $0xc8] sm:$0xff] %v2622
      %2681 = vst [vmem:[%s289 + $0xd0] sm:$0xff] %v2627
      %2682 = vst [vmem:[%s289 + $0xd8] sm:$0xff] %v2632
      %2683 = vst [vmem:[%s289 + $0xe0] sm:$0xff] %v2637
      %2684 = vst [vmem:[%s289 + $0xe8] sm:$0xff] %v2642
      %2685 = vst [vmem:[%s289 + $0xf0] sm:$0xff] %v2647
      %2686 = vst [vmem:[%s289 + $0xf8] sm:$0xff] %v2652
      %v2687 = vadd.f32 %v2497, %v2502
      %v2688 = vadd.f32 %v2687, %v2507
      %v2689 = vadd.f32 %v2688, %v2512
      %v2690 = vadd.f32 %v2689, %v2517
      %v2691 = vadd.f32 %v2690, %v2522
      %v2692 = vadd.f32 %v2691, %v2527
      %v2693 = vadd.f32 %v2692, %v2532
      %v2694 = vadd.f32 %v2693, %v2537
      %v2695 = vadd.f32 %v2694, %v2542
      %v2696 = vadd.f32 %v2695, %v2547
      %v2697 = vadd.f32 %v2696, %v2552
      %v2698 = vadd.f32 %v2697, %v2557
      %v2699 = vadd.f32 %v2698, %v2562
      %v2700 = vadd.f32 %v2699, %v2567
      %v2701 = vadd.f32 %v2700, %v2572
      %v2702 = vadd.f32 %v2701, %v2577
      %v2703 = vadd.f32 %v2702, %v2582
      %v2704 = vadd.f32 %v2703, %v2587
      %v2705 = vadd.f32 %v2704, %v2592
      %v2706 = vadd.f32 %v2705, %v2597
      %v2707 = vadd.f32 %v2706, %v2602
      %v2708 = vadd.f32 %v2707, %v2607
      %v2709 = vadd.f32 %v2708, %v2612
      %v2710 = vadd.f32 %v2709, %v2617
      %v2711 = vadd.f32 %v2710, %v2622
      %v2712 = vadd.f32 %v2711, %v2627
      %v2713 = vadd.f32 %v2712, %v2632
      %v2714 = vadd.f32 %v2713, %v2637
      %v2715 = vadd.f32 %v2714, %v2642
      %v2716 = vadd.f32 %v2715, %v2647
      %v2717 = vadd.f32 %v2716, %v2652
      %v2718 = vrot.slane %v2717, 4
      %v2719 = vadd.f32 %v2717, %v2718
      %v2720 = vrot.slane %v2719, 2
      %v2721 = vadd.f32 %v2719, %v2720
      %v2722 = vrot.slane %v2721, 1
      %v2723 = vadd.f32 %v2721, %v2722
      %2724 = vst [vmem:[%s292] sm:$0x1] %v2723
      %v2725 = vmul.f32 %v2497, %v2497
      %v2726 = vmul.f32 %v2502, %v2502
      %v2727 = vmul.f32 %v2507, %v2507
      %v2728 = vmul.f32 %v2512, %v2512
      %v2729 = vmul.f32 %v2517, %v2517
      %v2730 = vmul.f32 %v2522, %v2522
      %v2731 = vmul.f32 %v2527, %v2527
      %v2732 = vmul.f32 %v2532, %v2532
      %v2733 = vmul.f32 %v2537, %v2537
      %v2734 = vmul.f32 %v2542, %v2542
      %v2735 = vmul.f32 %v2547, %v2547
      %v2736 = vmul.f32 %v2552, %v2552
      %v2737 = vmul.f32 %v2557, %v2557
      %v2738 = vmul.f32 %v2562, %v2562
      %v2739 = vmul.f32 %v2567, %v2567
      %v2740 = vmul.f32 %v2572, %v2572
      %v2741 = vmul.f32 %v2577, %v2577
      %v2742 = vmul.f32 %v2582, %v2582
      %v2743 = vmul.f32 %v2587, %v2587
      %v2744 = vmul.f32 %v2592, %v2592
      %v2745 = vmul.f32 %v2597, %v2597
      %v2746 = vmul.f32 %v2602, %v2602
      %v2747 = vmul.f32 %v2607, %v2607
      %v2748 = vmul.f32 %v2612, %v2612
      %v2749 = vmul.f32 %v2617, %v2617
      %v2750 = vmul.f32 %v2622, %v2622
      %v2751 = vmul.f32 %v2627, %v2627
      %v2752 = vmul.f32 %v2632, %v2632
      %v2753 = vmul.f32 %v2637, %v2637
      %v2754 = vmul.f32 %v2642, %v2642
      %v2755 = vmul.f32 %v2647, %v2647
      %v2756 = vmul.f32 %v2652, %v2652
      %v2757 = vadd.f32 %v2725, %v2726
      %v2758 = vadd.f32 %v2757, %v2727
      %v2759 = vadd.f32 %v2758, %v2728
      %v2760 = vadd.f32 %v2759, %v2729
      %v2761 = vadd.f32 %v2760, %v2730
      %v2762 = vadd.f32 %v2761, %v2731
      %v2763 = vadd.f32 %v2762, %v2732
      %v2764 = vadd.f32 %v2763, %v2733
      %v2765 = vadd.f32 %v2764, %v2734
      %v2766 = vadd.f32 %v2765, %v2735
      %v2767 = vadd.f32 %v2766, %v2736
      %v2768 = vadd.f32 %v2767, %v2737
      %v2769 = vadd.f32 %v2768, %v2738
      %v2770 = vadd.f32 %v2769, %v2739
      %v2771 = vadd.f32 %v2770, %v2740
      %v2772 = vadd.f32 %v2771, %v2741
      %v2773 = vadd.f32 %v2772, %v2742
      %v2774 = vadd.f32 %v2773, %v2743
      %v2775 = vadd.f32 %v2774, %v2744
      %v2776 = vadd.f32 %v2775, %v2745
      %v2777 = vadd.f32 %v2776, %v2746
      %v2778 = vadd.f32 %v2777, %v2747
      %v2779 = vadd.f32 %v2778, %v2748
      %v2780 = vadd.f32 %v2779, %v2749
      %v2781 = vadd.f32 %v2780, %v2750
      %v2782 = vadd.f32 %v2781, %v2751
      %v2783 = vadd.f32 %v2782, %v2752
      %v2784 = vadd.f32 %v2783, %v2753
      %v2785 = vadd.f32 %v2784, %v2754
      %v2786 = vadd.f32 %v2785, %v2755
      %v2787 = vadd.f32 %v2786, %v2756
      %v2788 = vrot.slane %v2787, 4
      %v2789 = vadd.f32 %v2787, %v2788
      %v2790 = vrot.slane %v2789, 2
      %v2791 = vadd.f32 %v2789, %v2790
      %v2792 = vrot.slane %v2791, 1
      %v2793 = vadd.f32 %v2791, %v2792
      %2794 = vst [vmem:[%s295] sm:$0x1] %v2793
      %p2795 = scmp.lt.s32.totalorder %s19, 1
      %s2796 = scalar_select %p2795, %s19, 1
      %s2797 = smul.addr %s2796, 32
      %s2798 = smul.addr %s2797, 8
      %s2799 = scalar_lea.vmem %s5, %s2798
      %p2800 = scmp.lt.s32.totalorder %s19, 1
      %s2801 = scalar_select %p2800, %s19, 1
      %s2802 = scalar_lea.vmem %s6, %s2801
      %p2803 = scmp.lt.s32.totalorder %s19, 1
      %s2804 = scalar_select %p2803, %s19, 1
      %s2805 = scalar_lea.vmem %s7, %s2804
      // Predicated region
      $region41: #{double_conv_forward.4} parent=39 // pred_check
        %p2806 = pneg %p147
      $region42: #{double_conv_forward.4} parent=39 // pred_check_branch
        %2808 = sbr.rel (%p2806) target = $region44
      $region43: #{double_conv_forward.4} parent=39 // pred_region
        _
      $region44: #{double_conv_forward.4} parent=39 // pred_fallthru
        _
      // Predicated region
      $region45: #{double_conv_forward.4} parent=39 // pred_check
        %p2809 = pneg %p173
      $region46: #{double_conv_forward.4} parent=39 // pred_check_branch
        %2811 = sbr.rel (%p2809) target = $region48
      $region47: #{double_conv_forward.4} parent=39 // pred_region
        _
      $region48: #{double_conv_forward.4} parent=39 // pred_fallthru
        _
      // Predicated region
      $region49: #{double_conv_forward.4} parent=39 // pred_check
        %p2812 = pneg %p199
      $region50: #{double_conv_forward.4} parent=39 // pred_check_branch
        %2814 = sbr.rel (%p2812) target = $region52
      $region51: #{double_conv_forward.4} parent=39 // pred_region
        _
      $region52: #{double_conv_forward.4} parent=39 // pred_fallthru
        _
    $region40: #{double_conv_forward.4} parent=5 // pred_fallthru
      _
    %p2815 = scmp.le.s32.totalorder 2, %s14
    // Predicated region
    $region53: #{double_conv_forward.4} parent=5 // pred_check
      %p2816 = pneg %p2815
    $region54: #{double_conv_forward.4} parent=5 // pred_check_branch
      %2818 = sbr.rel (%p2816) target = $region56
    $region55: #{double_conv_forward.4} parent=5 // pred_region
      %s2819 = ssub.s32 %s14, 2
      // Predicated region
      $region57: #{double_conv_forward.4} parent=55 // pred_check
        %p2820 = pneg %p153
      $region58: #{double_conv_forward.4} parent=55 // pred_check_branch
        %2822 = sbr.rel (%p2820) target = $region60
      $region59: #{double_conv_forward.4} parent=55 // pred_region
        %p2823 = scmp.lt.s32.totalorder %s20, 1
        %s2824 = scalar_select %p2823, %s20, 1
        %s2825 = smul.addr %s2824, 32
        %s2826 = smul.addr %s2825, 8
        %s2827 = scalar_lea.vmem %s5, %s2826
      $region60: #{double_conv_forward.4} parent=55 // pred_fallthru
        _
      // Predicated region
      $region61: #{double_conv_forward.4} parent=55 // pred_check
        %p2828 = pneg %p179
      $region62: #{double_conv_forward.4} parent=55 // pred_check_branch
        %2830 = sbr.rel (%p2828) target = $region64
      $region63: #{double_conv_forward.4} parent=55 // pred_region
        %p2831 = scmp.lt.s32.totalorder %s20, 1
        %s2832 = scalar_select %p2831, %s20, 1
        %s2833 = scalar_lea.vmem %s6, %s2832
      $region64: #{double_conv_forward.4} parent=55 // pred_fallthru
        _
      // Predicated region
      $region65: #{double_conv_forward.4} parent=55 // pred_check
        %p2834 = pneg %p205
      $region66: #{double_conv_forward.4} parent=55 // pred_check_branch
        %2836 = sbr.rel (%p2834) target = $region68
      $region67: #{double_conv_forward.4} parent=55 // pred_region
        %p2837 = scmp.lt.s32.totalorder %s20, 1
        %s2838 = scalar_select %p2837, %s20, 1
        %s2839 = scalar_lea.vmem %s7, %s2838
      $region68: #{double_conv_forward.4} parent=55 // pred_fallthru
        _
    $region56: #{double_conv_forward.4} parent=5 // pred_fallthru
      _
  $region6: #{double_conv_forward.4} parent=0 // loop_footer
    %s18 = sadd.s32 1, %s14
  $region7: #{double_conv_forward.4} parent=0 // loop_footer_branch
    %13 = sbr.rel target = $region3
  $region8: #{double_conv_forward.4} parent=0 // loop_exit
    _

</llo_original>
